<compile_context>
chip_gen: v5e
topology: v5e:2x2
jax: 0.10.0
libtpu: 0.0.40
codegen_flags: <defaults>
</compile_context>

<pallas_src>
import functools

import jax
import jax.numpy as jnp
from jax.experimental import pallas as pl
from jax.experimental.pallas import tpu as pltpu


# ---------------------------------------------------------------------------
# In-kernel helpers
# ---------------------------------------------------------------------------
def _upsample2x(y, H, W, C):
    """Nearest-neighbour x2 upsample of a rows-form activation.

    y: (H*W, C), rows in (h, w) raster order  ->  (2H, 2W, C).
    Uses only sublane broadcasts and leading-dim merge/split reshapes (the minor/lane
    dimension is never reshaped), which lower robustly in Mosaic.
    """
    yw = jnp.broadcast_to(y[:, None, :], (H * W, 2, C))        # rows -> (h, w, b)
    yw = yw.reshape(2 * H * W, C)
    yw = yw.reshape(H, 2 * W, C)                                # (h, 2w+b, c)
    up = jnp.broadcast_to(yw[:, None, :, :], (H, 2, 2 * W, C))  # (h, a, 2w+b, c)
    return up.reshape(2 * H, 2 * W, C)                          # (2h+a, 2w+b, c)


def _make_decoder_kernel(num_layers, sched, skip_channels):
    """sched[l] = (H, W, Cin, Cout) of conv layer l; skip_channels[l] = channels of the
    encoder skip concatenated AFTER layer l."""

    def kernel(*refs):
        L = num_layers
        x_ref = refs[0]
        w_refs = refs[1:1 + L]           # (9*Cin, Cout) bf16 im2col weights
        b_refs = refs[1 + L:1 + 2 * L]   # (1, Cout) f32 biases
        s_refs = refs[1 + 2 * L:1 + 3 * L]
        out_ref = refs[1 + 3 * L]
        pad_refs = refs[2 + 3 * L:2 + 4 * L]

        def zero_halo(pad, H, W, C):
            # Zero only the 1-pixel halo border strips; the interior is fully overwritten
            # each layer, so no full (H+2)x(W+2)xC zero pass (store-slot bound on v5e).
            zrow = jnp.zeros((1, W + 2, C), pad.dtype)
            zcol = jnp.zeros((H + 2, 1, C), pad.dtype)
            pad[0:1, :, :] = zrow
            pad[H + 1:H + 2, :, :] = zrow
            pad[:, 0:1, :] = zcol
            pad[:, W + 1:W + 2, :] = zcol

        # Stage the decoder input into the first halo-padded VMEM buffer.
        H0, W0, C0, _ = sched[0]
        zero_halo(pad_refs[0], H0, W0, C0)
        pad_refs[0][1:1 + H0, 1:1 + W0, :] = x_ref[0]

        for l in range(L):
            H, W, Cin, Cout = sched[l]
            pad = pad_refs[l]

            # im2col 3x3 conv (pad=1): build ONE (H*W, 9*Cin) bf16 patch (concat of the 9
            # shifted views along the contraction dim) and do ONE MXU matmul, f32 accumulate.
            taps = []
            for dh in range(3):
                for dw in range(3):
                    taps.append(
                        pad[dh:dh + H, dw:dw + W, :]
                        .reshape(H * W, Cin)
                        .astype(jnp.bfloat16))
            patch = jnp.concatenate(taps, axis=-1)                       # (H*W, 9*Cin) bf16
            acc = jnp.dot(patch, w_refs[l][...],
                          preferred_element_type=jnp.float32)           # (H*W, Cout) f32
            y = jnp.maximum(acc + b_refs[l][...], 0.0)                   # bias + ReLU

            # Nearest upsample x2 in VMEM (Dropout is identity at inference).
            up = _upsample2x(y, H, W, Cout)                              # (2H, 2W, Cout) f32
            Hn, Wn, Cs = 2 * H, 2 * W, skip_channels[l]

            if l + 1 < L:
                # concat([skip, up], channel) built in-register and written with a SINGLE
                # interior store into the next layer's halo-padded VMEM buffer.
                nxt = pad_refs[l + 1]
                Hn1, Wn1, Cn1, _ = sched[l + 1]
                zero_halo(nxt, Hn1, Wn1, Cn1)
                nxt[1:1 + Hn, 1:1 + Wn, :] = jnp.concatenate(
                    [s_refs[l][0], up], axis=-1)
            else:
                # Final concat([skip, up], channel): single full-block store to the output.
                out_ref[0, :, :, :] = jnp.concatenate([s_refs[l][0], up], axis=-1)

    return kernel


# ---------------------------------------------------------------------------
# Wrapper: whole UnetDecoder forward in ONE pallas_call
# ---------------------------------------------------------------------------
def unet_decoder_forward(x, enc_outputs, former_params, latter_params, cut_offs):
    """x: (B, H, W, C) f32 NHWC.  Returns (B, H_out, W_out, C_out) f32."""
    params = list(former_params) + list(latter_params)
    L = len(params)
    assert L >= 1
    skips = ([enc_outputs[-i - 1] for i in range(len(former_params))] +
             [enc_outputs[cut_offs - j - 1] for j in range(len(latter_params))])

    B, h, w, c = x.shape
    sched, skip_cs = [], []
    for l in range(L):
        w_l, b_l = params[l]
        kh, kw, cin, cout = w_l.shape
        assert (kh, kw) == (3, 3) and cin == c and b_l.shape == (cout,)
        sched.append((h, w, cin, cout))
        h, w = 2 * h, 2 * w                          # conv keeps spatial, upsample doubles it
        sk = skips[l]
        assert sk.shape[0] == B and sk.shape[1] == h and sk.shape[2] == w
        skip_cs.append(sk.shape[3])
        c = sk.shape[3] + cout                       # channel concat [skip, y]
    H_out, W_out, C_out = h, w, c

    kernel = _make_decoder_kernel(L, tuple(sched), tuple(skip_cs))

    # Pre-reshape weights to im2col form (9*Cin, Cout) and cast to bf16 (MXU-native).
    # Row order (dh*3 + dw)*Cin + cin matches the in-kernel patch concat order.
    w_mats = [wl.reshape(9 * wl.shape[2], wl.shape[3]).astype(jnp.bfloat16)
              for wl, _ in params]
    b_rows = [bl.reshape(1, -1) for _, bl in params]

    in_specs = [pl.BlockSpec((1,) + x.shape[1:], lambda n: (n, 0, 0, 0))]
    in_specs += [pl.BlockSpec(wm.shape, lambda n: (0, 0)) for wm in w_mats]
    in_specs += [pl.BlockSpec(br.shape, lambda n: (0, 0)) for br in b_rows]
    in_specs += [pl.BlockSpec((1,) + sk.shape[1:], lambda n: (n, 0, 0, 0)) for sk in skips]

    # One halo-padded f32 VMEM buffer per layer (halo + concat staging stay on-chip).
    scratch = [pltpu.VMEM((hh + 2, ww + 2, cc), jnp.float32) for hh, ww, cc, _ in sched]

    return pl.pallas_call(
        kernel,
        out_shape=jax.ShapeDtypeStruct((B, H_out, W_out, C_out), jnp.float32),
        grid_spec=pltpu.PrefetchScalarGridSpec(
            num_scalar_prefetch=0,
            grid=(B,),
            in_specs=in_specs,
            out_specs=pl.BlockSpec((1, H_out, W_out, C_out), lambda n: (n, 0, 0, 0)),
            scratch_shapes=scratch,
        ),
        compiler_params=pltpu.CompilerParams(
            dimension_semantics=("parallel",),        # keep both v7x TensorCores busy
            vmem_limit_bytes=32 * 1024 * 1024,
        ),
    )(x, *w_mats, *b_rows, *skips)


# ---------------------------------------------------------------------------
# Pure-JAX references (same assumed ConvBlock semantics) for correctness gates
# ---------------------------------------------------------------------------
def _conv_block_ref(x, w, b, mxu_bf16):
    if mxu_bf16:
        # Mirrors the kernel's MXU precision policy: bf16 operands, f32 accumulation.
        y = jax.lax.conv_general_dilated(
            x.astype(jnp.bfloat16), w.astype(jnp.bfloat16),
            window_strides=(1, 1), padding=((1, 1), (1, 1)),
            dimension_numbers=("NHWC", "HWIO", "NHWC"),
            preferred_element_type=jnp.float32)
    else:
        y = jax.lax.conv_general_dilated(
            x, w, window_strides=(1, 1), padding=((1, 1), (1, 1)),
            dimension_numbers=("NHWC", "HWIO", "NHWC"),
            precision=jax.lax.Precision.HIGHEST)
    y = jnp.maximum(y + b[None, None, None, :], 0.0)
    return jnp.repeat(jnp.repeat(y, 2, axis=1), 2, axis=2)


def unet_decoder_reference(x, enc_outputs, former_params, latter_params, cut_offs,
                           mxu_bf16=False):
    for i, (w, b) in enumerate(former_params):
        x = _conv_block_ref(x, w, b, mxu_bf16)
        x = jnp.concatenate([enc_outputs[-i - 1], x], axis=-1)
    for j, (w, b) in enumerate(latter_params):
        x = _conv_block_ref(x, w, b, mxu_bf16)
        x = jnp.concatenate([enc_outputs[cut_offs - j - 1], x], axis=-1)
    return x


def init_params(key, basic_c, cut_offs, layers_num):
    former, latter = [], []
    k = key
    for i in range(layers_num - cut_offs):
        cin = basic_c * 2 ** cut_offs if i == 0 else basic_c * 2 ** (cut_offs + 1)
        cout = basic_c * 2 ** cut_offs
        k, kw, kb = jax.random.split(k, 3)
        former.append((0.1 * jax.random.normal(kw, (3, 3, cin, cout), jnp.float32),
                       0.1 * jax.random.normal(kb, (cout,), jnp.float32)))
    for j in range(cut_offs):
        cin = basic_c * 2 ** (cut_offs - j + 1)
        cout = basic_c * 2 ** (cut_offs - j - 1)
        k, kw, kb = jax.random.split(k, 3)
        latter.append((0.1 * jax.random.normal(kw, (3, 3, cin, cout), jnp.float32),
                       0.1 * jax.random.normal(kb, (cout,), jnp.float32)))
    return former, latter


if __name__ == "__main__":
    basic_c, cut_offs, layers_num = 4, 2, 4
    B = 2
    key = jax.random.PRNGKey(0)
    k0, k1, k2, k3, k4, kp = jax.random.split(key, 6)

    # Decoder input: (B, 2, 2, basic_c * 2**cut_offs) NHWC.
    x = jax.random.normal(k0, (B, 2, 2, basic_c * 2 ** cut_offs), jnp.float32)

    # Encoder skip outputs (NHWC), ordered shallow -> deep.
    enc_outputs = [
        jax.random.normal(k1, (B, 32, 32, basic_c), jnp.float32),
        jax.random.normal(k2, (B, 16, 16, basic_c * 2), jnp.float32),
        jax.random.normal(k3, (B, 8, 8, basic_c * 4), jnp.float32),
        jax.random.normal(k4, (B, 4, 4, basic_c * 4), jnp.float32),
    ]

    former_params, latter_params = init_params(kp, basic_c, cut_offs, layers_num)

    fwd = jax.jit(functools.partial(unet_decoder_forward, cut_offs=cut_offs))
    out = jax.block_until_ready(fwd(x, enc_outputs, former_params, latter_params))

    expected_shape = (B, 32, 32, 2 * basic_c)  # (2, 32, 32, 8)
    assert out.shape == expected_shape, (out.shape, expected_shape)

    # Tight gate: against a reference with the same MXU precision policy (bf16 operands,
    # f32 accumulation).  Tolerance 1e-2 absorbs rare bf16 rounding-boundary divergences
    # from f32 accumulation-order differences; any structural bug is O(1).
    ref_bf16 = unet_decoder_reference(x, enc_outputs, former_params, latter_params,
                                      cut_offs, mxu_bf16=True)
    err_bf16 = float(jnp.max(jnp.abs(out - ref_bf16)))
    assert err_bf16 < 1e-2, f"kernel mismatch vs bf16-MXU reference, max_err={err_bf16}"

    # Loose gate: against the full-f32 HIGHEST-precision reference (bounds the bf16-operand
    # precision loss of the MXU matmuls).
    ref_f32 = unet_decoder_reference(x, enc_outputs, former_params, latter_params,
                                     cut_offs, mxu_bf16=False)
    rel_f32 = float(jnp.max(jnp.abs(out - ref_f32) / (1.0 + jnp.abs(ref_f32))))
    assert rel_f32 < 5e-2, f"kernel drift vs f32 reference too large, rel_err={rel_f32}"

    print("KERNEL_OK")
</pallas_src>

<mosaic_0001>
module attributes {stable_mosaic.version = 11 : i64} {
  func.func @kernel(%arg0: i32, %arg1: memref<1x2x2x16xf32, #tpu.memory_space<vmem>>, %arg2: memref<144x16xbf16, #tpu.memory_space<vmem>>, %arg3: memref<288x16xbf16, #tpu.memory_space<vmem>>, %arg4: memref<288x8xbf16, #tpu.memory_space<vmem>>, %arg5: memref<144x4xbf16, #tpu.memory_space<vmem>>, %arg6: memref<1x16xf32, #tpu.memory_space<vmem>>, %arg7: memref<1x16xf32, #tpu.memory_space<vmem>>, %arg8: memref<1x8xf32, #tpu.memory_space<vmem>>, %arg9: memref<1x4xf32, #tpu.memory_space<vmem>>, %arg10: memref<1x4x4x16xf32, #tpu.memory_space<vmem>>, %arg11: memref<1x8x8x16xf32, #tpu.memory_space<vmem>>, %arg12: memref<1x16x16x8xf32, #tpu.memory_space<vmem>>, %arg13: memref<1x32x32x4xf32, #tpu.memory_space<vmem>>, %arg14: memref<1x32x32x8xf32, #tpu.memory_space<vmem>>, %arg15: memref<4x4x16xf32, #tpu.memory_space<vmem>>, %arg16: memref<6x6x32xf32, #tpu.memory_space<vmem>>, %arg17: memref<10x10x32xf32, #tpu.memory_space<vmem>>, %arg18: memref<18x18x16xf32, #tpu.memory_space<vmem>>) attributes {dimension_semantics = [#tpu.dimension_semantics<parallel>], iteration_bounds = array<i64: 2>, scalar_prefetch = 0 : i64, scratch_operands = 4 : i64, tpu.core_type = #tpu.core_type<tc>, window_params = [{transform_indices = @transform_0, window_bounds = array<i64: 1, 2, 2, 16>}, {pipeline_mode = #tpu.pipeline_mode<synchronous>, transform_indices = @transform_1, window_bounds = array<i64: 144, 16>}, {pipeline_mode = #tpu.pipeline_mode<synchronous>, transform_indices = @transform_2, window_bounds = array<i64: 288, 16>}, {pipeline_mode = #tpu.pipeline_mode<synchronous>, transform_indices = @transform_3, window_bounds = array<i64: 288, 8>}, {pipeline_mode = #tpu.pipeline_mode<synchronous>, transform_indices = @transform_4, window_bounds = array<i64: 144, 4>}, {pipeline_mode = #tpu.pipeline_mode<synchronous>, transform_indices = @transform_5, window_bounds = array<i64: 1, 16>}, {pipeline_mode = #tpu.pipeline_mode<synchronous>, transform_indices = @transform_6, window_bounds = array<i64: 1, 16>}, {pipeline_mode = #tpu.pipeline_mode<synchronous>, transform_indices = @transform_7, window_bounds = array<i64: 1, 8>}, {pipeline_mode = #tpu.pipeline_mode<synchronous>, transform_indices = @transform_8, window_bounds = array<i64: 1, 4>}, {transform_indices = @transform_9, window_bounds = array<i64: 1, 4, 4, 16>}, {transform_indices = @transform_10, window_bounds = array<i64: 1, 8, 8, 16>}, {transform_indices = @transform_11, window_bounds = array<i64: 1, 16, 16, 8>}, {transform_indices = @transform_12, window_bounds = array<i64: 1, 32, 32, 4>}, {transform_indices = @transform_13, window_bounds = array<i64: 1, 32, 32, 8>}]} {
    %cst = arith.constant 0.000000e+00 : f32
    %0 = vector.broadcast %cst : f32 to vector<1x4x16xf32>
    %cst_0 = arith.constant 0.000000e+00 : f32
    %1 = vector.broadcast %cst_0 : f32 to vector<4x1x16xf32>
    %c0 = arith.constant 0 : index
    %c0_1 = arith.constant 0 : index
    %c0_2 = arith.constant 0 : index
    %2 = vector.load %arg15[%c0, %c0_1, %c0_2] : memref<4x4x16xf32, #tpu.memory_space<vmem>>, vector<1x4x16xf32>
    tpu.vector_store %arg15[%c0, %c0_1, %c0_2], %0 {strides = array<i32>} : memref<4x4x16xf32, #tpu.memory_space<vmem>>, vector<1x4x16xf32>,
    %c3 = arith.constant 3 : index
    %c0_3 = arith.constant 0 : index
    %c0_4 = arith.constant 0 : index
    %3 = vector.load %arg15[%c3, %c0_3, %c0_4] : memref<4x4x16xf32, #tpu.memory_space<vmem>>, vector<1x4x16xf32>
    tpu.vector_store %arg15[%c3, %c0_3, %c0_4], %0 {strides = array<i32>} : memref<4x4x16xf32, #tpu.memory_space<vmem>>, vector<1x4x16xf32>,
    %c0_5 = arith.constant 0 : index
    %c0_6 = arith.constant 0 : index
    %c0_7 = arith.constant 0 : index
    %4 = vector.load %arg15[%c0_5, %c0_6, %c0_7] : memref<4x4x16xf32, #tpu.memory_space<vmem>>, vector<4x1x16xf32>
    tpu.vector_store %arg15[%c0_5, %c0_6, %c0_7], %1 {strides = array<i32>} : memref<4x4x16xf32, #tpu.memory_space<vmem>>, vector<4x1x16xf32>,
    %c0_8 = arith.constant 0 : index
    %c3_9 = arith.constant 3 : index
    %c0_10 = arith.constant 0 : index
    %5 = vector.load %arg15[%c0_8, %c3_9, %c0_10] : memref<4x4x16xf32, #tpu.memory_space<vmem>>, vector<4x1x16xf32>
    tpu.vector_store %arg15[%c0_8, %c3_9, %c0_10], %1 {strides = array<i32>} : memref<4x4x16xf32, #tpu.memory_space<vmem>>, vector<4x1x16xf32>,
    %c0_11 = arith.constant 0 : index
    %c0_12 = arith.constant 0 : index
    %c0_13 = arith.constant 0 : index
    %c0_14 = arith.constant 0 : index
    %6 = vector.load %arg1[%c0_11, %c0_12, %c0_13, %c0_14] : memref<1x2x2x16xf32, #tpu.memory_space<vmem>>, vector<1x2x2x16xf32>
    %7 = vector.shape_cast %6 : vector<1x2x2x16xf32> to vector<2x2x16xf32>
    %c1 = arith.constant 1 : index
    %c1_15 = arith.constant 1 : index
    %c0_16 = arith.constant 0 : index
    %8 = vector.load %arg15[%c1, %c1_15, %c0_16] : memref<4x4x16xf32, #tpu.memory_space<vmem>>, vector<2x2x16xf32>
    tpu.vector_store %arg15[%c1, %c1_15, %c0_16], %7 {strides = array<i32>} : memref<4x4x16xf32, #tpu.memory_space<vmem>>, vector<2x2x16xf32>,
    %c0_17 = arith.constant 0 : index
    %c0_18 = arith.constant 0 : index
    %c0_19 = arith.constant 0 : index
    %9 = vector.load %arg15[%c0_17, %c0_18, %c0_19] : memref<4x4x16xf32, #tpu.memory_space<vmem>>, vector<2x2x16xf32>
    %10 = vector.shape_cast %9 : vector<2x2x16xf32> to vector<4x16xf32>
    %11 = arith.truncf %10 : vector<4x16xf32> to vector<4x16xbf16>
    %c0_20 = arith.constant 0 : index
    %c1_21 = arith.constant 1 : index
    %c0_22 = arith.constant 0 : index
    %12 = vector.load %arg15[%c0_20, %c1_21, %c0_22] : memref<4x4x16xf32, #tpu.memory_space<vmem>>, vector<2x2x16xf32>
    %13 = vector.shape_cast %12 : vector<2x2x16xf32> to vector<4x16xf32>
    %14 = arith.truncf %13 : vector<4x16xf32> to vector<4x16xbf16>
    %c0_23 = arith.constant 0 : index
    %c2 = arith.constant 2 : index
    %c0_24 = arith.constant 0 : index
    %15 = vector.load %arg15[%c0_23, %c2, %c0_24] : memref<4x4x16xf32, #tpu.memory_space<vmem>>, vector<2x2x16xf32>
    %16 = vector.shape_cast %15 : vector<2x2x16xf32> to vector<4x16xf32>
    %17 = arith.truncf %16 : vector<4x16xf32> to vector<4x16xbf16>
    %c1_25 = arith.constant 1 : index
    %c0_26 = arith.constant 0 : index
    %c0_27 = arith.constant 0 : index
    %18 = vector.load %arg15[%c1_25, %c0_26, %c0_27] : memref<4x4x16xf32, #tpu.memory_space<vmem>>, vector<2x2x16xf32>
    %19 = vector.shape_cast %18 : vector<2x2x16xf32> to vector<4x16xf32>
    %20 = arith.truncf %19 : vector<4x16xf32> to vector<4x16xbf16>
    %c1_28 = arith.constant 1 : index
    %c1_29 = arith.constant 1 : index
    %c0_30 = arith.constant 0 : index
    %21 = vector.load %arg15[%c1_28, %c1_29, %c0_30] : memref<4x4x16xf32, #tpu.memory_space<vmem>>, vector<2x2x16xf32>
    %22 = vector.shape_cast %21 : vector<2x2x16xf32> to vector<4x16xf32>
    %23 = arith.truncf %22 : vector<4x16xf32> to vector<4x16xbf16>
    %c1_31 = arith.constant 1 : index
    %c2_32 = arith.constant 2 : index
    %c0_33 = arith.constant 0 : index
    %24 = vector.load %arg15[%c1_31, %c2_32, %c0_33] : memref<4x4x16xf32, #tpu.memory_space<vmem>>, vector<2x2x16xf32>
    %25 = vector.shape_cast %24 : vector<2x2x16xf32> to vector<4x16xf32>
    %26 = arith.truncf %25 : vector<4x16xf32> to vector<4x16xbf16>
    %c2_34 = arith.constant 2 : index
    %c0_35 = arith.constant 0 : index
    %c0_36 = arith.constant 0 : index
    %27 = vector.load %arg15[%c2_34, %c0_35, %c0_36] : memref<4x4x16xf32, #tpu.memory_space<vmem>>, vector<2x2x16xf32>
    %28 = vector.shape_cast %27 : vector<2x2x16xf32> to vector<4x16xf32>
    %29 = arith.truncf %28 : vector<4x16xf32> to vector<4x16xbf16>
    %c2_37 = arith.constant 2 : index
    %c1_38 = arith.constant 1 : index
    %c0_39 = arith.constant 0 : index
    %30 = vector.load %arg15[%c2_37, %c1_38, %c0_39] : memref<4x4x16xf32, #tpu.memory_space<vmem>>, vector<2x2x16xf32>
    %31 = vector.shape_cast %30 : vector<2x2x16xf32> to vector<4x16xf32>
    %32 = arith.truncf %31 : vector<4x16xf32> to vector<4x16xbf16>
    %c2_40 = arith.constant 2 : index
    %c2_41 = arith.constant 2 : index
    %c0_42 = arith.constant 0 : index
    %33 = vector.load %arg15[%c2_40, %c2_41, %c0_42] : memref<4x4x16xf32, #tpu.memory_space<vmem>>, vector<2x2x16xf32>
    %34 = vector.shape_cast %33 : vector<2x2x16xf32> to vector<4x16xf32>
    %35 = arith.truncf %34 : vector<4x16xf32> to vector<4x16xbf16>
    %36 = tpu.concatenate %11, %14, %17, %20, %23, %26, %29, %32, %35 in 1 : vector<4x16xbf16>, vector<4x16xbf16>, vector<4x16xbf16>, vector<4x16xbf16>, vector<4x16xbf16>, vector<4x16xbf16>, vector<4x16xbf16>, vector<4x16xbf16>, vector<4x16xbf16> -> vector<4x144xbf16>
    %c0_43 = arith.constant 0 : index
    %c0_44 = arith.constant 0 : index
    %37 = vector.load %arg2[%c0_43, %c0_44] : memref<144x16xbf16, #tpu.memory_space<vmem>>, vector<144x16xbf16>
    %cst_45 = arith.constant dense<0.000000e+00> : vector<4x16xf32>
    %38 = tpu.matmul %36, %37, %cst_45 {dimension_numbers = #tpu.dot_dimension_numbers<[1], [0], [0], [1], [0, 0, 1, 1], [], []>} : vector<4x144xbf16>, vector<144x16xbf16>, vector<4x16xf32> -> vector<4x16xf32>
    %c0_46 = arith.constant 0 : index
    %c0_47 = arith.constant 0 : index
    %39 = vector.load %arg6[%c0_46, %c0_47] : memref<1x16xf32, #tpu.memory_space<vmem>>, vector<1x16xf32>
    %40 = vector.broadcast %39 : vector<1x16xf32> to vector<4x16xf32>
    %41 = arith.addf %38, %40 : vector<4x16xf32>
    %cst_48 = arith.constant 0.000000e+00 : f32
    %42 = vector.broadcast %cst_48 : f32 to vector<4x16xf32>
    %43 = arith.maximumf %41, %42 : vector<4x16xf32>
    %44 = vector.shape_cast %43 : vector<4x16xf32> to vector<4x1x16xf32>
    %45 = vector.shape_cast %44 : vector<4x1x16xf32> to vector<4x1x16xf32>
    %46 = vector.broadcast %45 : vector<4x1x16xf32> to vector<4x2x16xf32>
    %47 = vector.shape_cast %46 : vector<4x2x16xf32> to vector<8x16xf32>
    %48 = vector.shape_cast %47 : vector<8x16xf32> to vector<2x4x16xf32>
    %49 = vector.shape_cast %48 : vector<2x4x16xf32> to vector<2x1x4x16xf32>
    %50 = vector.shape_cast %49 : vector<2x1x4x16xf32> to vector<2x1x4x16xf32>
    %51 = vector.broadcast %50 : vector<2x1x4x16xf32> to vector<2x2x4x16xf32>
    %52 = vector.shape_cast %51 : vector<2x2x4x16xf32> to vector<4x4x16xf32>
    %cst_49 = arith.constant 0.000000e+00 : f32
    %53 = vector.broadcast %cst_49 : f32 to vector<1x6x32xf32>
    %cst_50 = arith.constant 0.000000e+00 : f32
    %54 = vector.broadcast %cst_50 : f32 to vector<6x1x32xf32>
    %c0_51 = arith.constant 0 : index
    %c0_52 = arith.constant 0 : index
    %c0_53 = arith.constant 0 : index
    %55 = vector.load %arg16[%c0_51, %c0_52, %c0_53] : memref<6x6x32xf32, #tpu.memory_space<vmem>>, vector<1x6x32xf32>
    tpu.vector_store %arg16[%c0_51, %c0_52, %c0_53], %53 {strides = array<i32>} : memref<6x6x32xf32, #tpu.memory_space<vmem>>, vector<1x6x32xf32>,
    %c5 = arith.constant 5 : index
    %c0_54 = arith.constant 0 : index
    %c0_55 = arith.constant 0 : index
    %56 = vector.load %arg16[%c5, %c0_54, %c0_55] : memref<6x6x32xf32, #tpu.memory_space<vmem>>, vector<1x6x32xf32>
    tpu.vector_store %arg16[%c5, %c0_54, %c0_55], %53 {strides = array<i32>} : memref<6x6x32xf32, #tpu.memory_space<vmem>>, vector<1x6x32xf32>,
    %c0_56 = arith.constant 0 : index
    %c0_57 = arith.constant 0 : index
    %c0_58 = arith.constant 0 : index
    %57 = vector.load %arg16[%c0_56, %c0_57, %c0_58] : memref<6x6x32xf32, #tpu.memory_space<vmem>>, vector<6x1x32xf32>
    tpu.vector_store %arg16[%c0_56, %c0_57, %c0_58], %54 {strides = array<i32>} : memref<6x6x32xf32, #tpu.memory_space<vmem>>, vector<6x1x32xf32>,
    %c0_59 = arith.constant 0 : index
    %c5_60 = arith.constant 5 : index
    %c0_61 = arith.constant 0 : index
    %58 = vector.load %arg16[%c0_59, %c5_60, %c0_61] : memref<6x6x32xf32, #tpu.memory_space<vmem>>, vector<6x1x32xf32>
    tpu.vector_store %arg16[%c0_59, %c5_60, %c0_61], %54 {strides = array<i32>} : memref<6x6x32xf32, #tpu.memory_space<vmem>>, vector<6x1x32xf32>,
    %c0_62 = arith.constant 0 : index
    %c0_63 = arith.constant 0 : index
    %c0_64 = arith.constant 0 : index
    %c0_65 = arith.constant 0 : index
    %59 = vector.load %arg10[%c0_62, %c0_63, %c0_64, %c0_65] : memref<1x4x4x16xf32, #tpu.memory_space<vmem>>, vector<1x4x4x16xf32>
    %60 = vector.shape_cast %59 : vector<1x4x4x16xf32> to vector<4x4x16xf32>
    %61 = tpu.concatenate %60, %52 in 2 : vector<4x4x16xf32>, vector<4x4x16xf32> -> vector<4x4x32xf32>
    %c1_66 = arith.constant 1 : index
    %c1_67 = arith.constant 1 : index
    %c0_68 = arith.constant 0 : index
    %62 = vector.load %arg16[%c1_66, %c1_67, %c0_68] : memref<6x6x32xf32, #tpu.memory_space<vmem>>, vector<4x4x32xf32>
    tpu.vector_store %arg16[%c1_66, %c1_67, %c0_68], %61 {strides = array<i32>} : memref<6x6x32xf32, #tpu.memory_space<vmem>>, vector<4x4x32xf32>,
    %c0_69 = arith.constant 0 : index
    %c0_70 = arith.constant 0 : index
    %c0_71 = arith.constant 0 : index
    %63 = vector.load %arg16[%c0_69, %c0_70, %c0_71] : memref<6x6x32xf32, #tpu.memory_space<vmem>>, vector<4x4x32xf32>
    %64 = vector.shape_cast %63 : vector<4x4x32xf32> to vector<16x32xf32>
    %65 = arith.truncf %64 : vector<16x32xf32> to vector<16x32xbf16>
    %c0_72 = arith.constant 0 : index
    %c1_73 = arith.constant 1 : index
    %c0_74 = arith.constant 0 : index
    %66 = vector.load %arg16[%c0_72, %c1_73, %c0_74] : memref<6x6x32xf32, #tpu.memory_space<vmem>>, vector<4x4x32xf32>
    %67 = vector.shape_cast %66 : vector<4x4x32xf32> to vector<16x32xf32>
    %68 = arith.truncf %67 : vector<16x32xf32> to vector<16x32xbf16>
    %c0_75 = arith.constant 0 : index
    %c2_76 = arith.constant 2 : index
    %c0_77 = arith.constant 0 : index
    %69 = vector.load %arg16[%c0_75, %c2_76, %c0_77] : memref<6x6x32xf32, #tpu.memory_space<vmem>>, vector<4x4x32xf32>
    %70 = vector.shape_cast %69 : vector<4x4x32xf32> to vector<16x32xf32>
    %71 = arith.truncf %70 : vector<16x32xf32> to vector<16x32xbf16>
    %c1_78 = arith.constant 1 : index
    %c0_79 = arith.constant 0 : index
    %c0_80 = arith.constant 0 : index
    %72 = vector.load %arg16[%c1_78, %c0_79, %c0_80] : memref<6x6x32xf32, #tpu.memory_space<vmem>>, vector<4x4x32xf32>
    %73 = vector.shape_cast %72 : vector<4x4x32xf32> to vector<16x32xf32>
    %74 = arith.truncf %73 : vector<16x32xf32> to vector<16x32xbf16>
    %c1_81 = arith.constant 1 : index
    %c1_82 = arith.constant 1 : index
    %c0_83 = arith.constant 0 : index
    %75 = vector.load %arg16[%c1_81, %c1_82, %c0_83] : memref<6x6x32xf32, #tpu.memory_space<vmem>>, vector<4x4x32xf32>
    %76 = vector.shape_cast %75 : vector<4x4x32xf32> to vector<16x32xf32>
    %77 = arith.truncf %76 : vector<16x32xf32> to vector<16x32xbf16>
    %c1_84 = arith.constant 1 : index
    %c2_85 = arith.constant 2 : index
    %c0_86 = arith.constant 0 : index
    %78 = vector.load %arg16[%c1_84, %c2_85, %c0_86] : memref<6x6x32xf32, #tpu.memory_space<vmem>>, vector<4x4x32xf32>
    %79 = vector.shape_cast %78 : vector<4x4x32xf32> to vector<16x32xf32>
    %80 = arith.truncf %79 : vector<16x32xf32> to vector<16x32xbf16>
    %c2_87 = arith.constant 2 : index
    %c0_88 = arith.constant 0 : index
    %c0_89 = arith.constant 0 : index
    %81 = vector.load %arg16[%c2_87, %c0_88, %c0_89] : memref<6x6x32xf32, #tpu.memory_space<vmem>>, vector<4x4x32xf32>
    %82 = vector.shape_cast %81 : vector<4x4x32xf32> to vector<16x32xf32>
    %83 = arith.truncf %82 : vector<16x32xf32> to vector<16x32xbf16>
    %c2_90 = arith.constant 2 : index
    %c1_91 = arith.constant 1 : index
    %c0_92 = arith.constant 0 : index
    %84 = vector.load %arg16[%c2_90, %c1_91, %c0_92] : memref<6x6x32xf32, #tpu.memory_space<vmem>>, vector<4x4x32xf32>
    %85 = vector.shape_cast %84 : vector<4x4x32xf32> to vector<16x32xf32>
    %86 = arith.truncf %85 : vector<16x32xf32> to vector<16x32xbf16>
    %c2_93 = arith.constant 2 : index
    %c2_94 = arith.constant 2 : index
    %c0_95 = arith.constant 0 : index
    %87 = vector.load %arg16[%c2_93, %c2_94, %c0_95] : memref<6x6x32xf32, #tpu.memory_space<vmem>>, vector<4x4x32xf32>
    %88 = vector.shape_cast %87 : vector<4x4x32xf32> to vector<16x32xf32>
    %89 = arith.truncf %88 : vector<16x32xf32> to vector<16x32xbf16>
    %90 = tpu.concatenate %65, %68, %71, %74, %77, %80, %83, %86, %89 in 1 : vector<16x32xbf16>, vector<16x32xbf16>, vector<16x32xbf16>, vector<16x32xbf16>, vector<16x32xbf16>, vector<16x32xbf16>, vector<16x32xbf16>, vector<16x32xbf16>, vector<16x32xbf16> -> vector<16x288xbf16>
    %c0_96 = arith.constant 0 : index
    %c0_97 = arith.constant 0 : index
    %91 = vector.load %arg3[%c0_96, %c0_97] : memref<288x16xbf16, #tpu.memory_space<vmem>>, vector<288x16xbf16>
    %cst_98 = arith.constant dense<0.000000e+00> : vector<16x16xf32>
    %92 = tpu.matmul %90, %91, %cst_98 {dimension_numbers = #tpu.dot_dimension_numbers<[1], [0], [0], [1], [0, 0, 1, 1], [], []>} : vector<16x288xbf16>, vector<288x16xbf16>, vector<16x16xf32> -> vector<16x16xf32>
    %c0_99 = arith.constant 0 : index
    %c0_100 = arith.constant 0 : index
    %93 = vector.load %arg7[%c0_99, %c0_100] : memref<1x16xf32, #tpu.memory_space<vmem>>, vector<1x16xf32>
    %94 = vector.broadcast %93 : vector<1x16xf32> to vector<16x16xf32>
    %95 = arith.addf %92, %94 : vector<16x16xf32>
    %cst_101 = arith.constant 0.000000e+00 : f32
    %96 = vector.broadcast %cst_101 : f32 to vector<16x16xf32>
    %97 = arith.maximumf %95, %96 : vector<16x16xf32>
    %98 = vector.shape_cast %97 : vector<16x16xf32> to vector<16x1x16xf32>
    %99 = vector.shape_cast %98 : vector<16x1x16xf32> to vector<16x1x16xf32>
    %100 = vector.broadcast %99 : vector<16x1x16xf32> to vector<16x2x16xf32>
    %101 = vector.shape_cast %100 : vector<16x2x16xf32> to vector<32x16xf32>
    %102 = vector.shape_cast %101 : vector<32x16xf32> to vector<4x8x16xf32>
    %103 = vector.shape_cast %102 : vector<4x8x16xf32> to vector<4x1x8x16xf32>
    %104 = vector.shape_cast %103 : vector<4x1x8x16xf32> to vector<4x1x8x16xf32>
    %105 = vector.broadcast %104 : vector<4x1x8x16xf32> to vector<4x2x8x16xf32>
    %106 = vector.shape_cast %105 : vector<4x2x8x16xf32> to vector<8x8x16xf32>
    %cst_102 = arith.constant 0.000000e+00 : f32
    %107 = vector.broadcast %cst_102 : f32 to vector<1x10x32xf32>
    %cst_103 = arith.constant 0.000000e+00 : f32
    %108 = vector.broadcast %cst_103 : f32 to vector<10x1x32xf32>
    %c0_104 = arith.constant 0 : index
    %c0_105 = arith.constant 0 : index
    %c0_106 = arith.constant 0 : index
    %109 = vector.load %arg17[%c0_104, %c0_105, %c0_106] : memref<10x10x32xf32, #tpu.memory_space<vmem>>, vector<1x10x32xf32>
    tpu.vector_store %arg17[%c0_104, %c0_105, %c0_106], %107 {strides = array<i32>} : memref<10x10x32xf32, #tpu.memory_space<vmem>>, vector<1x10x32xf32>,
    %c9 = arith.constant 9 : index
    %c0_107 = arith.constant 0 : index
    %c0_108 = arith.constant 0 : index
    %110 = vector.load %arg17[%c9, %c0_107, %c0_108] : memref<10x10x32xf32, #tpu.memory_space<vmem>>, vector<1x10x32xf32>
    tpu.vector_store %arg17[%c9, %c0_107, %c0_108], %107 {strides = array<i32>} : memref<10x10x32xf32, #tpu.memory_space<vmem>>, vector<1x10x32xf32>,
    %c0_109 = arith.constant 0 : index
    %c0_110 = arith.constant 0 : index
    %c0_111 = arith.constant 0 : index
    %111 = vector.load %arg17[%c0_109, %c0_110, %c0_111] : memref<10x10x32xf32, #tpu.memory_space<vmem>>, vector<10x1x32xf32>
    tpu.vector_store %arg17[%c0_109, %c0_110, %c0_111], %108 {strides = array<i32>} : memref<10x10x32xf32, #tpu.memory_space<vmem>>, vector<10x1x32xf32>,
    %c0_112 = arith.constant 0 : index
    %c9_113 = arith.constant 9 : index
    %c0_114 = arith.constant 0 : index
    %112 = vector.load %arg17[%c0_112, %c9_113, %c0_114] : memref<10x10x32xf32, #tpu.memory_space<vmem>>, vector<10x1x32xf32>
    tpu.vector_store %arg17[%c0_112, %c9_113, %c0_114], %108 {strides = array<i32>} : memref<10x10x32xf32, #tpu.memory_space<vmem>>, vector<10x1x32xf32>,
    %c0_115 = arith.constant 0 : index
    %c0_116 = arith.constant 0 : index
    %c0_117 = arith.constant 0 : index
    %c0_118 = arith.constant 0 : index
    %113 = vector.load %arg11[%c0_115, %c0_116, %c0_117, %c0_118] : memref<1x8x8x16xf32, #tpu.memory_space<vmem>>, vector<1x8x8x16xf32>
    %114 = vector.shape_cast %113 : vector<1x8x8x16xf32> to vector<8x8x16xf32>
    %115 = tpu.concatenate %114, %106 in 2 : vector<8x8x16xf32>, vector<8x8x16xf32> -> vector<8x8x32xf32>
    %c1_119 = arith.constant 1 : index
    %c1_120 = arith.constant 1 : index
    %c0_121 = arith.constant 0 : index
    %116 = vector.load %arg17[%c1_119, %c1_120, %c0_121] : memref<10x10x32xf32, #tpu.memory_space<vmem>>, vector<8x8x32xf32>
    tpu.vector_store %arg17[%c1_119, %c1_120, %c0_121], %115 {strides = array<i32>} : memref<10x10x32xf32, #tpu.memory_space<vmem>>, vector<8x8x32xf32>,
    %c0_122 = arith.constant 0 : index
    %c0_123 = arith.constant 0 : index
    %c0_124 = arith.constant 0 : index
    %117 = vector.load %arg17[%c0_122, %c0_123, %c0_124] : memref<10x10x32xf32, #tpu.memory_space<vmem>>, vector<8x8x32xf32>
    %118 = vector.shape_cast %117 : vector<8x8x32xf32> to vector<64x32xf32>
    %119 = arith.truncf %118 : vector<64x32xf32> to vector<64x32xbf16>
    %c0_125 = arith.constant 0 : index
    %c1_126 = arith.constant 1 : index
    %c0_127 = arith.constant 0 : index
    %120 = vector.load %arg17[%c0_125, %c1_126, %c0_127] : memref<10x10x32xf32, #tpu.memory_space<vmem>>, vector<8x8x32xf32>
    %121 = vector.shape_cast %120 : vector<8x8x32xf32> to vector<64x32xf32>
    %122 = arith.truncf %121 : vector<64x32xf32> to vector<64x32xbf16>
    %c0_128 = arith.constant 0 : index
    %c2_129 = arith.constant 2 : index
    %c0_130 = arith.constant 0 : index
    %123 = vector.load %arg17[%c0_128, %c2_129, %c0_130] : memref<10x10x32xf32, #tpu.memory_space<vmem>>, vector<8x8x32xf32>
    %124 = vector.shape_cast %123 : vector<8x8x32xf32> to vector<64x32xf32>
    %125 = arith.truncf %124 : vector<64x32xf32> to vector<64x32xbf16>
    %c1_131 = arith.constant 1 : index
    %c0_132 = arith.constant 0 : index
    %c0_133 = arith.constant 0 : index
    %126 = vector.load %arg17[%c1_131, %c0_132, %c0_133] : memref<10x10x32xf32, #tpu.memory_space<vmem>>, vector<8x8x32xf32>
    %127 = vector.shape_cast %126 : vector<8x8x32xf32> to vector<64x32xf32>
    %128 = arith.truncf %127 : vector<64x32xf32> to vector<64x32xbf16>
    %c1_134 = arith.constant 1 : index
    %c1_135 = arith.constant 1 : index
    %c0_136 = arith.constant 0 : index
    %129 = vector.load %arg17[%c1_134, %c1_135, %c0_136] : memref<10x10x32xf32, #tpu.memory_space<vmem>>, vector<8x8x32xf32>
    %130 = vector.shape_cast %129 : vector<8x8x32xf32> to vector<64x32xf32>
    %131 = arith.truncf %130 : vector<64x32xf32> to vector<64x32xbf16>
    %c1_137 = arith.constant 1 : index
    %c2_138 = arith.constant 2 : index
    %c0_139 = arith.constant 0 : index
    %132 = vector.load %arg17[%c1_137, %c2_138, %c0_139] : memref<10x10x32xf32, #tpu.memory_space<vmem>>, vector<8x8x32xf32>
    %133 = vector.shape_cast %132 : vector<8x8x32xf32> to vector<64x32xf32>
    %134 = arith.truncf %133 : vector<64x32xf32> to vector<64x32xbf16>
    %c2_140 = arith.constant 2 : index
    %c0_141 = arith.constant 0 : index
    %c0_142 = arith.constant 0 : index
    %135 = vector.load %arg17[%c2_140, %c0_141, %c0_142] : memref<10x10x32xf32, #tpu.memory_space<vmem>>, vector<8x8x32xf32>
    %136 = vector.shape_cast %135 : vector<8x8x32xf32> to vector<64x32xf32>
    %137 = arith.truncf %136 : vector<64x32xf32> to vector<64x32xbf16>
    %c2_143 = arith.constant 2 : index
    %c1_144 = arith.constant 1 : index
    %c0_145 = arith.constant 0 : index
    %138 = vector.load %arg17[%c2_143, %c1_144, %c0_145] : memref<10x10x32xf32, #tpu.memory_space<vmem>>, vector<8x8x32xf32>
    %139 = vector.shape_cast %138 : vector<8x8x32xf32> to vector<64x32xf32>
    %140 = arith.truncf %139 : vector<64x32xf32> to vector<64x32xbf16>
    %c2_146 = arith.constant 2 : index
    %c2_147 = arith.constant 2 : index
    %c0_148 = arith.constant 0 : index
    %141 = vector.load %arg17[%c2_146, %c2_147, %c0_148] : memref<10x10x32xf32, #tpu.memory_space<vmem>>, vector<8x8x32xf32>
    %142 = vector.shape_cast %141 : vector<8x8x32xf32> to vector<64x32xf32>
    %143 = arith.truncf %142 : vector<64x32xf32> to vector<64x32xbf16>
    %144 = tpu.concatenate %119, %122, %125, %128, %131, %134, %137, %140, %143 in 1 : vector<64x32xbf16>, vector<64x32xbf16>, vector<64x32xbf16>, vector<64x32xbf16>, vector<64x32xbf16>, vector<64x32xbf16>, vector<64x32xbf16>, vector<64x32xbf16>, vector<64x32xbf16> -> vector<64x288xbf16>
    %c0_149 = arith.constant 0 : index
    %c0_150 = arith.constant 0 : index
    %145 = vector.load %arg4[%c0_149, %c0_150] : memref<288x8xbf16, #tpu.memory_space<vmem>>, vector<288x8xbf16>
    %cst_151 = arith.constant dense<0.000000e+00> : vector<64x8xf32>
    %146 = tpu.matmul %144, %145, %cst_151 {dimension_numbers = #tpu.dot_dimension_numbers<[1], [0], [0], [1], [0, 0, 1, 1], [], []>} : vector<64x288xbf16>, vector<288x8xbf16>, vector<64x8xf32> -> vector<64x8xf32>
    %c0_152 = arith.constant 0 : index
    %c0_153 = arith.constant 0 : index
    %147 = vector.load %arg8[%c0_152, %c0_153] : memref<1x8xf32, #tpu.memory_space<vmem>>, vector<1x8xf32>
    %148 = vector.broadcast %147 : vector<1x8xf32> to vector<64x8xf32>
    %149 = arith.addf %146, %148 : vector<64x8xf32>
    %cst_154 = arith.constant 0.000000e+00 : f32
    %150 = vector.broadcast %cst_154 : f32 to vector<64x8xf32>
    %151 = arith.maximumf %149, %150 : vector<64x8xf32>
    %152 = vector.shape_cast %151 : vector<64x8xf32> to vector<64x1x8xf32>
    %153 = vector.shape_cast %152 : vector<64x1x8xf32> to vector<64x1x8xf32>
    %154 = vector.broadcast %153 : vector<64x1x8xf32> to vector<64x2x8xf32>
    %155 = vector.shape_cast %154 : vector<64x2x8xf32> to vector<128x8xf32>
    %156 = vector.shape_cast %155 : vector<128x8xf32> to vector<8x16x8xf32>
    %157 = vector.shape_cast %156 : vector<8x16x8xf32> to vector<8x1x16x8xf32>
    %158 = vector.shape_cast %157 : vector<8x1x16x8xf32> to vector<8x1x16x8xf32>
    %159 = vector.broadcast %158 : vector<8x1x16x8xf32> to vector<8x2x16x8xf32>
    %160 = vector.shape_cast %159 : vector<8x2x16x8xf32> to vector<16x16x8xf32>
    %cst_155 = arith.constant 0.000000e+00 : f32
    %161 = vector.broadcast %cst_155 : f32 to vector<1x18x16xf32>
    %cst_156 = arith.constant 0.000000e+00 : f32
    %162 = vector.broadcast %cst_156 : f32 to vector<18x1x16xf32>
    %c0_157 = arith.constant 0 : index
    %c0_158 = arith.constant 0 : index
    %c0_159 = arith.constant 0 : index
    %163 = vector.load %arg18[%c0_157, %c0_158, %c0_159] : memref<18x18x16xf32, #tpu.memory_space<vmem>>, vector<1x18x16xf32>
    tpu.vector_store %arg18[%c0_157, %c0_158, %c0_159], %161 {strides = array<i32>} : memref<18x18x16xf32, #tpu.memory_space<vmem>>, vector<1x18x16xf32>,
    %c17 = arith.constant 17 : index
    %c0_160 = arith.constant 0 : index
    %c0_161 = arith.constant 0 : index
    %164 = vector.load %arg18[%c17, %c0_160, %c0_161] : memref<18x18x16xf32, #tpu.memory_space<vmem>>, vector<1x18x16xf32>
    tpu.vector_store %arg18[%c17, %c0_160, %c0_161], %161 {strides = array<i32>} : memref<18x18x16xf32, #tpu.memory_space<vmem>>, vector<1x18x16xf32>,
    %c0_162 = arith.constant 0 : index
    %c0_163 = arith.constant 0 : index
    %c0_164 = arith.constant 0 : index
    %165 = vector.load %arg18[%c0_162, %c0_163, %c0_164] : memref<18x18x16xf32, #tpu.memory_space<vmem>>, vector<18x1x16xf32>
    tpu.vector_store %arg18[%c0_162, %c0_163, %c0_164], %162 {strides = array<i32>} : memref<18x18x16xf32, #tpu.memory_space<vmem>>, vector<18x1x16xf32>,
    %c0_165 = arith.constant 0 : index
    %c17_166 = arith.constant 17 : index
    %c0_167 = arith.constant 0 : index
    %166 = vector.load %arg18[%c0_165, %c17_166, %c0_167] : memref<18x18x16xf32, #tpu.memory_space<vmem>>, vector<18x1x16xf32>
    tpu.vector_store %arg18[%c0_165, %c17_166, %c0_167], %162 {strides = array<i32>} : memref<18x18x16xf32, #tpu.memory_space<vmem>>, vector<18x1x16xf32>,
    %c0_168 = arith.constant 0 : index
    %c0_169 = arith.constant 0 : index
    %c0_170 = arith.constant 0 : index
    %c0_171 = arith.constant 0 : index
    %167 = vector.load %arg12[%c0_168, %c0_169, %c0_170, %c0_171] : memref<1x16x16x8xf32, #tpu.memory_space<vmem>>, vector<1x16x16x8xf32>
    %168 = vector.shape_cast %167 : vector<1x16x16x8xf32> to vector<16x16x8xf32>
    %169 = tpu.concatenate %168, %160 in 2 : vector<16x16x8xf32>, vector<16x16x8xf32> -> vector<16x16x16xf32>
    %c1_172 = arith.constant 1 : index
    %c1_173 = arith.constant 1 : index
    %c0_174 = arith.constant 0 : index
    %170 = vector.load %arg18[%c1_172, %c1_173, %c0_174] : memref<18x18x16xf32, #tpu.memory_space<vmem>>, vector<16x16x16xf32>
    tpu.vector_store %arg18[%c1_172, %c1_173, %c0_174], %169 {strides = array<i32>} : memref<18x18x16xf32, #tpu.memory_space<vmem>>, vector<16x16x16xf32>,
    %c0_175 = arith.constant 0 : index
    %c0_176 = arith.constant 0 : index
    %c0_177 = arith.constant 0 : index
    %171 = vector.load %arg18[%c0_175, %c0_176, %c0_177] : memref<18x18x16xf32, #tpu.memory_space<vmem>>, vector<16x16x16xf32>
    %172 = vector.shape_cast %171 : vector<16x16x16xf32> to vector<256x16xf32>
    %173 = arith.truncf %172 : vector<256x16xf32> to vector<256x16xbf16>
    %c0_178 = arith.constant 0 : index
    %c1_179 = arith.constant 1 : index
    %c0_180 = arith.constant 0 : index
    %174 = vector.load %arg18[%c0_178, %c1_179, %c0_180] : memref<18x18x16xf32, #tpu.memory_space<vmem>>, vector<16x16x16xf32>
    %175 = vector.shape_cast %174 : vector<16x16x16xf32> to vector<256x16xf32>
    %176 = arith.truncf %175 : vector<256x16xf32> to vector<256x16xbf16>
    %c0_181 = arith.constant 0 : index
    %c2_182 = arith.constant 2 : index
    %c0_183 = arith.constant 0 : index
    %177 = vector.load %arg18[%c0_181, %c2_182, %c0_183] : memref<18x18x16xf32, #tpu.memory_space<vmem>>, vector<16x16x16xf32>
    %178 = vector.shape_cast %177 : vector<16x16x16xf32> to vector<256x16xf32>
    %179 = arith.truncf %178 : vector<256x16xf32> to vector<256x16xbf16>
    %c1_184 = arith.constant 1 : index
    %c0_185 = arith.constant 0 : index
    %c0_186 = arith.constant 0 : index
    %180 = vector.load %arg18[%c1_184, %c0_185, %c0_186] : memref<18x18x16xf32, #tpu.memory_space<vmem>>, vector<16x16x16xf32>
    %181 = vector.shape_cast %180 : vector<16x16x16xf32> to vector<256x16xf32>
    %182 = arith.truncf %181 : vector<256x16xf32> to vector<256x16xbf16>
    %c1_187 = arith.constant 1 : index
    %c1_188 = arith.constant 1 : index
    %c0_189 = arith.constant 0 : index
    %183 = vector.load %arg18[%c1_187, %c1_188, %c0_189] : memref<18x18x16xf32, #tpu.memory_space<vmem>>, vector<16x16x16xf32>
    %184 = vector.shape_cast %183 : vector<16x16x16xf32> to vector<256x16xf32>
    %185 = arith.truncf %184 : vector<256x16xf32> to vector<256x16xbf16>
    %c1_190 = arith.constant 1 : index
    %c2_191 = arith.constant 2 : index
    %c0_192 = arith.constant 0 : index
    %186 = vector.load %arg18[%c1_190, %c2_191, %c0_192] : memref<18x18x16xf32, #tpu.memory_space<vmem>>, vector<16x16x16xf32>
    %187 = vector.shape_cast %186 : vector<16x16x16xf32> to vector<256x16xf32>
    %188 = arith.truncf %187 : vector<256x16xf32> to vector<256x16xbf16>
    %c2_193 = arith.constant 2 : index
    %c0_194 = arith.constant 0 : index
    %c0_195 = arith.constant 0 : index
    %189 = vector.load %arg18[%c2_193, %c0_194, %c0_195] : memref<18x18x16xf32, #tpu.memory_space<vmem>>, vector<16x16x16xf32>
    %190 = vector.shape_cast %189 : vector<16x16x16xf32> to vector<256x16xf32>
    %191 = arith.truncf %190 : vector<256x16xf32> to vector<256x16xbf16>
    %c2_196 = arith.constant 2 : index
    %c1_197 = arith.constant 1 : index
    %c0_198 = arith.constant 0 : index
    %192 = vector.load %arg18[%c2_196, %c1_197, %c0_198] : memref<18x18x16xf32, #tpu.memory_space<vmem>>, vector<16x16x16xf32>
    %193 = vector.shape_cast %192 : vector<16x16x16xf32> to vector<256x16xf32>
    %194 = arith.truncf %193 : vector<256x16xf32> to vector<256x16xbf16>
    %c2_199 = arith.constant 2 : index
    %c2_200 = arith.constant 2 : index
    %c0_201 = arith.constant 0 : index
    %195 = vector.load %arg18[%c2_199, %c2_200, %c0_201] : memref<18x18x16xf32, #tpu.memory_space<vmem>>, vector<16x16x16xf32>
    %196 = vector.shape_cast %195 : vector<16x16x16xf32> to vector<256x16xf32>
    %197 = arith.truncf %196 : vector<256x16xf32> to vector<256x16xbf16>
    %198 = tpu.concatenate %173, %176, %179, %182, %185, %188, %191, %194, %197 in 1 : vector<256x16xbf16>, vector<256x16xbf16>, vector<256x16xbf16>, vector<256x16xbf16>, vector<256x16xbf16>, vector<256x16xbf16>, vector<256x16xbf16>, vector<256x16xbf16>, vector<256x16xbf16> -> vector<256x144xbf16>
    %c0_202 = arith.constant 0 : index
    %c0_203 = arith.constant 0 : index
    %199 = vector.load %arg5[%c0_202, %c0_203] : memref<144x4xbf16, #tpu.memory_space<vmem>>, vector<144x4xbf16>
    %cst_204 = arith.constant dense<0.000000e+00> : vector<256x4xf32>
    %200 = tpu.matmul %198, %199, %cst_204 {dimension_numbers = #tpu.dot_dimension_numbers<[1], [0], [0], [1], [0, 0, 1, 1], [], []>} : vector<256x144xbf16>, vector<144x4xbf16>, vector<256x4xf32> -> vector<256x4xf32>
    %c0_205 = arith.constant 0 : index
    %c0_206 = arith.constant 0 : index
    %201 = vector.load %arg9[%c0_205, %c0_206] : memref<1x4xf32, #tpu.memory_space<vmem>>, vector<1x4xf32>
    %202 = vector.broadcast %201 : vector<1x4xf32> to vector<256x4xf32>
    %203 = arith.addf %200, %202 : vector<256x4xf32>
    %cst_207 = arith.constant 0.000000e+00 : f32
    %204 = vector.broadcast %cst_207 : f32 to vector<256x4xf32>
    %205 = arith.maximumf %203, %204 : vector<256x4xf32>
    %206 = vector.shape_cast %205 : vector<256x4xf32> to vector<256x1x4xf32>
    %207 = vector.shape_cast %206 : vector<256x1x4xf32> to vector<256x1x4xf32>
    %208 = vector.broadcast %207 : vector<256x1x4xf32> to vector<256x2x4xf32>
    %209 = vector.shape_cast %208 : vector<256x2x4xf32> to vector<512x4xf32>
    %210 = vector.shape_cast %209 : vector<512x4xf32> to vector<16x32x4xf32>
    %211 = vector.shape_cast %210 : vector<16x32x4xf32> to vector<16x1x32x4xf32>
    %212 = vector.shape_cast %211 : vector<16x1x32x4xf32> to vector<16x1x32x4xf32>
    %213 = vector.broadcast %212 : vector<16x1x32x4xf32> to vector<16x2x32x4xf32>
    %214 = vector.shape_cast %213 : vector<16x2x32x4xf32> to vector<32x32x4xf32>
    %c0_208 = arith.constant 0 : index
    %c0_209 = arith.constant 0 : index
    %c0_210 = arith.constant 0 : index
    %c0_211 = arith.constant 0 : index
    %215 = vector.load %arg13[%c0_208, %c0_209, %c0_210, %c0_211] : memref<1x32x32x4xf32, #tpu.memory_space<vmem>>, vector<1x32x32x4xf32>
    %216 = vector.shape_cast %215 : vector<1x32x32x4xf32> to vector<32x32x4xf32>
    %217 = tpu.concatenate %216, %214 in 2 : vector<32x32x4xf32>, vector<32x32x4xf32> -> vector<32x32x8xf32>
    %c0_212 = arith.constant 0 : index
    %c0_213 = arith.constant 0 : index
    %c0_214 = arith.constant 0 : index
    %c0_215 = arith.constant 0 : index
    %218 = vector.load %arg14[%c0_212, %c0_213, %c0_214, %c0_215] : memref<1x32x32x8xf32, #tpu.memory_space<vmem>>, vector<1x32x32x8xf32>
    %219 = vector.shape_cast %218 : vector<1x32x32x8xf32> to vector<32x32x8xf32>
    %220 = vector.shape_cast %217 : vector<32x32x8xf32> to vector<1x32x32x8xf32>
    tpu.vector_store %arg14[%c0_212, %c0_213, %c0_214, %c0_215], %220 {strides = array<i32>} : memref<1x32x32x8xf32, #tpu.memory_space<vmem>>, vector<1x32x32x8xf32>,
    return
  }
  func.func @transform_0(%arg0: i32) -> (i32, i32, i32, i32) {
    %c0_i32 = arith.constant 0 : i32
    %c0_i32_0 = arith.constant 0 : i32
    %c0_i32_1 = arith.constant 0 : i32
    %c0_i32_2 = arith.constant 0 : i32
    return %arg0, %c0_i32, %c0_i32_0, %c0_i32_1 : i32, i32, i32, i32
  }
  func.func @transform_1(%arg0: i32) -> (i32, i32) {
    %c0_i32 = arith.constant 0 : i32
    %c0_i32_0 = arith.constant 0 : i32
    %c0_i32_1 = arith.constant 0 : i32
    return %c0_i32, %c0_i32_0 : i32, i32
  }
  func.func @transform_2(%arg0: i32) -> (i32, i32) {
    %c0_i32 = arith.constant 0 : i32
    %c0_i32_0 = arith.constant 0 : i32
    %c0_i32_1 = arith.constant 0 : i32
    return %c0_i32, %c0_i32_0 : i32, i32
  }
  func.func @transform_3(%arg0: i32) -> (i32, i32) {
    %c0_i32 = arith.constant 0 : i32
    %c0_i32_0 = arith.constant 0 : i32
    %c0_i32_1 = arith.constant 0 : i32
    return %c0_i32, %c0_i32_0 : i32, i32
  }
  func.func @transform_4(%arg0: i32) -> (i32, i32) {
    %c0_i32 = arith.constant 0 : i32
    %c0_i32_0 = arith.constant 0 : i32
    %c0_i32_1 = arith.constant 0 : i32
    return %c0_i32, %c0_i32_0 : i32, i32
  }
  func.func @transform_5(%arg0: i32) -> (i32, i32) {
    %c0_i32 = arith.constant 0 : i32
    %c0_i32_0 = arith.constant 0 : i32
    %c0_i32_1 = arith.constant 0 : i32
    return %c0_i32, %c0_i32_0 : i32, i32
  }
  func.func @transform_6(%arg0: i32) -> (i32, i32) {
    %c0_i32 = arith.constant 0 : i32
    %c0_i32_0 = arith.constant 0 : i32
    %c0_i32_1 = arith.constant 0 : i32
    return %c0_i32, %c0_i32_0 : i32, i32
  }
  func.func @transform_7(%arg0: i32) -> (i32, i32) {
    %c0_i32 = arith.constant 0 : i32
    %c0_i32_0 = arith.constant 0 : i32
    %c0_i32_1 = arith.constant 0 : i32
    return %c0_i32, %c0_i32_0 : i32, i32
  }
  func.func @transform_8(%arg0: i32) -> (i32, i32) {
    %c0_i32 = arith.constant 0 : i32
    %c0_i32_0 = arith.constant 0 : i32
    %c0_i32_1 = arith.constant 0 : i32
    return %c0_i32, %c0_i32_0 : i32, i32
  }
  func.func @transform_9(%arg0: i32) -> (i32, i32, i32, i32) {
    %c0_i32 = arith.constant 0 : i32
    %c0_i32_0 = arith.constant 0 : i32
    %c0_i32_1 = arith.constant 0 : i32
    %c0_i32_2 = arith.constant 0 : i32
    return %arg0, %c0_i32, %c0_i32_0, %c0_i32_1 : i32, i32, i32, i32
  }
  func.func @transform_10(%arg0: i32) -> (i32, i32, i32, i32) {
    %c0_i32 = arith.constant 0 : i32
    %c0_i32_0 = arith.constant 0 : i32
    %c0_i32_1 = arith.constant 0 : i32
    %c0_i32_2 = arith.constant 0 : i32
    return %arg0, %c0_i32, %c0_i32_0, %c0_i32_1 : i32, i32, i32, i32
  }
  func.func @transform_11(%arg0: i32) -> (i32, i32, i32, i32) {
    %c0_i32 = arith.constant 0 : i32
    %c0_i32_0 = arith.constant 0 : i32
    %c0_i32_1 = arith.constant 0 : i32
    %c0_i32_2 = arith.constant 0 : i32
    return %arg0, %c0_i32, %c0_i32_0, %c0_i32_1 : i32, i32, i32, i32
  }
  func.func @transform_12(%arg0: i32) -> (i32, i32, i32, i32) {
    %c0_i32 = arith.constant 0 : i32
    %c0_i32_0 = arith.constant 0 : i32
    %c0_i32_1 = arith.constant 0 : i32
    %c0_i32_2 = arith.constant 0 : i32
    return %arg0, %c0_i32, %c0_i32_0, %c0_i32_1 : i32, i32, i32, i32
  }
  func.func @transform_13(%arg0: i32) -> (i32, i32, i32, i32) {
    %c0_i32 = arith.constant 0 : i32
    %c0_i32_0 = arith.constant 0 : i32
    %c0_i32_1 = arith.constant 0 : i32
    %c0_i32_2 = arith.constant 0 : i32
    return %arg0, %c0_i32, %c0_i32_0, %c0_i32_1 : i32, i32, i32, i32
  }
}

</mosaic_0001>

<llo_original>
// kernel: unet_decoder_forward.1
$region0: #{unet_decoder_forward.1}
  #allocation0 [shape = 'u32[]', space=smem, size = 0x4, offset = 0x4, fixed_abs, tag = 'smem constant byte address 0x4 - core index']
  #allocation1 [shape = 'u32[72,128]{1,0:T(1,128)}', space=vmem, size = 0x9000, scoped, tag = 'internal scratch']
  #allocation2 [shape = 'f32[4,4,16]{2,1,0:T(4,128)}', space=vmem, size = 0x2000, scoped, tag = 'scratch operand']
  #allocation3 [shape = 'f32[6,6,32]{2,1,0:T(8,128)}', space=vmem, size = 0x6000, scoped, tag = 'scratch operand']
  #allocation4 [shape = 'f32[10,10,32]{2,1,0:T(8,128)}', space=vmem, size = 0x14000, scoped, tag = 'scratch operand']
  #allocation5 [shape = 'f32[18,18,16]{2,1,0:T(8,128)}', space=vmem, size = 0x36000, scoped, tag = 'scratch operand']
  %s0 = inlined_call_operand.vmem [shape: f32[2,2,2,16], index: 0, kind: input, shape index: {}]
  %s1 = inlined_call_operand.vmem [shape: bf16[144,16], index: 1, kind: input, shape index: {}]
  %s2 = inlined_call_operand.vmem [shape: bf16[288,16], index: 2, kind: input, shape index: {}]
  %s3 = inlined_call_operand.vmem [shape: bf16[288,8], index: 3, kind: input, shape index: {}]
  %s4 = inlined_call_operand.vmem [shape: bf16[144,4], index: 4, kind: input, shape index: {}]
  %s5 = inlined_call_operand.vmem [shape: f32[1,16], index: 5, kind: input, shape index: {}]
  %s6 = inlined_call_operand.vmem [shape: f32[1,16], index: 6, kind: input, shape index: {}]
  %s7 = inlined_call_operand.vmem [shape: f32[1,8], index: 7, kind: input, shape index: {}]
  %s8 = inlined_call_operand.vmem [shape: f32[1,4], index: 8, kind: input, shape index: {}]
  %s9 = inlined_call_operand.vmem [shape: f32[2,4,4,16], index: 9, kind: input, shape index: {}]
  %s10 = inlined_call_operand.vmem [shape: f32[2,8,8,16], index: 10, kind: input, shape index: {}]
  %s11 = inlined_call_operand.vmem [shape: f32[2,16,16,8], index: 11, kind: input, shape index: {}]
  %s12 = inlined_call_operand.vmem [shape: f32[2,32,32,4], index: 12, kind: input, shape index: {}]
  %s13 = inlined_call_operand.vmem [shape: f32[2,32,32,8], index: 13, kind: output, shape index: {}]
  %s14 = sld [smem:[#allocation0]]
  $region85: #{unet_decoder_forward.1} parent=0
    _
  %s16 = ssub.s32 1, %s14
  %s17 = scalar_select 0, %s16, %s14
  loop: start=0, step=1, limit=4
  $region2: #{unet_decoder_forward.1} parent=0 // loop_pre_header
    _
  $region3: #{unet_decoder_forward.1} parent=0 // loop_header
    %s19 = sphi 0, %s23
    %p20 = scmp.ge.s32.totalorder %s19, 4
    %s29 = sphi 0, %s31
    %s32 = sphi 0, %s29
    %s33 = sphi 0, %s32
    %s49 = sphi 0, %s33
    %s53 = sphi 0, %s53
    %s55 = sphi 0, %s53
    %s56 = sphi 0, %s55
    %s70 = sphi 0, %s56
    %s74 = sphi 0, %s74
    %s76 = sphi 0, %s74
    %s77 = sphi 0, %s76
    %s91 = sphi 0, %s77
    %s95 = sphi 0, %s95
    %s97 = sphi 0, %s95
    %s98 = sphi 0, %s97
    %s112 = sphi 0, %s98
    %s116 = sphi 0, %s116
    %s118 = sphi 0, %s116
    %s119 = sphi 0, %s118
    %s133 = sphi 0, %s119
    %s137 = sphi 0, %s137
    %s139 = sphi 0, %s137
    %s140 = sphi 0, %s139
    %s154 = sphi 0, %s140
    %s158 = sphi 0, %s158
    %s160 = sphi 0, %s158
    %s161 = sphi 0, %s160
    %s175 = sphi 0, %s161
    %s179 = sphi 0, %s179
    %s181 = sphi 0, %s179
    %s182 = sphi 0, %s181
    %s196 = sphi 0, %s182
    %s200 = sphi 0, %s200
    %s202 = sphi 0, %s200
    %s203 = sphi 0, %s202
    %s217 = sphi 0, %s203
    %s223 = sphi 0, %s225
    %s226 = sphi 0, %s223
    %s227 = sphi 0, %s226
    %s243 = sphi 0, %s227
    %s249 = sphi 0, %s251
    %s252 = sphi 0, %s249
    %s253 = sphi 0, %s252
    %s269 = sphi 0, %s253
    %s275 = sphi 0, %s277
    %s278 = sphi 0, %s275
    %s279 = sphi 0, %s278
    %s295 = sphi 0, %s279
    %s301 = sphi 0, %s303
    %s304 = sphi 0, %s301
    %s305 = sphi 0, %s304
    %s321 = sphi 0, %s305
    %s327 = sphi 0, %s329
    %s330 = sphi 0, %s327
    %s331 = sphi 0, %s330
    %s347 = sphi 0, %s331
  $region4: #{unet_decoder_forward.1} parent=0 // loop_header_branch
    %22 = sbr.rel (%p20) target = $region8
  $region5: #{unet_decoder_forward.1} parent=0 // loop_body
    %s24 = ssub.s32 %s19, 1
    %s25 = ssub.s32 %s19, 2
    %s26 = sadd.s32 %s19, 1
    %s27 = ssub.s32 %s19, %s26
    %p28 = scmp.eq.s32.totalorder %s27, 0
    %s30 = sadd.s32 %s29, 1
    %s31 = scalar_select %p28, %s29, %s30
    %p34 = pneg %p28
    %p35 = scmp.eq.s32.totalorder %s19, 1
    %p36 = por %p34, %p35
    %p37 = scmp.ne.s32.totalorder %s29, %s32
    %p38 = scmp.eq.s32.totalorder %s19, 0
    %p39 = por %p37, %p38
    %p40 = scmp.ne.s32.totalorder %s29, %s32
    %p41 = scmp.eq.s32.totalorder %s24, 1
    %p42 = por %p40, %p41
    %p43 = scmp.ne.s32.totalorder %s32, %s33
    %p44 = scmp.eq.s32.totalorder %s24, 0
    %p45 = por %p43, %p44
    %p46 = scmp.ne.s32.totalorder %s32, %s33
    %p47 = scmp.eq.s32.totalorder %s25, 1
    %p48 = por %p46, %p47
    %p50 = scmp.ne.s32.totalorder %s33, %s49
    %p51 = scmp.eq.s32.totalorder %s25, 0
    %p52 = por %p50, %p51
    %s54 = sadd.s32 %s53, 1
    %p57 = scmp.eq.s32.totalorder %s19, 1
    %p58 = scmp.ne.s32.totalorder %s53, %s55
    %p59 = scmp.eq.s32.totalorder %s19, 0
    %p60 = por %p58, %p59
    %p61 = scmp.ne.s32.totalorder %s53, %s55
    %p62 = scmp.eq.s32.totalorder %s24, 1
    %p63 = por %p61, %p62
    %p64 = scmp.ne.s32.totalorder %s55, %s56
    %p65 = scmp.eq.s32.totalorder %s24, 0
    %p66 = por %p64, %p65
    %p67 = scmp.ne.s32.totalorder %s55, %s56
    %p68 = scmp.eq.s32.totalorder %s25, 1
    %p69 = por %p67, %p68
    %p71 = scmp.ne.s32.totalorder %s56, %s70
    %p72 = scmp.eq.s32.totalorder %s25, 0
    %p73 = por %p71, %p72
    %s75 = sadd.s32 %s74, 1
    %p78 = scmp.eq.s32.totalorder %s19, 1
    %p79 = scmp.ne.s32.totalorder %s74, %s76
    %p80 = scmp.eq.s32.totalorder %s19, 0
    %p81 = por %p79, %p80
    %p82 = scmp.ne.s32.totalorder %s74, %s76
    %p83 = scmp.eq.s32.totalorder %s24, 1
    %p84 = por %p82, %p83
    %p85 = scmp.ne.s32.totalorder %s76, %s77
    %p86 = scmp.eq.s32.totalorder %s24, 0
    %p87 = por %p85, %p86
    %p88 = scmp.ne.s32.totalorder %s76, %s77
    %p89 = scmp.eq.s32.totalorder %s25, 1
    %p90 = por %p88, %p89
    %p92 = scmp.ne.s32.totalorder %s77, %s91
    %p93 = scmp.eq.s32.totalorder %s25, 0
    %p94 = por %p92, %p93
    %s96 = sadd.s32 %s95, 1
    %p99 = scmp.eq.s32.totalorder %s19, 1
    %p100 = scmp.ne.s32.totalorder %s95, %s97
    %p101 = scmp.eq.s32.totalorder %s19, 0
    %p102 = por %p100, %p101
    %p103 = scmp.ne.s32.totalorder %s95, %s97
    %p104 = scmp.eq.s32.totalorder %s24, 1
    %p105 = por %p103, %p104
    %p106 = scmp.ne.s32.totalorder %s97, %s98
    %p107 = scmp.eq.s32.totalorder %s24, 0
    %p108 = por %p106, %p107
    %p109 = scmp.ne.s32.totalorder %s97, %s98
    %p110 = scmp.eq.s32.totalorder %s25, 1
    %p111 = por %p109, %p110
    %p113 = scmp.ne.s32.totalorder %s98, %s112
    %p114 = scmp.eq.s32.totalorder %s25, 0
    %p115 = por %p113, %p114
    %s117 = sadd.s32 %s116, 1
    %p120 = scmp.eq.s32.totalorder %s19, 1
    %p121 = scmp.ne.s32.totalorder %s116, %s118
    %p122 = scmp.eq.s32.totalorder %s19, 0
    %p123 = por %p121, %p122
    %p124 = scmp.ne.s32.totalorder %s116, %s118
    %p125 = scmp.eq.s32.totalorder %s24, 1
    %p126 = por %p124, %p125
    %p127 = scmp.ne.s32.totalorder %s118, %s119
    %p128 = scmp.eq.s32.totalorder %s24, 0
    %p129 = por %p127, %p128
    %p130 = scmp.ne.s32.totalorder %s118, %s119
    %p131 = scmp.eq.s32.totalorder %s25, 1
    %p132 = por %p130, %p131
    %p134 = scmp.ne.s32.totalorder %s119, %s133
    %p135 = scmp.eq.s32.totalorder %s25, 0
    %p136 = por %p134, %p135
    %s138 = sadd.s32 %s137, 1
    %p141 = scmp.eq.s32.totalorder %s19, 1
    %p142 = scmp.ne.s32.totalorder %s137, %s139
    %p143 = scmp.eq.s32.totalorder %s19, 0
    %p144 = por %p142, %p143
    %p145 = scmp.ne.s32.totalorder %s137, %s139
    %p146 = scmp.eq.s32.totalorder %s24, 1
    %p147 = por %p145, %p146
    %p148 = scmp.ne.s32.totalorder %s139, %s140
    %p149 = scmp.eq.s32.totalorder %s24, 0
    %p150 = por %p148, %p149
    %p151 = scmp.ne.s32.totalorder %s139, %s140
    %p152 = scmp.eq.s32.totalorder %s25, 1
    %p153 = por %p151, %p152
    %p155 = scmp.ne.s32.totalorder %s140, %s154
    %p156 = scmp.eq.s32.totalorder %s25, 0
    %p157 = por %p155, %p156
    %s159 = sadd.s32 %s158, 1
    %p162 = scmp.eq.s32.totalorder %s19, 1
    %p163 = scmp.ne.s32.totalorder %s158, %s160
    %p164 = scmp.eq.s32.totalorder %s19, 0
    %p165 = por %p163, %p164
    %p166 = scmp.ne.s32.totalorder %s158, %s160
    %p167 = scmp.eq.s32.totalorder %s24, 1
    %p168 = por %p166, %p167
    %p169 = scmp.ne.s32.totalorder %s160, %s161
    %p170 = scmp.eq.s32.totalorder %s24, 0
    %p171 = por %p169, %p170
    %p172 = scmp.ne.s32.totalorder %s160, %s161
    %p173 = scmp.eq.s32.totalorder %s25, 1
    %p174 = por %p172, %p173
    %p176 = scmp.ne.s32.totalorder %s161, %s175
    %p177 = scmp.eq.s32.totalorder %s25, 0
    %p178 = por %p176, %p177
    %s180 = sadd.s32 %s179, 1
    %p183 = scmp.eq.s32.totalorder %s19, 1
    %p184 = scmp.ne.s32.totalorder %s179, %s181
    %p185 = scmp.eq.s32.totalorder %s19, 0
    %p186 = por %p184, %p185
    %p187 = scmp.ne.s32.totalorder %s179, %s181
    %p188 = scmp.eq.s32.totalorder %s24, 1
    %p189 = por %p187, %p188
    %p190 = scmp.ne.s32.totalorder %s181, %s182
    %p191 = scmp.eq.s32.totalorder %s24, 0
    %p192 = por %p190, %p191
    %p193 = scmp.ne.s32.totalorder %s181, %s182
    %p194 = scmp.eq.s32.totalorder %s25, 1
    %p195 = por %p193, %p194
    %p197 = scmp.ne.s32.totalorder %s182, %s196
    %p198 = scmp.eq.s32.totalorder %s25, 0
    %p199 = por %p197, %p198
    %s201 = sadd.s32 %s200, 1
    %p204 = scmp.eq.s32.totalorder %s19, 1
    %p205 = scmp.ne.s32.totalorder %s200, %s202
    %p206 = scmp.eq.s32.totalorder %s19, 0
    %p207 = por %p205, %p206
    %p208 = scmp.ne.s32.totalorder %s200, %s202
    %p209 = scmp.eq.s32.totalorder %s24, 1
    %p210 = por %p208, %p209
    %p211 = scmp.ne.s32.totalorder %s202, %s203
    %p212 = scmp.eq.s32.totalorder %s24, 0
    %p213 = por %p211, %p212
    %p214 = scmp.ne.s32.totalorder %s202, %s203
    %p215 = scmp.eq.s32.totalorder %s25, 1
    %p216 = por %p214, %p215
    %p218 = scmp.ne.s32.totalorder %s203, %s217
    %p219 = scmp.eq.s32.totalorder %s25, 0
    %p220 = por %p218, %p219
    %s221 = ssub.s32 %s19, %s26
    %p222 = scmp.eq.s32.totalorder %s221, 0
    %s224 = sadd.s32 %s223, 1
    %s225 = scalar_select %p222, %s223, %s224
    %p228 = pneg %p222
    %p229 = scmp.eq.s32.totalorder %s19, 1
    %p230 = por %p228, %p229
    %p231 = scmp.ne.s32.totalorder %s223, %s226
    %p232 = scmp.eq.s32.totalorder %s19, 0
    %p233 = por %p231, %p232
    %p234 = scmp.ne.s32.totalorder %s223, %s226
    %p235 = scmp.eq.s32.totalorder %s24, 1
    %p236 = por %p234, %p235
    %p237 = scmp.ne.s32.totalorder %s226, %s227
    %p238 = scmp.eq.s32.totalorder %s24, 0
    %p239 = por %p237, %p238
    %p240 = scmp.ne.s32.totalorder %s226, %s227
    %p241 = scmp.eq.s32.totalorder %s25, 1
    %p242 = por %p240, %p241
    %p244 = scmp.ne.s32.totalorder %s227, %s243
    %p245 = scmp.eq.s32.totalorder %s25, 0
    %p246 = por %p244, %p245
    %s247 = ssub.s32 %s19, %s26
    %p248 = scmp.eq.s32.totalorder %s247, 0
    %s250 = sadd.s32 %s249, 1
    %s251 = scalar_select %p248, %s249, %s250
    %p254 = pneg %p248
    %p255 = scmp.eq.s32.totalorder %s19, 1
    %p256 = por %p254, %p255
    %p257 = scmp.ne.s32.totalorder %s249, %s252
    %p258 = scmp.eq.s32.totalorder %s19, 0
    %p259 = por %p257, %p258
    %p260 = scmp.ne.s32.totalorder %s249, %s252
    %p261 = scmp.eq.s32.totalorder %s24, 1
    %p262 = por %p260, %p261
    %p263 = scmp.ne.s32.totalorder %s252, %s253
    %p264 = scmp.eq.s32.totalorder %s24, 0
    %p265 = por %p263, %p264
    %p266 = scmp.ne.s32.totalorder %s252, %s253
    %p267 = scmp.eq.s32.totalorder %s25, 1
    %p268 = por %p266, %p267
    %p270 = scmp.ne.s32.totalorder %s253, %s269
    %p271 = scmp.eq.s32.totalorder %s25, 0
    %p272 = por %p270, %p271
    %s273 = ssub.s32 %s19, %s26
    %p274 = scmp.eq.s32.totalorder %s273, 0
    %s276 = sadd.s32 %s275, 1
    %s277 = scalar_select %p274, %s275, %s276
    %p280 = pneg %p274
    %p281 = scmp.eq.s32.totalorder %s19, 1
    %p282 = por %p280, %p281
    %p283 = scmp.ne.s32.totalorder %s275, %s278
    %p284 = scmp.eq.s32.totalorder %s19, 0
    %p285 = por %p283, %p284
    %p286 = scmp.ne.s32.totalorder %s275, %s278
    %p287 = scmp.eq.s32.totalorder %s24, 1
    %p288 = por %p286, %p287
    %p289 = scmp.ne.s32.totalorder %s278, %s279
    %p290 = scmp.eq.s32.totalorder %s24, 0
    %p291 = por %p289, %p290
    %p292 = scmp.ne.s32.totalorder %s278, %s279
    %p293 = scmp.eq.s32.totalorder %s25, 1
    %p294 = por %p292, %p293
    %p296 = scmp.ne.s32.totalorder %s279, %s295
    %p297 = scmp.eq.s32.totalorder %s25, 0
    %p298 = por %p296, %p297
    %s299 = ssub.s32 %s19, %s26
    %p300 = scmp.eq.s32.totalorder %s299, 0
    %s302 = sadd.s32 %s301, 1
    %s303 = scalar_select %p300, %s301, %s302
    %p306 = pneg %p300
    %p307 = scmp.eq.s32.totalorder %s19, 1
    %p308 = por %p306, %p307
    %p309 = scmp.ne.s32.totalorder %s301, %s304
    %p310 = scmp.eq.s32.totalorder %s19, 0
    %p311 = por %p309, %p310
    %p312 = scmp.ne.s32.totalorder %s301, %s304
    %p313 = scmp.eq.s32.totalorder %s24, 1
    %p314 = por %p312, %p313
    %p315 = scmp.ne.s32.totalorder %s304, %s305
    %p316 = scmp.eq.s32.totalorder %s24, 0
    %p317 = por %p315, %p316
    %p318 = scmp.ne.s32.totalorder %s304, %s305
    %p319 = scmp.eq.s32.totalorder %s25, 1
    %p320 = por %p318, %p319
    %p322 = scmp.ne.s32.totalorder %s305, %s321
    %p323 = scmp.eq.s32.totalorder %s25, 0
    %p324 = por %p322, %p323
    %s325 = ssub.s32 %s19, %s26
    %p326 = scmp.eq.s32.totalorder %s325, 0
    %s328 = sadd.s32 %s327, 1
    %s329 = scalar_select %p326, %s327, %s328
    %p332 = pneg %p326
    %p333 = scmp.eq.s32.totalorder %s19, 1
    %p334 = por %p332, %p333
    %p335 = scmp.ne.s32.totalorder %s327, %s330
    %p336 = scmp.eq.s32.totalorder %s19, 0
    %p337 = por %p335, %p336
    %p338 = scmp.ne.s32.totalorder %s327, %s330
    %p339 = scmp.eq.s32.totalorder %s24, 1
    %p340 = por %p338, %p339
    %p341 = scmp.ne.s32.totalorder %s330, %s331
    %p342 = scmp.eq.s32.totalorder %s24, 0
    %p343 = por %p341, %p342
    %p344 = scmp.ne.s32.totalorder %s330, %s331
    %p345 = scmp.eq.s32.totalorder %s25, 1
    %p346 = por %p344, %p345
    %p348 = scmp.ne.s32.totalorder %s331, %s347
    %p349 = scmp.eq.s32.totalorder %s25, 0
    %p350 = por %p348, %p349
    %p351 = scmp.le.s32.totalorder 1, %s19
    %p352 = scmp.lt.s32.totalorder %s19, 3
    %p353 = pnand %p351, %p352
    %p354 = pneg %p353
    // Predicated region
    $region9: #{unet_decoder_forward.1} parent=5 // pred_check
      _
    $region10: #{unet_decoder_forward.1} parent=5 // pred_check_branch
      %356 = sbr.rel (%p353) target = $region12
    $region11: #{unet_decoder_forward.1} parent=5 // pred_region
      %s357 = ssub.s32 %s19, 1
      // Predicated region
      $region13: #{unet_decoder_forward.1} parent=11 // pred_check
        %p358 = pneg %p66
      $region14: #{unet_decoder_forward.1} parent=11 // pred_check_branch
        %360 = sbr.rel (%p358) target = $region16
      $region15: #{unet_decoder_forward.1} parent=11 // pred_region
        _
      $region16: #{unet_decoder_forward.1} parent=11 // pred_fallthru
        _
      // Predicated region
      $region17: #{unet_decoder_forward.1} parent=11 // pred_check
        %p361 = pneg %p87
      $region18: #{unet_decoder_forward.1} parent=11 // pred_check_branch
        %363 = sbr.rel (%p361) target = $region20
      $region19: #{unet_decoder_forward.1} parent=11 // pred_region
        _
      $region20: #{unet_decoder_forward.1} parent=11 // pred_fallthru
        _
      // Predicated region
      $region21: #{unet_decoder_forward.1} parent=11 // pred_check
        %p364 = pneg %p108
      $region22: #{unet_decoder_forward.1} parent=11 // pred_check_branch
        %366 = sbr.rel (%p364) target = $region24
      $region23: #{unet_decoder_forward.1} parent=11 // pred_region
        _
      $region24: #{unet_decoder_forward.1} parent=11 // pred_fallthru
        _
      // Predicated region
      $region25: #{unet_decoder_forward.1} parent=11 // pred_check
        %p367 = pneg %p129
      $region26: #{unet_decoder_forward.1} parent=11 // pred_check_branch
        %369 = sbr.rel (%p367) target = $region28
      $region27: #{unet_decoder_forward.1} parent=11 // pred_region
        _
      $region28: #{unet_decoder_forward.1} parent=11 // pred_fallthru
        _
      // Predicated region
      $region29: #{unet_decoder_forward.1} parent=11 // pred_check
        %p370 = pneg %p150
      $region30: #{unet_decoder_forward.1} parent=11 // pred_check_branch
        %372 = sbr.rel (%p370) target = $region32
      $region31: #{unet_decoder_forward.1} parent=11 // pred_region
        _
      $region32: #{unet_decoder_forward.1} parent=11 // pred_fallthru
        _
      // Predicated region
      $region33: #{unet_decoder_forward.1} parent=11 // pred_check
        %p373 = pneg %p171
      $region34: #{unet_decoder_forward.1} parent=11 // pred_check_branch
        %375 = sbr.rel (%p373) target = $region36
      $region35: #{unet_decoder_forward.1} parent=11 // pred_region
        _
      $region36: #{unet_decoder_forward.1} parent=11 // pred_fallthru
        _
      // Predicated region
      $region37: #{unet_decoder_forward.1} parent=11 // pred_check
        %p376 = pneg %p192
      $region38: #{unet_decoder_forward.1} parent=11 // pred_check_branch
        %378 = sbr.rel (%p376) target = $region40
      $region39: #{unet_decoder_forward.1} parent=11 // pred_region
        _
      $region40: #{unet_decoder_forward.1} parent=11 // pred_fallthru
        _
      // Predicated region
      $region41: #{unet_decoder_forward.1} parent=11 // pred_check
        %p379 = pneg %p213
      $region42: #{unet_decoder_forward.1} parent=11 // pred_check_branch
        %381 = sbr.rel (%p379) target = $region44
      $region43: #{unet_decoder_forward.1} parent=11 // pred_region
        _
      $region44: #{unet_decoder_forward.1} parent=11 // pred_fallthru
        _
    $region12: #{unet_decoder_forward.1} parent=5 // pred_fallthru
      _
    %p382 = scmp.lt.s32.totalorder %s19, 2
    // Predicated region
    $region45: #{unet_decoder_forward.1} parent=5 // pred_check
      %p383 = pneg %p382
    $region46: #{unet_decoder_forward.1} parent=5 // pred_check_branch
      %385 = sbr.rel (%p383) target = $region48
    $region47: #{unet_decoder_forward.1} parent=5 // pred_region
      // Predicated region
      $region49: #{unet_decoder_forward.1} parent=47 // pred_check
        %p386 = pneg %p39
      $region50: #{unet_decoder_forward.1} parent=47 // pred_check_branch
        %388 = sbr.rel (%p386) target = $region52
      $region51: #{unet_decoder_forward.1} parent=47 // pred_region
        %p389 = scmp.lt.s32.totalorder %s19, 1
        %s390 = scalar_select %p389, %s19, 1
        %s391 = smul.addr %s390, 2
        %s392 = smul.addr %s391, 2
        %s393 = scalar_lea.vmem %s0, %s392
      $region52: #{unet_decoder_forward.1} parent=47 // pred_fallthru
        _
      // Predicated region
      $region53: #{unet_decoder_forward.1} parent=47 // pred_check
        %p394 = pneg %p233
      $region54: #{unet_decoder_forward.1} parent=47 // pred_check_branch
        %396 = sbr.rel (%p394) target = $region56
      $region55: #{unet_decoder_forward.1} parent=47 // pred_region
        %p397 = scmp.lt.s32.totalorder %s19, 1
        %s398 = scalar_select %p397, %s19, 1
        %s399 = smul.addr %s398, 4
        %s400 = smul.addr %s399, 4
        %s401 = scalar_lea.vmem %s9, %s400
      $region56: #{unet_decoder_forward.1} parent=47 // pred_fallthru
        _
      // Predicated region
      $region57: #{unet_decoder_forward.1} parent=47 // pred_check
        %p402 = pneg %p259
      $region58: #{unet_decoder_forward.1} parent=47 // pred_check_branch
        %404 = sbr.rel (%p402) target = $region60
      $region59: #{unet_decoder_forward.1} parent=47 // pred_region
        %p405 = scmp.lt.s32.totalorder %s19, 1
        %s406 = scalar_select %p405, %s19, 1
        %s407 = smul.addr %s406, 8
        %s408 = smul.addr %s407, 8
        %s409 = scalar_lea.vmem %s10, %s408
      $region60: #{unet_decoder_forward.1} parent=47 // pred_fallthru
        _
      // Predicated region
      $region61: #{unet_decoder_forward.1} parent=47 // pred_check
        %p410 = pneg %p285
      $region62: #{unet_decoder_forward.1} parent=47 // pred_check_branch
        %412 = sbr.rel (%p410) target = $region64
      $region63: #{unet_decoder_forward.1} parent=47 // pred_region
        %p413 = scmp.lt.s32.totalorder %s19, 1
        %s414 = scalar_select %p413, %s19, 1
        %s415 = smul.addr %s414, 32
        %s416 = smul.addr %s415, 8
        %s417 = scalar_lea.vmem %s11, %s416
      $region64: #{unet_decoder_forward.1} parent=47 // pred_fallthru
        _
      // Predicated region
      $region65: #{unet_decoder_forward.1} parent=47 // pred_check
        %p418 = pneg %p311
      $region66: #{unet_decoder_forward.1} parent=47 // pred_check_branch
        %420 = sbr.rel (%p418) target = $region68
      $region67: #{unet_decoder_forward.1} parent=47 // pred_region
        %p421 = scmp.lt.s32.totalorder %s19, 1
        %s422 = scalar_select %p421, %s19, 1
        %s423 = smul.addr %s422, 128
        %s424 = smul.addr %s423, 8
        %s425 = scalar_lea.vmem %s12, %s424
      $region68: #{unet_decoder_forward.1} parent=47 // pred_fallthru
        _
    $region48: #{unet_decoder_forward.1} parent=5 // pred_fallthru
      _
    %p426 = scmp.le.s32.totalorder 1, %s19
    %p427 = scmp.lt.s32.totalorder %s19, 3
    %p428 = pnand %p426, %p427
    %p429 = pneg %p428
    // Predicated region
    $region69: #{unet_decoder_forward.1} parent=5 // pred_check
      _
    $region70: #{unet_decoder_forward.1} parent=5 // pred_check_branch
      %431 = sbr.rel (%p428) target = $region72
    $region71: #{unet_decoder_forward.1} parent=5 // pred_region
      %s432 = ssub.s32 %s19, 1
      %p433 = scmp.lt.s32.totalorder %s24, 1
      %s434 = scalar_select %p433, %s24, 1
      %s435 = smul.addr %s434, 2
      %s436 = smul.addr %s435, 2
      %s437 = scalar_lea.vmem %s0, %s436
      %p438 = pneg %p45
      %p439 = pneg %p42
      %p440 = pneg %p66
      %p441 = pneg %p63
      %p442 = pneg %p87
      %p443 = pneg %p84
      %p444 = pneg %p108
      %p445 = pneg %p105
      %p446 = pneg %p129
      %p447 = pneg %p126
      %p448 = pneg %p150
      %p449 = pneg %p147
      %p450 = pneg %p171
      %p451 = pneg %p168
      %p452 = pneg %p192
      %p453 = pneg %p189
      %p454 = pneg %p213
      %p455 = pneg %p210
      %p456 = scmp.lt.s32.totalorder %s24, 1
      %s457 = scalar_select %p456, %s24, 1
      %s458 = smul.addr %s457, 4
      %s459 = smul.addr %s458, 4
      %s460 = scalar_lea.vmem %s9, %s459
      %p461 = pneg %p239
      %p462 = pneg %p236
      %p463 = scmp.lt.s32.totalorder %s24, 1
      %s464 = scalar_select %p463, %s24, 1
      %s465 = smul.addr %s464, 8
      %s466 = smul.addr %s465, 8
      %s467 = scalar_lea.vmem %s10, %s466
      %p468 = pneg %p265
      %p469 = pneg %p262
      %p470 = scmp.lt.s32.totalorder %s24, 1
      %s471 = scalar_select %p470, %s24, 1
      %s472 = smul.addr %s471, 32
      %s473 = smul.addr %s472, 8
      %s474 = scalar_lea.vmem %s11, %s473
      %p475 = pneg %p291
      %p476 = pneg %p288
      %p477 = scmp.lt.s32.totalorder %s24, 1
      %s478 = scalar_select %p477, %s24, 1
      %s479 = smul.addr %s478, 128
      %s480 = smul.addr %s479, 8
      %s481 = scalar_lea.vmem %s12, %s480
      %p482 = pneg %p317
      %p483 = pneg %p314
      %p484 = pneg %p343
      %p485 = pneg %p340
      %p486 = scmp.lt.s32.totalorder %s24, 1
      %s487 = scalar_select %p486, %s24, 1
      %s488 = smul.addr %s487, 128
      %s489 = smul.addr %s488, 8
      %s490 = scalar_lea.vmem %s13, %s489
      %p491 = scmp.lt.s32.totalorder %s24, 1
      %s492 = scalar_select %p491, %s24, 1
      %s493 = smul.addr %s492, 2
      %s494 = smul.addr %s493, 2
      %s495 = scalar_lea.vmem %s0, %s494
      %p496 = scmp.lt.s32.totalorder %s24, 1
      %s497 = scalar_select %p496, %s24, 1
      %s498 = smul.addr %s497, 4
      %s499 = smul.addr %s498, 4
      %s500 = scalar_lea.vmem %s9, %s499
      %p501 = scmp.lt.s32.totalorder %s24, 1
      %s502 = scalar_select %p501, %s24, 1
      %s503 = smul.addr %s502, 8
      %s504 = smul.addr %s503, 8
      %s505 = scalar_lea.vmem %s10, %s504
      %p506 = scmp.lt.s32.totalorder %s24, 1
      %s507 = scalar_select %p506, %s24, 1
      %s508 = smul.addr %s507, 32
      %s509 = smul.addr %s508, 8
      %s510 = scalar_lea.vmem %s11, %s509
      %p511 = scmp.lt.s32.totalorder %s24, 1
      %s512 = scalar_select %p511, %s24, 1
      %s513 = smul.addr %s512, 128
      %s514 = smul.addr %s513, 8
      %s515 = scalar_lea.vmem %s12, %s514
      %p516 = scmp.lt.s32.totalorder %s24, 1
      %s517 = scalar_select %p516, %s24, 1
      %s518 = smul.addr %s517, 128
      %s519 = smul.addr %s518, 8
      %s520 = scalar_lea.vmem %s13, %s519
      %vm522 = vcmask 125952
      %523 = vst.msk [vmem:[#allocation2] sm:$0xf] %vm522, 0.0
      %s524 = scalar_lea.vmem [#allocation2], 12
      %525 = vst.msk [vmem:[%s524] sm:$0xf] %vm522, 0.0
      %vm526 = vcmask 122880
      %527 = vst.msk [vmem:[#allocation2] sm:$0x1] %vm526, 0.0
      %528 = vst.msk [vmem:[#allocation2 + $0x4] sm:$0x1] %vm526, 0.0
      %529 = vst.msk [vmem:[#allocation2 + $0x8] sm:$0x1] %vm526, 0.0
      %530 = vst.msk [vmem:[#allocation2 + $0xc] sm:$0x1] %vm526, 0.0
      %531 = vst.msk [vmem:[#allocation2 + $0x3] sm:$0x1] %vm526, 0.0
      %532 = vst.msk [vmem:[#allocation2 + $0x7] sm:$0x1] %vm526, 0.0
      %533 = vst.msk [vmem:[#allocation2 + $0xb] sm:$0x1] %vm526, 0.0
      %534 = vst.msk [vmem:[#allocation2 + $0xf] sm:$0x1] %vm526, 0.0
      %v535 = vld [vmem:[%s495] sm:$0x3]
      %v536 = vld [vmem:[%s495 + $0x2] sm:$0x3]
      %s537 = scalar_lea.vmem [#allocation2], 4
      %vm538 = vcmask 123904
      %539 = vst.msk [vmem:[%s537 + $0x1] sm:$0x3] %vm538, %v535
      %540 = vst.msk [vmem:[%s537 + $0x5] sm:$0x3] %vm538, %v536
      %v541 = vld [vmem:[#allocation2] sm:$0x3]
      %v542 = vld [vmem:[#allocation2 + $0x4] sm:$0x3]
      %545 = vst [vmem:[#allocation1] ss:$4 sm:$0xff] %v541
      %s546 = scalar_lea.vmem [#allocation1], 1
      %547 = vst [vmem:[%s546] ss:$4 sm:$0xff] %v542
      %v548 = vld.sshfl [vmem:[#allocation1] sm:$0xff pattern:$0x73625140]
      %v550 = vpack.c.bf16 %v548, %v548
      %v551 = vld [vmem:[#allocation2 + $0x1] sm:$0x3]
      %v552 = vld [vmem:[#allocation2 + $0x5] sm:$0x3]
      %555 = vst [vmem:[#allocation1] ss:$4 sm:$0xff] %v551
      %s556 = scalar_lea.vmem [#allocation1], 1
      %557 = vst [vmem:[%s556] ss:$4 sm:$0xff] %v552
      %v558 = vld.sshfl [vmem:[#allocation1] sm:$0xff pattern:$0x73625140]
      %v560 = vpack.c.bf16 %v558, %v558
      %v561 = vld [vmem:[#allocation2 + $0x2] sm:$0x3]
      %v562 = vld [vmem:[#allocation2 + $0x6] sm:$0x3]
      %565 = vst [vmem:[#allocation1] ss:$4 sm:$0xff] %v561
      %s566 = scalar_lea.vmem [#allocation1], 1
      %567 = vst [vmem:[%s566] ss:$4 sm:$0xff] %v562
      %v568 = vld.sshfl [vmem:[#allocation1] sm:$0xff pattern:$0x73625140]
      %v570 = vpack.c.bf16 %v568, %v568
      %v571 = vld [vmem:[%s537] sm:$0x3]
      %v572 = vld [vmem:[%s537 + $0x4] sm:$0x3]
      %575 = vst [vmem:[#allocation1] ss:$4 sm:$0xff] %v571
      %s576 = scalar_lea.vmem [#allocation1], 1
      %577 = vst [vmem:[%s576] ss:$4 sm:$0xff] %v572
      %v578 = vld.sshfl [vmem:[#allocation1] sm:$0xff pattern:$0x73625140]
      %v580 = vpack.c.bf16 %v578, %v578
      %v581 = vld [vmem:[%s537 + $0x1] sm:$0x3]
      %v582 = vld [vmem:[%s537 + $0x5] sm:$0x3]
      %585 = vst [vmem:[#allocation1] ss:$4 sm:$0xff] %v581
      %s586 = scalar_lea.vmem [#allocation1], 1
      %587 = vst [vmem:[%s586] ss:$4 sm:$0xff] %v582
      %v588 = vld.sshfl [vmem:[#allocation1] sm:$0xff pattern:$0x73625140]
      %v590 = vpack.c.bf16 %v588, %v588
      %v591 = vld [vmem:[%s537 + $0x2] sm:$0x3]
      %v592 = vld [vmem:[%s537 + $0x6] sm:$0x3]
      %595 = vst [vmem:[#allocation1] ss:$4 sm:$0xff] %v591
      %s596 = scalar_lea.vmem [#allocation1], 1
      %597 = vst [vmem:[%s596] ss:$4 sm:$0xff] %v592
      %v598 = vld.sshfl [vmem:[#allocation1] sm:$0xff pattern:$0x73625140]
      %v600 = vpack.c.bf16 %v598, %v598
      %s601 = scalar_lea.vmem [#allocation2], 8
      %v602 = vld [vmem:[%s601] sm:$0x3]
      %v603 = vld [vmem:[%s601 + $0x4] sm:$0x3]
      %606 = vst [vmem:[#allocation1] ss:$4 sm:$0xff] %v602
      %s607 = scalar_lea.vmem [#allocation1], 1
      %608 = vst [vmem:[%s607] ss:$4 sm:$0xff] %v603
      %v609 = vld.sshfl [vmem:[#allocation1] sm:$0xff pattern:$0x73625140]
      %v611 = vpack.c.bf16 %v609, %v609
      %v612 = vld [vmem:[%s601 + $0x1] sm:$0x3]
      %v613 = vld [vmem:[%s601 + $0x5] sm:$0x3]
      %616 = vst [vmem:[#allocation1] ss:$4 sm:$0xff] %v612
      %s617 = scalar_lea.vmem [#allocation1], 1
      %618 = vst [vmem:[%s617] ss:$4 sm:$0xff] %v613
      %v619 = vld.sshfl [vmem:[#allocation1] sm:$0xff pattern:$0x73625140]
      %v621 = vpack.c.bf16 %v619, %v619
      %v622 = vld [vmem:[%s601 + $0x2] sm:$0x3]
      %v623 = vld [vmem:[%s601 + $0x6] sm:$0x3]
      %626 = vst [vmem:[#allocation1] ss:$4 sm:$0xff] %v622
      %s627 = scalar_lea.vmem [#allocation1], 1
      %628 = vst [vmem:[%s627] ss:$4 sm:$0xff] %v623
      %v629 = vld.sshfl [vmem:[#allocation1] sm:$0xff pattern:$0x73625140]
      %v631 = vpack.c.bf16 %v629, %v629
      %v633 = vunpack.c.l.b16 %v560
      %v634 = vpack.c.b16 %v633, %v633
      %635 = vrot.lane.b32.xlu0 %v634, 16
      %v636 = vpop.permute.xlu0 %635
      %v638 = vunpack.c.l.b16 %v570
      %v639 = vpack.c.b16 %v638, %v638
      %640 = vrot.lane.b32.xlu0 %v639, 32
      %v641 = vpop.permute.xlu0 %640
      %v643 = vunpack.c.l.b16 %v580
      %v644 = vpack.c.b16 %v643, %v643
      %645 = vrot.lane.b32.xlu0 %v644, 48
      %v646 = vpop.permute.xlu0 %645
      %v648 = vunpack.c.l.b16 %v590
      %v649 = vpack.c.b16 %v648, %v648
      %650 = vrot.lane.b32.xlu0 %v649, 64
      %v651 = vpop.permute.xlu0 %650
      %v653 = vunpack.c.l.b16 %v600
      %v654 = vpack.c.b16 %v653, %v653
      %655 = vrot.lane.b32.xlu0 %v654, 80
      %v656 = vpop.permute.xlu0 %655
      %v658 = vunpack.c.l.b16 %v611
      %v659 = vpack.c.b16 %v658, %v658
      %660 = vrot.lane.b32.xlu0 %v659, 96
      %v661 = vpop.permute.xlu0 %660
      %v663 = vunpack.c.l.b16 %v621
      %v664 = vpack.c.b16 %v663, %v663
      %665 = vrot.lane.b32.xlu0 %v664, 112
      %v666 = vpop.permute.xlu0 %665
      %vm667 = vcmask 130048
      %v670 = vsel %vm667, %v550, %v636
      %vm671 = vcmask 261120
      %v673 = vsel %vm671, %v670, %v641
      %vm674 = vcmask 392192
      %v676 = vsel %vm674, %v673, %v646
      %vm677 = vcmask 523264
      %v679 = vsel %vm677, %v676, %v651
      %vm680 = vcmask 654336
      %v682 = vsel %vm680, %v679, %v656
      %vm683 = vcmask 785408
      %v685 = vsel %vm683, %v682, %v661
      %vm686 = vcmask 916480
      %v688 = vsel %vm686, %v685, %v666
      %v690 = vld [vmem:[%s1] sm:$0xf]
      %v691 = vld [vmem:[%s1 + $0x4] sm:$0xf]
      %v692 = vld [vmem:[%s1 + $0x8] sm:$0xf]
      %v693 = vld [vmem:[%s1 + $0xc] sm:$0xf]
      %v694 = vld [vmem:[%s1 + $0x10] sm:$0xf]
      %v695 = vld [vmem:[%s1 + $0x14] sm:$0xf]
      %v696 = vld [vmem:[%s1 + $0x18] sm:$0xf]
      %v697 = vld [vmem:[%s1 + $0x1c] sm:$0xf]
      %v698 = vld [vmem:[%s1 + $0x20] sm:$0xf]
      %v699 = vld [vmem:[%s1 + $0x24] sm:$0xf]
      %v700 = vld [vmem:[%s1 + $0x28] sm:$0xf]
      %v701 = vld [vmem:[%s1 + $0x2c] sm:$0xf]
      %v702 = vld [vmem:[%s1 + $0x30] sm:$0xf]
      %v703 = vld [vmem:[%s1 + $0x34] sm:$0xf]
      %v704 = vld [vmem:[%s1 + $0x38] sm:$0xf]
      %v705 = vld [vmem:[%s1 + $0x3c] sm:$0xf]
      %v706 = vld [vmem:[%s1 + $0x40] sm:$0xf]
      %v707 = vld [vmem:[%s1 + $0x44] sm:$0xf]
      %v708 = vld [vmem:[%s5] sm:$0x1]
      %v710 = vperm.slane %v708, 0
      %v730 = vunpack.c.l.b16 %v690
      %v731 = vunpack.c.l.b16 %v691
      %v732 = vunpack.c.l.b16 %v692
      %v733 = vunpack.c.l.b16 %v693
      %v734 = vunpack.c.l.b16 %v694
      %v735 = vunpack.c.l.b16 %v695
      %v736 = vunpack.c.l.b16 %v696
      %v737 = vunpack.c.l.b16 %v697
      %v738 = vunpack.c.l.b16 %v698
      %v739 = vunpack.c.l.b16 %v699
      %v740 = vunpack.c.l.b16 %v700
      %v741 = vunpack.c.l.b16 %v701
      %v742 = vunpack.c.l.b16 %v702
      %v743 = vunpack.c.l.b16 %v703
      %v744 = vunpack.c.l.b16 %v704
      %v745 = vunpack.c.l.b16 %v705
      %v746 = vunpack.c.l.b16 %v706
      %v747 = vunpack.c.l.b16 %v707
      %v748 = vpack.c.b16 %v731, %v730
      %v749 = vpack.c.b16 %v733, %v732
      %v750 = vpack.c.b16 %v735, %v734
      %v751 = vpack.c.b16 %v737, %v736
      %v752 = vpack.c.b16 %v739, %v738
      %v753 = vpack.c.b16 %v741, %v740
      %v754 = vpack.c.b16 %v743, %v742
      %v755 = vpack.c.b16 %v745, %v744
      %v756 = vpack.c.b16 %v747, %v746
      %v767 = vsel %vm667, %v631, 0
      %769 = vmatpush.bf16.msra.mxu0 %v755
      %770 = vmatpush.bf16.msra.mxu0 %v754
      %771 = vmatpush.bf16.msra.mxu0 %v753
      %772 = vmatpush.bf16.msra.mxu0 %v752
      %773 = vmatpush.bf16.msra.mxu0 %v751
      %774 = vmatpush.bf16.msra.mxu0 %v750
      %775 = vmatpush.bf16.msra.mxu0 %v749
      %776 = vmatpush.bf16.msra.mxu0 %v748
      %777 = vmatmul.bf16.gmra.mxu0 %v688
      %v778 = vpop.f32.mrf.mxu0
      %v779 = vadd.f32 %v710, %v778
      %v780 = vpop.f32.mrf.mxu0
      %781 = vdwg.mxu0
      %782 = vmatpush.bf16.msra.mxu0 0
      %783 = vmatpush.bf16.msra.mxu0 0
      %784 = vmatpush.bf16.msra.mxu0 0
      %785 = vmatpush.bf16.msra.mxu0 0
      %786 = vmatpush.bf16.msra.mxu0 0
      %787 = vmatpush.bf16.msra.mxu0 0
      %788 = vmatpush.bf16.msra.mxu0 0
      %789 = vmatpush.bf16.msra.mxu0 %v756
      %790 = vmatmul.bf16.gmra.mxu0 %v767
      %v791 = vpop.f32.mrf.mxu0
      %v792 = vadd.f32 %v779, %v791
      %v793 = vpop.f32.mrf.mxu0
      %794 = vdwg.mxu0
      %v795 = vmax.f32 %v792, 0.0
      %v797 = vrot.slane %v795, 1
      %v798 = vrot.slane %v795, 2
      %v799 = vrot.slane %v795, 3
      %v800 = vperm.slane %v795, 0
      %v801 = vperm.slane %v797, 0
      %v802 = vperm.slane %v798, 0
      %v803 = vperm.slane %v799, 0
      %vm804 = vcmask 259072
      %805 = vst.msk [vmem:[#allocation3] sm:$0x3f] %vm804, 0.0
      %s806 = scalar_lea.vmem [#allocation3], 40
      %807 = vst.msk [vmem:[%s806] sm:$0x3f] %vm804, 0.0
      %vm808 = vcmask 253952
      %809 = vst.msk [vmem:[#allocation3] sm:$0x1] %vm808, 0.0
      %810 = vst.msk [vmem:[#allocation3 + $0x8] sm:$0x1] %vm808, 0.0
      %811 = vst.msk [vmem:[#allocation3 + $0x10] sm:$0x1] %vm808, 0.0
      %812 = vst.msk [vmem:[#allocation3 + $0x18] sm:$0x1] %vm808, 0.0
      %813 = vst.msk [vmem:[#allocation3 + $0x20] sm:$0x1] %vm808, 0.0
      %814 = vst.msk [vmem:[#allocation3 + $0x28] sm:$0x1] %vm808, 0.0
      %815 = vst.msk [vmem:[#allocation3 + $0x5] sm:$0x1] %vm808, 0.0
      %816 = vst.msk [vmem:[#allocation3 + $0xd] sm:$0x1] %vm808, 0.0
      %817 = vst.msk [vmem:[#allocation3 + $0x15] sm:$0x1] %vm808, 0.0
      %818 = vst.msk [vmem:[#allocation3 + $0x1d] sm:$0x1] %vm808, 0.0
      %819 = vst.msk [vmem:[#allocation3 + $0x25] sm:$0x1] %vm808, 0.0
      %820 = vst.msk [vmem:[#allocation3 + $0x2d] sm:$0x1] %vm808, 0.0
      %v821 = vld [vmem:[%s500] sm:$0xf]
      %v822 = vld [vmem:[%s500 + $0x4] sm:$0xf]
      %v823 = vld [vmem:[%s500 + $0x8] sm:$0xf]
      %v824 = vld [vmem:[%s500 + $0xc] sm:$0xf]
      %825 = vst [vmem:[#allocation1] ss:$4 sm:$0xff] %v800
      %s826 = scalar_lea.vmem [#allocation1], 1
      %827 = vst [vmem:[%s826] ss:$4 sm:$0xff] %v801
      %v828 = vld.sshfl [vmem:[#allocation1] sm:$0xff pattern:$0x73625140]
      %s829 = scalar_lea.vmem [#allocation1], 32
      %830 = vst [vmem:[%s829] ss:$4 sm:$0xff] %v800
      %s831 = scalar_lea.vmem [#allocation1], 33
      %832 = vst [vmem:[%s831] ss:$4 sm:$0xff] %v801
      %v833 = vld.sshfl [vmem:[#allocation1 + $0x20] sm:$0xff pattern:$0x73625140]
      %834 = vst [vmem:[#allocation1] ss:$4 sm:$0xff] %v802
      %835 = vst [vmem:[%s826] ss:$4 sm:$0xff] %v803
      %v836 = vld.sshfl [vmem:[#allocation1] sm:$0xff pattern:$0x73625140]
      %837 = vst [vmem:[%s829] ss:$4 sm:$0xff] %v802
      %838 = vst [vmem:[%s831] ss:$4 sm:$0xff] %v803
      %v839 = vld.sshfl [vmem:[#allocation1 + $0x20] sm:$0xff pattern:$0x73625140]
      %840 = vrot.lane.b32.xlu0 %v828, 16
      %v841 = vpop.permute.xlu0 %840
      %842 = vrot.lane.b32.xlu0 %v833, 16
      %v843 = vpop.permute.xlu0 %842
      %844 = vrot.lane.b32.xlu0 %v836, 16
      %v845 = vpop.permute.xlu0 %844
      %846 = vrot.lane.b32.xlu0 %v839, 16
      %v847 = vpop.permute.xlu0 %846
      %v852 = vsel %vm667, %v821, %v841
      %v853 = vsel %vm667, %v822, %v843
      %v854 = vsel %vm667, %v823, %v845
      %v855 = vsel %vm667, %v824, %v847
      %s856 = scalar_lea.vmem [#allocation3], 8
      %vm857 = vcmask 257024
      %858 = vst.msk [vmem:[%s856 + $0x1] sm:$0xf] %vm857, %v852
      %859 = vst.msk [vmem:[%s856 + $0x9] sm:$0xf] %vm857, %v853
      %860 = vst.msk [vmem:[%s856 + $0x11] sm:$0xf] %vm857, %v854
      %861 = vst.msk [vmem:[%s856 + $0x19] sm:$0xf] %vm857, %v855
      %v862 = vld [vmem:[#allocation3] sm:$0xf]
      %v863 = vld [vmem:[#allocation3 + $0x8] sm:$0xf]
      %v864 = vld [vmem:[#allocation3 + $0x10] sm:$0xf]
      %v865 = vld [vmem:[#allocation3 + $0x18] sm:$0xf]
      %870 = vst [vmem:[#allocation1] ss:$2 sm:$0xff] %v862
      %s871 = scalar_lea.vmem [#allocation1], 1
      %872 = vst [vmem:[%s871] ss:$2 sm:$0xff] %v863
      %s873 = scalar_lea.vmem [#allocation1], 16
      %874 = vst [vmem:[%s873] ss:$2 sm:$0xff] %v864
      %s875 = scalar_lea.vmem [#allocation1], 17
      %876 = vst [vmem:[%s875] ss:$2 sm:$0xff] %v865
      %v877 = vld.sshfl [vmem:[#allocation1] sm:$0xff pattern:$0x75316420]
      %v878 = vld.sshfl [vmem:[#allocation1 + $0x10] sm:$0xff pattern:$0x75316420]
      %v881 = vpack.c.bf16 %v877, %v877
      %v882 = vpack.c.bf16 %v878, %v878
      %v883 = vld [vmem:[#allocation3 + $0x1] sm:$0xf]
      %v884 = vld [vmem:[#allocation3 + $0x9] sm:$0xf]
      %v885 = vld [vmem:[#allocation3 + $0x11] sm:$0xf]
      %v886 = vld [vmem:[#allocation3 + $0x19] sm:$0xf]
      %891 = vst [vmem:[#allocation1] ss:$2 sm:$0xff] %v883
      %s892 = scalar_lea.vmem [#allocation1], 1
      %893 = vst [vmem:[%s892] ss:$2 sm:$0xff] %v884
      %s894 = scalar_lea.vmem [#allocation1], 16
      %895 = vst [vmem:[%s894] ss:$2 sm:$0xff] %v885
      %s896 = scalar_lea.vmem [#allocation1], 17
      %897 = vst [vmem:[%s896] ss:$2 sm:$0xff] %v886
      %v898 = vld.sshfl [vmem:[#allocation1] sm:$0xff pattern:$0x75316420]
      %v899 = vld.sshfl [vmem:[#allocation1 + $0x10] sm:$0xff pattern:$0x75316420]
      %v902 = vpack.c.bf16 %v898, %v898
      %v903 = vpack.c.bf16 %v899, %v899
      %v904 = vld [vmem:[#allocation3 + $0x2] sm:$0xf]
      %v905 = vld [vmem:[#allocation3 + $0xa] sm:$0xf]
      %v906 = vld [vmem:[#allocation3 + $0x12] sm:$0xf]
      %v907 = vld [vmem:[#allocation3 + $0x1a] sm:$0xf]
      %912 = vst [vmem:[#allocation1] ss:$2 sm:$0xff] %v904
      %s913 = scalar_lea.vmem [#allocation1], 1
      %914 = vst [vmem:[%s913] ss:$2 sm:$0xff] %v905
      %s915 = scalar_lea.vmem [#allocation1], 16
      %916 = vst [vmem:[%s915] ss:$2 sm:$0xff] %v906
      %s917 = scalar_lea.vmem [#allocation1], 17
      %918 = vst [vmem:[%s917] ss:$2 sm:$0xff] %v907
      %v919 = vld.sshfl [vmem:[#allocation1] sm:$0xff pattern:$0x75316420]
      %v920 = vld.sshfl [vmem:[#allocation1 + $0x10] sm:$0xff pattern:$0x75316420]
      %v923 = vpack.c.bf16 %v919, %v919
      %v924 = vpack.c.bf16 %v920, %v920
      %v925 = vld [vmem:[%s856] sm:$0xf]
      %v926 = vld [vmem:[%s856 + $0x8] sm:$0xf]
      %v927 = vld [vmem:[%s856 + $0x10] sm:$0xf]
      %v928 = vld [vmem:[%s856 + $0x18] sm:$0xf]
      %933 = vst [vmem:[#allocation1] ss:$2 sm:$0xff] %v925
      %s934 = scalar_lea.vmem [#allocation1], 1
      %935 = vst [vmem:[%s934] ss:$2 sm:$0xff] %v926
      %s936 = scalar_lea.vmem [#allocation1], 16
      %937 = vst [vmem:[%s936] ss:$2 sm:$0xff] %v927
      %s938 = scalar_lea.vmem [#allocation1], 17
      %939 = vst [vmem:[%s938] ss:$2 sm:$0xff] %v928
      %v940 = vld.sshfl [vmem:[#allocation1] sm:$0xff pattern:$0x75316420]
      %v941 = vld.sshfl [vmem:[#allocation1 + $0x10] sm:$0xff pattern:$0x75316420]
      %v944 = vpack.c.bf16 %v940, %v940
      %v945 = vpack.c.bf16 %v941, %v941
      %v946 = vld [vmem:[%s856 + $0x1] sm:$0xf]
      %v947 = vld [vmem:[%s856 + $0x9] sm:$0xf]
      %v948 = vld [vmem:[%s856 + $0x11] sm:$0xf]
      %v949 = vld [vmem:[%s856 + $0x19] sm:$0xf]
      %954 = vst [vmem:[#allocation1] ss:$2 sm:$0xff] %v946
      %s955 = scalar_lea.vmem [#allocation1], 1
      %956 = vst [vmem:[%s955] ss:$2 sm:$0xff] %v947
      %s957 = scalar_lea.vmem [#allocation1], 16
      %958 = vst [vmem:[%s957] ss:$2 sm:$0xff] %v948
      %s959 = scalar_lea.vmem [#allocation1], 17
      %960 = vst [vmem:[%s959] ss:$2 sm:$0xff] %v949
      %v961 = vld.sshfl [vmem:[#allocation1] sm:$0xff pattern:$0x75316420]
      %v962 = vld.sshfl [vmem:[#allocation1 + $0x10] sm:$0xff pattern:$0x75316420]
      %v965 = vpack.c.bf16 %v961, %v961
      %v966 = vpack.c.bf16 %v962, %v962
      %v967 = vld [vmem:[%s856 + $0x2] sm:$0xf]
      %v968 = vld [vmem:[%s856 + $0xa] sm:$0xf]
      %v969 = vld [vmem:[%s856 + $0x12] sm:$0xf]
      %v970 = vld [vmem:[%s856 + $0x1a] sm:$0xf]
      %975 = vst [vmem:[#allocation1] ss:$2 sm:$0xff] %v967
      %s976 = scalar_lea.vmem [#allocation1], 1
      %977 = vst [vmem:[%s976] ss:$2 sm:$0xff] %v968
      %s978 = scalar_lea.vmem [#allocation1], 16
      %979 = vst [vmem:[%s978] ss:$2 sm:$0xff] %v969
      %s980 = scalar_lea.vmem [#allocation1], 17
      %981 = vst [vmem:[%s980] ss:$2 sm:$0xff] %v970
      %v982 = vld.sshfl [vmem:[#allocation1] sm:$0xff pattern:$0x75316420]
      %v983 = vld.sshfl [vmem:[#allocation1 + $0x10] sm:$0xff pattern:$0x75316420]
      %v986 = vpack.c.bf16 %v982, %v982
      %v987 = vpack.c.bf16 %v983, %v983
      %s988 = scalar_lea.vmem [#allocation3], 16
      %v989 = vld [vmem:[%s988] sm:$0xf]
      %v990 = vld [vmem:[%s988 + $0x8] sm:$0xf]
      %v991 = vld [vmem:[%s988 + $0x10] sm:$0xf]
      %v992 = vld [vmem:[%s988 + $0x18] sm:$0xf]
      %997 = vst [vmem:[#allocation1] ss:$2 sm:$0xff] %v989
      %s998 = scalar_lea.vmem [#allocation1], 1
      %999 = vst [vmem:[%s998] ss:$2 sm:$0xff] %v990
      %s1000 = scalar_lea.vmem [#allocation1], 16
      %1001 = vst [vmem:[%s1000] ss:$2 sm:$0xff] %v991
      %s1002 = scalar_lea.vmem [#allocation1], 17
      %1003 = vst [vmem:[%s1002] ss:$2 sm:$0xff] %v992
      %v1004 = vld.sshfl [vmem:[#allocation1] sm:$0xff pattern:$0x75316420]
      %v1005 = vld.sshfl [vmem:[#allocation1 + $0x10] sm:$0xff pattern:$0x75316420]
      %v1008 = vpack.c.bf16 %v1004, %v1004
      %v1009 = vpack.c.bf16 %v1005, %v1005
      %v1010 = vld [vmem:[%s988 + $0x1] sm:$0xf]
      %v1011 = vld [vmem:[%s988 + $0x9] sm:$0xf]
      %v1012 = vld [vmem:[%s988 + $0x11] sm:$0xf]
      %v1013 = vld [vmem:[%s988 + $0x19] sm:$0xf]
      %1018 = vst [vmem:[#allocation1] ss:$2 sm:$0xff] %v1010
      %s1019 = scalar_lea.vmem [#allocation1], 1
      %1020 = vst [vmem:[%s1019] ss:$2 sm:$0xff] %v1011
      %s1021 = scalar_lea.vmem [#allocation1], 16
      %1022 = vst [vmem:[%s1021] ss:$2 sm:$0xff] %v1012
      %s1023 = scalar_lea.vmem [#allocation1], 17
      %1024 = vst [vmem:[%s1023] ss:$2 sm:$0xff] %v1013
      %v1025 = vld.sshfl [vmem:[#allocation1] sm:$0xff pattern:$0x75316420]
      %v1026 = vld.sshfl [vmem:[#allocation1 + $0x10] sm:$0xff pattern:$0x75316420]
      %v1029 = vpack.c.bf16 %v1025, %v1025
      %v1030 = vpack.c.bf16 %v1026, %v1026
      %v1031 = vld [vmem:[%s988 + $0x2] sm:$0xf]
      %v1032 = vld [vmem:[%s988 + $0xa] sm:$0xf]
      %v1033 = vld [vmem:[%s988 + $0x12] sm:$0xf]
      %v1034 = vld [vmem:[%s988 + $0x1a] sm:$0xf]
      %1039 = vst [vmem:[#allocation1] ss:$2 sm:$0xff] %v1031
      %s1040 = scalar_lea.vmem [#allocation1], 1
      %1041 = vst [vmem:[%s1040] ss:$2 sm:$0xff] %v1032
      %s1042 = scalar_lea.vmem [#allocation1], 16
      %1043 = vst [vmem:[%s1042] ss:$2 sm:$0xff] %v1033
      %s1044 = scalar_lea.vmem [#allocation1], 17
      %1045 = vst [vmem:[%s1044] ss:$2 sm:$0xff] %v1034
      %v1046 = vld.sshfl [vmem:[#allocation1] sm:$0xff pattern:$0x75316420]
      %v1047 = vld.sshfl [vmem:[#allocation1 + $0x10] sm:$0xff pattern:$0x75316420]
      %v1050 = vpack.c.bf16 %v1046, %v1046
      %v1051 = vpack.c.bf16 %v1047, %v1047
      %v1054 = vunpack.c.l.b16 %v881
      %v1055 = vunpack.c.l.b16 %v882
      %v1056 = vpack.c.b16 %v1055, %v1054
      %v1059 = vunpack.c.l.b16 %v902
      %v1060 = vunpack.c.l.b16 %v903
      %v1061 = vpack.c.b16 %v1060, %v1059
      %1062 = vrot.lane.b32.xlu0 %v1061, 32
      %v1063 = vpop.permute.xlu0 %1062
      %v1066 = vunpack.c.l.b16 %v923
      %v1067 = vunpack.c.l.b16 %v924
      %v1068 = vpack.c.b16 %v1067, %v1066
      %1069 = vrot.lane.b32.xlu0 %v1068, 64
      %v1070 = vpop.permute.xlu0 %1069
      %v1073 = vunpack.c.l.b16 %v944
      %v1074 = vunpack.c.l.b16 %v945
      %v1075 = vpack.c.b16 %v1074, %v1073
      %1076 = vrot.lane.b32.xlu0 %v1075, 96
      %v1077 = vpop.permute.xlu0 %1076
      %v1080 = vunpack.c.l.b16 %v965
      %v1081 = vunpack.c.l.b16 %v966
      %v1082 = vpack.c.b16 %v1081, %v1080
      %v1085 = vunpack.c.l.b16 %v986
      %v1086 = vunpack.c.l.b16 %v987
      %v1087 = vpack.c.b16 %v1086, %v1085
      %1088 = vrot.lane.b32.xlu0 %v1087, 32
      %v1089 = vpop.permute.xlu0 %1088
      %v1092 = vunpack.c.l.b16 %v1008
      %v1093 = vunpack.c.l.b16 %v1009
      %v1094 = vpack.c.b16 %v1093, %v1092
      %1095 = vrot.lane.b32.xlu0 %v1094, 64
      %v1096 = vpop.permute.xlu0 %1095
      %v1099 = vunpack.c.l.b16 %v1029
      %v1100 = vunpack.c.l.b16 %v1030
      %v1101 = vpack.c.b16 %v1100, %v1099
      %1102 = vrot.lane.b32.xlu0 %v1101, 96
      %v1103 = vpop.permute.xlu0 %1102
      %v1106 = vunpack.c.l.b16 %v1050
      %v1107 = vunpack.c.l.b16 %v1051
      %v1108 = vpack.c.b16 %v1107, %v1106
      %v1111 = vsel %vm671, %v1056, %v1063
      %v1113 = vsel %vm677, %v1111, %v1070
      %v1115 = vsel %vm683, %v1113, %v1077
      %v1119 = vsel %vm671, %v1082, %v1089
      %v1121 = vsel %vm677, %v1119, %v1096
      %v1123 = vsel %vm683, %v1121, %v1103
      %v1125 = vld [vmem:[%s2] sm:$0xf]
      %v1126 = vld [vmem:[%s2 + $0x4] sm:$0xf]
      %v1127 = vld [vmem:[%s2 + $0x8] sm:$0xf]
      %v1128 = vld [vmem:[%s2 + $0xc] sm:$0xf]
      %v1129 = vld [vmem:[%s2 + $0x10] sm:$0xf]
      %v1130 = vld [vmem:[%s2 + $0x14] sm:$0xf]
      %v1131 = vld [vmem:[%s2 + $0x18] sm:$0xf]
      %v1132 = vld [vmem:[%s2 + $0x1c] sm:$0xf]
      %v1133 = vld [vmem:[%s2 + $0x20] sm:$0xf]
      %v1134 = vld [vmem:[%s2 + $0x24] sm:$0xf]
      %v1135 = vld [vmem:[%s2 + $0x28] sm:$0xf]
      %v1136 = vld [vmem:[%s2 + $0x2c] sm:$0xf]
      %v1137 = vld [vmem:[%s2 + $0x30] sm:$0xf]
      %v1138 = vld [vmem:[%s2 + $0x34] sm:$0xf]
      %v1139 = vld [vmem:[%s2 + $0x38] sm:$0xf]
      %v1140 = vld [vmem:[%s2 + $0x3c] sm:$0xf]
      %v1141 = vld [vmem:[%s2 + $0x40] sm:$0xf]
      %v1142 = vld [vmem:[%s2 + $0x44] sm:$0xf]
      %v1143 = vld [vmem:[%s2 + $0x48] sm:$0xf]
      %v1144 = vld [vmem:[%s2 + $0x4c] sm:$0xf]
      %v1145 = vld [vmem:[%s2 + $0x50] sm:$0xf]
      %v1146 = vld [vmem:[%s2 + $0x54] sm:$0xf]
      %v1147 = vld [vmem:[%s2 + $0x58] sm:$0xf]
      %v1148 = vld [vmem:[%s2 + $0x5c] sm:$0xf]
      %v1149 = vld [vmem:[%s2 + $0x60] sm:$0xf]
      %v1150 = vld [vmem:[%s2 + $0x64] sm:$0xf]
      %v1151 = vld [vmem:[%s2 + $0x68] sm:$0xf]
      %v1152 = vld [vmem:[%s2 + $0x6c] sm:$0xf]
      %v1153 = vld [vmem:[%s2 + $0x70] sm:$0xf]
      %v1154 = vld [vmem:[%s2 + $0x74] sm:$0xf]
      %v1155 = vld [vmem:[%s2 + $0x78] sm:$0xf]
      %v1156 = vld [vmem:[%s2 + $0x7c] sm:$0xf]
      %v1157 = vld [vmem:[%s2 + $0x80] sm:$0xf]
      %v1158 = vld [vmem:[%s2 + $0x84] sm:$0xf]
      %v1159 = vld [vmem:[%s2 + $0x88] sm:$0xf]
      %v1160 = vld [vmem:[%s2 + $0x8c] sm:$0xf]
      %v1161 = vld [vmem:[%s6] sm:$0x1]
      %v1163 = vperm.slane %v1161, 0
      %v1201 = vunpack.c.l.b16 %v1125
      %v1202 = vunpack.c.l.b16 %v1126
      %v1203 = vunpack.c.l.b16 %v1127
      %v1204 = vunpack.c.l.b16 %v1128
      %v1205 = vunpack.c.l.b16 %v1129
      %v1206 = vunpack.c.l.b16 %v1130
      %v1207 = vunpack.c.l.b16 %v1131
      %v1208 = vunpack.c.l.b16 %v1132
      %v1209 = vunpack.c.l.b16 %v1133
      %v1210 = vunpack.c.l.b16 %v1134
      %v1211 = vunpack.c.l.b16 %v1135
      %v1212 = vunpack.c.l.b16 %v1136
      %v1213 = vunpack.c.l.b16 %v1137
      %v1214 = vunpack.c.l.b16 %v1138
      %v1215 = vunpack.c.l.b16 %v1139
      %v1216 = vunpack.c.l.b16 %v1140
      %v1217 = vunpack.c.l.b16 %v1141
      %v1218 = vunpack.c.l.b16 %v1142
      %v1219 = vunpack.c.l.b16 %v1143
      %v1220 = vunpack.c.l.b16 %v1144
      %v1221 = vunpack.c.l.b16 %v1145
      %v1222 = vunpack.c.l.b16 %v1146
      %v1223 = vunpack.c.l.b16 %v1147
      %v1224 = vunpack.c.l.b16 %v1148
      %v1225 = vunpack.c.l.b16 %v1149
      %v1226 = vunpack.c.l.b16 %v1150
      %v1227 = vunpack.c.l.b16 %v1151
      %v1228 = vunpack.c.l.b16 %v1152
      %v1229 = vunpack.c.l.b16 %v1153
      %v1230 = vunpack.c.l.b16 %v1154
      %v1231 = vunpack.c.l.b16 %v1155
      %v1232 = vunpack.c.l.b16 %v1156
      %v1233 = vunpack.c.l.b16 %v1157
      %v1234 = vunpack.c.l.b16 %v1158
      %v1235 = vunpack.c.l.b16 %v1159
      %v1236 = vunpack.c.l.b16 %v1160
      %v1237 = vpack.c.b16 %v1202, %v1201
      %v1238 = vpack.c.b16 %v1204, %v1203
      %v1239 = vpack.c.b16 %v1206, %v1205
      %v1240 = vpack.c.b16 %v1208, %v1207
      %v1241 = vpack.c.b16 %v1210, %v1209
      %v1242 = vpack.c.b16 %v1212, %v1211
      %v1243 = vpack.c.b16 %v1214, %v1213
      %v1244 = vpack.c.b16 %v1216, %v1215
      %v1245 = vpack.c.b16 %v1218, %v1217
      %v1246 = vpack.c.b16 %v1220, %v1219
      %v1247 = vpack.c.b16 %v1222, %v1221
      %v1248 = vpack.c.b16 %v1224, %v1223
      %v1249 = vpack.c.b16 %v1226, %v1225
      %v1250 = vpack.c.b16 %v1228, %v1227
      %v1251 = vpack.c.b16 %v1230, %v1229
      %v1252 = vpack.c.b16 %v1232, %v1231
      %v1253 = vpack.c.b16 %v1234, %v1233
      %v1254 = vpack.c.b16 %v1236, %v1235
      %v1274 = vsel %vm671, %v1108, 0
      %1276 = vmatpush.bf16.msra.mxu0 %v1244
      %1277 = vmatpush.bf16.msra.mxu0 %v1243
      %1278 = vmatpush.bf16.msra.mxu0 %v1242
      %1279 = vmatpush.bf16.msra.mxu0 %v1241
      %1280 = vmatpush.bf16.msra.mxu0 %v1240
      %1281 = vmatpush.bf16.msra.mxu0 %v1239
      %1282 = vmatpush.bf16.msra.mxu0 %v1238
      %1283 = vmatpush.bf16.msra.mxu0 %v1237
      %1284 = vmatmul.bf16.gmra.mxu0 %v1115
      %v1285 = vpop.f32.mrf.mxu0
      %v1286 = vadd.f32 %v1163, %v1285
      %v1287 = vpop.f32.mrf.mxu0
      %v1288 = vadd.f32 %v1163, %v1287
      %1289 = vdwg.mxu0
      %1290 = vmatpush.bf16.msra.mxu0 %v1252
      %1291 = vmatpush.bf16.msra.mxu0 %v1251
      %1292 = vmatpush.bf16.msra.mxu0 %v1250
      %1293 = vmatpush.bf16.msra.mxu0 %v1249
      %1294 = vmatpush.bf16.msra.mxu0 %v1248
      %1295 = vmatpush.bf16.msra.mxu0 %v1247
      %1296 = vmatpush.bf16.msra.mxu0 %v1246
      %1297 = vmatpush.bf16.msra.mxu0 %v1245
      %1298 = vmatmul.bf16.gmra.mxu0 %v1123
      %v1299 = vpop.f32.mrf.mxu0
      %v1300 = vadd.f32 %v1286, %v1299
      %v1301 = vpop.f32.mrf.mxu0
      %v1302 = vadd.f32 %v1288, %v1301
      %1303 = vdwg.mxu0
      %1304 = vmatpush.bf16.msra.mxu0 0
      %1305 = vmatpush.bf16.msra.mxu0 0
      %1306 = vmatpush.bf16.msra.mxu0 0
      %1307 = vmatpush.bf16.msra.mxu0 0
      %1308 = vmatpush.bf16.msra.mxu0 0
      %1309 = vmatpush.bf16.msra.mxu0 0
      %1310 = vmatpush.bf16.msra.mxu0 %v1254
      %1311 = vmatpush.bf16.msra.mxu0 %v1253
      %1312 = vmatmul.bf16.gmra.mxu0 %v1274
      %v1313 = vpop.f32.mrf.mxu0
      %v1314 = vadd.f32 %v1300, %v1313
      %v1315 = vpop.f32.mrf.mxu0
      %v1316 = vadd.f32 %v1302, %v1315
      %1317 = vdwg.mxu0
      %v1318 = vmax.f32 %v1314, 0.0
      %v1319 = vmax.f32 %v1316, 0.0
      %v1322 = vrot.slane %v1318, 1
      %v1323 = vrot.slane %v1318, 2
      %v1324 = vrot.slane %v1318, 3
      %v1325 = vrot.slane %v1318, 4
      %v1326 = vrot.slane %v1318, 5
      %v1327 = vrot.slane %v1318, 6
      %v1328 = vrot.slane %v1318, 7
      %v1329 = vrot.slane %v1319, 1
      %v1330 = vrot.slane %v1319, 2
      %v1331 = vrot.slane %v1319, 3
      %v1332 = vrot.slane %v1319, 4
      %v1333 = vrot.slane %v1319, 5
      %v1334 = vrot.slane %v1319, 6
      %v1335 = vrot.slane %v1319, 7
      %v1336 = vperm.slane %v1318, 0
      %v1337 = vperm.slane %v1322, 0
      %v1338 = vperm.slane %v1323, 0
      %v1339 = vperm.slane %v1324, 0
      %v1340 = vperm.slane %v1325, 0
      %v1341 = vperm.slane %v1326, 0
      %v1342 = vperm.slane %v1327, 0
      %v1343 = vperm.slane %v1328, 0
      %v1344 = vperm.slane %v1319, 0
      %v1345 = vperm.slane %v1329, 0
      %v1346 = vperm.slane %v1330, 0
      %v1347 = vperm.slane %v1331, 0
      %v1348 = vperm.slane %v1332, 0
      %v1349 = vperm.slane %v1333, 0
      %v1350 = vperm.slane %v1334, 0
      %v1351 = vperm.slane %v1335, 0
      %1352 = vst.msk [vmem:[#allocation4] sm:$0xff] %vm671, 0.0
      %vm1353 = vcmask 254976
      %1354 = vst.msk [vmem:[#allocation4 + $0x8] sm:$0x3] %vm1353, 0.0
      %s1355 = scalar_lea.vmem [#allocation4], 144
      %1356 = vst.msk [vmem:[%s1355] sm:$0xff] %vm671, 0.0
      %1357 = vst.msk [vmem:[%s1355 + $0x8] sm:$0x3] %vm1353, 0.0
      %1358 = vst.msk [vmem:[#allocation4] sm:$0x1] %vm808, 0.0
      %1359 = vst.msk [vmem:[#allocation4 + $0x10] sm:$0x1] %vm808, 0.0
      %1360 = vst.msk [vmem:[#allocation4 + $0x20] sm:$0x1] %vm808, 0.0
      %1361 = vst.msk [vmem:[#allocation4 + $0x30] sm:$0x1] %vm808, 0.0
      %1362 = vst.msk [vmem:[#allocation4 + $0x40] sm:$0x1] %vm808, 0.0
      %1363 = vst.msk [vmem:[#allocation4 + $0x50] sm:$0x1] %vm808, 0.0
      %1364 = vst.msk [vmem:[#allocation4 + $0x60] sm:$0x1] %vm808, 0.0
      %1365 = vst.msk [vmem:[#allocation4 + $0x70] sm:$0x1] %vm808, 0.0
      %1366 = vst.msk [vmem:[#allocation4 + $0x80] sm:$0x1] %vm808, 0.0
      %1367 = vst.msk [vmem:[#allocation4 + $0x90] sm:$0x1] %vm808, 0.0
      %1368 = vst.msk [vmem:[#allocation4 + $0x9] sm:$0x1] %vm808, 0.0
      %1369 = vst.msk [vmem:[#allocation4 + $0x19] sm:$0x1] %vm808, 0.0
      %1370 = vst.msk [vmem:[#allocation4 + $0x29] sm:$0x1] %vm808, 0.0
      %1371 = vst.msk [vmem:[#allocation4 + $0x39] sm:$0x1] %vm808, 0.0
      %1372 = vst.msk [vmem:[#allocation4 + $0x49] sm:$0x1] %vm808, 0.0
      %1373 = vst.msk [vmem:[#allocation4 + $0x59] sm:$0x1] %vm808, 0.0
      %1374 = vst.msk [vmem:[#allocation4 + $0x69] sm:$0x1] %vm808, 0.0
      %1375 = vst.msk [vmem:[#allocation4 + $0x79] sm:$0x1] %vm808, 0.0
      %1376 = vst.msk [vmem:[#allocation4 + $0x89] sm:$0x1] %vm808, 0.0
      %1377 = vst.msk [vmem:[#allocation4 + $0x99] sm:$0x1] %vm808, 0.0
      %v1378 = vld [vmem:[%s505] sm:$0xff]
      %v1379 = vld [vmem:[%s505 + $0x8] sm:$0xff]
      %v1380 = vld [vmem:[%s505 + $0x10] sm:$0xff]
      %v1381 = vld [vmem:[%s505 + $0x18] sm:$0xff]
      %v1382 = vld [vmem:[%s505 + $0x20] sm:$0xff]
      %v1383 = vld [vmem:[%s505 + $0x28] sm:$0xff]
      %v1384 = vld [vmem:[%s505 + $0x30] sm:$0xff]
      %v1385 = vld [vmem:[%s505 + $0x38] sm:$0xff]
      %1386 = vst [vmem:[#allocation1] ss:$4 sm:$0xff] %v1336
      %s1387 = scalar_lea.vmem [#allocation1], 1
      %1388 = vst [vmem:[%s1387] ss:$4 sm:$0xff] %v1337
      %s1389 = scalar_lea.vmem [#allocation1], 2
      %1390 = vst [vmem:[%s1389] ss:$4 sm:$0xff] %v1338
      %s1391 = scalar_lea.vmem [#allocation1], 3
      %1392 = vst [vmem:[%s1391] ss:$4 sm:$0xff] %v1339
      %v1393 = vld.sshfl [vmem:[#allocation1] sm:$0xff pattern:$0x73625140]
      %s1394 = scalar_lea.vmem [#allocation1], 32
      %1395 = vst [vmem:[%s1394] ss:$4 sm:$0xff] %v1336
      %s1396 = scalar_lea.vmem [#allocation1], 33
      %1397 = vst [vmem:[%s1396] ss:$4 sm:$0xff] %v1337
      %s1398 = scalar_lea.vmem [#allocation1], 34
      %1399 = vst [vmem:[%s1398] ss:$4 sm:$0xff] %v1338
      %s1400 = scalar_lea.vmem [#allocation1], 35
      %1401 = vst [vmem:[%s1400] ss:$4 sm:$0xff] %v1339
      %v1402 = vld.sshfl [vmem:[#allocation1 + $0x20] sm:$0xff pattern:$0x73625140]
      %1403 = vst [vmem:[#allocation1] ss:$4 sm:$0xff] %v1340
      %1404 = vst [vmem:[%s1387] ss:$4 sm:$0xff] %v1341
      %1405 = vst [vmem:[%s1389] ss:$4 sm:$0xff] %v1342
      %1406 = vst [vmem:[%s1391] ss:$4 sm:$0xff] %v1343
      %v1407 = vld.sshfl [vmem:[#allocation1] sm:$0xff pattern:$0x73625140]
      %1408 = vst [vmem:[%s1394] ss:$4 sm:$0xff] %v1340
      %1409 = vst [vmem:[%s1396] ss:$4 sm:$0xff] %v1341
      %1410 = vst [vmem:[%s1398] ss:$4 sm:$0xff] %v1342
      %1411 = vst [vmem:[%s1400] ss:$4 sm:$0xff] %v1343
      %v1412 = vld.sshfl [vmem:[#allocation1 + $0x20] sm:$0xff pattern:$0x73625140]
      %1413 = vst [vmem:[#allocation1] ss:$4 sm:$0xff] %v1344
      %1414 = vst [vmem:[%s1387] ss:$4 sm:$0xff] %v1345
      %1415 = vst [vmem:[%s1389] ss:$4 sm:$0xff] %v1346
      %1416 = vst [vmem:[%s1391] ss:$4 sm:$0xff] %v1347
      %v1417 = vld.sshfl [vmem:[#allocation1] sm:$0xff pattern:$0x73625140]
      %1418 = vst [vmem:[%s1394] ss:$4 sm:$0xff] %v1344
      %1419 = vst [vmem:[%s1396] ss:$4 sm:$0xff] %v1345
      %1420 = vst [vmem:[%s1398] ss:$4 sm:$0xff] %v1346
      %1421 = vst [vmem:[%s1400] ss:$4 sm:$0xff] %v1347
      %v1422 = vld.sshfl [vmem:[#allocation1 + $0x20] sm:$0xff pattern:$0x73625140]
      %1423 = vst [vmem:[#allocation1] ss:$4 sm:$0xff] %v1348
      %1424 = vst [vmem:[%s1387] ss:$4 sm:$0xff] %v1349
      %1425 = vst [vmem:[%s1389] ss:$4 sm:$0xff] %v1350
      %1426 = vst [vmem:[%s1391] ss:$4 sm:$0xff] %v1351
      %v1427 = vld.sshfl [vmem:[#allocation1] sm:$0xff pattern:$0x73625140]
      %1428 = vst [vmem:[%s1394] ss:$4 sm:$0xff] %v1348
      %1429 = vst [vmem:[%s1396] ss:$4 sm:$0xff] %v1349
      %1430 = vst [vmem:[%s1398] ss:$4 sm:$0xff] %v1350
      %1431 = vst [vmem:[%s1400] ss:$4 sm:$0xff] %v1351
      %v1432 = vld.sshfl [vmem:[#allocation1 + $0x20] sm:$0xff pattern:$0x73625140]
      %1433 = vrot.lane.b32.xlu0 %v1393, 16
      %v1434 = vpop.permute.xlu0 %1433
      %1435 = vrot.lane.b32.xlu0 %v1402, 16
      %v1436 = vpop.permute.xlu0 %1435
      %1437 = vrot.lane.b32.xlu0 %v1407, 16
      %v1438 = vpop.permute.xlu0 %1437
      %1439 = vrot.lane.b32.xlu0 %v1412, 16
      %v1440 = vpop.permute.xlu0 %1439
      %1441 = vrot.lane.b32.xlu0 %v1417, 16
      %v1442 = vpop.permute.xlu0 %1441
      %1443 = vrot.lane.b32.xlu0 %v1422, 16
      %v1444 = vpop.permute.xlu0 %1443
      %1445 = vrot.lane.b32.xlu0 %v1427, 16
      %v1446 = vpop.permute.xlu0 %1445
      %1447 = vrot.lane.b32.xlu0 %v1432, 16
      %v1448 = vpop.permute.xlu0 %1447
      %v1457 = vsel %vm667, %v1378, %v1434
      %v1458 = vsel %vm667, %v1379, %v1436
      %v1459 = vsel %vm667, %v1380, %v1438
      %v1460 = vsel %vm667, %v1381, %v1440
      %v1461 = vsel %vm667, %v1382, %v1442
      %v1462 = vsel %vm667, %v1383, %v1444
      %v1463 = vsel %vm667, %v1384, %v1446
      %v1464 = vsel %vm667, %v1385, %v1448
      %s1465 = scalar_lea.vmem [#allocation4], 16
      %1466 = vst.msk [vmem:[%s1465 + $0x1] sm:$0xff] %vm671, %v1457
      %1467 = vst.msk [vmem:[%s1465 + $0x11] sm:$0xff] %vm671, %v1458
      %1468 = vst.msk [vmem:[%s1465 + $0x21] sm:$0xff] %vm671, %v1459
      %1469 = vst.msk [vmem:[%s1465 + $0x31] sm:$0xff] %vm671, %v1460
      %1470 = vst.msk [vmem:[%s1465 + $0x41] sm:$0xff] %vm671, %v1461
      %1471 = vst.msk [vmem:[%s1465 + $0x51] sm:$0xff] %vm671, %v1462
      %1472 = vst.msk [vmem:[%s1465 + $0x61] sm:$0xff] %vm671, %v1463
      %1473 = vst.msk [vmem:[%s1465 + $0x71] sm:$0xff] %vm671, %v1464
      %v1474 = vld [vmem:[#allocation4] sm:$0xff]
      %v1475 = vld [vmem:[#allocation4 + $0x10] sm:$0xff]
      %v1476 = vld [vmem:[#allocation4 + $0x20] sm:$0xff]
      %v1477 = vld [vmem:[#allocation4 + $0x30] sm:$0xff]
      %v1478 = vld [vmem:[#allocation4 + $0x40] sm:$0xff]
      %v1479 = vld [vmem:[#allocation4 + $0x50] sm:$0xff]
      %v1480 = vld [vmem:[#allocation4 + $0x60] sm:$0xff]
      %v1481 = vld [vmem:[#allocation4 + $0x70] sm:$0xff]
      %v1482 = vpack.c.bf16 %v1474, %v1474
      %v1483 = vpack.c.bf16 %v1475, %v1475
      %v1484 = vpack.c.bf16 %v1476, %v1476
      %v1485 = vpack.c.bf16 %v1477, %v1477
      %v1486 = vpack.c.bf16 %v1478, %v1478
      %v1487 = vpack.c.bf16 %v1479, %v1479
      %v1488 = vpack.c.bf16 %v1480, %v1480
      %v1489 = vpack.c.bf16 %v1481, %v1481
      %v1490 = vld [vmem:[#allocation4 + $0x1] sm:$0xff]
      %v1491 = vld [vmem:[#allocation4 + $0x11] sm:$0xff]
      %v1492 = vld [vmem:[#allocation4 + $0x21] sm:$0xff]
      %v1493 = vld [vmem:[#allocation4 + $0x31] sm:$0xff]
      %v1494 = vld [vmem:[#allocation4 + $0x41] sm:$0xff]
      %v1495 = vld [vmem:[#allocation4 + $0x51] sm:$0xff]
      %v1496 = vld [vmem:[#allocation4 + $0x61] sm:$0xff]
      %v1497 = vld [vmem:[#allocation4 + $0x71] sm:$0xff]
      %v1498 = vpack.c.bf16 %v1490, %v1490
      %v1499 = vpack.c.bf16 %v1491, %v1491
      %v1500 = vpack.c.bf16 %v1492, %v1492
      %v1501 = vpack.c.bf16 %v1493, %v1493
      %v1502 = vpack.c.bf16 %v1494, %v1494
      %v1503 = vpack.c.bf16 %v1495, %v1495
      %v1504 = vpack.c.bf16 %v1496, %v1496
      %v1505 = vpack.c.bf16 %v1497, %v1497
      %v1506 = vld [vmem:[#allocation4 + $0x2] sm:$0xff]
      %v1507 = vld [vmem:[#allocation4 + $0x12] sm:$0xff]
      %v1508 = vld [vmem:[#allocation4 + $0x22] sm:$0xff]
      %v1509 = vld [vmem:[#allocation4 + $0x32] sm:$0xff]
      %v1510 = vld [vmem:[#allocation4 + $0x42] sm:$0xff]
      %v1511 = vld [vmem:[#allocation4 + $0x52] sm:$0xff]
      %v1512 = vld [vmem:[#allocation4 + $0x62] sm:$0xff]
      %v1513 = vld [vmem:[#allocation4 + $0x72] sm:$0xff]
      %v1514 = vpack.c.bf16 %v1506, %v1506
      %v1515 = vpack.c.bf16 %v1507, %v1507
      %v1516 = vpack.c.bf16 %v1508, %v1508
      %v1517 = vpack.c.bf16 %v1509, %v1509
      %v1518 = vpack.c.bf16 %v1510, %v1510
      %v1519 = vpack.c.bf16 %v1511, %v1511
      %v1520 = vpack.c.bf16 %v1512, %v1512
      %v1521 = vpack.c.bf16 %v1513, %v1513
      %v1522 = vld [vmem:[%s1465] sm:$0xff]
      %v1523 = vld [vmem:[%s1465 + $0x10] sm:$0xff]
      %v1524 = vld [vmem:[%s1465 + $0x20] sm:$0xff]
      %v1525 = vld [vmem:[%s1465 + $0x30] sm:$0xff]
      %v1526 = vld [vmem:[%s1465 + $0x40] sm:$0xff]
      %v1527 = vld [vmem:[%s1465 + $0x50] sm:$0xff]
      %v1528 = vld [vmem:[%s1465 + $0x60] sm:$0xff]
      %v1529 = vld [vmem:[%s1465 + $0x70] sm:$0xff]
      %v1530 = vpack.c.bf16 %v1522, %v1522
      %v1531 = vpack.c.bf16 %v1523, %v1523
      %v1532 = vpack.c.bf16 %v1524, %v1524
      %v1533 = vpack.c.bf16 %v1525, %v1525
      %v1534 = vpack.c.bf16 %v1526, %v1526
      %v1535 = vpack.c.bf16 %v1527, %v1527
      %v1536 = vpack.c.bf16 %v1528, %v1528
      %v1537 = vpack.c.bf16 %v1529, %v1529
      %v1538 = vld [vmem:[%s1465 + $0x1] sm:$0xff]
      %v1539 = vld [vmem:[%s1465 + $0x11] sm:$0xff]
      %v1540 = vld [vmem:[%s1465 + $0x21] sm:$0xff]
      %v1541 = vld [vmem:[%s1465 + $0x31] sm:$0xff]
      %v1542 = vld [vmem:[%s1465 + $0x41] sm:$0xff]
      %v1543 = vld [vmem:[%s1465 + $0x51] sm:$0xff]
      %v1544 = vld [vmem:[%s1465 + $0x61] sm:$0xff]
      %v1545 = vld [vmem:[%s1465 + $0x71] sm:$0xff]
      %v1546 = vpack.c.bf16 %v1538, %v1538
      %v1547 = vpack.c.bf16 %v1539, %v1539
      %v1548 = vpack.c.bf16 %v1540, %v1540
      %v1549 = vpack.c.bf16 %v1541, %v1541
      %v1550 = vpack.c.bf16 %v1542, %v1542
      %v1551 = vpack.c.bf16 %v1543, %v1543
      %v1552 = vpack.c.bf16 %v1544, %v1544
      %v1553 = vpack.c.bf16 %v1545, %v1545
      %v1554 = vld [vmem:[%s1465 + $0x2] sm:$0xff]
      %v1555 = vld [vmem:[%s1465 + $0x12] sm:$0xff]
      %v1556 = vld [vmem:[%s1465 + $0x22] sm:$0xff]
      %v1557 = vld [vmem:[%s1465 + $0x32] sm:$0xff]
      %v1558 = vld [vmem:[%s1465 + $0x42] sm:$0xff]
      %v1559 = vld [vmem:[%s1465 + $0x52] sm:$0xff]
      %v1560 = vld [vmem:[%s1465 + $0x62] sm:$0xff]
      %v1561 = vld [vmem:[%s1465 + $0x72] sm:$0xff]
      %v1562 = vpack.c.bf16 %v1554, %v1554
      %v1563 = vpack.c.bf16 %v1555, %v1555
      %v1564 = vpack.c.bf16 %v1556, %v1556
      %v1565 = vpack.c.bf16 %v1557, %v1557
      %v1566 = vpack.c.bf16 %v1558, %v1558
      %v1567 = vpack.c.bf16 %v1559, %v1559
      %v1568 = vpack.c.bf16 %v1560, %v1560
      %v1569 = vpack.c.bf16 %v1561, %v1561
      %s1570 = scalar_lea.vmem [#allocation4], 32
      %v1571 = vld [vmem:[%s1570] sm:$0xff]
      %v1572 = vld [vmem:[%s1570 + $0x10] sm:$0xff]
      %v1573 = vld [vmem:[%s1570 + $0x20] sm:$0xff]
      %v1574 = vld [vmem:[%s1570 + $0x30] sm:$0xff]
      %v1575 = vld [vmem:[%s1570 + $0x40] sm:$0xff]
      %v1576 = vld [vmem:[%s1570 + $0x50] sm:$0xff]
      %v1577 = vld [vmem:[%s1570 + $0x60] sm:$0xff]
      %v1578 = vld [vmem:[%s1570 + $0x70] sm:$0xff]
      %v1579 = vpack.c.bf16 %v1571, %v1571
      %v1580 = vpack.c.bf16 %v1572, %v1572
      %v1581 = vpack.c.bf16 %v1573, %v1573
      %v1582 = vpack.c.bf16 %v1574, %v1574
      %v1583 = vpack.c.bf16 %v1575, %v1575
      %v1584 = vpack.c.bf16 %v1576, %v1576
      %v1585 = vpack.c.bf16 %v1577, %v1577
      %v1586 = vpack.c.bf16 %v1578, %v1578
      %v1587 = vld [vmem:[%s1570 + $0x1] sm:$0xff]
      %v1588 = vld [vmem:[%s1570 + $0x11] sm:$0xff]
      %v1589 = vld [vmem:[%s1570 + $0x21] sm:$0xff]
      %v1590 = vld [vmem:[%s1570 + $0x31] sm:$0xff]
      %v1591 = vld [vmem:[%s1570 + $0x41] sm:$0xff]
      %v1592 = vld [vmem:[%s1570 + $0x51] sm:$0xff]
      %v1593 = vld [vmem:[%s1570 + $0x61] sm:$0xff]
      %v1594 = vld [vmem:[%s1570 + $0x71] sm:$0xff]
      %v1595 = vpack.c.bf16 %v1587, %v1587
      %v1596 = vpack.c.bf16 %v1588, %v1588
      %v1597 = vpack.c.bf16 %v1589, %v1589
      %v1598 = vpack.c.bf16 %v1590, %v1590
      %v1599 = vpack.c.bf16 %v1591, %v1591
      %v1600 = vpack.c.bf16 %v1592, %v1592
      %v1601 = vpack.c.bf16 %v1593, %v1593
      %v1602 = vpack.c.bf16 %v1594, %v1594
      %v1603 = vld [vmem:[%s1570 + $0x2] sm:$0xff]
      %v1604 = vld [vmem:[%s1570 + $0x12] sm:$0xff]
      %v1605 = vld [vmem:[%s1570 + $0x22] sm:$0xff]
      %v1606 = vld [vmem:[%s1570 + $0x32] sm:$0xff]
      %v1607 = vld [vmem:[%s1570 + $0x42] sm:$0xff]
      %v1608 = vld [vmem:[%s1570 + $0x52] sm:$0xff]
      %v1609 = vld [vmem:[%s1570 + $0x62] sm:$0xff]
      %v1610 = vld [vmem:[%s1570 + $0x72] sm:$0xff]
      %v1611 = vpack.c.bf16 %v1603, %v1603
      %v1612 = vpack.c.bf16 %v1604, %v1604
      %v1613 = vpack.c.bf16 %v1605, %v1605
      %v1614 = vpack.c.bf16 %v1606, %v1606
      %v1615 = vpack.c.bf16 %v1607, %v1607
      %v1616 = vpack.c.bf16 %v1608, %v1608
      %v1617 = vpack.c.bf16 %v1609, %v1609
      %v1618 = vpack.c.bf16 %v1610, %v1610
      %v1627 = vunpack.c.l.b16 %v1482
      %v1628 = vunpack.c.l.b16 %v1483
      %v1629 = vunpack.c.l.b16 %v1484
      %v1630 = vunpack.c.l.b16 %v1485
      %v1631 = vunpack.c.l.b16 %v1486
      %v1632 = vunpack.c.l.b16 %v1487
      %v1633 = vunpack.c.l.b16 %v1488
      %v1634 = vunpack.c.l.b16 %v1489
      %v1635 = vpack.c.b16 %v1628, %v1627
      %v1636 = vpack.c.b16 %v1630, %v1629
      %v1637 = vpack.c.b16 %v1632, %v1631
      %v1638 = vpack.c.b16 %v1634, %v1633
      %v1647 = vunpack.c.l.b16 %v1498
      %v1648 = vunpack.c.l.b16 %v1499
      %v1649 = vunpack.c.l.b16 %v1500
      %v1650 = vunpack.c.l.b16 %v1501
      %v1651 = vunpack.c.l.b16 %v1502
      %v1652 = vunpack.c.l.b16 %v1503
      %v1653 = vunpack.c.l.b16 %v1504
      %v1654 = vunpack.c.l.b16 %v1505
      %v1655 = vpack.c.b16 %v1648, %v1647
      %v1656 = vpack.c.b16 %v1650, %v1649
      %v1657 = vpack.c.b16 %v1652, %v1651
      %v1658 = vpack.c.b16 %v1654, %v1653
      %1659 = vrot.lane.b32.xlu0 %v1655, 32
      %v1660 = vpop.permute.xlu0 %1659
      %1661 = vrot.lane.b32.xlu0 %v1656, 32
      %v1662 = vpop.permute.xlu0 %1661
      %1663 = vrot.lane.b32.xlu0 %v1657, 32
      %v1664 = vpop.permute.xlu0 %1663
      %1665 = vrot.lane.b32.xlu0 %v1658, 32
      %v1666 = vpop.permute.xlu0 %1665
      %v1675 = vunpack.c.l.b16 %v1514
      %v1676 = vunpack.c.l.b16 %v1515
      %v1677 = vunpack.c.l.b16 %v1516
      %v1678 = vunpack.c.l.b16 %v1517
      %v1679 = vunpack.c.l.b16 %v1518
      %v1680 = vunpack.c.l.b16 %v1519
      %v1681 = vunpack.c.l.b16 %v1520
      %v1682 = vunpack.c.l.b16 %v1521
      %v1683 = vpack.c.b16 %v1676, %v1675
      %v1684 = vpack.c.b16 %v1678, %v1677
      %v1685 = vpack.c.b16 %v1680, %v1679
      %v1686 = vpack.c.b16 %v1682, %v1681
      %1687 = vrot.lane.b32.xlu0 %v1683, 64
      %v1688 = vpop.permute.xlu0 %1687
      %1689 = vrot.lane.b32.xlu0 %v1684, 64
      %v1690 = vpop.permute.xlu0 %1689
      %1691 = vrot.lane.b32.xlu0 %v1685, 64
      %v1692 = vpop.permute.xlu0 %1691
      %1693 = vrot.lane.b32.xlu0 %v1686, 64
      %v1694 = vpop.permute.xlu0 %1693
      %v1703 = vunpack.c.l.b16 %v1530
      %v1704 = vunpack.c.l.b16 %v1531
      %v1705 = vunpack.c.l.b16 %v1532
      %v1706 = vunpack.c.l.b16 %v1533
      %v1707 = vunpack.c.l.b16 %v1534
      %v1708 = vunpack.c.l.b16 %v1535
      %v1709 = vunpack.c.l.b16 %v1536
      %v1710 = vunpack.c.l.b16 %v1537
      %v1711 = vpack.c.b16 %v1704, %v1703
      %v1712 = vpack.c.b16 %v1706, %v1705
      %v1713 = vpack.c.b16 %v1708, %v1707
      %v1714 = vpack.c.b16 %v1710, %v1709
      %1715 = vrot.lane.b32.xlu0 %v1711, 96
      %v1716 = vpop.permute.xlu0 %1715
      %1717 = vrot.lane.b32.xlu0 %v1712, 96
      %v1718 = vpop.permute.xlu0 %1717
      %1719 = vrot.lane.b32.xlu0 %v1713, 96
      %v1720 = vpop.permute.xlu0 %1719
      %1721 = vrot.lane.b32.xlu0 %v1714, 96
      %v1722 = vpop.permute.xlu0 %1721
      %v1731 = vunpack.c.l.b16 %v1546
      %v1732 = vunpack.c.l.b16 %v1547
      %v1733 = vunpack.c.l.b16 %v1548
      %v1734 = vunpack.c.l.b16 %v1549
      %v1735 = vunpack.c.l.b16 %v1550
      %v1736 = vunpack.c.l.b16 %v1551
      %v1737 = vunpack.c.l.b16 %v1552
      %v1738 = vunpack.c.l.b16 %v1553
      %v1739 = vpack.c.b16 %v1732, %v1731
      %v1740 = vpack.c.b16 %v1734, %v1733
      %v1741 = vpack.c.b16 %v1736, %v1735
      %v1742 = vpack.c.b16 %v1738, %v1737
      %v1751 = vunpack.c.l.b16 %v1562
      %v1752 = vunpack.c.l.b16 %v1563
      %v1753 = vunpack.c.l.b16 %v1564
      %v1754 = vunpack.c.l.b16 %v1565
      %v1755 = vunpack.c.l.b16 %v1566
      %v1756 = vunpack.c.l.b16 %v1567
      %v1757 = vunpack.c.l.b16 %v1568
      %v1758 = vunpack.c.l.b16 %v1569
      %v1759 = vpack.c.b16 %v1752, %v1751
      %v1760 = vpack.c.b16 %v1754, %v1753
      %v1761 = vpack.c.b16 %v1756, %v1755
      %v1762 = vpack.c.b16 %v1758, %v1757
      %1763 = vrot.lane.b32.xlu0 %v1759, 32
      %v1764 = vpop.permute.xlu0 %1763
      %1765 = vrot.lane.b32.xlu0 %v1760, 32
      %v1766 = vpop.permute.xlu0 %1765
      %1767 = vrot.lane.b32.xlu0 %v1761, 32
      %v1768 = vpop.permute.xlu0 %1767
      %1769 = vrot.lane.b32.xlu0 %v1762, 32
      %v1770 = vpop.permute.xlu0 %1769
      %v1779 = vunpack.c.l.b16 %v1579
      %v1780 = vunpack.c.l.b16 %v1580
      %v1781 = vunpack.c.l.b16 %v1581
      %v1782 = vunpack.c.l.b16 %v1582
      %v1783 = vunpack.c.l.b16 %v1583
      %v1784 = vunpack.c.l.b16 %v1584
      %v1785 = vunpack.c.l.b16 %v1585
      %v1786 = vunpack.c.l.b16 %v1586
      %v1787 = vpack.c.b16 %v1780, %v1779
      %v1788 = vpack.c.b16 %v1782, %v1781
      %v1789 = vpack.c.b16 %v1784, %v1783
      %v1790 = vpack.c.b16 %v1786, %v1785
      %1791 = vrot.lane.b32.xlu0 %v1787, 64
      %v1792 = vpop.permute.xlu0 %1791
      %1793 = vrot.lane.b32.xlu0 %v1788, 64
      %v1794 = vpop.permute.xlu0 %1793
      %1795 = vrot.lane.b32.xlu0 %v1789, 64
      %v1796 = vpop.permute.xlu0 %1795
      %1797 = vrot.lane.b32.xlu0 %v1790, 64
      %v1798 = vpop.permute.xlu0 %1797
      %v1807 = vunpack.c.l.b16 %v1595
      %v1808 = vunpack.c.l.b16 %v1596
      %v1809 = vunpack.c.l.b16 %v1597
      %v1810 = vunpack.c.l.b16 %v1598
      %v1811 = vunpack.c.l.b16 %v1599
      %v1812 = vunpack.c.l.b16 %v1600
      %v1813 = vunpack.c.l.b16 %v1601
      %v1814 = vunpack.c.l.b16 %v1602
      %v1815 = vpack.c.b16 %v1808, %v1807
      %v1816 = vpack.c.b16 %v1810, %v1809
      %v1817 = vpack.c.b16 %v1812, %v1811
      %v1818 = vpack.c.b16 %v1814, %v1813
      %1819 = vrot.lane.b32.xlu0 %v1815, 96
      %v1820 = vpop.permute.xlu0 %1819
      %1821 = vrot.lane.b32.xlu0 %v1816, 96
      %v1822 = vpop.permute.xlu0 %1821
      %1823 = vrot.lane.b32.xlu0 %v1817, 96
      %v1824 = vpop.permute.xlu0 %1823
      %1825 = vrot.lane.b32.xlu0 %v1818, 96
      %v1826 = vpop.permute.xlu0 %1825
      %v1835 = vunpack.c.l.b16 %v1611
      %v1836 = vunpack.c.l.b16 %v1612
      %v1837 = vunpack.c.l.b16 %v1613
      %v1838 = vunpack.c.l.b16 %v1614
      %v1839 = vunpack.c.l.b16 %v1615
      %v1840 = vunpack.c.l.b16 %v1616
      %v1841 = vunpack.c.l.b16 %v1617
      %v1842 = vunpack.c.l.b16 %v1618
      %v1843 = vpack.c.b16 %v1836, %v1835
      %v1844 = vpack.c.b16 %v1838, %v1837
      %v1845 = vpack.c.b16 %v1840, %v1839
      %v1846 = vpack.c.b16 %v1842, %v1841
      %v1849 = vsel %vm671, %v1635, %v1660
      %v1852 = vsel %vm671, %v1636, %v1662
      %v1855 = vsel %vm671, %v1637, %v1664
      %v1858 = vsel %vm671, %v1638, %v1666
      %v1860 = vsel %vm677, %v1849, %v1688
      %v1862 = vsel %vm677, %v1852, %v1690
      %v1864 = vsel %vm677, %v1855, %v1692
      %v1866 = vsel %vm677, %v1858, %v1694
      %v1868 = vsel %vm683, %v1860, %v1716
      %v1871 = vsel %vm683, %v1862, %v1718
      %v1874 = vsel %vm683, %v1864, %v1720
      %v1877 = vsel %vm683, %v1866, %v1722
      %v1881 = vsel %vm671, %v1739, %v1764
      %v1884 = vsel %vm671, %v1740, %v1766
      %v1887 = vsel %vm671, %v1741, %v1768
      %v1890 = vsel %vm671, %v1742, %v1770
      %v1892 = vsel %vm677, %v1881, %v1792
      %v1894 = vsel %vm677, %v1884, %v1794
      %v1896 = vsel %vm677, %v1887, %v1796
      %v1898 = vsel %vm677, %v1890, %v1798
      %v1900 = vsel %vm683, %v1892, %v1820
      %v1903 = vsel %vm683, %v1894, %v1822
      %v1906 = vsel %vm683, %v1896, %v1824
      %v1909 = vsel %vm683, %v1898, %v1826
      %v1911 = vld [vmem:[%s3] sm:$0xf]
      %v1912 = vld [vmem:[%s3 + $0x4] sm:$0xf]
      %v1913 = vld [vmem:[%s3 + $0x8] sm:$0xf]
      %v1914 = vld [vmem:[%s3 + $0xc] sm:$0xf]
      %v1915 = vld [vmem:[%s3 + $0x10] sm:$0xf]
      %v1916 = vld [vmem:[%s3 + $0x14] sm:$0xf]
      %v1917 = vld [vmem:[%s3 + $0x18] sm:$0xf]
      %v1918 = vld [vmem:[%s3 + $0x1c] sm:$0xf]
      %v1919 = vld [vmem:[%s3 + $0x20] sm:$0xf]
      %v1920 = vld [vmem:[%s3 + $0x24] sm:$0xf]
      %v1921 = vld [vmem:[%s3 + $0x28] sm:$0xf]
      %v1922 = vld [vmem:[%s3 + $0x2c] sm:$0xf]
      %v1923 = vld [vmem:[%s3 + $0x30] sm:$0xf]
      %v1924 = vld [vmem:[%s3 + $0x34] sm:$0xf]
      %v1925 = vld [vmem:[%s3 + $0x38] sm:$0xf]
      %v1926 = vld [vmem:[%s3 + $0x3c] sm:$0xf]
      %v1927 = vld [vmem:[%s3 + $0x40] sm:$0xf]
      %v1928 = vld [vmem:[%s3 + $0x44] sm:$0xf]
      %v1929 = vld [vmem:[%s3 + $0x48] sm:$0xf]
      %v1930 = vld [vmem:[%s3 + $0x4c] sm:$0xf]
      %v1931 = vld [vmem:[%s3 + $0x50] sm:$0xf]
      %v1932 = vld [vmem:[%s3 + $0x54] sm:$0xf]
      %v1933 = vld [vmem:[%s3 + $0x58] sm:$0xf]
      %v1934 = vld [vmem:[%s3 + $0x5c] sm:$0xf]
      %v1935 = vld [vmem:[%s3 + $0x60] sm:$0xf]
      %v1936 = vld [vmem:[%s3 + $0x64] sm:$0xf]
      %v1937 = vld [vmem:[%s3 + $0x68] sm:$0xf]
      %v1938 = vld [vmem:[%s3 + $0x6c] sm:$0xf]
      %v1939 = vld [vmem:[%s3 + $0x70] sm:$0xf]
      %v1940 = vld [vmem:[%s3 + $0x74] sm:$0xf]
      %v1941 = vld [vmem:[%s3 + $0x78] sm:$0xf]
      %v1942 = vld [vmem:[%s3 + $0x7c] sm:$0xf]
      %v1943 = vld [vmem:[%s3 + $0x80] sm:$0xf]
      %v1944 = vld [vmem:[%s3 + $0x84] sm:$0xf]
      %v1945 = vld [vmem:[%s3 + $0x88] sm:$0xf]
      %v1946 = vld [vmem:[%s3 + $0x8c] sm:$0xf]
      %v1947 = vld [vmem:[%s7] sm:$0x1]
      %v1949 = vperm.slane %v1947, 0
      %v1987 = vunpack.c.l.b16 %v1911
      %v1988 = vunpack.c.l.b16 %v1912
      %v1989 = vunpack.c.l.b16 %v1913
      %v1990 = vunpack.c.l.b16 %v1914
      %v1991 = vunpack.c.l.b16 %v1915
      %v1992 = vunpack.c.l.b16 %v1916
      %v1993 = vunpack.c.l.b16 %v1917
      %v1994 = vunpack.c.l.b16 %v1918
      %v1995 = vunpack.c.l.b16 %v1919
      %v1996 = vunpack.c.l.b16 %v1920
      %v1997 = vunpack.c.l.b16 %v1921
      %v1998 = vunpack.c.l.b16 %v1922
      %v1999 = vunpack.c.l.b16 %v1923
      %v2000 = vunpack.c.l.b16 %v1924
      %v2001 = vunpack.c.l.b16 %v1925
      %v2002 = vunpack.c.l.b16 %v1926
      %v2003 = vunpack.c.l.b16 %v1927
      %v2004 = vunpack.c.l.b16 %v1928
      %v2005 = vunpack.c.l.b16 %v1929
      %v2006 = vunpack.c.l.b16 %v1930
      %v2007 = vunpack.c.l.b16 %v1931
      %v2008 = vunpack.c.l.b16 %v1932
      %v2009 = vunpack.c.l.b16 %v1933
      %v2010 = vunpack.c.l.b16 %v1934
      %v2011 = vunpack.c.l.b16 %v1935
      %v2012 = vunpack.c.l.b16 %v1936
      %v2013 = vunpack.c.l.b16 %v1937
      %v2014 = vunpack.c.l.b16 %v1938
      %v2015 = vunpack.c.l.b16 %v1939
      %v2016 = vunpack.c.l.b16 %v1940
      %v2017 = vunpack.c.l.b16 %v1941
      %v2018 = vunpack.c.l.b16 %v1942
      %v2019 = vunpack.c.l.b16 %v1943
      %v2020 = vunpack.c.l.b16 %v1944
      %v2021 = vunpack.c.l.b16 %v1945
      %v2022 = vunpack.c.l.b16 %v1946
      %v2023 = vpack.c.b16 %v1988, %v1987
      %v2024 = vpack.c.b16 %v1990, %v1989
      %v2025 = vpack.c.b16 %v1992, %v1991
      %v2026 = vpack.c.b16 %v1994, %v1993
      %v2027 = vpack.c.b16 %v1996, %v1995
      %v2028 = vpack.c.b16 %v1998, %v1997
      %v2029 = vpack.c.b16 %v2000, %v1999
      %v2030 = vpack.c.b16 %v2002, %v2001
      %v2031 = vpack.c.b16 %v2004, %v2003
      %v2032 = vpack.c.b16 %v2006, %v2005
      %v2033 = vpack.c.b16 %v2008, %v2007
      %v2034 = vpack.c.b16 %v2010, %v2009
      %v2035 = vpack.c.b16 %v2012, %v2011
      %v2036 = vpack.c.b16 %v2014, %v2013
      %v2037 = vpack.c.b16 %v2016, %v2015
      %v2038 = vpack.c.b16 %v2018, %v2017
      %v2039 = vpack.c.b16 %v2020, %v2019
      %v2040 = vpack.c.b16 %v2022, %v2021
      %v2060 = vsel %vm671, %v1843, 0
      %v2063 = vsel %vm671, %v1844, 0
      %v2066 = vsel %vm671, %v1845, 0
      %v2069 = vsel %vm671, %v1846, 0
      %2071 = vmatpush.bf16.msra.mxu0 %v2030
      %2072 = vmatpush.bf16.msra.mxu0 %v2029
      %2073 = vmatpush.bf16.msra.mxu0 %v2028
      %2074 = vmatpush.bf16.msra.mxu0 %v2027
      %2075 = vmatpush.bf16.msra.mxu0 %v2026
      %2076 = vmatpush.bf16.msra.mxu0 %v2025
      %2077 = vmatpush.bf16.msra.mxu0 %v2024
      %2078 = vmatpush.bf16.msra.mxu0 %v2023
      %2079 = vmatmul.bf16.gmra.mxu0 %v1868
      %v2080 = vpop.f32.mrf.mxu0
      %v2081 = vadd.f32 %v1949, %v2080
      %v2082 = vpop.f32.mrf.mxu0
      %v2083 = vadd.f32 %v1949, %v2082
      %2084 = vmatmul.bf16.gmra.mxu0 %v1871
      %v2085 = vpop.f32.mrf.mxu0
      %v2086 = vadd.f32 %v1949, %v2085
      %v2087 = vpop.f32.mrf.mxu0
      %v2088 = vadd.f32 %v1949, %v2087
      %2089 = vmatmul.bf16.gmra.mxu0 %v1874
      %v2090 = vpop.f32.mrf.mxu0
      %v2091 = vadd.f32 %v1949, %v2090
      %v2092 = vpop.f32.mrf.mxu0
      %v2093 = vadd.f32 %v1949, %v2092
      %2094 = vmatmul.bf16.gmra.mxu0 %v1877
      %v2095 = vpop.f32.mrf.mxu0
      %v2096 = vadd.f32 %v1949, %v2095
      %v2097 = vpop.f32.mrf.mxu0
      %v2098 = vadd.f32 %v1949, %v2097
      %2099 = vdwg.mxu0
      %2100 = vmatpush.bf16.msra.mxu0 %v2038
      %2101 = vmatpush.bf16.msra.mxu0 %v2037
      %2102 = vmatpush.bf16.msra.mxu0 %v2036
      %2103 = vmatpush.bf16.msra.mxu0 %v2035
      %2104 = vmatpush.bf16.msra.mxu0 %v2034
      %2105 = vmatpush.bf16.msra.mxu0 %v2033
      %2106 = vmatpush.bf16.msra.mxu0 %v2032
      %2107 = vmatpush.bf16.msra.mxu0 %v2031
      %2108 = vmatmul.bf16.gmra.mxu0 %v1900
      %v2109 = vpop.f32.mrf.mxu0
      %v2110 = vadd.f32 %v2081, %v2109
      %v2111 = vpop.f32.mrf.mxu0
      %v2112 = vadd.f32 %v2083, %v2111
      %2113 = vmatmul.bf16.gmra.mxu0 %v1903
      %v2114 = vpop.f32.mrf.mxu0
      %v2115 = vadd.f32 %v2086, %v2114
      %v2116 = vpop.f32.mrf.mxu0
      %v2117 = vadd.f32 %v2088, %v2116
      %2118 = vmatmul.bf16.gmra.mxu0 %v1906
      %v2119 = vpop.f32.mrf.mxu0
      %v2120 = vadd.f32 %v2091, %v2119
      %v2121 = vpop.f32.mrf.mxu0
      %v2122 = vadd.f32 %v2093, %v2121
      %2123 = vmatmul.bf16.gmra.mxu0 %v1909
      %v2124 = vpop.f32.mrf.mxu0
      %v2125 = vadd.f32 %v2096, %v2124
      %v2126 = vpop.f32.mrf.mxu0
      %v2127 = vadd.f32 %v2098, %v2126
      %2128 = vdwg.mxu0
      %2129 = vmatpush.bf16.msra.mxu0 0
      %2130 = vmatpush.bf16.msra.mxu0 0
      %2131 = vmatpush.bf16.msra.mxu0 0
      %2132 = vmatpush.bf16.msra.mxu0 0
      %2133 = vmatpush.bf16.msra.mxu0 0
      %2134 = vmatpush.bf16.msra.mxu0 0
      %2135 = vmatpush.bf16.msra.mxu0 %v2040
      %2136 = vmatpush.bf16.msra.mxu0 %v2039
      %2137 = vmatmul.bf16.gmra.mxu0 %v2060
      %v2138 = vpop.f32.mrf.mxu0
      %v2139 = vadd.f32 %v2110, %v2138
      %v2140 = vpop.f32.mrf.mxu0
      %v2141 = vadd.f32 %v2112, %v2140
      %2142 = vmatmul.bf16.gmra.mxu0 %v2063
      %v2143 = vpop.f32.mrf.mxu0
      %v2144 = vadd.f32 %v2115, %v2143
      %v2145 = vpop.f32.mrf.mxu0
      %v2146 = vadd.f32 %v2117, %v2145
      %2147 = vmatmul.bf16.gmra.mxu0 %v2066
      %v2148 = vpop.f32.mrf.mxu0
      %v2149 = vadd.f32 %v2120, %v2148
      %v2150 = vpop.f32.mrf.mxu0
      %v2151 = vadd.f32 %v2122, %v2150
      %2152 = vmatmul.bf16.gmra.mxu0 %v2069
      %v2153 = vpop.f32.mrf.mxu0
      %v2154 = vadd.f32 %v2125, %v2153
      %v2155 = vpop.f32.mrf.mxu0
      %v2156 = vadd.f32 %v2127, %v2155
      %2157 = vdwg.mxu0
      %v2158 = vmax.f32 %v2139, 0.0
      %v2159 = vmax.f32 %v2141, 0.0
      %v2160 = vmax.f32 %v2144, 0.0
      %v2161 = vmax.f32 %v2146, 0.0
      %v2162 = vmax.f32 %v2149, 0.0
      %v2163 = vmax.f32 %v2151, 0.0
      %v2164 = vmax.f32 %v2154, 0.0
      %v2165 = vmax.f32 %v2156, 0.0
      %v2174 = vrot.slane %v2158, 1
      %v2175 = vrot.slane %v2158, 2
      %v2176 = vrot.slane %v2158, 3
      %v2177 = vrot.slane %v2158, 4
      %v2178 = vrot.slane %v2158, 5
      %v2179 = vrot.slane %v2158, 6
      %v2180 = vrot.slane %v2158, 7
      %v2181 = vrot.slane %v2159, 1
      %v2182 = vrot.slane %v2159, 2
      %v2183 = vrot.slane %v2159, 3
      %v2184 = vrot.slane %v2159, 4
      %v2185 = vrot.slane %v2159, 5
      %v2186 = vrot.slane %v2159, 6
      %v2187 = vrot.slane %v2159, 7
      %v2188 = vrot.slane %v2160, 1
      %v2189 = vrot.slane %v2160, 2
      %v2190 = vrot.slane %v2160, 3
      %v2191 = vrot.slane %v2160, 4
      %v2192 = vrot.slane %v2160, 5
      %v2193 = vrot.slane %v2160, 6
      %v2194 = vrot.slane %v2160, 7
      %v2195 = vrot.slane %v2161, 1
      %v2196 = vrot.slane %v2161, 2
      %v2197 = vrot.slane %v2161, 3
      %v2198 = vrot.slane %v2161, 4
      %v2199 = vrot.slane %v2161, 5
      %v2200 = vrot.slane %v2161, 6
      %v2201 = vrot.slane %v2161, 7
      %v2202 = vrot.slane %v2162, 1
      %v2203 = vrot.slane %v2162, 2
      %v2204 = vrot.slane %v2162, 3
      %v2205 = vrot.slane %v2162, 4
      %v2206 = vrot.slane %v2162, 5
      %v2207 = vrot.slane %v2162, 6
      %v2208 = vrot.slane %v2162, 7
      %v2209 = vrot.slane %v2163, 1
      %v2210 = vrot.slane %v2163, 2
      %v2211 = vrot.slane %v2163, 3
      %v2212 = vrot.slane %v2163, 4
      %v2213 = vrot.slane %v2163, 5
      %v2214 = vrot.slane %v2163, 6
      %v2215 = vrot.slane %v2163, 7
      %v2216 = vrot.slane %v2164, 1
      %v2217 = vrot.slane %v2164, 2
      %v2218 = vrot.slane %v2164, 3
      %v2219 = vrot.slane %v2164, 4
      %v2220 = vrot.slane %v2164, 5
      %v2221 = vrot.slane %v2164, 6
      %v2222 = vrot.slane %v2164, 7
      %v2223 = vrot.slane %v2165, 1
      %v2224 = vrot.slane %v2165, 2
      %v2225 = vrot.slane %v2165, 3
      %v2226 = vrot.slane %v2165, 4
      %v2227 = vrot.slane %v2165, 5
      %v2228 = vrot.slane %v2165, 6
      %v2229 = vrot.slane %v2165, 7
      %v2230 = vperm.slane %v2158, 0
      %v2231 = vperm.slane %v2174, 0
      %v2232 = vperm.slane %v2175, 0
      %v2233 = vperm.slane %v2176, 0
      %v2234 = vperm.slane %v2177, 0
      %v2235 = vperm.slane %v2178, 0
      %v2236 = vperm.slane %v2179, 0
      %v2237 = vperm.slane %v2180, 0
      %v2238 = vperm.slane %v2159, 0
      %v2239 = vperm.slane %v2181, 0
      %v2240 = vperm.slane %v2182, 0
      %v2241 = vperm.slane %v2183, 0
      %v2242 = vperm.slane %v2184, 0
      %v2243 = vperm.slane %v2185, 0
      %v2244 = vperm.slane %v2186, 0
      %v2245 = vperm.slane %v2187, 0
      %v2246 = vperm.slane %v2160, 0
      %v2247 = vperm.slane %v2188, 0
      %v2248 = vperm.slane %v2189, 0
      %v2249 = vperm.slane %v2190, 0
      %v2250 = vperm.slane %v2191, 0
      %v2251 = vperm.slane %v2192, 0
      %v2252 = vperm.slane %v2193, 0
      %v2253 = vperm.slane %v2194, 0
      %v2254 = vperm.slane %v2161, 0
      %v2255 = vperm.slane %v2195, 0
      %v2256 = vperm.slane %v2196, 0
      %v2257 = vperm.slane %v2197, 0
      %v2258 = vperm.slane %v2198, 0
      %v2259 = vperm.slane %v2199, 0
      %v2260 = vperm.slane %v2200, 0
      %v2261 = vperm.slane %v2201, 0
      %v2262 = vperm.slane %v2162, 0
      %v2263 = vperm.slane %v2202, 0
      %v2264 = vperm.slane %v2203, 0
      %v2265 = vperm.slane %v2204, 0
      %v2266 = vperm.slane %v2205, 0
      %v2267 = vperm.slane %v2206, 0
      %v2268 = vperm.slane %v2207, 0
      %v2269 = vperm.slane %v2208, 0
      %v2270 = vperm.slane %v2163, 0
      %v2271 = vperm.slane %v2209, 0
      %v2272 = vperm.slane %v2210, 0
      %v2273 = vperm.slane %v2211, 0
      %v2274 = vperm.slane %v2212, 0
      %v2275 = vperm.slane %v2213, 0
      %v2276 = vperm.slane %v2214, 0
      %v2277 = vperm.slane %v2215, 0
      %v2278 = vperm.slane %v2164, 0
      %v2279 = vperm.slane %v2216, 0
      %v2280 = vperm.slane %v2217, 0
      %v2281 = vperm.slane %v2218, 0
      %v2282 = vperm.slane %v2219, 0
      %v2283 = vperm.slane %v2220, 0
      %v2284 = vperm.slane %v2221, 0
      %v2285 = vperm.slane %v2222, 0
      %v2286 = vperm.slane %v2165, 0
      %v2287 = vperm.slane %v2223, 0
      %v2288 = vperm.slane %v2224, 0
      %v2289 = vperm.slane %v2225, 0
      %v2290 = vperm.slane %v2226, 0
      %v2291 = vperm.slane %v2227, 0
      %v2292 = vperm.slane %v2228, 0
      %v2293 = vperm.slane %v2229, 0
      %2294 = vst.msk [vmem:[#allocation5] sm:$0xff] %vm667, 0.0
      %2295 = vst.msk [vmem:[#allocation5 + $0x8] sm:$0xff] %vm667, 0.0
      %2296 = vst.msk [vmem:[#allocation5 + $0x10] sm:$0x3] %vm538, 0.0
      %s2297 = scalar_lea.vmem [#allocation5], 408
      %2298 = vst.msk [vmem:[%s2297] sm:$0xff] %vm667, 0.0
      %2299 = vst.msk [vmem:[%s2297 + $0x8] sm:$0xff] %vm667, 0.0
      %2300 = vst.msk [vmem:[%s2297 + $0x10] sm:$0x3] %vm538, 0.0
      %2301 = vst.msk [vmem:[#allocation5] sm:$0x1] %vm526, 0.0
      %2302 = vst.msk [vmem:[#allocation5 + $0x18] sm:$0x1] %vm526, 0.0
      %2303 = vst.msk [vmem:[#allocation5 + $0x30] sm:$0x1] %vm526, 0.0
      %2304 = vst.msk [vmem:[#allocation5 + $0x48] sm:$0x1] %vm526, 0.0
      %2305 = vst.msk [vmem:[#allocation5 + $0x60] sm:$0x1] %vm526, 0.0
      %2306 = vst.msk [vmem:[#allocation5 + $0x78] sm:$0x1] %vm526, 0.0
      %2307 = vst.msk [vmem:[#allocation5 + $0x90] sm:$0x1] %vm526, 0.0
      %2308 = vst.msk [vmem:[#allocation5 + $0xa8] sm:$0x1] %vm526, 0.0
      %2309 = vst.msk [vmem:[#allocation5 + $0xc0] sm:$0x1] %vm526, 0.0
      %2310 = vst.msk [vmem:[#allocation5 + $0xd8] sm:$0x1] %vm526, 0.0
      %2311 = vst.msk [vmem:[#allocation5 + $0xf0] sm:$0x1] %vm526, 0.0
      %2312 = vst.msk [vmem:[#allocation5 + $0x108] sm:$0x1] %vm526, 0.0
      %2313 = vst.msk [vmem:[#allocation5 + $0x120] sm:$0x1] %vm526, 0.0
      %2314 = vst.msk [vmem:[#allocation5 + $0x138] sm:$0x1] %vm526, 0.0
      %2315 = vst.msk [vmem:[#allocation5 + $0x150] sm:$0x1] %vm526, 0.0
      %2316 = vst.msk [vmem:[#allocation5 + $0x168] sm:$0x1] %vm526, 0.0
      %2317 = vst.msk [vmem:[#allocation5 + $0x180] sm:$0x1] %vm526, 0.0
      %2318 = vst.msk [vmem:[#allocation5 + $0x198] sm:$0x1] %vm526, 0.0
      %2319 = vst.msk [vmem:[#allocation5 + $0x11] sm:$0x1] %vm526, 0.0
      %2320 = vst.msk [vmem:[#allocation5 + $0x29] sm:$0x1] %vm526, 0.0
      %2321 = vst.msk [vmem:[#allocation5 + $0x41] sm:$0x1] %vm526, 0.0
      %2322 = vst.msk [vmem:[#allocation5 + $0x59] sm:$0x1] %vm526, 0.0
      %2323 = vst.msk [vmem:[#allocation5 + $0x71] sm:$0x1] %vm526, 0.0
      %2324 = vst.msk [vmem:[#allocation5 + $0x89] sm:$0x1] %vm526, 0.0
      %2325 = vst.msk [vmem:[#allocation5 + $0xa1] sm:$0x1] %vm526, 0.0
      %2326 = vst.msk [vmem:[#allocation5 + $0xb9] sm:$0x1] %vm526, 0.0
      %2327 = vst.msk [vmem:[#allocation5 + $0xd1] sm:$0x1] %vm526, 0.0
      %2328 = vst.msk [vmem:[#allocation5 + $0xe9] sm:$0x1] %vm526, 0.0
      %2329 = vst.msk [vmem:[#allocation5 + $0x101] sm:$0x1] %vm526, 0.0
      %2330 = vst.msk [vmem:[#allocation5 + $0x119] sm:$0x1] %vm526, 0.0
      %2331 = vst.msk [vmem:[#allocation5 + $0x131] sm:$0x1] %vm526, 0.0
      %2332 = vst.msk [vmem:[#allocation5 + $0x149] sm:$0x1] %vm526, 0.0
      %2333 = vst.msk [vmem:[#allocation5 + $0x161] sm:$0x1] %vm526, 0.0
      %2334 = vst.msk [vmem:[#allocation5 + $0x179] sm:$0x1] %vm526, 0.0
      %2335 = vst.msk [vmem:[#allocation5 + $0x191] sm:$0x1] %vm526, 0.0
      %2336 = vst.msk [vmem:[#allocation5 + $0x1a9] sm:$0x1] %vm526, 0.0
      %v2337 = vld [vmem:[%s510] sm:$0xff]
      %v2338 = vld [vmem:[%s510 + $0x8] sm:$0xff]
      %v2339 = vld [vmem:[%s510 + $0x10] sm:$0xff]
      %v2340 = vld [vmem:[%s510 + $0x18] sm:$0xff]
      %v2341 = vld [vmem:[%s510 + $0x20] sm:$0xff]
      %v2342 = vld [vmem:[%s510 + $0x28] sm:$0xff]
      %v2343 = vld [vmem:[%s510 + $0x30] sm:$0xff]
      %v2344 = vld [vmem:[%s510 + $0x38] sm:$0xff]
      %v2345 = vld [vmem:[%s510 + $0x40] sm:$0xff]
      %v2346 = vld [vmem:[%s510 + $0x48] sm:$0xff]
      %v2347 = vld [vmem:[%s510 + $0x50] sm:$0xff]
      %v2348 = vld [vmem:[%s510 + $0x58] sm:$0xff]
      %v2349 = vld [vmem:[%s510 + $0x60] sm:$0xff]
      %v2350 = vld [vmem:[%s510 + $0x68] sm:$0xff]
      %v2351 = vld [vmem:[%s510 + $0x70] sm:$0xff]
      %v2352 = vld [vmem:[%s510 + $0x78] sm:$0xff]
      %v2353 = vld [vmem:[%s510 + $0x80] sm:$0xff]
      %v2354 = vld [vmem:[%s510 + $0x88] sm:$0xff]
      %v2355 = vld [vmem:[%s510 + $0x90] sm:$0xff]
      %v2356 = vld [vmem:[%s510 + $0x98] sm:$0xff]
      %v2357 = vld [vmem:[%s510 + $0xa0] sm:$0xff]
      %v2358 = vld [vmem:[%s510 + $0xa8] sm:$0xff]
      %v2359 = vld [vmem:[%s510 + $0xb0] sm:$0xff]
      %v2360 = vld [vmem:[%s510 + $0xb8] sm:$0xff]
      %v2361 = vld [vmem:[%s510 + $0xc0] sm:$0xff]
      %v2362 = vld [vmem:[%s510 + $0xc8] sm:$0xff]
      %v2363 = vld [vmem:[%s510 + $0xd0] sm:$0xff]
      %v2364 = vld [vmem:[%s510 + $0xd8] sm:$0xff]
      %v2365 = vld [vmem:[%s510 + $0xe0] sm:$0xff]
      %v2366 = vld [vmem:[%s510 + $0xe8] sm:$0xff]
      %v2367 = vld [vmem:[%s510 + $0xf0] sm:$0xff]
      %v2368 = vld [vmem:[%s510 + $0xf8] sm:$0xff]
      %2369 = vst [vmem:[#allocation1] ss:$4 sm:$0xff] %v2230
      %s2370 = scalar_lea.vmem [#allocation1], 1
      %2371 = vst [vmem:[%s2370] ss:$4 sm:$0xff] %v2231
      %s2372 = scalar_lea.vmem [#allocation1], 2
      %2373 = vst [vmem:[%s2372] ss:$4 sm:$0xff] %v2232
      %s2374 = scalar_lea.vmem [#allocation1], 3
      %2375 = vst [vmem:[%s2374] ss:$4 sm:$0xff] %v2233
      %s2376 = scalar_lea.vmem [#allocation1], 32
      %2377 = vst [vmem:[%s2376] ss:$4 sm:$0xff] %v2234
      %s2378 = scalar_lea.vmem [#allocation1], 33
      %2379 = vst [vmem:[%s2378] ss:$4 sm:$0xff] %v2235
      %s2380 = scalar_lea.vmem [#allocation1], 34
      %2381 = vst [vmem:[%s2380] ss:$4 sm:$0xff] %v2236
      %s2382 = scalar_lea.vmem [#allocation1], 35
      %2383 = vst [vmem:[%s2382] ss:$4 sm:$0xff] %v2237
      %v2384 = vld.sshfl [vmem:[#allocation1] sm:$0xff pattern:$0x73625140]
      %v2385 = vld.sshfl [vmem:[#allocation1 + $0x20] sm:$0xff pattern:$0x73625140]
      %2386 = vst [vmem:[#allocation1] ss:$4 sm:$0xff] %v2230
      %2387 = vst [vmem:[%s2370] ss:$4 sm:$0xff] %v2231
      %2388 = vst [vmem:[%s2372] ss:$4 sm:$0xff] %v2232
      %2389 = vst [vmem:[%s2374] ss:$4 sm:$0xff] %v2233
      %2390 = vst [vmem:[%s2376] ss:$4 sm:$0xff] %v2234
      %2391 = vst [vmem:[%s2378] ss:$4 sm:$0xff] %v2235
      %2392 = vst [vmem:[%s2380] ss:$4 sm:$0xff] %v2236
      %2393 = vst [vmem:[%s2382] ss:$4 sm:$0xff] %v2237
      %v2394 = vld.sshfl [vmem:[#allocation1] sm:$0xff pattern:$0x73625140]
      %v2395 = vld.sshfl [vmem:[#allocation1 + $0x20] sm:$0xff pattern:$0x73625140]
      %2396 = vst [vmem:[#allocation1] ss:$4 sm:$0xff] %v2238
      %2397 = vst [vmem:[%s2370] ss:$4 sm:$0xff] %v2239
      %2398 = vst [vmem:[%s2372] ss:$4 sm:$0xff] %v2240
      %2399 = vst [vmem:[%s2374] ss:$4 sm:$0xff] %v2241
      %2400 = vst [vmem:[%s2376] ss:$4 sm:$0xff] %v2242
      %2401 = vst [vmem:[%s2378] ss:$4 sm:$0xff] %v2243
      %2402 = vst [vmem:[%s2380] ss:$4 sm:$0xff] %v2244
      %2403 = vst [vmem:[%s2382] ss:$4 sm:$0xff] %v2245
      %v2404 = vld.sshfl [vmem:[#allocation1] sm:$0xff pattern:$0x73625140]
      %v2405 = vld.sshfl [vmem:[#allocation1 + $0x20] sm:$0xff pattern:$0x73625140]
      %2406 = vst [vmem:[#allocation1] ss:$4 sm:$0xff] %v2238
      %2407 = vst [vmem:[%s2370] ss:$4 sm:$0xff] %v2239
      %2408 = vst [vmem:[%s2372] ss:$4 sm:$0xff] %v2240
      %2409 = vst [vmem:[%s2374] ss:$4 sm:$0xff] %v2241
      %2410 = vst [vmem:[%s2376] ss:$4 sm:$0xff] %v2242
      %2411 = vst [vmem:[%s2378] ss:$4 sm:$0xff] %v2243
      %2412 = vst [vmem:[%s2380] ss:$4 sm:$0xff] %v2244
      %2413 = vst [vmem:[%s2382] ss:$4 sm:$0xff] %v2245
      %v2414 = vld.sshfl [vmem:[#allocation1] sm:$0xff pattern:$0x73625140]
      %v2415 = vld.sshfl [vmem:[#allocation1 + $0x20] sm:$0xff pattern:$0x73625140]
      %2416 = vst [vmem:[#allocation1] ss:$4 sm:$0xff] %v2246
      %2417 = vst [vmem:[%s2370] ss:$4 sm:$0xff] %v2247
      %2418 = vst [vmem:[%s2372] ss:$4 sm:$0xff] %v2248
      %2419 = vst [vmem:[%s2374] ss:$4 sm:$0xff] %v2249
      %2420 = vst [vmem:[%s2376] ss:$4 sm:$0xff] %v2250
      %2421 = vst [vmem:[%s2378] ss:$4 sm:$0xff] %v2251
      %2422 = vst [vmem:[%s2380] ss:$4 sm:$0xff] %v2252
      %2423 = vst [vmem:[%s2382] ss:$4 sm:$0xff] %v2253
      %v2424 = vld.sshfl [vmem:[#allocation1] sm:$0xff pattern:$0x73625140]
      %v2425 = vld.sshfl [vmem:[#allocation1 + $0x20] sm:$0xff pattern:$0x73625140]
      %2426 = vst [vmem:[#allocation1] ss:$4 sm:$0xff] %v2246
      %2427 = vst [vmem:[%s2370] ss:$4 sm:$0xff] %v2247
      %2428 = vst [vmem:[%s2372] ss:$4 sm:$0xff] %v2248
      %2429 = vst [vmem:[%s2374] ss:$4 sm:$0xff] %v2249
      %2430 = vst [vmem:[%s2376] ss:$4 sm:$0xff] %v2250
      %2431 = vst [vmem:[%s2378] ss:$4 sm:$0xff] %v2251
      %2432 = vst [vmem:[%s2380] ss:$4 sm:$0xff] %v2252
      %2433 = vst [vmem:[%s2382] ss:$4 sm:$0xff] %v2253
      %v2434 = vld.sshfl [vmem:[#allocation1] sm:$0xff pattern:$0x73625140]
      %v2435 = vld.sshfl [vmem:[#allocation1 + $0x20] sm:$0xff pattern:$0x73625140]
      %2436 = vst [vmem:[#allocation1] ss:$4 sm:$0xff] %v2254
      %2437 = vst [vmem:[%s2370] ss:$4 sm:$0xff] %v2255
      %2438 = vst [vmem:[%s2372] ss:$4 sm:$0xff] %v2256
      %2439 = vst [vmem:[%s2374] ss:$4 sm:$0xff] %v2257
      %2440 = vst [vmem:[%s2376] ss:$4 sm:$0xff] %v2258
      %2441 = vst [vmem:[%s2378] ss:$4 sm:$0xff] %v2259
      %2442 = vst [vmem:[%s2380] ss:$4 sm:$0xff] %v2260
      %2443 = vst [vmem:[%s2382] ss:$4 sm:$0xff] %v2261
      %v2444 = vld.sshfl [vmem:[#allocation1] sm:$0xff pattern:$0x73625140]
      %v2445 = vld.sshfl [vmem:[#allocation1 + $0x20] sm:$0xff pattern:$0x73625140]
      %2446 = vst [vmem:[#allocation1] ss:$4 sm:$0xff] %v2254
      %2447 = vst [vmem:[%s2370] ss:$4 sm:$0xff] %v2255
      %2448 = vst [vmem:[%s2372] ss:$4 sm:$0xff] %v2256
      %2449 = vst [vmem:[%s2374] ss:$4 sm:$0xff] %v2257
      %2450 = vst [vmem:[%s2376] ss:$4 sm:$0xff] %v2258
      %2451 = vst [vmem:[%s2378] ss:$4 sm:$0xff] %v2259
      %2452 = vst [vmem:[%s2380] ss:$4 sm:$0xff] %v2260
      %2453 = vst [vmem:[%s2382] ss:$4 sm:$0xff] %v2261
      %v2454 = vld.sshfl [vmem:[#allocation1] sm:$0xff pattern:$0x73625140]
      %v2455 = vld.sshfl [vmem:[#allocation1 + $0x20] sm:$0xff pattern:$0x73625140]
      %2456 = vst [vmem:[#allocation1] ss:$4 sm:$0xff] %v2262
      %2457 = vst [vmem:[%s2370] ss:$4 sm:$0xff] %v2263
      %2458 = vst [vmem:[%s2372] ss:$4 sm:$0xff] %v2264
      %2459 = vst [vmem:[%s2374] ss:$4 sm:$0xff] %v2265
      %2460 = vst [vmem:[%s2376] ss:$4 sm:$0xff] %v2266
      %2461 = vst [vmem:[%s2378] ss:$4 sm:$0xff] %v2267
      %2462 = vst [vmem:[%s2380] ss:$4 sm:$0xff] %v2268
      %2463 = vst [vmem:[%s2382] ss:$4 sm:$0xff] %v2269
      %v2464 = vld.sshfl [vmem:[#allocation1] sm:$0xff pattern:$0x73625140]
      %v2465 = vld.sshfl [vmem:[#allocation1 + $0x20] sm:$0xff pattern:$0x73625140]
      %2466 = vst [vmem:[#allocation1] ss:$4 sm:$0xff] %v2262
      %2467 = vst [vmem:[%s2370] ss:$4 sm:$0xff] %v2263
      %2468 = vst [vmem:[%s2372] ss:$4 sm:$0xff] %v2264
      %2469 = vst [vmem:[%s2374] ss:$4 sm:$0xff] %v2265
      %2470 = vst [vmem:[%s2376] ss:$4 sm:$0xff] %v2266
      %2471 = vst [vmem:[%s2378] ss:$4 sm:$0xff] %v2267
      %2472 = vst [vmem:[%s2380] ss:$4 sm:$0xff] %v2268
      %2473 = vst [vmem:[%s2382] ss:$4 sm:$0xff] %v2269
      %v2474 = vld.sshfl [vmem:[#allocation1] sm:$0xff pattern:$0x73625140]
      %v2475 = vld.sshfl [vmem:[#allocation1 + $0x20] sm:$0xff pattern:$0x73625140]
      %2476 = vst [vmem:[#allocation1] ss:$4 sm:$0xff] %v2270
      %2477 = vst [vmem:[%s2370] ss:$4 sm:$0xff] %v2271
      %2478 = vst [vmem:[%s2372] ss:$4 sm:$0xff] %v2272
      %2479 = vst [vmem:[%s2374] ss:$4 sm:$0xff] %v2273
      %2480 = vst [vmem:[%s2376] ss:$4 sm:$0xff] %v2274
      %2481 = vst [vmem:[%s2378] ss:$4 sm:$0xff] %v2275
      %2482 = vst [vmem:[%s2380] ss:$4 sm:$0xff] %v2276
      %2483 = vst [vmem:[%s2382] ss:$4 sm:$0xff] %v2277
      %v2484 = vld.sshfl [vmem:[#allocation1] sm:$0xff pattern:$0x73625140]
      %v2485 = vld.sshfl [vmem:[#allocation1 + $0x20] sm:$0xff pattern:$0x73625140]
      %2486 = vst [vmem:[#allocation1] ss:$4 sm:$0xff] %v2270
      %2487 = vst [vmem:[%s2370] ss:$4 sm:$0xff] %v2271
      %2488 = vst [vmem:[%s2372] ss:$4 sm:$0xff] %v2272
      %2489 = vst [vmem:[%s2374] ss:$4 sm:$0xff] %v2273
      %2490 = vst [vmem:[%s2376] ss:$4 sm:$0xff] %v2274
      %2491 = vst [vmem:[%s2378] ss:$4 sm:$0xff] %v2275
      %2492 = vst [vmem:[%s2380] ss:$4 sm:$0xff] %v2276
      %2493 = vst [vmem:[%s2382] ss:$4 sm:$0xff] %v2277
      %v2494 = vld.sshfl [vmem:[#allocation1] sm:$0xff pattern:$0x73625140]
      %v2495 = vld.sshfl [vmem:[#allocation1 + $0x20] sm:$0xff pattern:$0x73625140]
      %2496 = vst [vmem:[#allocation1] ss:$4 sm:$0xff] %v2278
      %2497 = vst [vmem:[%s2370] ss:$4 sm:$0xff] %v2279
      %2498 = vst [vmem:[%s2372] ss:$4 sm:$0xff] %v2280
      %2499 = vst [vmem:[%s2374] ss:$4 sm:$0xff] %v2281
      %2500 = vst [vmem:[%s2376] ss:$4 sm:$0xff] %v2282
      %2501 = vst [vmem:[%s2378] ss:$4 sm:$0xff] %v2283
      %2502 = vst [vmem:[%s2380] ss:$4 sm:$0xff] %v2284
      %2503 = vst [vmem:[%s2382] ss:$4 sm:$0xff] %v2285
      %v2504 = vld.sshfl [vmem:[#allocation1] sm:$0xff pattern:$0x73625140]
      %v2505 = vld.sshfl [vmem:[#allocation1 + $0x20] sm:$0xff pattern:$0x73625140]
      %2506 = vst [vmem:[#allocation1] ss:$4 sm:$0xff] %v2278
      %2507 = vst [vmem:[%s2370] ss:$4 sm:$0xff] %v2279
      %2508 = vst [vmem:[%s2372] ss:$4 sm:$0xff] %v2280
      %2509 = vst [vmem:[%s2374] ss:$4 sm:$0xff] %v2281
      %2510 = vst [vmem:[%s2376] ss:$4 sm:$0xff] %v2282
      %2511 = vst [vmem:[%s2378] ss:$4 sm:$0xff] %v2283
      %2512 = vst [vmem:[%s2380] ss:$4 sm:$0xff] %v2284
      %2513 = vst [vmem:[%s2382] ss:$4 sm:$0xff] %v2285
      %v2514 = vld.sshfl [vmem:[#allocation1] sm:$0xff pattern:$0x73625140]
      %v2515 = vld.sshfl [vmem:[#allocation1 + $0x20] sm:$0xff pattern:$0x73625140]
      %2516 = vst [vmem:[#allocation1] ss:$4 sm:$0xff] %v2286
      %2517 = vst [vmem:[%s2370] ss:$4 sm:$0xff] %v2287
      %2518 = vst [vmem:[%s2372] ss:$4 sm:$0xff] %v2288
      %2519 = vst [vmem:[%s2374] ss:$4 sm:$0xff] %v2289
      %2520 = vst [vmem:[%s2376] ss:$4 sm:$0xff] %v2290
      %2521 = vst [vmem:[%s2378] ss:$4 sm:$0xff] %v2291
      %2522 = vst [vmem:[%s2380] ss:$4 sm:$0xff] %v2292
      %2523 = vst [vmem:[%s2382] ss:$4 sm:$0xff] %v2293
      %v2524 = vld.sshfl [vmem:[#allocation1] sm:$0xff pattern:$0x73625140]
      %v2525 = vld.sshfl [vmem:[#allocation1 + $0x20] sm:$0xff pattern:$0x73625140]
      %2526 = vst [vmem:[#allocation1] ss:$4 sm:$0xff] %v2286
      %2527 = vst [vmem:[%s2370] ss:$4 sm:$0xff] %v2287
      %2528 = vst [vmem:[%s2372] ss:$4 sm:$0xff] %v2288
      %2529 = vst [vmem:[%s2374] ss:$4 sm:$0xff] %v2289
      %2530 = vst [vmem:[%s2376] ss:$4 sm:$0xff] %v2290
      %2531 = vst [vmem:[%s2378] ss:$4 sm:$0xff] %v2291
      %2532 = vst [vmem:[%s2380] ss:$4 sm:$0xff] %v2292
      %2533 = vst [vmem:[%s2382] ss:$4 sm:$0xff] %v2293
      %v2534 = vld.sshfl [vmem:[#allocation1] sm:$0xff pattern:$0x73625140]
      %v2535 = vld.sshfl [vmem:[#allocation1 + $0x20] sm:$0xff pattern:$0x73625140]
      %2536 = vrot.lane.b32.xlu0 %v2384, 8
      %v2537 = vpop.permute.xlu0 %2536
      %2538 = vrot.lane.b32.xlu0 %v2385, 8
      %v2539 = vpop.permute.xlu0 %2538
      %2540 = vrot.lane.b32.xlu0 %v2394, 8
      %v2541 = vpop.permute.xlu0 %2540
      %2542 = vrot.lane.b32.xlu0 %v2395, 8
      %v2543 = vpop.permute.xlu0 %2542
      %2544 = vrot.lane.b32.xlu0 %v2404, 8
      %v2545 = vpop.permute.xlu0 %2544
      %2546 = vrot.lane.b32.xlu0 %v2405, 8
      %v2547 = vpop.permute.xlu0 %2546
      %2548 = vrot.lane.b32.xlu0 %v2414, 8
      %v2549 = vpop.permute.xlu0 %2548
      %2550 = vrot.lane.b32.xlu0 %v2415, 8
      %v2551 = vpop.permute.xlu0 %2550
      %2552 = vrot.lane.b32.xlu0 %v2424, 8
      %v2553 = vpop.permute.xlu0 %2552
      %2554 = vrot.lane.b32.xlu0 %v2425, 8
      %v2555 = vpop.permute.xlu0 %2554
      %2556 = vrot.lane.b32.xlu0 %v2434, 8
      %v2557 = vpop.permute.xlu0 %2556
      %2558 = vrot.lane.b32.xlu0 %v2435, 8
      %v2559 = vpop.permute.xlu0 %2558
      %2560 = vrot.lane.b32.xlu0 %v2444, 8
      %v2561 = vpop.permute.xlu0 %2560
      %2562 = vrot.lane.b32.xlu0 %v2445, 8
      %v2563 = vpop.permute.xlu0 %2562
      %2564 = vrot.lane.b32.xlu0 %v2454, 8
      %v2565 = vpop.permute.xlu0 %2564
      %2566 = vrot.lane.b32.xlu0 %v2455, 8
      %v2567 = vpop.permute.xlu0 %2566
      %2568 = vrot.lane.b32.xlu0 %v2464, 8
      %v2569 = vpop.permute.xlu0 %2568
      %2570 = vrot.lane.b32.xlu0 %v2465, 8
      %v2571 = vpop.permute.xlu0 %2570
      %2572 = vrot.lane.b32.xlu0 %v2474, 8
      %v2573 = vpop.permute.xlu0 %2572
      %2574 = vrot.lane.b32.xlu0 %v2475, 8
      %v2575 = vpop.permute.xlu0 %2574
      %2576 = vrot.lane.b32.xlu0 %v2484, 8
      %v2577 = vpop.permute.xlu0 %2576
      %2578 = vrot.lane.b32.xlu0 %v2485, 8
      %v2579 = vpop.permute.xlu0 %2578
      %2580 = vrot.lane.b32.xlu0 %v2494, 8
      %v2581 = vpop.permute.xlu0 %2580
      %2582 = vrot.lane.b32.xlu0 %v2495, 8
      %v2583 = vpop.permute.xlu0 %2582
      %2584 = vrot.lane.b32.xlu0 %v2504, 8
      %v2585 = vpop.permute.xlu0 %2584
      %2586 = vrot.lane.b32.xlu0 %v2505, 8
      %v2587 = vpop.permute.xlu0 %2586
      %2588 = vrot.lane.b32.xlu0 %v2514, 8
      %v2589 = vpop.permute.xlu0 %2588
      %2590 = vrot.lane.b32.xlu0 %v2515, 8
      %v2591 = vpop.permute.xlu0 %2590
      %2592 = vrot.lane.b32.xlu0 %v2524, 8
      %v2593 = vpop.permute.xlu0 %2592
      %2594 = vrot.lane.b32.xlu0 %v2525, 8
      %v2595 = vpop.permute.xlu0 %2594
      %2596 = vrot.lane.b32.xlu0 %v2534, 8
      %v2597 = vpop.permute.xlu0 %2596
      %2598 = vrot.lane.b32.xlu0 %v2535, 8
      %v2599 = vpop.permute.xlu0 %2598
      %vm2632 = vcmask 64512
      %v2633 = vsel %vm2632, %v2337, %v2537
      %v2634 = vsel %vm2632, %v2338, %v2539
      %v2635 = vsel %vm2632, %v2339, %v2541
      %v2636 = vsel %vm2632, %v2340, %v2543
      %v2637 = vsel %vm2632, %v2341, %v2545
      %v2638 = vsel %vm2632, %v2342, %v2547
      %v2639 = vsel %vm2632, %v2343, %v2549
      %v2640 = vsel %vm2632, %v2344, %v2551
      %v2641 = vsel %vm2632, %v2345, %v2553
      %v2642 = vsel %vm2632, %v2346, %v2555
      %v2643 = vsel %vm2632, %v2347, %v2557
      %v2644 = vsel %vm2632, %v2348, %v2559
      %v2645 = vsel %vm2632, %v2349, %v2561
      %v2646 = vsel %vm2632, %v2350, %v2563
      %v2647 = vsel %vm2632, %v2351, %v2565
      %v2648 = vsel %vm2632, %v2352, %v2567
      %v2649 = vsel %vm2632, %v2353, %v2569
      %v2650 = vsel %vm2632, %v2354, %v2571
      %v2651 = vsel %vm2632, %v2355, %v2573
      %v2652 = vsel %vm2632, %v2356, %v2575
      %v2653 = vsel %vm2632, %v2357, %v2577
      %v2654 = vsel %vm2632, %v2358, %v2579
      %v2655 = vsel %vm2632, %v2359, %v2581
      %v2656 = vsel %vm2632, %v2360, %v2583
      %v2657 = vsel %vm2632, %v2361, %v2585
      %v2658 = vsel %vm2632, %v2362, %v2587
      %v2659 = vsel %vm2632, %v2363, %v2589
      %v2660 = vsel %vm2632, %v2364, %v2591
      %v2661 = vsel %vm2632, %v2365, %v2593
      %v2662 = vsel %vm2632, %v2366, %v2595
      %v2663 = vsel %vm2632, %v2367, %v2597
      %v2664 = vsel %vm2632, %v2368, %v2599
      %s2665 = scalar_lea.vmem [#allocation5], 24
      %2666 = vst.msk [vmem:[%s2665 + $0x1] sm:$0xff] %vm667, %v2633
      %2667 = vst.msk [vmem:[%s2665 + $0x9] sm:$0xff] %vm667, %v2634
      %2668 = vst.msk [vmem:[%s2665 + $0x19] sm:$0xff] %vm667, %v2635
      %2669 = vst.msk [vmem:[%s2665 + $0x21] sm:$0xff] %vm667, %v2636
      %2670 = vst.msk [vmem:[%s2665 + $0x31] sm:$0xff] %vm667, %v2637
      %2671 = vst.msk [vmem:[%s2665 + $0x39] sm:$0xff] %vm667, %v2638
      %2672 = vst.msk [vmem:[%s2665 + $0x49] sm:$0xff] %vm667, %v2639
      %2673 = vst.msk [vmem:[%s2665 + $0x51] sm:$0xff] %vm667, %v2640
      %2674 = vst.msk [vmem:[%s2665 + $0x61] sm:$0xff] %vm667, %v2641
      %2675 = vst.msk [vmem:[%s2665 + $0x69] sm:$0xff] %vm667, %v2642
      %2676 = vst.msk [vmem:[%s2665 + $0x79] sm:$0xff] %vm667, %v2643
      %2677 = vst.msk [vmem:[%s2665 + $0x81] sm:$0xff] %vm667, %v2644
      %2678 = vst.msk [vmem:[%s2665 + $0x91] sm:$0xff] %vm667, %v2645
      %2679 = vst.msk [vmem:[%s2665 + $0x99] sm:$0xff] %vm667, %v2646
      %2680 = vst.msk [vmem:[%s2665 + $0xa9] sm:$0xff] %vm667, %v2647
      %2681 = vst.msk [vmem:[%s2665 + $0xb1] sm:$0xff] %vm667, %v2648
      %2682 = vst.msk [vmem:[%s2665 + $0xc1] sm:$0xff] %vm667, %v2649
      %2683 = vst.msk [vmem:[%s2665 + $0xc9] sm:$0xff] %vm667, %v2650
      %2684 = vst.msk [vmem:[%s2665 + $0xd9] sm:$0xff] %vm667, %v2651
      %2685 = vst.msk [vmem:[%s2665 + $0xe1] sm:$0xff] %vm667, %v2652
      %2686 = vst.msk [vmem:[%s2665 + $0xf1] sm:$0xff] %vm667, %v2653
      %2687 = vst.msk [vmem:[%s2665 + $0xf9] sm:$0xff] %vm667, %v2654
      %2688 = vst.msk [vmem:[%s2665 + $0x109] sm:$0xff] %vm667, %v2655
      %2689 = vst.msk [vmem:[%s2665 + $0x111] sm:$0xff] %vm667, %v2656
      %2690 = vst.msk [vmem:[%s2665 + $0x121] sm:$0xff] %vm667, %v2657
      %2691 = vst.msk [vmem:[%s2665 + $0x129] sm:$0xff] %vm667, %v2658
      %2692 = vst.msk [vmem:[%s2665 + $0x139] sm:$0xff] %vm667, %v2659
      %2693 = vst.msk [vmem:[%s2665 + $0x141] sm:$0xff] %vm667, %v2660
      %2694 = vst.msk [vmem:[%s2665 + $0x151] sm:$0xff] %vm667, %v2661
      %2695 = vst.msk [vmem:[%s2665 + $0x159] sm:$0xff] %vm667, %v2662
      %2696 = vst.msk [vmem:[%s2665 + $0x169] sm:$0xff] %vm667, %v2663
      %2697 = vst.msk [vmem:[%s2665 + $0x171] sm:$0xff] %vm667, %v2664
      %v2698 = vld [vmem:[#allocation5] sm:$0xff]
      %v2699 = vld [vmem:[#allocation5 + $0x8] sm:$0xff]
      %v2700 = vld [vmem:[#allocation5 + $0x18] sm:$0xff]
      %v2701 = vld [vmem:[#allocation5 + $0x20] sm:$0xff]
      %v2702 = vld [vmem:[#allocation5 + $0x30] sm:$0xff]
      %v2703 = vld [vmem:[#allocation5 + $0x38] sm:$0xff]
      %v2704 = vld [vmem:[#allocation5 + $0x48] sm:$0xff]
      %v2705 = vld [vmem:[#allocation5 + $0x50] sm:$0xff]
      %v2706 = vld [vmem:[#allocation5 + $0x60] sm:$0xff]
      %v2707 = vld [vmem:[#allocation5 + $0x68] sm:$0xff]
      %v2708 = vld [vmem:[#allocation5 + $0x78] sm:$0xff]
      %v2709 = vld [vmem:[#allocation5 + $0x80] sm:$0xff]
      %v2710 = vld [vmem:[#allocation5 + $0x90] sm:$0xff]
      %v2711 = vld [vmem:[#allocation5 + $0x98] sm:$0xff]
      %v2712 = vld [vmem:[#allocation5 + $0xa8] sm:$0xff]
      %v2713 = vld [vmem:[#allocation5 + $0xb0] sm:$0xff]
      %v2714 = vld [vmem:[#allocation5 + $0xc0] sm:$0xff]
      %v2715 = vld [vmem:[#allocation5 + $0xc8] sm:$0xff]
      %v2716 = vld [vmem:[#allocation5 + $0xd8] sm:$0xff]
      %v2717 = vld [vmem:[#allocation5 + $0xe0] sm:$0xff]
      %v2718 = vld [vmem:[#allocation5 + $0xf0] sm:$0xff]
      %v2719 = vld [vmem:[#allocation5 + $0xf8] sm:$0xff]
      %v2720 = vld [vmem:[#allocation5 + $0x108] sm:$0xff]
      %v2721 = vld [vmem:[#allocation5 + $0x110] sm:$0xff]
      %v2722 = vld [vmem:[#allocation5 + $0x120] sm:$0xff]
      %v2723 = vld [vmem:[#allocation5 + $0x128] sm:$0xff]
      %v2724 = vld [vmem:[#allocation5 + $0x138] sm:$0xff]
      %v2725 = vld [vmem:[#allocation5 + $0x140] sm:$0xff]
      %v2726 = vld [vmem:[#allocation5 + $0x150] sm:$0xff]
      %v2727 = vld [vmem:[#allocation5 + $0x158] sm:$0xff]
      %v2728 = vld [vmem:[#allocation5 + $0x168] sm:$0xff]
      %v2729 = vld [vmem:[#allocation5 + $0x170] sm:$0xff]
      %v2730 = vpack.c.bf16 %v2698, %v2698
      %v2731 = vpack.c.bf16 %v2699, %v2699
      %v2732 = vpack.c.bf16 %v2700, %v2700
      %v2733 = vpack.c.bf16 %v2701, %v2701
      %v2734 = vpack.c.bf16 %v2702, %v2702
      %v2735 = vpack.c.bf16 %v2703, %v2703
      %v2736 = vpack.c.bf16 %v2704, %v2704
      %v2737 = vpack.c.bf16 %v2705, %v2705
      %v2738 = vpack.c.bf16 %v2706, %v2706
      %v2739 = vpack.c.bf16 %v2707, %v2707
      %v2740 = vpack.c.bf16 %v2708, %v2708
      %v2741 = vpack.c.bf16 %v2709, %v2709
      %v2742 = vpack.c.bf16 %v2710, %v2710
      %v2743 = vpack.c.bf16 %v2711, %v2711
      %v2744 = vpack.c.bf16 %v2712, %v2712
      %v2745 = vpack.c.bf16 %v2713, %v2713
      %v2746 = vpack.c.bf16 %v2714, %v2714
      %v2747 = vpack.c.bf16 %v2715, %v2715
      %v2748 = vpack.c.bf16 %v2716, %v2716
      %v2749 = vpack.c.bf16 %v2717, %v2717
      %v2750 = vpack.c.bf16 %v2718, %v2718
      %v2751 = vpack.c.bf16 %v2719, %v2719
      %v2752 = vpack.c.bf16 %v2720, %v2720
      %v2753 = vpack.c.bf16 %v2721, %v2721
      %v2754 = vpack.c.bf16 %v2722, %v2722
      %v2755 = vpack.c.bf16 %v2723, %v2723
      %v2756 = vpack.c.bf16 %v2724, %v2724
      %v2757 = vpack.c.bf16 %v2725, %v2725
      %v2758 = vpack.c.bf16 %v2726, %v2726
      %v2759 = vpack.c.bf16 %v2727, %v2727
      %v2760 = vpack.c.bf16 %v2728, %v2728
      %v2761 = vpack.c.bf16 %v2729, %v2729
      %v2762 = vld [vmem:[#allocation5 + $0x1] sm:$0xff]
      %v2763 = vld [vmem:[#allocation5 + $0x9] sm:$0xff]
      %v2764 = vld [vmem:[#allocation5 + $0x19] sm:$0xff]
      %v2765 = vld [vmem:[#allocation5 + $0x21] sm:$0xff]
      %v2766 = vld [vmem:[#allocation5 + $0x31] sm:$0xff]
      %v2767 = vld [vmem:[#allocation5 + $0x39] sm:$0xff]
      %v2768 = vld [vmem:[#allocation5 + $0x49] sm:$0xff]
      %v2769 = vld [vmem:[#allocation5 + $0x51] sm:$0xff]
      %v2770 = vld [vmem:[#allocation5 + $0x61] sm:$0xff]
      %v2771 = vld [vmem:[#allocation5 + $0x69] sm:$0xff]
      %v2772 = vld [vmem:[#allocation5 + $0x79] sm:$0xff]
      %v2773 = vld [vmem:[#allocation5 + $0x81] sm:$0xff]
      %v2774 = vld [vmem:[#allocation5 + $0x91] sm:$0xff]
      %v2775 = vld [vmem:[#allocation5 + $0x99] sm:$0xff]
      %v2776 = vld [vmem:[#allocation5 + $0xa9] sm:$0xff]
      %v2777 = vld [vmem:[#allocation5 + $0xb1] sm:$0xff]
      %v2778 = vld [vmem:[#allocation5 + $0xc1] sm:$0xff]
      %v2779 = vld [vmem:[#allocation5 + $0xc9] sm:$0xff]
      %v2780 = vld [vmem:[#allocation5 + $0xd9] sm:$0xff]
      %v2781 = vld [vmem:[#allocation5 + $0xe1] sm:$0xff]
      %v2782 = vld [vmem:[#allocation5 + $0xf1] sm:$0xff]
      %v2783 = vld [vmem:[#allocation5 + $0xf9] sm:$0xff]
      %v2784 = vld [vmem:[#allocation5 + $0x109] sm:$0xff]
      %v2785 = vld [vmem:[#allocation5 + $0x111] sm:$0xff]
      %v2786 = vld [vmem:[#allocation5 + $0x121] sm:$0xff]
      %v2787 = vld [vmem:[#allocation5 + $0x129] sm:$0xff]
      %v2788 = vld [vmem:[#allocation5 + $0x139] sm:$0xff]
      %v2789 = vld [vmem:[#allocation5 + $0x141] sm:$0xff]
      %v2790 = vld [vmem:[#allocation5 + $0x151] sm:$0xff]
      %v2791 = vld [vmem:[#allocation5 + $0x159] sm:$0xff]
      %v2792 = vld [vmem:[#allocation5 + $0x169] sm:$0xff]
      %v2793 = vld [vmem:[#allocation5 + $0x171] sm:$0xff]
      %v2794 = vpack.c.bf16 %v2762, %v2762
      %v2795 = vpack.c.bf16 %v2763, %v2763
      %v2796 = vpack.c.bf16 %v2764, %v2764
      %v2797 = vpack.c.bf16 %v2765, %v2765
      %v2798 = vpack.c.bf16 %v2766, %v2766
      %v2799 = vpack.c.bf16 %v2767, %v2767
      %v2800 = vpack.c.bf16 %v2768, %v2768
      %v2801 = vpack.c.bf16 %v2769, %v2769
      %v2802 = vpack.c.bf16 %v2770, %v2770
      %v2803 = vpack.c.bf16 %v2771, %v2771
      %v2804 = vpack.c.bf16 %v2772, %v2772
      %v2805 = vpack.c.bf16 %v2773, %v2773
      %v2806 = vpack.c.bf16 %v2774, %v2774
      %v2807 = vpack.c.bf16 %v2775, %v2775
      %v2808 = vpack.c.bf16 %v2776, %v2776
      %v2809 = vpack.c.bf16 %v2777, %v2777
      %v2810 = vpack.c.bf16 %v2778, %v2778
      %v2811 = vpack.c.bf16 %v2779, %v2779
      %v2812 = vpack.c.bf16 %v2780, %v2780
      %v2813 = vpack.c.bf16 %v2781, %v2781
      %v2814 = vpack.c.bf16 %v2782, %v2782
      %v2815 = vpack.c.bf16 %v2783, %v2783
      %v2816 = vpack.c.bf16 %v2784, %v2784
      %v2817 = vpack.c.bf16 %v2785, %v2785
      %v2818 = vpack.c.bf16 %v2786, %v2786
      %v2819 = vpack.c.bf16 %v2787, %v2787
      %v2820 = vpack.c.bf16 %v2788, %v2788
      %v2821 = vpack.c.bf16 %v2789, %v2789
      %v2822 = vpack.c.bf16 %v2790, %v2790
      %v2823 = vpack.c.bf16 %v2791, %v2791
      %v2824 = vpack.c.bf16 %v2792, %v2792
      %v2825 = vpack.c.bf16 %v2793, %v2793
      %v2826 = vld [vmem:[#allocation5 + $0x2] sm:$0xff]
      %v2827 = vld [vmem:[#allocation5 + $0xa] sm:$0xff]
      %v2828 = vld [vmem:[#allocation5 + $0x1a] sm:$0xff]
      %v2829 = vld [vmem:[#allocation5 + $0x22] sm:$0xff]
      %v2830 = vld [vmem:[#allocation5 + $0x32] sm:$0xff]
      %v2831 = vld [vmem:[#allocation5 + $0x3a] sm:$0xff]
      %v2832 = vld [vmem:[#allocation5 + $0x4a] sm:$0xff]
      %v2833 = vld [vmem:[#allocation5 + $0x52] sm:$0xff]
      %v2834 = vld [vmem:[#allocation5 + $0x62] sm:$0xff]
      %v2835 = vld [vmem:[#allocation5 + $0x6a] sm:$0xff]
      %v2836 = vld [vmem:[#allocation5 + $0x7a] sm:$0xff]
      %v2837 = vld [vmem:[#allocation5 + $0x82] sm:$0xff]
      %v2838 = vld [vmem:[#allocation5 + $0x92] sm:$0xff]
      %v2839 = vld [vmem:[#allocation5 + $0x9a] sm:$0xff]
      %v2840 = vld [vmem:[#allocation5 + $0xaa] sm:$0xff]
      %v2841 = vld [vmem:[#allocation5 + $0xb2] sm:$0xff]
      %v2842 = vld [vmem:[#allocation5 + $0xc2] sm:$0xff]
      %v2843 = vld [vmem:[#allocation5 + $0xca] sm:$0xff]
      %v2844 = vld [vmem:[#allocation5 + $0xda] sm:$0xff]
      %v2845 = vld [vmem:[#allocation5 + $0xe2] sm:$0xff]
      %v2846 = vld [vmem:[#allocation5 + $0xf2] sm:$0xff]
      %v2847 = vld [vmem:[#allocation5 + $0xfa] sm:$0xff]
      %v2848 = vld [vmem:[#allocation5 + $0x10a] sm:$0xff]
      %v2849 = vld [vmem:[#allocation5 + $0x112] sm:$0xff]
      %v2850 = vld [vmem:[#allocation5 + $0x122] sm:$0xff]
      %v2851 = vld [vmem:[#allocation5 + $0x12a] sm:$0xff]
      %v2852 = vld [vmem:[#allocation5 + $0x13a] sm:$0xff]
      %v2853 = vld [vmem:[#allocation5 + $0x142] sm:$0xff]
      %v2854 = vld [vmem:[#allocation5 + $0x152] sm:$0xff]
      %v2855 = vld [vmem:[#allocation5 + $0x15a] sm:$0xff]
      %v2856 = vld [vmem:[#allocation5 + $0x16a] sm:$0xff]
      %v2857 = vld [vmem:[#allocation5 + $0x172] sm:$0xff]
      %v2858 = vpack.c.bf16 %v2826, %v2826
      %v2859 = vpack.c.bf16 %v2827, %v2827
      %v2860 = vpack.c.bf16 %v2828, %v2828
      %v2861 = vpack.c.bf16 %v2829, %v2829
      %v2862 = vpack.c.bf16 %v2830, %v2830
      %v2863 = vpack.c.bf16 %v2831, %v2831
      %v2864 = vpack.c.bf16 %v2832, %v2832
      %v2865 = vpack.c.bf16 %v2833, %v2833
      %v2866 = vpack.c.bf16 %v2834, %v2834
      %v2867 = vpack.c.bf16 %v2835, %v2835
      %v2868 = vpack.c.bf16 %v2836, %v2836
      %v2869 = vpack.c.bf16 %v2837, %v2837
      %v2870 = vpack.c.bf16 %v2838, %v2838
      %v2871 = vpack.c.bf16 %v2839, %v2839
      %v2872 = vpack.c.bf16 %v2840, %v2840
      %v2873 = vpack.c.bf16 %v2841, %v2841
      %v2874 = vpack.c.bf16 %v2842, %v2842
      %v2875 = vpack.c.bf16 %v2843, %v2843
      %v2876 = vpack.c.bf16 %v2844, %v2844
      %v2877 = vpack.c.bf16 %v2845, %v2845
      %v2878 = vpack.c.bf16 %v2846, %v2846
      %v2879 = vpack.c.bf16 %v2847, %v2847
      %v2880 = vpack.c.bf16 %v2848, %v2848
      %v2881 = vpack.c.bf16 %v2849, %v2849
      %v2882 = vpack.c.bf16 %v2850, %v2850
      %v2883 = vpack.c.bf16 %v2851, %v2851
      %v2884 = vpack.c.bf16 %v2852, %v2852
      %v2885 = vpack.c.bf16 %v2853, %v2853
      %v2886 = vpack.c.bf16 %v2854, %v2854
      %v2887 = vpack.c.bf16 %v2855, %v2855
      %v2888 = vpack.c.bf16 %v2856, %v2856
      %v2889 = vpack.c.bf16 %v2857, %v2857
      %v2890 = vld [vmem:[%s2665] sm:$0xff]
      %v2891 = vld [vmem:[%s2665 + $0x8] sm:$0xff]
      %v2892 = vld [vmem:[%s2665 + $0x18] sm:$0xff]
      %v2893 = vld [vmem:[%s2665 + $0x20] sm:$0xff]
      %v2894 = vld [vmem:[%s2665 + $0x30] sm:$0xff]
      %v2895 = vld [vmem:[%s2665 + $0x38] sm:$0xff]
      %v2896 = vld [vmem:[%s2665 + $0x48] sm:$0xff]
      %v2897 = vld [vmem:[%s2665 + $0x50] sm:$0xff]
      %v2898 = vld [vmem:[%s2665 + $0x60] sm:$0xff]
      %v2899 = vld [vmem:[%s2665 + $0x68] sm:$0xff]
      %v2900 = vld [vmem:[%s2665 + $0x78] sm:$0xff]
      %v2901 = vld [vmem:[%s2665 + $0x80] sm:$0xff]
      %v2902 = vld [vmem:[%s2665 + $0x90] sm:$0xff]
      %v2903 = vld [vmem:[%s2665 + $0x98] sm:$0xff]
      %v2904 = vld [vmem:[%s2665 + $0xa8] sm:$0xff]
      %v2905 = vld [vmem:[%s2665 + $0xb0] sm:$0xff]
      %v2906 = vld [vmem:[%s2665 + $0xc0] sm:$0xff]
      %v2907 = vld [vmem:[%s2665 + $0xc8] sm:$0xff]
      %v2908 = vld [vmem:[%s2665 + $0xd8] sm:$0xff]
      %v2909 = vld [vmem:[%s2665 + $0xe0] sm:$0xff]
      %v2910 = vld [vmem:[%s2665 + $0xf0] sm:$0xff]
      %v2911 = vld [vmem:[%s2665 + $0xf8] sm:$0xff]
      %v2912 = vld [vmem:[%s2665 + $0x108] sm:$0xff]
      %v2913 = vld [vmem:[%s2665 + $0x110] sm:$0xff]
      %v2914 = vld [vmem:[%s2665 + $0x120] sm:$0xff]
      %v2915 = vld [vmem:[%s2665 + $0x128] sm:$0xff]
      %v2916 = vld [vmem:[%s2665 + $0x138] sm:$0xff]
      %v2917 = vld [vmem:[%s2665 + $0x140] sm:$0xff]
      %v2918 = vld [vmem:[%s2665 + $0x150] sm:$0xff]
      %v2919 = vld [vmem:[%s2665 + $0x158] sm:$0xff]
      %v2920 = vld [vmem:[%s2665 + $0x168] sm:$0xff]
      %v2921 = vld [vmem:[%s2665 + $0x170] sm:$0xff]
      %v2922 = vpack.c.bf16 %v2890, %v2890
      %v2923 = vpack.c.bf16 %v2891, %v2891
      %v2924 = vpack.c.bf16 %v2892, %v2892
      %v2925 = vpack.c.bf16 %v2893, %v2893
      %v2926 = vpack.c.bf16 %v2894, %v2894
      %v2927 = vpack.c.bf16 %v2895, %v2895
      %v2928 = vpack.c.bf16 %v2896, %v2896
      %v2929 = vpack.c.bf16 %v2897, %v2897
      %v2930 = vpack.c.bf16 %v2898, %v2898
      %v2931 = vpack.c.bf16 %v2899, %v2899
      %v2932 = vpack.c.bf16 %v2900, %v2900
      %v2933 = vpack.c.bf16 %v2901, %v2901
      %v2934 = vpack.c.bf16 %v2902, %v2902
      %v2935 = vpack.c.bf16 %v2903, %v2903
      %v2936 = vpack.c.bf16 %v2904, %v2904
      %v2937 = vpack.c.bf16 %v2905, %v2905
      %v2938 = vpack.c.bf16 %v2906, %v2906
      %v2939 = vpack.c.bf16 %v2907, %v2907
      %v2940 = vpack.c.bf16 %v2908, %v2908
      %v2941 = vpack.c.bf16 %v2909, %v2909
      %v2942 = vpack.c.bf16 %v2910, %v2910
      %v2943 = vpack.c.bf16 %v2911, %v2911
      %v2944 = vpack.c.bf16 %v2912, %v2912
      %v2945 = vpack.c.bf16 %v2913, %v2913
      %v2946 = vpack.c.bf16 %v2914, %v2914
      %v2947 = vpack.c.bf16 %v2915, %v2915
      %v2948 = vpack.c.bf16 %v2916, %v2916
      %v2949 = vpack.c.bf16 %v2917, %v2917
      %v2950 = vpack.c.bf16 %v2918, %v2918
      %v2951 = vpack.c.bf16 %v2919, %v2919
      %v2952 = vpack.c.bf16 %v2920, %v2920
      %v2953 = vpack.c.bf16 %v2921, %v2921
      %v2954 = vld [vmem:[%s2665 + $0x1] sm:$0xff]
      %v2955 = vld [vmem:[%s2665 + $0x9] sm:$0xff]
      %v2956 = vld [vmem:[%s2665 + $0x19] sm:$0xff]
      %v2957 = vld [vmem:[%s2665 + $0x21] sm:$0xff]
      %v2958 = vld [vmem:[%s2665 + $0x31] sm:$0xff]
      %v2959 = vld [vmem:[%s2665 + $0x39] sm:$0xff]
      %v2960 = vld [vmem:[%s2665 + $0x49] sm:$0xff]
      %v2961 = vld [vmem:[%s2665 + $0x51] sm:$0xff]
      %v2962 = vld [vmem:[%s2665 + $0x61] sm:$0xff]
      %v2963 = vld [vmem:[%s2665 + $0x69] sm:$0xff]
      %v2964 = vld [vmem:[%s2665 + $0x79] sm:$0xff]
      %v2965 = vld [vmem:[%s2665 + $0x81] sm:$0xff]
      %v2966 = vld [vmem:[%s2665 + $0x91] sm:$0xff]
      %v2967 = vld [vmem:[%s2665 + $0x99] sm:$0xff]
      %v2968 = vld [vmem:[%s2665 + $0xa9] sm:$0xff]
      %v2969 = vld [vmem:[%s2665 + $0xb1] sm:$0xff]
      %v2970 = vld [vmem:[%s2665 + $0xc1] sm:$0xff]
      %v2971 = vld [vmem:[%s2665 + $0xc9] sm:$0xff]
      %v2972 = vld [vmem:[%s2665 + $0xd9] sm:$0xff]
      %v2973 = vld [vmem:[%s2665 + $0xe1] sm:$0xff]
      %v2974 = vld [vmem:[%s2665 + $0xf1] sm:$0xff]
      %v2975 = vld [vmem:[%s2665 + $0xf9] sm:$0xff]
      %v2976 = vld [vmem:[%s2665 + $0x109] sm:$0xff]
      %v2977 = vld [vmem:[%s2665 + $0x111] sm:$0xff]
      %v2978 = vld [vmem:[%s2665 + $0x121] sm:$0xff]
      %v2979 = vld [vmem:[%s2665 + $0x129] sm:$0xff]
      %v2980 = vld [vmem:[%s2665 + $0x139] sm:$0xff]
      %v2981 = vld [vmem:[%s2665 + $0x141] sm:$0xff]
      %v2982 = vld [vmem:[%s2665 + $0x151] sm:$0xff]
      %v2983 = vld [vmem:[%s2665 + $0x159] sm:$0xff]
      %v2984 = vld [vmem:[%s2665 + $0x169] sm:$0xff]
      %v2985 = vld [vmem:[%s2665 + $0x171] sm:$0xff]
      %v2986 = vpack.c.bf16 %v2954, %v2954
      %v2987 = vpack.c.bf16 %v2955, %v2955
      %v2988 = vpack.c.bf16 %v2956, %v2956
      %v2989 = vpack.c.bf16 %v2957, %v2957
      %v2990 = vpack.c.bf16 %v2958, %v2958
      %v2991 = vpack.c.bf16 %v2959, %v2959
      %v2992 = vpack.c.bf16 %v2960, %v2960
      %v2993 = vpack.c.bf16 %v2961, %v2961
      %v2994 = vpack.c.bf16 %v2962, %v2962
      %v2995 = vpack.c.bf16 %v2963, %v2963
      %v2996 = vpack.c.bf16 %v2964, %v2964
      %v2997 = vpack.c.bf16 %v2965, %v2965
      %v2998 = vpack.c.bf16 %v2966, %v2966
      %v2999 = vpack.c.bf16 %v2967, %v2967
      %v3000 = vpack.c.bf16 %v2968, %v2968
      %v3001 = vpack.c.bf16 %v2969, %v2969
      %v3002 = vpack.c.bf16 %v2970, %v2970
      %v3003 = vpack.c.bf16 %v2971, %v2971
      %v3004 = vpack.c.bf16 %v2972, %v2972
      %v3005 = vpack.c.bf16 %v2973, %v2973
      %v3006 = vpack.c.bf16 %v2974, %v2974
      %v3007 = vpack.c.bf16 %v2975, %v2975
      %v3008 = vpack.c.bf16 %v2976, %v2976
      %v3009 = vpack.c.bf16 %v2977, %v2977
      %v3010 = vpack.c.bf16 %v2978, %v2978
      %v3011 = vpack.c.bf16 %v2979, %v2979
      %v3012 = vpack.c.bf16 %v2980, %v2980
      %v3013 = vpack.c.bf16 %v2981, %v2981
      %v3014 = vpack.c.bf16 %v2982, %v2982
      %v3015 = vpack.c.bf16 %v2983, %v2983
      %v3016 = vpack.c.bf16 %v2984, %v2984
      %v3017 = vpack.c.bf16 %v2985, %v2985
      %v3018 = vld [vmem:[%s2665 + $0x2] sm:$0xff]
      %v3019 = vld [vmem:[%s2665 + $0xa] sm:$0xff]
      %v3020 = vld [vmem:[%s2665 + $0x1a] sm:$0xff]
      %v3021 = vld [vmem:[%s2665 + $0x22] sm:$0xff]
      %v3022 = vld [vmem:[%s2665 + $0x32] sm:$0xff]
      %v3023 = vld [vmem:[%s2665 + $0x3a] sm:$0xff]
      %v3024 = vld [vmem:[%s2665 + $0x4a] sm:$0xff]
      %v3025 = vld [vmem:[%s2665 + $0x52] sm:$0xff]
      %v3026 = vld [vmem:[%s2665 + $0x62] sm:$0xff]
      %v3027 = vld [vmem:[%s2665 + $0x6a] sm:$0xff]
      %v3028 = vld [vmem:[%s2665 + $0x7a] sm:$0xff]
      %v3029 = vld [vmem:[%s2665 + $0x82] sm:$0xff]
      %v3030 = vld [vmem:[%s2665 + $0x92] sm:$0xff]
      %v3031 = vld [vmem:[%s2665 + $0x9a] sm:$0xff]
      %v3032 = vld [vmem:[%s2665 + $0xaa] sm:$0xff]
      %v3033 = vld [vmem:[%s2665 + $0xb2] sm:$0xff]
      %v3034 = vld [vmem:[%s2665 + $0xc2] sm:$0xff]
      %v3035 = vld [vmem:[%s2665 + $0xca] sm:$0xff]
      %v3036 = vld [vmem:[%s2665 + $0xda] sm:$0xff]
      %v3037 = vld [vmem:[%s2665 + $0xe2] sm:$0xff]
      %v3038 = vld [vmem:[%s2665 + $0xf2] sm:$0xff]
      %v3039 = vld [vmem:[%s2665 + $0xfa] sm:$0xff]
      %v3040 = vld [vmem:[%s2665 + $0x10a] sm:$0xff]
      %v3041 = vld [vmem:[%s2665 + $0x112] sm:$0xff]
      %v3042 = vld [vmem:[%s2665 + $0x122] sm:$0xff]
      %v3043 = vld [vmem:[%s2665 + $0x12a] sm:$0xff]
      %v3044 = vld [vmem:[%s2665 + $0x13a] sm:$0xff]
      %v3045 = vld [vmem:[%s2665 + $0x142] sm:$0xff]
      %v3046 = vld [vmem:[%s2665 + $0x152] sm:$0xff]
      %v3047 = vld [vmem:[%s2665 + $0x15a] sm:$0xff]
      %v3048 = vld [vmem:[%s2665 + $0x16a] sm:$0xff]
      %v3049 = vld [vmem:[%s2665 + $0x172] sm:$0xff]
      %v3050 = vpack.c.bf16 %v3018, %v3018
      %v3051 = vpack.c.bf16 %v3019, %v3019
      %v3052 = vpack.c.bf16 %v3020, %v3020
      %v3053 = vpack.c.bf16 %v3021, %v3021
      %v3054 = vpack.c.bf16 %v3022, %v3022
      %v3055 = vpack.c.bf16 %v3023, %v3023
      %v3056 = vpack.c.bf16 %v3024, %v3024
      %v3057 = vpack.c.bf16 %v3025, %v3025
      %v3058 = vpack.c.bf16 %v3026, %v3026
      %v3059 = vpack.c.bf16 %v3027, %v3027
      %v3060 = vpack.c.bf16 %v3028, %v3028
      %v3061 = vpack.c.bf16 %v3029, %v3029
      %v3062 = vpack.c.bf16 %v3030, %v3030
      %v3063 = vpack.c.bf16 %v3031, %v3031
      %v3064 = vpack.c.bf16 %v3032, %v3032
      %v3065 = vpack.c.bf16 %v3033, %v3033
      %v3066 = vpack.c.bf16 %v3034, %v3034
      %v3067 = vpack.c.bf16 %v3035, %v3035
      %v3068 = vpack.c.bf16 %v3036, %v3036
      %v3069 = vpack.c.bf16 %v3037, %v3037
      %v3070 = vpack.c.bf16 %v3038, %v3038
      %v3071 = vpack.c.bf16 %v3039, %v3039
      %v3072 = vpack.c.bf16 %v3040, %v3040
      %v3073 = vpack.c.bf16 %v3041, %v3041
      %v3074 = vpack.c.bf16 %v3042, %v3042
      %v3075 = vpack.c.bf16 %v3043, %v3043
      %v3076 = vpack.c.bf16 %v3044, %v3044
      %v3077 = vpack.c.bf16 %v3045, %v3045
      %v3078 = vpack.c.bf16 %v3046, %v3046
      %v3079 = vpack.c.bf16 %v3047, %v3047
      %v3080 = vpack.c.bf16 %v3048, %v3048
      %v3081 = vpack.c.bf16 %v3049, %v3049
      %s3082 = scalar_lea.vmem [#allocation5], 48
      %v3083 = vld [vmem:[%s3082] sm:$0xff]
      %v3084 = vld [vmem:[%s3082 + $0x8] sm:$0xff]
      %v3085 = vld [vmem:[%s3082 + $0x18] sm:$0xff]
      %v3086 = vld [vmem:[%s3082 + $0x20] sm:$0xff]
      %v3087 = vld [vmem:[%s3082 + $0x30] sm:$0xff]
      %v3088 = vld [vmem:[%s3082 + $0x38] sm:$0xff]
      %v3089 = vld [vmem:[%s3082 + $0x48] sm:$0xff]
      %v3090 = vld [vmem:[%s3082 + $0x50] sm:$0xff]
      %v3091 = vld [vmem:[%s3082 + $0x60] sm:$0xff]
      %v3092 = vld [vmem:[%s3082 + $0x68] sm:$0xff]
      %v3093 = vld [vmem:[%s3082 + $0x78] sm:$0xff]
      %v3094 = vld [vmem:[%s3082 + $0x80] sm:$0xff]
      %v3095 = vld [vmem:[%s3082 + $0x90] sm:$0xff]
      %v3096 = vld [vmem:[%s3082 + $0x98] sm:$0xff]
      %v3097 = vld [vmem:[%s3082 + $0xa8] sm:$0xff]
      %v3098 = vld [vmem:[%s3082 + $0xb0] sm:$0xff]
      %v3099 = vld [vmem:[%s3082 + $0xc0] sm:$0xff]
      %v3100 = vld [vmem:[%s3082 + $0xc8] sm:$0xff]
      %v3101 = vld [vmem:[%s3082 + $0xd8] sm:$0xff]
      %v3102 = vld [vmem:[%s3082 + $0xe0] sm:$0xff]
      %v3103 = vld [vmem:[%s3082 + $0xf0] sm:$0xff]
      %v3104 = vld [vmem:[%s3082 + $0xf8] sm:$0xff]
      %v3105 = vld [vmem:[%s3082 + $0x108] sm:$0xff]
      %v3106 = vld [vmem:[%s3082 + $0x110] sm:$0xff]
      %v3107 = vld [vmem:[%s3082 + $0x120] sm:$0xff]
      %v3108 = vld [vmem:[%s3082 + $0x128] sm:$0xff]
      %v3109 = vld [vmem:[%s3082 + $0x138] sm:$0xff]
      %v3110 = vld [vmem:[%s3082 + $0x140] sm:$0xff]
      %v3111 = vld [vmem:[%s3082 + $0x150] sm:$0xff]
      %v3112 = vld [vmem:[%s3082 + $0x158] sm:$0xff]
      %v3113 = vld [vmem:[%s3082 + $0x168] sm:$0xff]
      %v3114 = vld [vmem:[%s3082 + $0x170] sm:$0xff]
      %v3115 = vpack.c.bf16 %v3083, %v3083
      %v3116 = vpack.c.bf16 %v3084, %v3084
      %v3117 = vpack.c.bf16 %v3085, %v3085
      %v3118 = vpack.c.bf16 %v3086, %v3086
      %v3119 = vpack.c.bf16 %v3087, %v3087
      %v3120 = vpack.c.bf16 %v3088, %v3088
      %v3121 = vpack.c.bf16 %v3089, %v3089
      %v3122 = vpack.c.bf16 %v3090, %v3090
      %v3123 = vpack.c.bf16 %v3091, %v3091
      %v3124 = vpack.c.bf16 %v3092, %v3092
      %v3125 = vpack.c.bf16 %v3093, %v3093
      %v3126 = vpack.c.bf16 %v3094, %v3094
      %v3127 = vpack.c.bf16 %v3095, %v3095
      %v3128 = vpack.c.bf16 %v3096, %v3096
      %v3129 = vpack.c.bf16 %v3097, %v3097
      %v3130 = vpack.c.bf16 %v3098, %v3098
      %v3131 = vpack.c.bf16 %v3099, %v3099
      %v3132 = vpack.c.bf16 %v3100, %v3100
      %v3133 = vpack.c.bf16 %v3101, %v3101
      %v3134 = vpack.c.bf16 %v3102, %v3102
      %v3135 = vpack.c.bf16 %v3103, %v3103
      %v3136 = vpack.c.bf16 %v3104, %v3104
      %v3137 = vpack.c.bf16 %v3105, %v3105
      %v3138 = vpack.c.bf16 %v3106, %v3106
      %v3139 = vpack.c.bf16 %v3107, %v3107
      %v3140 = vpack.c.bf16 %v3108, %v3108
      %v3141 = vpack.c.bf16 %v3109, %v3109
      %v3142 = vpack.c.bf16 %v3110, %v3110
      %v3143 = vpack.c.bf16 %v3111, %v3111
      %v3144 = vpack.c.bf16 %v3112, %v3112
      %v3145 = vpack.c.bf16 %v3113, %v3113
      %v3146 = vpack.c.bf16 %v3114, %v3114
      %v3147 = vld [vmem:[%s3082 + $0x1] sm:$0xff]
      %v3148 = vld [vmem:[%s3082 + $0x9] sm:$0xff]
      %v3149 = vld [vmem:[%s3082 + $0x19] sm:$0xff]
      %v3150 = vld [vmem:[%s3082 + $0x21] sm:$0xff]
      %v3151 = vld [vmem:[%s3082 + $0x31] sm:$0xff]
      %v3152 = vld [vmem:[%s3082 + $0x39] sm:$0xff]
      %v3153 = vld [vmem:[%s3082 + $0x49] sm:$0xff]
      %v3154 = vld [vmem:[%s3082 + $0x51] sm:$0xff]
      %v3155 = vld [vmem:[%s3082 + $0x61] sm:$0xff]
      %v3156 = vld [vmem:[%s3082 + $0x69] sm:$0xff]
      %v3157 = vld [vmem:[%s3082 + $0x79] sm:$0xff]
      %v3158 = vld [vmem:[%s3082 + $0x81] sm:$0xff]
      %v3159 = vld [vmem:[%s3082 + $0x91] sm:$0xff]
      %v3160 = vld [vmem:[%s3082 + $0x99] sm:$0xff]
      %v3161 = vld [vmem:[%s3082 + $0xa9] sm:$0xff]
      %v3162 = vld [vmem:[%s3082 + $0xb1] sm:$0xff]
      %v3163 = vld [vmem:[%s3082 + $0xc1] sm:$0xff]
      %v3164 = vld [vmem:[%s3082 + $0xc9] sm:$0xff]
      %v3165 = vld [vmem:[%s3082 + $0xd9] sm:$0xff]
      %v3166 = vld [vmem:[%s3082 + $0xe1] sm:$0xff]
      %v3167 = vld [vmem:[%s3082 + $0xf1] sm:$0xff]
      %v3168 = vld [vmem:[%s3082 + $0xf9] sm:$0xff]
      %v3169 = vld [vmem:[%s3082 + $0x109] sm:$0xff]
      %v3170 = vld [vmem:[%s3082 + $0x111] sm:$0xff]
      %v3171 = vld [vmem:[%s3082 + $0x121] sm:$0xff]
      %v3172 = vld [vmem:[%s3082 + $0x129] sm:$0xff]
      %v3173 = vld [vmem:[%s3082 + $0x139] sm:$0xff]
      %v3174 = vld [vmem:[%s3082 + $0x141] sm:$0xff]
      %v3175 = vld [vmem:[%s3082 + $0x151] sm:$0xff]
      %v3176 = vld [vmem:[%s3082 + $0x159] sm:$0xff]
      %v3177 = vld [vmem:[%s3082 + $0x169] sm:$0xff]
      %v3178 = vld [vmem:[%s3082 + $0x171] sm:$0xff]
      %v3179 = vpack.c.bf16 %v3147, %v3147
      %v3180 = vpack.c.bf16 %v3148, %v3148
      %v3181 = vpack.c.bf16 %v3149, %v3149
      %v3182 = vpack.c.bf16 %v3150, %v3150
      %v3183 = vpack.c.bf16 %v3151, %v3151
      %v3184 = vpack.c.bf16 %v3152, %v3152
      %v3185 = vpack.c.bf16 %v3153, %v3153
      %v3186 = vpack.c.bf16 %v3154, %v3154
      %v3187 = vpack.c.bf16 %v3155, %v3155
      %v3188 = vpack.c.bf16 %v3156, %v3156
      %v3189 = vpack.c.bf16 %v3157, %v3157
      %v3190 = vpack.c.bf16 %v3158, %v3158
      %v3191 = vpack.c.bf16 %v3159, %v3159
      %v3192 = vpack.c.bf16 %v3160, %v3160
      %v3193 = vpack.c.bf16 %v3161, %v3161
      %v3194 = vpack.c.bf16 %v3162, %v3162
      %v3195 = vpack.c.bf16 %v3163, %v3163
      %v3196 = vpack.c.bf16 %v3164, %v3164
      %v3197 = vpack.c.bf16 %v3165, %v3165
      %v3198 = vpack.c.bf16 %v3166, %v3166
      %v3199 = vpack.c.bf16 %v3167, %v3167
      %v3200 = vpack.c.bf16 %v3168, %v3168
      %v3201 = vpack.c.bf16 %v3169, %v3169
      %v3202 = vpack.c.bf16 %v3170, %v3170
      %v3203 = vpack.c.bf16 %v3171, %v3171
      %v3204 = vpack.c.bf16 %v3172, %v3172
      %v3205 = vpack.c.bf16 %v3173, %v3173
      %v3206 = vpack.c.bf16 %v3174, %v3174
      %v3207 = vpack.c.bf16 %v3175, %v3175
      %v3208 = vpack.c.bf16 %v3176, %v3176
      %v3209 = vpack.c.bf16 %v3177, %v3177
      %v3210 = vpack.c.bf16 %v3178, %v3178
      %v3211 = vld [vmem:[%s3082 + $0x2] sm:$0xff]
      %v3212 = vld [vmem:[%s3082 + $0xa] sm:$0xff]
      %v3213 = vld [vmem:[%s3082 + $0x1a] sm:$0xff]
      %v3214 = vld [vmem:[%s3082 + $0x22] sm:$0xff]
      %v3215 = vld [vmem:[%s3082 + $0x32] sm:$0xff]
      %v3216 = vld [vmem:[%s3082 + $0x3a] sm:$0xff]
      %v3217 = vld [vmem:[%s3082 + $0x4a] sm:$0xff]
      %v3218 = vld [vmem:[%s3082 + $0x52] sm:$0xff]
      %v3219 = vld [vmem:[%s3082 + $0x62] sm:$0xff]
      %v3220 = vld [vmem:[%s3082 + $0x6a] sm:$0xff]
      %v3221 = vld [vmem:[%s3082 + $0x7a] sm:$0xff]
      %v3222 = vld [vmem:[%s3082 + $0x82] sm:$0xff]
      %v3223 = vld [vmem:[%s3082 + $0x92] sm:$0xff]
      %v3224 = vld [vmem:[%s3082 + $0x9a] sm:$0xff]
      %v3225 = vld [vmem:[%s3082 + $0xaa] sm:$0xff]
      %v3226 = vld [vmem:[%s3082 + $0xb2] sm:$0xff]
      %v3227 = vld [vmem:[%s3082 + $0xc2] sm:$0xff]
      %v3228 = vld [vmem:[%s3082 + $0xca] sm:$0xff]
      %v3229 = vld [vmem:[%s3082 + $0xda] sm:$0xff]
      %v3230 = vld [vmem:[%s3082 + $0xe2] sm:$0xff]
      %v3231 = vld [vmem:[%s3082 + $0xf2] sm:$0xff]
      %v3232 = vld [vmem:[%s3082 + $0xfa] sm:$0xff]
      %v3233 = vld [vmem:[%s3082 + $0x10a] sm:$0xff]
      %v3234 = vld [vmem:[%s3082 + $0x112] sm:$0xff]
      %v3235 = vld [vmem:[%s3082 + $0x122] sm:$0xff]
      %v3236 = vld [vmem:[%s3082 + $0x12a] sm:$0xff]
      %v3237 = vld [vmem:[%s3082 + $0x13a] sm:$0xff]
      %v3238 = vld [vmem:[%s3082 + $0x142] sm:$0xff]
      %v3239 = vld [vmem:[%s3082 + $0x152] sm:$0xff]
      %v3240 = vld [vmem:[%s3082 + $0x15a] sm:$0xff]
      %v3241 = vld [vmem:[%s3082 + $0x16a] sm:$0xff]
      %v3242 = vld [vmem:[%s3082 + $0x172] sm:$0xff]
      %v3243 = vpack.c.bf16 %v3211, %v3211
      %v3244 = vpack.c.bf16 %v3212, %v3212
      %v3245 = vpack.c.bf16 %v3213, %v3213
      %v3246 = vpack.c.bf16 %v3214, %v3214
      %v3247 = vpack.c.bf16 %v3215, %v3215
      %v3248 = vpack.c.bf16 %v3216, %v3216
      %v3249 = vpack.c.bf16 %v3217, %v3217
      %v3250 = vpack.c.bf16 %v3218, %v3218
      %v3251 = vpack.c.bf16 %v3219, %v3219
      %v3252 = vpack.c.bf16 %v3220, %v3220
      %v3253 = vpack.c.bf16 %v3221, %v3221
      %v3254 = vpack.c.bf16 %v3222, %v3222
      %v3255 = vpack.c.bf16 %v3223, %v3223
      %v3256 = vpack.c.bf16 %v3224, %v3224
      %v3257 = vpack.c.bf16 %v3225, %v3225
      %v3258 = vpack.c.bf16 %v3226, %v3226
      %v3259 = vpack.c.bf16 %v3227, %v3227
      %v3260 = vpack.c.bf16 %v3228, %v3228
      %v3261 = vpack.c.bf16 %v3229, %v3229
      %v3262 = vpack.c.bf16 %v3230, %v3230
      %v3263 = vpack.c.bf16 %v3231, %v3231
      %v3264 = vpack.c.bf16 %v3232, %v3232
      %v3265 = vpack.c.bf16 %v3233, %v3233
      %v3266 = vpack.c.bf16 %v3234, %v3234
      %v3267 = vpack.c.bf16 %v3235, %v3235
      %v3268 = vpack.c.bf16 %v3236, %v3236
      %v3269 = vpack.c.bf16 %v3237, %v3237
      %v3270 = vpack.c.bf16 %v3238, %v3238
      %v3271 = vpack.c.bf16 %v3239, %v3239
      %v3272 = vpack.c.bf16 %v3240, %v3240
      %v3273 = vpack.c.bf16 %v3241, %v3241
      %v3274 = vpack.c.bf16 %v3242, %v3242
      %v3307 = vunpack.c.l.b16 %v2730
      %v3308 = vunpack.c.l.b16 %v2731
      %v3309 = vunpack.c.l.b16 %v2732
      %v3310 = vunpack.c.l.b16 %v2733
      %v3311 = vunpack.c.l.b16 %v2734
      %v3312 = vunpack.c.l.b16 %v2735
      %v3313 = vunpack.c.l.b16 %v2736
      %v3314 = vunpack.c.l.b16 %v2737
      %v3315 = vunpack.c.l.b16 %v2738
      %v3316 = vunpack.c.l.b16 %v2739
      %v3317 = vunpack.c.l.b16 %v2740
      %v3318 = vunpack.c.l.b16 %v2741
      %v3319 = vunpack.c.l.b16 %v2742
      %v3320 = vunpack.c.l.b16 %v2743
      %v3321 = vunpack.c.l.b16 %v2744
      %v3322 = vunpack.c.l.b16 %v2745
      %v3323 = vunpack.c.l.b16 %v2746
      %v3324 = vunpack.c.l.b16 %v2747
      %v3325 = vunpack.c.l.b16 %v2748
      %v3326 = vunpack.c.l.b16 %v2749
      %v3327 = vunpack.c.l.b16 %v2750
      %v3328 = vunpack.c.l.b16 %v2751
      %v3329 = vunpack.c.l.b16 %v2752
      %v3330 = vunpack.c.l.b16 %v2753
      %v3331 = vunpack.c.l.b16 %v2754
      %v3332 = vunpack.c.l.b16 %v2755
      %v3333 = vunpack.c.l.b16 %v2756
      %v3334 = vunpack.c.l.b16 %v2757
      %v3335 = vunpack.c.l.b16 %v2758
      %v3336 = vunpack.c.l.b16 %v2759
      %v3337 = vunpack.c.l.b16 %v2760
      %v3338 = vunpack.c.l.b16 %v2761
      %v3339 = vpack.c.b16 %v3308, %v3307
      %v3340 = vpack.c.b16 %v3310, %v3309
      %v3341 = vpack.c.b16 %v3312, %v3311
      %v3342 = vpack.c.b16 %v3314, %v3313
      %v3343 = vpack.c.b16 %v3316, %v3315
      %v3344 = vpack.c.b16 %v3318, %v3317
      %v3345 = vpack.c.b16 %v3320, %v3319
      %v3346 = vpack.c.b16 %v3322, %v3321
      %v3347 = vpack.c.b16 %v3324, %v3323
      %v3348 = vpack.c.b16 %v3326, %v3325
      %v3349 = vpack.c.b16 %v3328, %v3327
      %v3350 = vpack.c.b16 %v3330, %v3329
      %v3351 = vpack.c.b16 %v3332, %v3331
      %v3352 = vpack.c.b16 %v3334, %v3333
      %v3353 = vpack.c.b16 %v3336, %v3335
      %v3354 = vpack.c.b16 %v3338, %v3337
      %v3387 = vunpack.c.l.b16 %v2794
      %v3388 = vunpack.c.l.b16 %v2795
      %v3389 = vunpack.c.l.b16 %v2796
      %v3390 = vunpack.c.l.b16 %v2797
      %v3391 = vunpack.c.l.b16 %v2798
      %v3392 = vunpack.c.l.b16 %v2799
      %v3393 = vunpack.c.l.b16 %v2800
      %v3394 = vunpack.c.l.b16 %v2801
      %v3395 = vunpack.c.l.b16 %v2802
      %v3396 = vunpack.c.l.b16 %v2803
      %v3397 = vunpack.c.l.b16 %v2804
      %v3398 = vunpack.c.l.b16 %v2805
      %v3399 = vunpack.c.l.b16 %v2806
      %v3400 = vunpack.c.l.b16 %v2807
      %v3401 = vunpack.c.l.b16 %v2808
      %v3402 = vunpack.c.l.b16 %v2809
      %v3403 = vunpack.c.l.b16 %v2810
      %v3404 = vunpack.c.l.b16 %v2811
      %v3405 = vunpack.c.l.b16 %v2812
      %v3406 = vunpack.c.l.b16 %v2813
      %v3407 = vunpack.c.l.b16 %v2814
      %v3408 = vunpack.c.l.b16 %v2815
      %v3409 = vunpack.c.l.b16 %v2816
      %v3410 = vunpack.c.l.b16 %v2817
      %v3411 = vunpack.c.l.b16 %v2818
      %v3412 = vunpack.c.l.b16 %v2819
      %v3413 = vunpack.c.l.b16 %v2820
      %v3414 = vunpack.c.l.b16 %v2821
      %v3415 = vunpack.c.l.b16 %v2822
      %v3416 = vunpack.c.l.b16 %v2823
      %v3417 = vunpack.c.l.b16 %v2824
      %v3418 = vunpack.c.l.b16 %v2825
      %v3419 = vpack.c.b16 %v3388, %v3387
      %v3420 = vpack.c.b16 %v3390, %v3389
      %v3421 = vpack.c.b16 %v3392, %v3391
      %v3422 = vpack.c.b16 %v3394, %v3393
      %v3423 = vpack.c.b16 %v3396, %v3395
      %v3424 = vpack.c.b16 %v3398, %v3397
      %v3425 = vpack.c.b16 %v3400, %v3399
      %v3426 = vpack.c.b16 %v3402, %v3401
      %v3427 = vpack.c.b16 %v3404, %v3403
      %v3428 = vpack.c.b16 %v3406, %v3405
      %v3429 = vpack.c.b16 %v3408, %v3407
      %v3430 = vpack.c.b16 %v3410, %v3409
      %v3431 = vpack.c.b16 %v3412, %v3411
      %v3432 = vpack.c.b16 %v3414, %v3413
      %v3433 = vpack.c.b16 %v3416, %v3415
      %v3434 = vpack.c.b16 %v3418, %v3417
      %3435 = vrot.lane.b32.xlu0 %v3419, 16
      %v3436 = vpop.permute.xlu0 %3435
      %3437 = vrot.lane.b32.xlu0 %v3420, 16
      %v3438 = vpop.permute.xlu0 %3437
      %3439 = vrot.lane.b32.xlu0 %v3421, 16
      %v3440 = vpop.permute.xlu0 %3439
      %3441 = vrot.lane.b32.xlu0 %v3422, 16
      %v3442 = vpop.permute.xlu0 %3441
      %3443 = vrot.lane.b32.xlu0 %v3423, 16
      %v3444 = vpop.permute.xlu0 %3443
      %3445 = vrot.lane.b32.xlu0 %v3424, 16
      %v3446 = vpop.permute.xlu0 %3445
      %3447 = vrot.lane.b32.xlu0 %v3425, 16
      %v3448 = vpop.permute.xlu0 %3447
      %3449 = vrot.lane.b32.xlu0 %v3426, 16
      %v3450 = vpop.permute.xlu0 %3449
      %3451 = vrot.lane.b32.xlu0 %v3427, 16
      %v3452 = vpop.permute.xlu0 %3451
      %3453 = vrot.lane.b32.xlu0 %v3428, 16
      %v3454 = vpop.permute.xlu0 %3453
      %3455 = vrot.lane.b32.xlu0 %v3429, 16
      %v3456 = vpop.permute.xlu0 %3455
      %3457 = vrot.lane.b32.xlu0 %v3430, 16
      %v3458 = vpop.permute.xlu0 %3457
      %3459 = vrot.lane.b32.xlu0 %v3431, 16
      %v3460 = vpop.permute.xlu0 %3459
      %3461 = vrot.lane.b32.xlu0 %v3432, 16
      %v3462 = vpop.permute.xlu0 %3461
      %3463 = vrot.lane.b32.xlu0 %v3433, 16
      %v3464 = vpop.permute.xlu0 %3463
      %3465 = vrot.lane.b32.xlu0 %v3434, 16
      %v3466 = vpop.permute.xlu0 %3465
      %v3499 = vunpack.c.l.b16 %v2858
      %v3500 = vunpack.c.l.b16 %v2859
      %v3501 = vunpack.c.l.b16 %v2860
      %v3502 = vunpack.c.l.b16 %v2861
      %v3503 = vunpack.c.l.b16 %v2862
      %v3504 = vunpack.c.l.b16 %v2863
      %v3505 = vunpack.c.l.b16 %v2864
      %v3506 = vunpack.c.l.b16 %v2865
      %v3507 = vunpack.c.l.b16 %v2866
      %v3508 = vunpack.c.l.b16 %v2867
      %v3509 = vunpack.c.l.b16 %v2868
      %v3510 = vunpack.c.l.b16 %v2869
      %v3511 = vunpack.c.l.b16 %v2870
      %v3512 = vunpack.c.l.b16 %v2871
      %v3513 = vunpack.c.l.b16 %v2872
      %v3514 = vunpack.c.l.b16 %v2873
      %v3515 = vunpack.c.l.b16 %v2874
      %v3516 = vunpack.c.l.b16 %v2875
      %v3517 = vunpack.c.l.b16 %v2876
      %v3518 = vunpack.c.l.b16 %v2877
      %v3519 = vunpack.c.l.b16 %v2878
      %v3520 = vunpack.c.l.b16 %v2879
      %v3521 = vunpack.c.l.b16 %v2880
      %v3522 = vunpack.c.l.b16 %v2881
      %v3523 = vunpack.c.l.b16 %v2882
      %v3524 = vunpack.c.l.b16 %v2883
      %v3525 = vunpack.c.l.b16 %v2884
      %v3526 = vunpack.c.l.b16 %v2885
      %v3527 = vunpack.c.l.b16 %v2886
      %v3528 = vunpack.c.l.b16 %v2887
      %v3529 = vunpack.c.l.b16 %v2888
      %v3530 = vunpack.c.l.b16 %v2889
      %v3531 = vpack.c.b16 %v3500, %v3499
      %v3532 = vpack.c.b16 %v3502, %v3501
      %v3533 = vpack.c.b16 %v3504, %v3503
      %v3534 = vpack.c.b16 %v3506, %v3505
      %v3535 = vpack.c.b16 %v3508, %v3507
      %v3536 = vpack.c.b16 %v3510, %v3509
      %v3537 = vpack.c.b16 %v3512, %v3511
      %v3538 = vpack.c.b16 %v3514, %v3513
      %v3539 = vpack.c.b16 %v3516, %v3515
      %v3540 = vpack.c.b16 %v3518, %v3517
      %v3541 = vpack.c.b16 %v3520, %v3519
      %v3542 = vpack.c.b16 %v3522, %v3521
      %v3543 = vpack.c.b16 %v3524, %v3523
      %v3544 = vpack.c.b16 %v3526, %v3525
      %v3545 = vpack.c.b16 %v3528, %v3527
      %v3546 = vpack.c.b16 %v3530, %v3529
      %3547 = vrot.lane.b32.xlu0 %v3531, 32
      %v3548 = vpop.permute.xlu0 %3547
      %3549 = vrot.lane.b32.xlu0 %v3532, 32
      %v3550 = vpop.permute.xlu0 %3549
      %3551 = vrot.lane.b32.xlu0 %v3533, 32
      %v3552 = vpop.permute.xlu0 %3551
      %3553 = vrot.lane.b32.xlu0 %v3534, 32
      %v3554 = vpop.permute.xlu0 %3553
      %3555 = vrot.lane.b32.xlu0 %v3535, 32
      %v3556 = vpop.permute.xlu0 %3555
      %3557 = vrot.lane.b32.xlu0 %v3536, 32
      %v3558 = vpop.permute.xlu0 %3557
      %3559 = vrot.lane.b32.xlu0 %v3537, 32
      %v3560 = vpop.permute.xlu0 %3559
      %3561 = vrot.lane.b32.xlu0 %v3538, 32
      %v3562 = vpop.permute.xlu0 %3561
      %3563 = vrot.lane.b32.xlu0 %v3539, 32
      %v3564 = vpop.permute.xlu0 %3563
      %3565 = vrot.lane.b32.xlu0 %v3540, 32
      %v3566 = vpop.permute.xlu0 %3565
      %3567 = vrot.lane.b32.xlu0 %v3541, 32
      %v3568 = vpop.permute.xlu0 %3567
      %3569 = vrot.lane.b32.xlu0 %v3542, 32
      %v3570 = vpop.permute.xlu0 %3569
      %3571 = vrot.lane.b32.xlu0 %v3543, 32
      %v3572 = vpop.permute.xlu0 %3571
      %3573 = vrot.lane.b32.xlu0 %v3544, 32
      %v3574 = vpop.permute.xlu0 %3573
      %3575 = vrot.lane.b32.xlu0 %v3545, 32
      %v3576 = vpop.permute.xlu0 %3575
      %3577 = vrot.lane.b32.xlu0 %v3546, 32
      %v3578 = vpop.permute.xlu0 %3577
      %v3611 = vunpack.c.l.b16 %v2922
      %v3612 = vunpack.c.l.b16 %v2923
      %v3613 = vunpack.c.l.b16 %v2924
      %v3614 = vunpack.c.l.b16 %v2925
      %v3615 = vunpack.c.l.b16 %v2926
      %v3616 = vunpack.c.l.b16 %v2927
      %v3617 = vunpack.c.l.b16 %v2928
      %v3618 = vunpack.c.l.b16 %v2929
      %v3619 = vunpack.c.l.b16 %v2930
      %v3620 = vunpack.c.l.b16 %v2931
      %v3621 = vunpack.c.l.b16 %v2932
      %v3622 = vunpack.c.l.b16 %v2933
      %v3623 = vunpack.c.l.b16 %v2934
      %v3624 = vunpack.c.l.b16 %v2935
      %v3625 = vunpack.c.l.b16 %v2936
      %v3626 = vunpack.c.l.b16 %v2937
      %v3627 = vunpack.c.l.b16 %v2938
      %v3628 = vunpack.c.l.b16 %v2939
      %v3629 = vunpack.c.l.b16 %v2940
      %v3630 = vunpack.c.l.b16 %v2941
      %v3631 = vunpack.c.l.b16 %v2942
      %v3632 = vunpack.c.l.b16 %v2943
      %v3633 = vunpack.c.l.b16 %v2944
      %v3634 = vunpack.c.l.b16 %v2945
      %v3635 = vunpack.c.l.b16 %v2946
      %v3636 = vunpack.c.l.b16 %v2947
      %v3637 = vunpack.c.l.b16 %v2948
      %v3638 = vunpack.c.l.b16 %v2949
      %v3639 = vunpack.c.l.b16 %v2950
      %v3640 = vunpack.c.l.b16 %v2951
      %v3641 = vunpack.c.l.b16 %v2952
      %v3642 = vunpack.c.l.b16 %v2953
      %v3643 = vpack.c.b16 %v3612, %v3611
      %v3644 = vpack.c.b16 %v3614, %v3613
      %v3645 = vpack.c.b16 %v3616, %v3615
      %v3646 = vpack.c.b16 %v3618, %v3617
      %v3647 = vpack.c.b16 %v3620, %v3619
      %v3648 = vpack.c.b16 %v3622, %v3621
      %v3649 = vpack.c.b16 %v3624, %v3623
      %v3650 = vpack.c.b16 %v3626, %v3625
      %v3651 = vpack.c.b16 %v3628, %v3627
      %v3652 = vpack.c.b16 %v3630, %v3629
      %v3653 = vpack.c.b16 %v3632, %v3631
      %v3654 = vpack.c.b16 %v3634, %v3633
      %v3655 = vpack.c.b16 %v3636, %v3635
      %v3656 = vpack.c.b16 %v3638, %v3637
      %v3657 = vpack.c.b16 %v3640, %v3639
      %v3658 = vpack.c.b16 %v3642, %v3641
      %3659 = vrot.lane.b32.xlu0 %v3643, 48
      %v3660 = vpop.permute.xlu0 %3659
      %3661 = vrot.lane.b32.xlu0 %v3644, 48
      %v3662 = vpop.permute.xlu0 %3661
      %3663 = vrot.lane.b32.xlu0 %v3645, 48
      %v3664 = vpop.permute.xlu0 %3663
      %3665 = vrot.lane.b32.xlu0 %v3646, 48
      %v3666 = vpop.permute.xlu0 %3665
      %3667 = vrot.lane.b32.xlu0 %v3647, 48
      %v3668 = vpop.permute.xlu0 %3667
      %3669 = vrot.lane.b32.xlu0 %v3648, 48
      %v3670 = vpop.permute.xlu0 %3669
      %3671 = vrot.lane.b32.xlu0 %v3649, 48
      %v3672 = vpop.permute.xlu0 %3671
      %3673 = vrot.lane.b32.xlu0 %v3650, 48
      %v3674 = vpop.permute.xlu0 %3673
      %3675 = vrot.lane.b32.xlu0 %v3651, 48
      %v3676 = vpop.permute.xlu0 %3675
      %3677 = vrot.lane.b32.xlu0 %v3652, 48
      %v3678 = vpop.permute.xlu0 %3677
      %3679 = vrot.lane.b32.xlu0 %v3653, 48
      %v3680 = vpop.permute.xlu0 %3679
      %3681 = vrot.lane.b32.xlu0 %v3654, 48
      %v3682 = vpop.permute.xlu0 %3681
      %3683 = vrot.lane.b32.xlu0 %v3655, 48
      %v3684 = vpop.permute.xlu0 %3683
      %3685 = vrot.lane.b32.xlu0 %v3656, 48
      %v3686 = vpop.permute.xlu0 %3685
      %3687 = vrot.lane.b32.xlu0 %v3657, 48
      %v3688 = vpop.permute.xlu0 %3687
      %3689 = vrot.lane.b32.xlu0 %v3658, 48
      %v3690 = vpop.permute.xlu0 %3689
      %v3723 = vunpack.c.l.b16 %v2986
      %v3724 = vunpack.c.l.b16 %v2987
      %v3725 = vunpack.c.l.b16 %v2988
      %v3726 = vunpack.c.l.b16 %v2989
      %v3727 = vunpack.c.l.b16 %v2990
      %v3728 = vunpack.c.l.b16 %v2991
      %v3729 = vunpack.c.l.b16 %v2992
      %v3730 = vunpack.c.l.b16 %v2993
      %v3731 = vunpack.c.l.b16 %v2994
      %v3732 = vunpack.c.l.b16 %v2995
      %v3733 = vunpack.c.l.b16 %v2996
      %v3734 = vunpack.c.l.b16 %v2997
      %v3735 = vunpack.c.l.b16 %v2998
      %v3736 = vunpack.c.l.b16 %v2999
      %v3737 = vunpack.c.l.b16 %v3000
      %v3738 = vunpack.c.l.b16 %v3001
      %v3739 = vunpack.c.l.b16 %v3002
      %v3740 = vunpack.c.l.b16 %v3003
      %v3741 = vunpack.c.l.b16 %v3004
      %v3742 = vunpack.c.l.b16 %v3005
      %v3743 = vunpack.c.l.b16 %v3006
      %v3744 = vunpack.c.l.b16 %v3007
      %v3745 = vunpack.c.l.b16 %v3008
      %v3746 = vunpack.c.l.b16 %v3009
      %v3747 = vunpack.c.l.b16 %v3010
      %v3748 = vunpack.c.l.b16 %v3011
      %v3749 = vunpack.c.l.b16 %v3012
      %v3750 = vunpack.c.l.b16 %v3013
      %v3751 = vunpack.c.l.b16 %v3014
      %v3752 = vunpack.c.l.b16 %v3015
      %v3753 = vunpack.c.l.b16 %v3016
      %v3754 = vunpack.c.l.b16 %v3017
      %v3755 = vpack.c.b16 %v3724, %v3723
      %v3756 = vpack.c.b16 %v3726, %v3725
      %v3757 = vpack.c.b16 %v3728, %v3727
      %v3758 = vpack.c.b16 %v3730, %v3729
      %v3759 = vpack.c.b16 %v3732, %v3731
      %v3760 = vpack.c.b16 %v3734, %v3733
      %v3761 = vpack.c.b16 %v3736, %v3735
      %v3762 = vpack.c.b16 %v3738, %v3737
      %v3763 = vpack.c.b16 %v3740, %v3739
      %v3764 = vpack.c.b16 %v3742, %v3741
      %v3765 = vpack.c.b16 %v3744, %v3743
      %v3766 = vpack.c.b16 %v3746, %v3745
      %v3767 = vpack.c.b16 %v3748, %v3747
      %v3768 = vpack.c.b16 %v3750, %v3749
      %v3769 = vpack.c.b16 %v3752, %v3751
      %v3770 = vpack.c.b16 %v3754, %v3753
      %3771 = vrot.lane.b32.xlu0 %v3755, 64
      %v3772 = vpop.permute.xlu0 %3771
      %3773 = vrot.lane.b32.xlu0 %v3756, 64
      %v3774 = vpop.permute.xlu0 %3773
      %3775 = vrot.lane.b32.xlu0 %v3757, 64
      %v3776 = vpop.permute.xlu0 %3775
      %3777 = vrot.lane.b32.xlu0 %v3758, 64
      %v3778 = vpop.permute.xlu0 %3777
      %3779 = vrot.lane.b32.xlu0 %v3759, 64
      %v3780 = vpop.permute.xlu0 %3779
      %3781 = vrot.lane.b32.xlu0 %v3760, 64
      %v3782 = vpop.permute.xlu0 %3781
      %3783 = vrot.lane.b32.xlu0 %v3761, 64
      %v3784 = vpop.permute.xlu0 %3783
      %3785 = vrot.lane.b32.xlu0 %v3762, 64
      %v3786 = vpop.permute.xlu0 %3785
      %3787 = vrot.lane.b32.xlu0 %v3763, 64
      %v3788 = vpop.permute.xlu0 %3787
      %3789 = vrot.lane.b32.xlu0 %v3764, 64
      %v3790 = vpop.permute.xlu0 %3789
      %3791 = vrot.lane.b32.xlu0 %v3765, 64
      %v3792 = vpop.permute.xlu0 %3791
      %3793 = vrot.lane.b32.xlu0 %v3766, 64
      %v3794 = vpop.permute.xlu0 %3793
      %3795 = vrot.lane.b32.xlu0 %v3767, 64
      %v3796 = vpop.permute.xlu0 %3795
      %3797 = vrot.lane.b32.xlu0 %v3768, 64
      %v3798 = vpop.permute.xlu0 %3797
      %3799 = vrot.lane.b32.xlu0 %v3769, 64
      %v3800 = vpop.permute.xlu0 %3799
      %3801 = vrot.lane.b32.xlu0 %v3770, 64
      %v3802 = vpop.permute.xlu0 %3801
      %v3835 = vunpack.c.l.b16 %v3050
      %v3836 = vunpack.c.l.b16 %v3051
      %v3837 = vunpack.c.l.b16 %v3052
      %v3838 = vunpack.c.l.b16 %v3053
      %v3839 = vunpack.c.l.b16 %v3054
      %v3840 = vunpack.c.l.b16 %v3055
      %v3841 = vunpack.c.l.b16 %v3056
      %v3842 = vunpack.c.l.b16 %v3057
      %v3843 = vunpack.c.l.b16 %v3058
      %v3844 = vunpack.c.l.b16 %v3059
      %v3845 = vunpack.c.l.b16 %v3060
      %v3846 = vunpack.c.l.b16 %v3061
      %v3847 = vunpack.c.l.b16 %v3062
      %v3848 = vunpack.c.l.b16 %v3063
      %v3849 = vunpack.c.l.b16 %v3064
      %v3850 = vunpack.c.l.b16 %v3065
      %v3851 = vunpack.c.l.b16 %v3066
      %v3852 = vunpack.c.l.b16 %v3067
      %v3853 = vunpack.c.l.b16 %v3068
      %v3854 = vunpack.c.l.b16 %v3069
      %v3855 = vunpack.c.l.b16 %v3070
      %v3856 = vunpack.c.l.b16 %v3071
      %v3857 = vunpack.c.l.b16 %v3072
      %v3858 = vunpack.c.l.b16 %v3073
      %v3859 = vunpack.c.l.b16 %v3074
      %v3860 = vunpack.c.l.b16 %v3075
      %v3861 = vunpack.c.l.b16 %v3076
      %v3862 = vunpack.c.l.b16 %v3077
      %v3863 = vunpack.c.l.b16 %v3078
      %v3864 = vunpack.c.l.b16 %v3079
      %v3865 = vunpack.c.l.b16 %v3080
      %v3866 = vunpack.c.l.b16 %v3081
      %v3867 = vpack.c.b16 %v3836, %v3835
      %v3868 = vpack.c.b16 %v3838, %v3837
      %v3869 = vpack.c.b16 %v3840, %v3839
      %v3870 = vpack.c.b16 %v3842, %v3841
      %v3871 = vpack.c.b16 %v3844, %v3843
      %v3872 = vpack.c.b16 %v3846, %v3845
      %v3873 = vpack.c.b16 %v3848, %v3847
      %v3874 = vpack.c.b16 %v3850, %v3849
      %v3875 = vpack.c.b16 %v3852, %v3851
      %v3876 = vpack.c.b16 %v3854, %v3853
      %v3877 = vpack.c.b16 %v3856, %v3855
      %v3878 = vpack.c.b16 %v3858, %v3857
      %v3879 = vpack.c.b16 %v3860, %v3859
      %v3880 = vpack.c.b16 %v3862, %v3861
      %v3881 = vpack.c.b16 %v3864, %v3863
      %v3882 = vpack.c.b16 %v3866, %v3865
      %3883 = vrot.lane.b32.xlu0 %v3867, 80
      %v3884 = vpop.permute.xlu0 %3883
      %3885 = vrot.lane.b32.xlu0 %v3868, 80
      %v3886 = vpop.permute.xlu0 %3885
      %3887 = vrot.lane.b32.xlu0 %v3869, 80
      %v3888 = vpop.permute.xlu0 %3887
      %3889 = vrot.lane.b32.xlu0 %v3870, 80
      %v3890 = vpop.permute.xlu0 %3889
      %3891 = vrot.lane.b32.xlu0 %v3871, 80
      %v3892 = vpop.permute.xlu0 %3891
      %3893 = vrot.lane.b32.xlu0 %v3872, 80
      %v3894 = vpop.permute.xlu0 %3893
      %3895 = vrot.lane.b32.xlu0 %v3873, 80
      %v3896 = vpop.permute.xlu0 %3895
      %3897 = vrot.lane.b32.xlu0 %v3874, 80
      %v3898 = vpop.permute.xlu0 %3897
      %3899 = vrot.lane.b32.xlu0 %v3875, 80
      %v3900 = vpop.permute.xlu0 %3899
      %3901 = vrot.lane.b32.xlu0 %v3876, 80
      %v3902 = vpop.permute.xlu0 %3901
      %3903 = vrot.lane.b32.xlu0 %v3877, 80
      %v3904 = vpop.permute.xlu0 %3903
      %3905 = vrot.lane.b32.xlu0 %v3878, 80
      %v3906 = vpop.permute.xlu0 %3905
      %3907 = vrot.lane.b32.xlu0 %v3879, 80
      %v3908 = vpop.permute.xlu0 %3907
      %3909 = vrot.lane.b32.xlu0 %v3880, 80
      %v3910 = vpop.permute.xlu0 %3909
      %3911 = vrot.lane.b32.xlu0 %v3881, 80
      %v3912 = vpop.permute.xlu0 %3911
      %3913 = vrot.lane.b32.xlu0 %v3882, 80
      %v3914 = vpop.permute.xlu0 %3913
      %v3947 = vunpack.c.l.b16 %v3115
      %v3948 = vunpack.c.l.b16 %v3116
      %v3949 = vunpack.c.l.b16 %v3117
      %v3950 = vunpack.c.l.b16 %v3118
      %v3951 = vunpack.c.l.b16 %v3119
      %v3952 = vunpack.c.l.b16 %v3120
      %v3953 = vunpack.c.l.b16 %v3121
      %v3954 = vunpack.c.l.b16 %v3122
      %v3955 = vunpack.c.l.b16 %v3123
      %v3956 = vunpack.c.l.b16 %v3124
      %v3957 = vunpack.c.l.b16 %v3125
      %v3958 = vunpack.c.l.b16 %v3126
      %v3959 = vunpack.c.l.b16 %v3127
      %v3960 = vunpack.c.l.b16 %v3128
      %v3961 = vunpack.c.l.b16 %v3129
      %v3962 = vunpack.c.l.b16 %v3130
      %v3963 = vunpack.c.l.b16 %v3131
      %v3964 = vunpack.c.l.b16 %v3132
      %v3965 = vunpack.c.l.b16 %v3133
      %v3966 = vunpack.c.l.b16 %v3134
      %v3967 = vunpack.c.l.b16 %v3135
      %v3968 = vunpack.c.l.b16 %v3136
      %v3969 = vunpack.c.l.b16 %v3137
      %v3970 = vunpack.c.l.b16 %v3138
      %v3971 = vunpack.c.l.b16 %v3139
      %v3972 = vunpack.c.l.b16 %v3140
      %v3973 = vunpack.c.l.b16 %v3141
      %v3974 = vunpack.c.l.b16 %v3142
      %v3975 = vunpack.c.l.b16 %v3143
      %v3976 = vunpack.c.l.b16 %v3144
      %v3977 = vunpack.c.l.b16 %v3145
      %v3978 = vunpack.c.l.b16 %v3146
      %v3979 = vpack.c.b16 %v3948, %v3947
      %v3980 = vpack.c.b16 %v3950, %v3949
      %v3981 = vpack.c.b16 %v3952, %v3951
      %v3982 = vpack.c.b16 %v3954, %v3953
      %v3983 = vpack.c.b16 %v3956, %v3955
      %v3984 = vpack.c.b16 %v3958, %v3957
      %v3985 = vpack.c.b16 %v3960, %v3959
      %v3986 = vpack.c.b16 %v3962, %v3961
      %v3987 = vpack.c.b16 %v3964, %v3963
      %v3988 = vpack.c.b16 %v3966, %v3965
      %v3989 = vpack.c.b16 %v3968, %v3967
      %v3990 = vpack.c.b16 %v3970, %v3969
      %v3991 = vpack.c.b16 %v3972, %v3971
      %v3992 = vpack.c.b16 %v3974, %v3973
      %v3993 = vpack.c.b16 %v3976, %v3975
      %v3994 = vpack.c.b16 %v3978, %v3977
      %3995 = vrot.lane.b32.xlu0 %v3979, 96
      %v3996 = vpop.permute.xlu0 %3995
      %3997 = vrot.lane.b32.xlu0 %v3980, 96
      %v3998 = vpop.permute.xlu0 %3997
      %3999 = vrot.lane.b32.xlu0 %v3981, 96
      %v4000 = vpop.permute.xlu0 %3999
      %4001 = vrot.lane.b32.xlu0 %v3982, 96
      %v4002 = vpop.permute.xlu0 %4001
      %4003 = vrot.lane.b32.xlu0 %v3983, 96
      %v4004 = vpop.permute.xlu0 %4003
      %4005 = vrot.lane.b32.xlu0 %v3984, 96
      %v4006 = vpop.permute.xlu0 %4005
      %4007 = vrot.lane.b32.xlu0 %v3985, 96
      %v4008 = vpop.permute.xlu0 %4007
      %4009 = vrot.lane.b32.xlu0 %v3986, 96
      %v4010 = vpop.permute.xlu0 %4009
      %4011 = vrot.lane.b32.xlu0 %v3987, 96
      %v4012 = vpop.permute.xlu0 %4011
      %4013 = vrot.lane.b32.xlu0 %v3988, 96
      %v4014 = vpop.permute.xlu0 %4013
      %4015 = vrot.lane.b32.xlu0 %v3989, 96
      %v4016 = vpop.permute.xlu0 %4015
      %4017 = vrot.lane.b32.xlu0 %v3990, 96
      %v4018 = vpop.permute.xlu0 %4017
      %4019 = vrot.lane.b32.xlu0 %v3991, 96
      %v4020 = vpop.permute.xlu0 %4019
      %4021 = vrot.lane.b32.xlu0 %v3992, 96
      %v4022 = vpop.permute.xlu0 %4021
      %4023 = vrot.lane.b32.xlu0 %v3993, 96
      %v4024 = vpop.permute.xlu0 %4023
      %4025 = vrot.lane.b32.xlu0 %v3994, 96
      %v4026 = vpop.permute.xlu0 %4025
      %v4059 = vunpack.c.l.b16 %v3179
      %v4060 = vunpack.c.l.b16 %v3180
      %v4061 = vunpack.c.l.b16 %v3181
      %v4062 = vunpack.c.l.b16 %v3182
      %v4063 = vunpack.c.l.b16 %v3183
      %v4064 = vunpack.c.l.b16 %v3184
      %v4065 = vunpack.c.l.b16 %v3185
      %v4066 = vunpack.c.l.b16 %v3186
      %v4067 = vunpack.c.l.b16 %v3187
      %v4068 = vunpack.c.l.b16 %v3188
      %v4069 = vunpack.c.l.b16 %v3189
      %v4070 = vunpack.c.l.b16 %v3190
      %v4071 = vunpack.c.l.b16 %v3191
      %v4072 = vunpack.c.l.b16 %v3192
      %v4073 = vunpack.c.l.b16 %v3193
      %v4074 = vunpack.c.l.b16 %v3194
      %v4075 = vunpack.c.l.b16 %v3195
      %v4076 = vunpack.c.l.b16 %v3196
      %v4077 = vunpack.c.l.b16 %v3197
      %v4078 = vunpack.c.l.b16 %v3198
      %v4079 = vunpack.c.l.b16 %v3199
      %v4080 = vunpack.c.l.b16 %v3200
      %v4081 = vunpack.c.l.b16 %v3201
      %v4082 = vunpack.c.l.b16 %v3202
      %v4083 = vunpack.c.l.b16 %v3203
      %v4084 = vunpack.c.l.b16 %v3204
      %v4085 = vunpack.c.l.b16 %v3205
      %v4086 = vunpack.c.l.b16 %v3206
      %v4087 = vunpack.c.l.b16 %v3207
      %v4088 = vunpack.c.l.b16 %v3208
      %v4089 = vunpack.c.l.b16 %v3209
      %v4090 = vunpack.c.l.b16 %v3210
      %v4091 = vpack.c.b16 %v4060, %v4059
      %v4092 = vpack.c.b16 %v4062, %v4061
      %v4093 = vpack.c.b16 %v4064, %v4063
      %v4094 = vpack.c.b16 %v4066, %v4065
      %v4095 = vpack.c.b16 %v4068, %v4067
      %v4096 = vpack.c.b16 %v4070, %v4069
      %v4097 = vpack.c.b16 %v4072, %v4071
      %v4098 = vpack.c.b16 %v4074, %v4073
      %v4099 = vpack.c.b16 %v4076, %v4075
      %v4100 = vpack.c.b16 %v4078, %v4077
      %v4101 = vpack.c.b16 %v4080, %v4079
      %v4102 = vpack.c.b16 %v4082, %v4081
      %v4103 = vpack.c.b16 %v4084, %v4083
      %v4104 = vpack.c.b16 %v4086, %v4085
      %v4105 = vpack.c.b16 %v4088, %v4087
      %v4106 = vpack.c.b16 %v4090, %v4089
      %4107 = vrot.lane.b32.xlu0 %v4091, 112
      %v4108 = vpop.permute.xlu0 %4107
      %4109 = vrot.lane.b32.xlu0 %v4092, 112
      %v4110 = vpop.permute.xlu0 %4109
      %4111 = vrot.lane.b32.xlu0 %v4093, 112
      %v4112 = vpop.permute.xlu0 %4111
      %4113 = vrot.lane.b32.xlu0 %v4094, 112
      %v4114 = vpop.permute.xlu0 %4113
      %4115 = vrot.lane.b32.xlu0 %v4095, 112
      %v4116 = vpop.permute.xlu0 %4115
      %4117 = vrot.lane.b32.xlu0 %v4096, 112
      %v4118 = vpop.permute.xlu0 %4117
      %4119 = vrot.lane.b32.xlu0 %v4097, 112
      %v4120 = vpop.permute.xlu0 %4119
      %4121 = vrot.lane.b32.xlu0 %v4098, 112
      %v4122 = vpop.permute.xlu0 %4121
      %4123 = vrot.lane.b32.xlu0 %v4099, 112
      %v4124 = vpop.permute.xlu0 %4123
      %4125 = vrot.lane.b32.xlu0 %v4100, 112
      %v4126 = vpop.permute.xlu0 %4125
      %4127 = vrot.lane.b32.xlu0 %v4101, 112
      %v4128 = vpop.permute.xlu0 %4127
      %4129 = vrot.lane.b32.xlu0 %v4102, 112
      %v4130 = vpop.permute.xlu0 %4129
      %4131 = vrot.lane.b32.xlu0 %v4103, 112
      %v4132 = vpop.permute.xlu0 %4131
      %4133 = vrot.lane.b32.xlu0 %v4104, 112
      %v4134 = vpop.permute.xlu0 %4133
      %4135 = vrot.lane.b32.xlu0 %v4105, 112
      %v4136 = vpop.permute.xlu0 %4135
      %4137 = vrot.lane.b32.xlu0 %v4106, 112
      %v4138 = vpop.permute.xlu0 %4137
      %v4171 = vunpack.c.l.b16 %v3243
      %v4172 = vunpack.c.l.b16 %v3244
      %v4173 = vunpack.c.l.b16 %v3245
      %v4174 = vunpack.c.l.b16 %v3246
      %v4175 = vunpack.c.l.b16 %v3247
      %v4176 = vunpack.c.l.b16 %v3248
      %v4177 = vunpack.c.l.b16 %v3249
      %v4178 = vunpack.c.l.b16 %v3250
      %v4179 = vunpack.c.l.b16 %v3251
      %v4180 = vunpack.c.l.b16 %v3252
      %v4181 = vunpack.c.l.b16 %v3253
      %v4182 = vunpack.c.l.b16 %v3254
      %v4183 = vunpack.c.l.b16 %v3255
      %v4184 = vunpack.c.l.b16 %v3256
      %v4185 = vunpack.c.l.b16 %v3257
      %v4186 = vunpack.c.l.b16 %v3258
      %v4187 = vunpack.c.l.b16 %v3259
      %v4188 = vunpack.c.l.b16 %v3260
      %v4189 = vunpack.c.l.b16 %v3261
      %v4190 = vunpack.c.l.b16 %v3262
      %v4191 = vunpack.c.l.b16 %v3263
      %v4192 = vunpack.c.l.b16 %v3264
      %v4193 = vunpack.c.l.b16 %v3265
      %v4194 = vunpack.c.l.b16 %v3266
      %v4195 = vunpack.c.l.b16 %v3267
      %v4196 = vunpack.c.l.b16 %v3268
      %v4197 = vunpack.c.l.b16 %v3269
      %v4198 = vunpack.c.l.b16 %v3270
      %v4199 = vunpack.c.l.b16 %v3271
      %v4200 = vunpack.c.l.b16 %v3272
      %v4201 = vunpack.c.l.b16 %v3273
      %v4202 = vunpack.c.l.b16 %v3274
      %v4203 = vpack.c.b16 %v4172, %v4171
      %v4204 = vpack.c.b16 %v4174, %v4173
      %v4205 = vpack.c.b16 %v4176, %v4175
      %v4206 = vpack.c.b16 %v4178, %v4177
      %v4207 = vpack.c.b16 %v4180, %v4179
      %v4208 = vpack.c.b16 %v4182, %v4181
      %v4209 = vpack.c.b16 %v4184, %v4183
      %v4210 = vpack.c.b16 %v4186, %v4185
      %v4211 = vpack.c.b16 %v4188, %v4187
      %v4212 = vpack.c.b16 %v4190, %v4189
      %v4213 = vpack.c.b16 %v4192, %v4191
      %v4214 = vpack.c.b16 %v4194, %v4193
      %v4215 = vpack.c.b16 %v4196, %v4195
      %v4216 = vpack.c.b16 %v4198, %v4197
      %v4217 = vpack.c.b16 %v4200, %v4199
      %v4218 = vpack.c.b16 %v4202, %v4201
      %v4221 = vsel %vm667, %v3339, %v3436
      %v4224 = vsel %vm667, %v3340, %v3438
      %v4227 = vsel %vm667, %v3341, %v3440
      %v4230 = vsel %vm667, %v3342, %v3442
      %v4233 = vsel %vm667, %v3343, %v3444
      %v4236 = vsel %vm667, %v3344, %v3446
      %v4239 = vsel %vm667, %v3345, %v3448
      %v4242 = vsel %vm667, %v3346, %v3450
      %v4245 = vsel %vm667, %v3347, %v3452
      %v4248 = vsel %vm667, %v3348, %v3454
      %v4251 = vsel %vm667, %v3349, %v3456
      %v4254 = vsel %vm667, %v3350, %v3458
      %v4257 = vsel %vm667, %v3351, %v3460
      %v4260 = vsel %vm667, %v3352, %v3462
      %v4263 = vsel %vm667, %v3353, %v3464
      %v4266 = vsel %vm667, %v3354, %v3466
      %v4268 = vsel %vm671, %v4221, %v3548
      %v4270 = vsel %vm671, %v4224, %v3550
      %v4272 = vsel %vm671, %v4227, %v3552
      %v4274 = vsel %vm671, %v4230, %v3554
      %v4276 = vsel %vm671, %v4233, %v3556
      %v4278 = vsel %vm671, %v4236, %v3558
      %v4280 = vsel %vm671, %v4239, %v3560
      %v4282 = vsel %vm671, %v4242, %v3562
      %v4284 = vsel %vm671, %v4245, %v3564
      %v4286 = vsel %vm671, %v4248, %v3566
      %v4288 = vsel %vm671, %v4251, %v3568
      %v4290 = vsel %vm671, %v4254, %v3570
      %v4292 = vsel %vm671, %v4257, %v3572
      %v4294 = vsel %vm671, %v4260, %v3574
      %v4296 = vsel %vm671, %v4263, %v3576
      %v4298 = vsel %vm671, %v4266, %v3578
      %v4300 = vsel %vm674, %v4268, %v3660
      %v4302 = vsel %vm674, %v4270, %v3662
      %v4304 = vsel %vm674, %v4272, %v3664
      %v4306 = vsel %vm674, %v4274, %v3666
      %v4308 = vsel %vm674, %v4276, %v3668
      %v4310 = vsel %vm674, %v4278, %v3670
      %v4312 = vsel %vm674, %v4280, %v3672
      %v4314 = vsel %vm674, %v4282, %v3674
      %v4316 = vsel %vm674, %v4284, %v3676
      %v4318 = vsel %vm674, %v4286, %v3678
      %v4320 = vsel %vm674, %v4288, %v3680
      %v4322 = vsel %vm674, %v4290, %v3682
      %v4324 = vsel %vm674, %v4292, %v3684
      %v4326 = vsel %vm674, %v4294, %v3686
      %v4328 = vsel %vm674, %v4296, %v3688
      %v4330 = vsel %vm674, %v4298, %v3690
      %v4332 = vsel %vm677, %v4300, %v3772
      %v4334 = vsel %vm677, %v4302, %v3774
      %v4336 = vsel %vm677, %v4304, %v3776
      %v4338 = vsel %vm677, %v4306, %v3778
      %v4340 = vsel %vm677, %v4308, %v3780
      %v4342 = vsel %vm677, %v4310, %v3782
      %v4344 = vsel %vm677, %v4312, %v3784
      %v4346 = vsel %vm677, %v4314, %v3786
      %v4348 = vsel %vm677, %v4316, %v3788
      %v4350 = vsel %vm677, %v4318, %v3790
      %v4352 = vsel %vm677, %v4320, %v3792
      %v4354 = vsel %vm677, %v4322, %v3794
      %v4356 = vsel %vm677, %v4324, %v3796
      %v4358 = vsel %vm677, %v4326, %v3798
      %v4360 = vsel %vm677, %v4328, %v3800
      %v4362 = vsel %vm677, %v4330, %v3802
      %v4364 = vsel %vm680, %v4332, %v3884
      %v4366 = vsel %vm680, %v4334, %v3886
      %v4368 = vsel %vm680, %v4336, %v3888
      %v4370 = vsel %vm680, %v4338, %v3890
      %v4372 = vsel %vm680, %v4340, %v3892
      %v4374 = vsel %vm680, %v4342, %v3894
      %v4376 = vsel %vm680, %v4344, %v3896
      %v4378 = vsel %vm680, %v4346, %v3898
      %v4380 = vsel %vm680, %v4348, %v3900
      %v4382 = vsel %vm680, %v4350, %v3902
      %v4384 = vsel %vm680, %v4352, %v3904
      %v4386 = vsel %vm680, %v4354, %v3906
      %v4388 = vsel %vm680, %v4356, %v3908
      %v4390 = vsel %vm680, %v4358, %v3910
      %v4392 = vsel %vm680, %v4360, %v3912
      %v4394 = vsel %vm680, %v4362, %v3914
      %v4396 = vsel %vm683, %v4364, %v3996
      %v4398 = vsel %vm683, %v4366, %v3998
      %v4400 = vsel %vm683, %v4368, %v4000
      %v4402 = vsel %vm683, %v4370, %v4002
      %v4404 = vsel %vm683, %v4372, %v4004
      %v4406 = vsel %vm683, %v4374, %v4006
      %v4408 = vsel %vm683, %v4376, %v4008
      %v4410 = vsel %vm683, %v4378, %v4010
      %v4412 = vsel %vm683, %v4380, %v4012
      %v4414 = vsel %vm683, %v4382, %v4014
      %v4416 = vsel %vm683, %v4384, %v4016
      %v4418 = vsel %vm683, %v4386, %v4018
      %v4420 = vsel %vm683, %v4388, %v4020
      %v4422 = vsel %vm683, %v4390, %v4022
      %v4424 = vsel %vm683, %v4392, %v4024
      %v4426 = vsel %vm683, %v4394, %v4026
      %v4428 = vsel %vm686, %v4396, %v4108
      %v4431 = vsel %vm686, %v4398, %v4110
      %v4434 = vsel %vm686, %v4400, %v4112
      %v4437 = vsel %vm686, %v4402, %v4114
      %v4440 = vsel %vm686, %v4404, %v4116
      %v4443 = vsel %vm686, %v4406, %v4118
      %v4446 = vsel %vm686, %v4408, %v4120
      %v4449 = vsel %vm686, %v4410, %v4122
      %v4452 = vsel %vm686, %v4412, %v4124
      %v4455 = vsel %vm686, %v4414, %v4126
      %v4458 = vsel %vm686, %v4416, %v4128
      %v4461 = vsel %vm686, %v4418, %v4130
      %v4464 = vsel %vm686, %v4420, %v4132
      %v4467 = vsel %vm686, %v4422, %v4134
      %v4470 = vsel %vm686, %v4424, %v4136
      %v4473 = vsel %vm686, %v4426, %v4138
      %v4475 = vld [vmem:[%s4] sm:$0xf]
      %v4476 = vld [vmem:[%s4 + $0x4] sm:$0xf]
      %v4477 = vld [vmem:[%s4 + $0x8] sm:$0xf]
      %v4478 = vld [vmem:[%s4 + $0xc] sm:$0xf]
      %v4479 = vld [vmem:[%s4 + $0x10] sm:$0xf]
      %v4480 = vld [vmem:[%s4 + $0x14] sm:$0xf]
      %v4481 = vld [vmem:[%s4 + $0x18] sm:$0xf]
      %v4482 = vld [vmem:[%s4 + $0x1c] sm:$0xf]
      %v4483 = vld [vmem:[%s4 + $0x20] sm:$0xf]
      %v4484 = vld [vmem:[%s4 + $0x24] sm:$0xf]
      %v4485 = vld [vmem:[%s4 + $0x28] sm:$0xf]
      %v4486 = vld [vmem:[%s4 + $0x2c] sm:$0xf]
      %v4487 = vld [vmem:[%s4 + $0x30] sm:$0xf]
      %v4488 = vld [vmem:[%s4 + $0x34] sm:$0xf]
      %v4489 = vld [vmem:[%s4 + $0x38] sm:$0xf]
      %v4490 = vld [vmem:[%s4 + $0x3c] sm:$0xf]
      %v4491 = vld [vmem:[%s4 + $0x40] sm:$0xf]
      %v4492 = vld [vmem:[%s4 + $0x44] sm:$0xf]
      %v4493 = vld [vmem:[%s8] sm:$0x1]
      %v4495 = vperm.slane %v4493, 0
      %v4515 = vunpack.c.l.b16 %v4475
      %v4516 = vunpack.c.l.b16 %v4476
      %v4517 = vunpack.c.l.b16 %v4477
      %v4518 = vunpack.c.l.b16 %v4478
      %v4519 = vunpack.c.l.b16 %v4479
      %v4520 = vunpack.c.l.b16 %v4480
      %v4521 = vunpack.c.l.b16 %v4481
      %v4522 = vunpack.c.l.b16 %v4482
      %v4523 = vunpack.c.l.b16 %v4483
      %v4524 = vunpack.c.l.b16 %v4484
      %v4525 = vunpack.c.l.b16 %v4485
      %v4526 = vunpack.c.l.b16 %v4486
      %v4527 = vunpack.c.l.b16 %v4487
      %v4528 = vunpack.c.l.b16 %v4488
      %v4529 = vunpack.c.l.b16 %v4489
      %v4530 = vunpack.c.l.b16 %v4490
      %v4531 = vunpack.c.l.b16 %v4491
      %v4532 = vunpack.c.l.b16 %v4492
      %v4533 = vpack.c.b16 %v4516, %v4515
      %v4534 = vpack.c.b16 %v4518, %v4517
      %v4535 = vpack.c.b16 %v4520, %v4519
      %v4536 = vpack.c.b16 %v4522, %v4521
      %v4537 = vpack.c.b16 %v4524, %v4523
      %v4538 = vpack.c.b16 %v4526, %v4525
      %v4539 = vpack.c.b16 %v4528, %v4527
      %v4540 = vpack.c.b16 %v4530, %v4529
      %v4541 = vpack.c.b16 %v4532, %v4531
      %v4552 = vsel %vm667, %v4203, 0
      %v4555 = vsel %vm667, %v4204, 0
      %v4558 = vsel %vm667, %v4205, 0
      %v4561 = vsel %vm667, %v4206, 0
      %v4564 = vsel %vm667, %v4207, 0
      %v4567 = vsel %vm667, %v4208, 0
      %v4570 = vsel %vm667, %v4209, 0
      %v4573 = vsel %vm667, %v4210, 0
      %v4576 = vsel %vm667, %v4211, 0
      %v4579 = vsel %vm667, %v4212, 0
      %v4582 = vsel %vm667, %v4213, 0
      %v4585 = vsel %vm667, %v4214, 0
      %v4588 = vsel %vm667, %v4215, 0
      %v4591 = vsel %vm667, %v4216, 0
      %v4594 = vsel %vm667, %v4217, 0
      %v4597 = vsel %vm667, %v4218, 0
      %4599 = vmatpush.bf16.msra.mxu0 %v4540
      %4600 = vmatpush.bf16.msra.mxu0 %v4539
      %4601 = vmatpush.bf16.msra.mxu0 %v4538
      %4602 = vmatpush.bf16.msra.mxu0 %v4537
      %4603 = vmatpush.bf16.msra.mxu0 %v4536
      %4604 = vmatpush.bf16.msra.mxu0 %v4535
      %4605 = vmatpush.bf16.msra.mxu0 %v4534
      %4606 = vmatpush.bf16.msra.mxu0 %v4533
      %4607 = vmatmul.bf16.gmra.mxu0 %v4428
      %v4608 = vpop.f32.mrf.mxu0
      %v4609 = vadd.f32 %v4495, %v4608
      %v4610 = vpop.f32.mrf.mxu0
      %v4611 = vadd.f32 %v4495, %v4610
      %4612 = vmatmul.bf16.gmra.mxu0 %v4431
      %v4613 = vpop.f32.mrf.mxu0
      %v4614 = vadd.f32 %v4495, %v4613
      %v4615 = vpop.f32.mrf.mxu0
      %v4616 = vadd.f32 %v4495, %v4615
      %4617 = vmatmul.bf16.gmra.mxu0 %v4434
      %v4618 = vpop.f32.mrf.mxu0
      %v4619 = vadd.f32 %v4495, %v4618
      %v4620 = vpop.f32.mrf.mxu0
      %v4621 = vadd.f32 %v4495, %v4620
      %4622 = vmatmul.bf16.gmra.mxu0 %v4437
      %v4623 = vpop.f32.mrf.mxu0
      %v4624 = vadd.f32 %v4495, %v4623
      %v4625 = vpop.f32.mrf.mxu0
      %v4626 = vadd.f32 %v4495, %v4625
      %4627 = vmatmul.bf16.gmra.mxu0 %v4440
      %v4628 = vpop.f32.mrf.mxu0
      %v4629 = vadd.f32 %v4495, %v4628
      %v4630 = vpop.f32.mrf.mxu0
      %v4631 = vadd.f32 %v4495, %v4630
      %4632 = vmatmul.bf16.gmra.mxu0 %v4443
      %v4633 = vpop.f32.mrf.mxu0
      %v4634 = vadd.f32 %v4495, %v4633
      %v4635 = vpop.f32.mrf.mxu0
      %v4636 = vadd.f32 %v4495, %v4635
      %4637 = vmatmul.bf16.gmra.mxu0 %v4446
      %v4638 = vpop.f32.mrf.mxu0
      %v4639 = vadd.f32 %v4495, %v4638
      %v4640 = vpop.f32.mrf.mxu0
      %v4641 = vadd.f32 %v4495, %v4640
      %4642 = vmatmul.bf16.gmra.mxu0 %v4449
      %v4643 = vpop.f32.mrf.mxu0
      %v4644 = vadd.f32 %v4495, %v4643
      %v4645 = vpop.f32.mrf.mxu0
      %v4646 = vadd.f32 %v4495, %v4645
      %4647 = vmatmul.bf16.gmra.mxu0 %v4452
      %v4648 = vpop.f32.mrf.mxu0
      %v4649 = vadd.f32 %v4495, %v4648
      %v4650 = vpop.f32.mrf.mxu0
      %v4651 = vadd.f32 %v4495, %v4650
      %4652 = vmatmul.bf16.gmra.mxu0 %v4455
      %v4653 = vpop.f32.mrf.mxu0
      %v4654 = vadd.f32 %v4495, %v4653
      %v4655 = vpop.f32.mrf.mxu0
      %v4656 = vadd.f32 %v4495, %v4655
      %4657 = vmatmul.bf16.gmra.mxu0 %v4458
      %v4658 = vpop.f32.mrf.mxu0
      %v4659 = vadd.f32 %v4495, %v4658
      %v4660 = vpop.f32.mrf.mxu0
      %v4661 = vadd.f32 %v4495, %v4660
      %4662 = vmatmul.bf16.gmra.mxu0 %v4461
      %v4663 = vpop.f32.mrf.mxu0
      %v4664 = vadd.f32 %v4495, %v4663
      %v4665 = vpop.f32.mrf.mxu0
      %v4666 = vadd.f32 %v4495, %v4665
      %4667 = vmatmul.bf16.gmra.mxu0 %v4464
      %v4668 = vpop.f32.mrf.mxu0
      %v4669 = vadd.f32 %v4495, %v4668
      %v4670 = vpop.f32.mrf.mxu0
      %v4671 = vadd.f32 %v4495, %v4670
      %4672 = vmatmul.bf16.gmra.mxu0 %v4467
      %v4673 = vpop.f32.mrf.mxu0
      %v4674 = vadd.f32 %v4495, %v4673
      %v4675 = vpop.f32.mrf.mxu0
      %v4676 = vadd.f32 %v4495, %v4675
      %4677 = vmatmul.bf16.gmra.mxu0 %v4470
      %v4678 = vpop.f32.mrf.mxu0
      %v4679 = vadd.f32 %v4495, %v4678
      %v4680 = vpop.f32.mrf.mxu0
      %v4681 = vadd.f32 %v4495, %v4680
      %4682 = vmatmul.bf16.gmra.mxu0 %v4473
      %v4683 = vpop.f32.mrf.mxu0
      %v4684 = vadd.f32 %v4495, %v4683
      %v4685 = vpop.f32.mrf.mxu0
      %v4686 = vadd.f32 %v4495, %v4685
      %4687 = vdwg.mxu0
      %4688 = vmatpush.bf16.msra.mxu0 0
      %4689 = vmatpush.bf16.msra.mxu0 0
      %4690 = vmatpush.bf16.msra.mxu0 0
      %4691 = vmatpush.bf16.msra.mxu0 0
      %4692 = vmatpush.bf16.msra.mxu0 0
      %4693 = vmatpush.bf16.msra.mxu0 0
      %4694 = vmatpush.bf16.msra.mxu0 0
      %4695 = vmatpush.bf16.msra.mxu0 %v4541
      %4696 = vmatmul.bf16.gmra.mxu0 %v4552
      %v4697 = vpop.f32.mrf.mxu0
      %v4698 = vadd.f32 %v4609, %v4697
      %v4699 = vpop.f32.mrf.mxu0
      %v4700 = vadd.f32 %v4611, %v4699
      %4701 = vmatmul.bf16.gmra.mxu0 %v4555
      %v4702 = vpop.f32.mrf.mxu0
      %v4703 = vadd.f32 %v4614, %v4702
      %v4704 = vpop.f32.mrf.mxu0
      %v4705 = vadd.f32 %v4616, %v4704
      %4706 = vmatmul.bf16.gmra.mxu0 %v4558
      %v4707 = vpop.f32.mrf.mxu0
      %v4708 = vadd.f32 %v4619, %v4707
      %v4709 = vpop.f32.mrf.mxu0
      %v4710 = vadd.f32 %v4621, %v4709
      %4711 = vmatmul.bf16.gmra.mxu0 %v4561
      %v4712 = vpop.f32.mrf.mxu0
      %v4713 = vadd.f32 %v4624, %v4712
      %v4714 = vpop.f32.mrf.mxu0
      %v4715 = vadd.f32 %v4626, %v4714
      %4716 = vmatmul.bf16.gmra.mxu0 %v4564
      %v4717 = vpop.f32.mrf.mxu0
      %v4718 = vadd.f32 %v4629, %v4717
      %v4719 = vpop.f32.mrf.mxu0
      %v4720 = vadd.f32 %v4631, %v4719
      %4721 = vmatmul.bf16.gmra.mxu0 %v4567
      %v4722 = vpop.f32.mrf.mxu0
      %v4723 = vadd.f32 %v4634, %v4722
      %v4724 = vpop.f32.mrf.mxu0
      %v4725 = vadd.f32 %v4636, %v4724
      %4726 = vmatmul.bf16.gmra.mxu0 %v4570
      %v4727 = vpop.f32.mrf.mxu0
      %v4728 = vadd.f32 %v4639, %v4727
      %v4729 = vpop.f32.mrf.mxu0
      %v4730 = vadd.f32 %v4641, %v4729
      %4731 = vmatmul.bf16.gmra.mxu0 %v4573
      %v4732 = vpop.f32.mrf.mxu0
      %v4733 = vadd.f32 %v4644, %v4732
      %v4734 = vpop.f32.mrf.mxu0
      %v4735 = vadd.f32 %v4646, %v4734
      %4736 = vmatmul.bf16.gmra.mxu0 %v4576
      %v4737 = vpop.f32.mrf.mxu0
      %v4738 = vadd.f32 %v4649, %v4737
      %v4739 = vpop.f32.mrf.mxu0
      %v4740 = vadd.f32 %v4651, %v4739
      %4741 = vmatmul.bf16.gmra.mxu0 %v4579
      %v4742 = vpop.f32.mrf.mxu0
      %v4743 = vadd.f32 %v4654, %v4742
      %v4744 = vpop.f32.mrf.mxu0
      %v4745 = vadd.f32 %v4656, %v4744
      %4746 = vmatmul.bf16.gmra.mxu0 %v4582
      %v4747 = vpop.f32.mrf.mxu0
      %v4748 = vadd.f32 %v4659, %v4747
      %v4749 = vpop.f32.mrf.mxu0
      %v4750 = vadd.f32 %v4661, %v4749
      %4751 = vmatmul.bf16.gmra.mxu0 %v4585
      %v4752 = vpop.f32.mrf.mxu0
      %v4753 = vadd.f32 %v4664, %v4752
      %v4754 = vpop.f32.mrf.mxu0
      %v4755 = vadd.f32 %v4666, %v4754
      %4756 = vmatmul.bf16.gmra.mxu0 %v4588
      %v4757 = vpop.f32.mrf.mxu0
      %v4758 = vadd.f32 %v4669, %v4757
      %v4759 = vpop.f32.mrf.mxu0
      %v4760 = vadd.f32 %v4671, %v4759
      %4761 = vmatmul.bf16.gmra.mxu0 %v4591
      %v4762 = vpop.f32.mrf.mxu0
      %v4763 = vadd.f32 %v4674, %v4762
      %v4764 = vpop.f32.mrf.mxu0
      %v4765 = vadd.f32 %v4676, %v4764
      %4766 = vmatmul.bf16.gmra.mxu0 %v4594
      %v4767 = vpop.f32.mrf.mxu0
      %v4768 = vadd.f32 %v4679, %v4767
      %v4769 = vpop.f32.mrf.mxu0
      %v4770 = vadd.f32 %v4681, %v4769
      %4771 = vmatmul.bf16.gmra.mxu0 %v4597
      %v4772 = vpop.f32.mrf.mxu0
      %v4773 = vadd.f32 %v4684, %v4772
      %v4774 = vpop.f32.mrf.mxu0
      %v4775 = vadd.f32 %v4686, %v4774
      %4776 = vdwg.mxu0
      %v4777 = vmax.f32 %v4698, 0.0
      %v4778 = vmax.f32 %v4700, 0.0
      %v4779 = vmax.f32 %v4703, 0.0
      %v4780 = vmax.f32 %v4705, 0.0
      %v4781 = vmax.f32 %v4708, 0.0
      %v4782 = vmax.f32 %v4710, 0.0
      %v4783 = vmax.f32 %v4713, 0.0
      %v4784 = vmax.f32 %v4715, 0.0
      %v4785 = vmax.f32 %v4718, 0.0
      %v4786 = vmax.f32 %v4720, 0.0
      %v4787 = vmax.f32 %v4723, 0.0
      %v4788 = vmax.f32 %v4725, 0.0
      %v4789 = vmax.f32 %v4728, 0.0
      %v4790 = vmax.f32 %v4730, 0.0
      %v4791 = vmax.f32 %v4733, 0.0
      %v4792 = vmax.f32 %v4735, 0.0
      %v4793 = vmax.f32 %v4738, 0.0
      %v4794 = vmax.f32 %v4740, 0.0
      %v4795 = vmax.f32 %v4743, 0.0
      %v4796 = vmax.f32 %v4745, 0.0
      %v4797 = vmax.f32 %v4748, 0.0
      %v4798 = vmax.f32 %v4750, 0.0
      %v4799 = vmax.f32 %v4753, 0.0
      %v4800 = vmax.f32 %v4755, 0.0
      %v4801 = vmax.f32 %v4758, 0.0
      %v4802 = vmax.f32 %v4760, 0.0
      %v4803 = vmax.f32 %v4763, 0.0
      %v4804 = vmax.f32 %v4765, 0.0
      %v4805 = vmax.f32 %v4768, 0.0
      %v4806 = vmax.f32 %v4770, 0.0
      %v4807 = vmax.f32 %v4773, 0.0
      %v4808 = vmax.f32 %v4775, 0.0
      %v4841 = vrot.slane %v4777, 1
      %v4842 = vrot.slane %v4777, 2
      %v4843 = vrot.slane %v4777, 3
      %v4844 = vrot.slane %v4777, 4
      %v4845 = vrot.slane %v4777, 5
      %v4846 = vrot.slane %v4777, 6
      %v4847 = vrot.slane %v4777, 7
      %v4848 = vrot.slane %v4778, 1
      %v4849 = vrot.slane %v4778, 2
      %v4850 = vrot.slane %v4778, 3
      %v4851 = vrot.slane %v4778, 4
      %v4852 = vrot.slane %v4778, 5
      %v4853 = vrot.slane %v4778, 6
      %v4854 = vrot.slane %v4778, 7
      %v4855 = vrot.slane %v4779, 1
      %v4856 = vrot.slane %v4779, 2
      %v4857 = vrot.slane %v4779, 3
      %v4858 = vrot.slane %v4779, 4
      %v4859 = vrot.slane %v4779, 5
      %v4860 = vrot.slane %v4779, 6
      %v4861 = vrot.slane %v4779, 7
      %v4862 = vrot.slane %v4780, 1
      %v4863 = vrot.slane %v4780, 2
      %v4864 = vrot.slane %v4780, 3
      %v4865 = vrot.slane %v4780, 4
      %v4866 = vrot.slane %v4780, 5
      %v4867 = vrot.slane %v4780, 6
      %v4868 = vrot.slane %v4780, 7
      %v4869 = vrot.slane %v4781, 1
      %v4870 = vrot.slane %v4781, 2
      %v4871 = vrot.slane %v4781, 3
      %v4872 = vrot.slane %v4781, 4
      %v4873 = vrot.slane %v4781, 5
      %v4874 = vrot.slane %v4781, 6
      %v4875 = vrot.slane %v4781, 7
      %v4876 = vrot.slane %v4782, 1
      %v4877 = vrot.slane %v4782, 2
      %v4878 = vrot.slane %v4782, 3
      %v4879 = vrot.slane %v4782, 4
      %v4880 = vrot.slane %v4782, 5
      %v4881 = vrot.slane %v4782, 6
      %v4882 = vrot.slane %v4782, 7
      %v4883 = vrot.slane %v4783, 1
      %v4884 = vrot.slane %v4783, 2
      %v4885 = vrot.slane %v4783, 3
      %v4886 = vrot.slane %v4783, 4
      %v4887 = vrot.slane %v4783, 5
      %v4888 = vrot.slane %v4783, 6
      %v4889 = vrot.slane %v4783, 7
      %v4890 = vrot.slane %v4784, 1
      %v4891 = vrot.slane %v4784, 2
      %v4892 = vrot.slane %v4784, 3
      %v4893 = vrot.slane %v4784, 4
      %v4894 = vrot.slane %v4784, 5
      %v4895 = vrot.slane %v4784, 6
      %v4896 = vrot.slane %v4784, 7
      %v4897 = vrot.slane %v4785, 1
      %v4898 = vrot.slane %v4785, 2
      %v4899 = vrot.slane %v4785, 3
      %v4900 = vrot.slane %v4785, 4
      %v4901 = vrot.slane %v4785, 5
      %v4902 = vrot.slane %v4785, 6
      %v4903 = vrot.slane %v4785, 7
      %v4904 = vrot.slane %v4786, 1
      %v4905 = vrot.slane %v4786, 2
      %v4906 = vrot.slane %v4786, 3
      %v4907 = vrot.slane %v4786, 4
      %v4908 = vrot.slane %v4786, 5
      %v4909 = vrot.slane %v4786, 6
      %v4910 = vrot.slane %v4786, 7
      %v4911 = vrot.slane %v4787, 1
      %v4912 = vrot.slane %v4787, 2
      %v4913 = vrot.slane %v4787, 3
      %v4914 = vrot.slane %v4787, 4
      %v4915 = vrot.slane %v4787, 5
      %v4916 = vrot.slane %v4787, 6
      %v4917 = vrot.slane %v4787, 7
      %v4918 = vrot.slane %v4788, 1
      %v4919 = vrot.slane %v4788, 2
      %v4920 = vrot.slane %v4788, 3
      %v4921 = vrot.slane %v4788, 4
      %v4922 = vrot.slane %v4788, 5
      %v4923 = vrot.slane %v4788, 6
      %v4924 = vrot.slane %v4788, 7
      %v4925 = vrot.slane %v4789, 1
      %v4926 = vrot.slane %v4789, 2
      %v4927 = vrot.slane %v4789, 3
      %v4928 = vrot.slane %v4789, 4
      %v4929 = vrot.slane %v4789, 5
      %v4930 = vrot.slane %v4789, 6
      %v4931 = vrot.slane %v4789, 7
      %v4932 = vrot.slane %v4790, 1
      %v4933 = vrot.slane %v4790, 2
      %v4934 = vrot.slane %v4790, 3
      %v4935 = vrot.slane %v4790, 4
      %v4936 = vrot.slane %v4790, 5
      %v4937 = vrot.slane %v4790, 6
      %v4938 = vrot.slane %v4790, 7
      %v4939 = vrot.slane %v4791, 1
      %v4940 = vrot.slane %v4791, 2
      %v4941 = vrot.slane %v4791, 3
      %v4942 = vrot.slane %v4791, 4
      %v4943 = vrot.slane %v4791, 5
      %v4944 = vrot.slane %v4791, 6
      %v4945 = vrot.slane %v4791, 7
      %v4946 = vrot.slane %v4792, 1
      %v4947 = vrot.slane %v4792, 2
      %v4948 = vrot.slane %v4792, 3
      %v4949 = vrot.slane %v4792, 4
      %v4950 = vrot.slane %v4792, 5
      %v4951 = vrot.slane %v4792, 6
      %v4952 = vrot.slane %v4792, 7
      %v4953 = vrot.slane %v4793, 1
      %v4954 = vrot.slane %v4793, 2
      %v4955 = vrot.slane %v4793, 3
      %v4956 = vrot.slane %v4793, 4
      %v4957 = vrot.slane %v4793, 5
      %v4958 = vrot.slane %v4793, 6
      %v4959 = vrot.slane %v4793, 7
      %v4960 = vrot.slane %v4794, 1
      %v4961 = vrot.slane %v4794, 2
      %v4962 = vrot.slane %v4794, 3
      %v4963 = vrot.slane %v4794, 4
      %v4964 = vrot.slane %v4794, 5
      %v4965 = vrot.slane %v4794, 6
      %v4966 = vrot.slane %v4794, 7
      %v4967 = vrot.slane %v4795, 1
      %v4968 = vrot.slane %v4795, 2
      %v4969 = vrot.slane %v4795, 3
      %v4970 = vrot.slane %v4795, 4
      %v4971 = vrot.slane %v4795, 5
      %v4972 = vrot.slane %v4795, 6
      %v4973 = vrot.slane %v4795, 7
      %v4974 = vrot.slane %v4796, 1
      %v4975 = vrot.slane %v4796, 2
      %v4976 = vrot.slane %v4796, 3
      %v4977 = vrot.slane %v4796, 4
      %v4978 = vrot.slane %v4796, 5
      %v4979 = vrot.slane %v4796, 6
      %v4980 = vrot.slane %v4796, 7
      %v4981 = vrot.slane %v4797, 1
      %v4982 = vrot.slane %v4797, 2
      %v4983 = vrot.slane %v4797, 3
      %v4984 = vrot.slane %v4797, 4
      %v4985 = vrot.slane %v4797, 5
      %v4986 = vrot.slane %v4797, 6
      %v4987 = vrot.slane %v4797, 7
      %v4988 = vrot.slane %v4798, 1
      %v4989 = vrot.slane %v4798, 2
      %v4990 = vrot.slane %v4798, 3
      %v4991 = vrot.slane %v4798, 4
      %v4992 = vrot.slane %v4798, 5
      %v4993 = vrot.slane %v4798, 6
      %v4994 = vrot.slane %v4798, 7
      %v4995 = vrot.slane %v4799, 1
      %v4996 = vrot.slane %v4799, 2
      %v4997 = vrot.slane %v4799, 3
      %v4998 = vrot.slane %v4799, 4
      %v4999 = vrot.slane %v4799, 5
      %v5000 = vrot.slane %v4799, 6
      %v5001 = vrot.slane %v4799, 7
      %v5002 = vrot.slane %v4800, 1
      %v5003 = vrot.slane %v4800, 2
      %v5004 = vrot.slane %v4800, 3
      %v5005 = vrot.slane %v4800, 4
      %v5006 = vrot.slane %v4800, 5
      %v5007 = vrot.slane %v4800, 6
      %v5008 = vrot.slane %v4800, 7
      %v5009 = vrot.slane %v4801, 1
      %v5010 = vrot.slane %v4801, 2
      %v5011 = vrot.slane %v4801, 3
      %v5012 = vrot.slane %v4801, 4
      %v5013 = vrot.slane %v4801, 5
      %v5014 = vrot.slane %v4801, 6
      %v5015 = vrot.slane %v4801, 7
      %v5016 = vrot.slane %v4802, 1
      %v5017 = vrot.slane %v4802, 2
      %v5018 = vrot.slane %v4802, 3
      %v5019 = vrot.slane %v4802, 4
      %v5020 = vrot.slane %v4802, 5
      %v5021 = vrot.slane %v4802, 6
      %v5022 = vrot.slane %v4802, 7
      %v5023 = vrot.slane %v4803, 1
      %v5024 = vrot.slane %v4803, 2
      %v5025 = vrot.slane %v4803, 3
      %v5026 = vrot.slane %v4803, 4
      %v5027 = vrot.slane %v4803, 5
      %v5028 = vrot.slane %v4803, 6
      %v5029 = vrot.slane %v4803, 7
      %v5030 = vrot.slane %v4804, 1
      %v5031 = vrot.slane %v4804, 2
      %v5032 = vrot.slane %v4804, 3
      %v5033 = vrot.slane %v4804, 4
      %v5034 = vrot.slane %v4804, 5
      %v5035 = vrot.slane %v4804, 6
      %v5036 = vrot.slane %v4804, 7
      %v5037 = vrot.slane %v4805, 1
      %v5038 = vrot.slane %v4805, 2
      %v5039 = vrot.slane %v4805, 3
      %v5040 = vrot.slane %v4805, 4
      %v5041 = vrot.slane %v4805, 5
      %v5042 = vrot.slane %v4805, 6
      %v5043 = vrot.slane %v4805, 7
      %v5044 = vrot.slane %v4806, 1
      %v5045 = vrot.slane %v4806, 2
      %v5046 = vrot.slane %v4806, 3
      %v5047 = vrot.slane %v4806, 4
      %v5048 = vrot.slane %v4806, 5
      %v5049 = vrot.slane %v4806, 6
      %v5050 = vrot.slane %v4806, 7
      %v5051 = vrot.slane %v4807, 1
      %v5052 = vrot.slane %v4807, 2
      %v5053 = vrot.slane %v4807, 3
      %v5054 = vrot.slane %v4807, 4
      %v5055 = vrot.slane %v4807, 5
      %v5056 = vrot.slane %v4807, 6
      %v5057 = vrot.slane %v4807, 7
      %v5058 = vrot.slane %v4808, 1
      %v5059 = vrot.slane %v4808, 2
      %v5060 = vrot.slane %v4808, 3
      %v5061 = vrot.slane %v4808, 4
      %v5062 = vrot.slane %v4808, 5
      %v5063 = vrot.slane %v4808, 6
      %v5064 = vrot.slane %v4808, 7
      %v5065 = vperm.slane %v4777, 0
      %v5066 = vperm.slane %v4841, 0
      %v5067 = vperm.slane %v4842, 0
      %v5068 = vperm.slane %v4843, 0
      %v5069 = vperm.slane %v4844, 0
      %v5070 = vperm.slane %v4845, 0
      %v5071 = vperm.slane %v4846, 0
      %v5072 = vperm.slane %v4847, 0
      %v5073 = vperm.slane %v4778, 0
      %v5074 = vperm.slane %v4848, 0
      %v5075 = vperm.slane %v4849, 0
      %v5076 = vperm.slane %v4850, 0
      %v5077 = vperm.slane %v4851, 0
      %v5078 = vperm.slane %v4852, 0
      %v5079 = vperm.slane %v4853, 0
      %v5080 = vperm.slane %v4854, 0
      %v5081 = vperm.slane %v4779, 0
      %v5082 = vperm.slane %v4855, 0
      %v5083 = vperm.slane %v4856, 0
      %v5084 = vperm.slane %v4857, 0
      %v5085 = vperm.slane %v4858, 0
      %v5086 = vperm.slane %v4859, 0
      %v5087 = vperm.slane %v4860, 0
      %v5088 = vperm.slane %v4861, 0
      %v5089 = vperm.slane %v4780, 0
      %v5090 = vperm.slane %v4862, 0
      %v5091 = vperm.slane %v4863, 0
      %v5092 = vperm.slane %v4864, 0
      %v5093 = vperm.slane %v4865, 0
      %v5094 = vperm.slane %v4866, 0
      %v5095 = vperm.slane %v4867, 0
      %v5096 = vperm.slane %v4868, 0
      %v5097 = vperm.slane %v4781, 0
      %v5098 = vperm.slane %v4869, 0
      %v5099 = vperm.slane %v4870, 0
      %v5100 = vperm.slane %v4871, 0
      %v5101 = vperm.slane %v4872, 0
      %v5102 = vperm.slane %v4873, 0
      %v5103 = vperm.slane %v4874, 0
      %v5104 = vperm.slane %v4875, 0
      %v5105 = vperm.slane %v4782, 0
      %v5106 = vperm.slane %v4876, 0
      %v5107 = vperm.slane %v4877, 0
      %v5108 = vperm.slane %v4878, 0
      %v5109 = vperm.slane %v4879, 0
      %v5110 = vperm.slane %v4880, 0
      %v5111 = vperm.slane %v4881, 0
      %v5112 = vperm.slane %v4882, 0
      %v5113 = vperm.slane %v4783, 0
      %v5114 = vperm.slane %v4883, 0
      %v5115 = vperm.slane %v4884, 0
      %v5116 = vperm.slane %v4885, 0
      %v5117 = vperm.slane %v4886, 0
      %v5118 = vperm.slane %v4887, 0
      %v5119 = vperm.slane %v4888, 0
      %v5120 = vperm.slane %v4889, 0
      %v5121 = vperm.slane %v4784, 0
      %v5122 = vperm.slane %v4890, 0
      %v5123 = vperm.slane %v4891, 0
      %v5124 = vperm.slane %v4892, 0
      %v5125 = vperm.slane %v4893, 0
      %v5126 = vperm.slane %v4894, 0
      %v5127 = vperm.slane %v4895, 0
      %v5128 = vperm.slane %v4896, 0
      %v5129 = vperm.slane %v4785, 0
      %v5130 = vperm.slane %v4897, 0
      %v5131 = vperm.slane %v4898, 0
      %v5132 = vperm.slane %v4899, 0
      %v5133 = vperm.slane %v4900, 0
      %v5134 = vperm.slane %v4901, 0
      %v5135 = vperm.slane %v4902, 0
      %v5136 = vperm.slane %v4903, 0
      %v5137 = vperm.slane %v4786, 0
      %v5138 = vperm.slane %v4904, 0
      %v5139 = vperm.slane %v4905, 0
      %v5140 = vperm.slane %v4906, 0
      %v5141 = vperm.slane %v4907, 0
      %v5142 = vperm.slane %v4908, 0
      %v5143 = vperm.slane %v4909, 0
      %v5144 = vperm.slane %v4910, 0
      %v5145 = vperm.slane %v4787, 0
      %v5146 = vperm.slane %v4911, 0
      %v5147 = vperm.slane %v4912, 0
      %v5148 = vperm.slane %v4913, 0
      %v5149 = vperm.slane %v4914, 0
      %v5150 = vperm.slane %v4915, 0
      %v5151 = vperm.slane %v4916, 0
      %v5152 = vperm.slane %v4917, 0
      %v5153 = vperm.slane %v4788, 0
      %v5154 = vperm.slane %v4918, 0
      %v5155 = vperm.slane %v4919, 0
      %v5156 = vperm.slane %v4920, 0
      %v5157 = vperm.slane %v4921, 0
      %v5158 = vperm.slane %v4922, 0
      %v5159 = vperm.slane %v4923, 0
      %v5160 = vperm.slane %v4924, 0
      %v5161 = vperm.slane %v4789, 0
      %v5162 = vperm.slane %v4925, 0
      %v5163 = vperm.slane %v4926, 0
      %v5164 = vperm.slane %v4927, 0
      %v5165 = vperm.slane %v4928, 0
      %v5166 = vperm.slane %v4929, 0
      %v5167 = vperm.slane %v4930, 0
      %v5168 = vperm.slane %v4931, 0
      %v5169 = vperm.slane %v4790, 0
      %v5170 = vperm.slane %v4932, 0
      %v5171 = vperm.slane %v4933, 0
      %v5172 = vperm.slane %v4934, 0
      %v5173 = vperm.slane %v4935, 0
      %v5174 = vperm.slane %v4936, 0
      %v5175 = vperm.slane %v4937, 0
      %v5176 = vperm.slane %v4938, 0
      %v5177 = vperm.slane %v4791, 0
      %v5178 = vperm.slane %v4939, 0
      %v5179 = vperm.slane %v4940, 0
      %v5180 = vperm.slane %v4941, 0
      %v5181 = vperm.slane %v4942, 0
      %v5182 = vperm.slane %v4943, 0
      %v5183 = vperm.slane %v4944, 0
      %v5184 = vperm.slane %v4945, 0
      %v5185 = vperm.slane %v4792, 0
      %v5186 = vperm.slane %v4946, 0
      %v5187 = vperm.slane %v4947, 0
      %v5188 = vperm.slane %v4948, 0
      %v5189 = vperm.slane %v4949, 0
      %v5190 = vperm.slane %v4950, 0
      %v5191 = vperm.slane %v4951, 0
      %v5192 = vperm.slane %v4952, 0
      %v5193 = vperm.slane %v4793, 0
      %v5194 = vperm.slane %v4953, 0
      %v5195 = vperm.slane %v4954, 0
      %v5196 = vperm.slane %v4955, 0
      %v5197 = vperm.slane %v4956, 0
      %v5198 = vperm.slane %v4957, 0
      %v5199 = vperm.slane %v4958, 0
      %v5200 = vperm.slane %v4959, 0
      %v5201 = vperm.slane %v4794, 0
      %v5202 = vperm.slane %v4960, 0
      %v5203 = vperm.slane %v4961, 0
      %v5204 = vperm.slane %v4962, 0
      %v5205 = vperm.slane %v4963, 0
      %v5206 = vperm.slane %v4964, 0
      %v5207 = vperm.slane %v4965, 0
      %v5208 = vperm.slane %v4966, 0
      %v5209 = vperm.slane %v4795, 0
      %v5210 = vperm.slane %v4967, 0
      %v5211 = vperm.slane %v4968, 0
      %v5212 = vperm.slane %v4969, 0
      %v5213 = vperm.slane %v4970, 0
      %v5214 = vperm.slane %v4971, 0
      %v5215 = vperm.slane %v4972, 0
      %v5216 = vperm.slane %v4973, 0
      %v5217 = vperm.slane %v4796, 0
      %v5218 = vperm.slane %v4974, 0
      %v5219 = vperm.slane %v4975, 0
      %v5220 = vperm.slane %v4976, 0
      %v5221 = vperm.slane %v4977, 0
      %v5222 = vperm.slane %v4978, 0
      %v5223 = vperm.slane %v4979, 0
      %v5224 = vperm.slane %v4980, 0
      %v5225 = vperm.slane %v4797, 0
      %v5226 = vperm.slane %v4981, 0
      %v5227 = vperm.slane %v4982, 0
      %v5228 = vperm.slane %v4983, 0
      %v5229 = vperm.slane %v4984, 0
      %v5230 = vperm.slane %v4985, 0
      %v5231 = vperm.slane %v4986, 0
      %v5232 = vperm.slane %v4987, 0
      %v5233 = vperm.slane %v4798, 0
      %v5234 = vperm.slane %v4988, 0
      %v5235 = vperm.slane %v4989, 0
      %v5236 = vperm.slane %v4990, 0
      %v5237 = vperm.slane %v4991, 0
      %v5238 = vperm.slane %v4992, 0
      %v5239 = vperm.slane %v4993, 0
      %v5240 = vperm.slane %v4994, 0
      %v5241 = vperm.slane %v4799, 0
      %v5242 = vperm.slane %v4995, 0
      %v5243 = vperm.slane %v4996, 0
      %v5244 = vperm.slane %v4997, 0
      %v5245 = vperm.slane %v4998, 0
      %v5246 = vperm.slane %v4999, 0
      %v5247 = vperm.slane %v5000, 0
      %v5248 = vperm.slane %v5001, 0
      %v5249 = vperm.slane %v4800, 0
      %v5250 = vperm.slane %v5002, 0
      %v5251 = vperm.slane %v5003, 0
      %v5252 = vperm.slane %v5004, 0
      %v5253 = vperm.slane %v5005, 0
      %v5254 = vperm.slane %v5006, 0
      %v5255 = vperm.slane %v5007, 0
      %v5256 = vperm.slane %v5008, 0
      %v5257 = vperm.slane %v4801, 0
      %v5258 = vperm.slane %v5009, 0
      %v5259 = vperm.slane %v5010, 0
      %v5260 = vperm.slane %v5011, 0
      %v5261 = vperm.slane %v5012, 0
      %v5262 = vperm.slane %v5013, 0
      %v5263 = vperm.slane %v5014, 0
      %v5264 = vperm.slane %v5015, 0
      %v5265 = vperm.slane %v4802, 0
      %v5266 = vperm.slane %v5016, 0
      %v5267 = vperm.slane %v5017, 0
      %v5268 = vperm.slane %v5018, 0
      %v5269 = vperm.slane %v5019, 0
      %v5270 = vperm.slane %v5020, 0
      %v5271 = vperm.slane %v5021, 0
      %v5272 = vperm.slane %v5022, 0
      %v5273 = vperm.slane %v4803, 0
      %v5274 = vperm.slane %v5023, 0
      %v5275 = vperm.slane %v5024, 0
      %v5276 = vperm.slane %v5025, 0
      %v5277 = vperm.slane %v5026, 0
      %v5278 = vperm.slane %v5027, 0
      %v5279 = vperm.slane %v5028, 0
      %v5280 = vperm.slane %v5029, 0
      %v5281 = vperm.slane %v4804, 0
      %v5282 = vperm.slane %v5030, 0
      %v5283 = vperm.slane %v5031, 0
      %v5284 = vperm.slane %v5032, 0
      %v5285 = vperm.slane %v5033, 0
      %v5286 = vperm.slane %v5034, 0
      %v5287 = vperm.slane %v5035, 0
      %v5288 = vperm.slane %v5036, 0
      %v5289 = vperm.slane %v4805, 0
      %v5290 = vperm.slane %v5037, 0
      %v5291 = vperm.slane %v5038, 0
      %v5292 = vperm.slane %v5039, 0
      %v5293 = vperm.slane %v5040, 0
      %v5294 = vperm.slane %v5041, 0
      %v5295 = vperm.slane %v5042, 0
      %v5296 = vperm.slane %v5043, 0
      %v5297 = vperm.slane %v4806, 0
      %v5298 = vperm.slane %v5044, 0
      %v5299 = vperm.slane %v5045, 0
      %v5300 = vperm.slane %v5046, 0
      %v5301 = vperm.slane %v5047, 0
      %v5302 = vperm.slane %v5048, 0
      %v5303 = vperm.slane %v5049, 0
      %v5304 = vperm.slane %v5050, 0
      %v5305 = vperm.slane %v4807, 0
      %v5306 = vperm.slane %v5051, 0
      %v5307 = vperm.slane %v5052, 0
      %v5308 = vperm.slane %v5053, 0
      %v5309 = vperm.slane %v5054, 0
      %v5310 = vperm.slane %v5055, 0
      %v5311 = vperm.slane %v5056, 0
      %v5312 = vperm.slane %v5057, 0
      %v5313 = vperm.slane %v4808, 0
      %v5314 = vperm.slane %v5058, 0
      %v5315 = vperm.slane %v5059, 0
      %v5316 = vperm.slane %v5060, 0
      %v5317 = vperm.slane %v5061, 0
      %v5318 = vperm.slane %v5062, 0
      %v5319 = vperm.slane %v5063, 0
      %v5320 = vperm.slane %v5064, 0
      %v5321 = vld [vmem:[%s515] sm:$0xff]
      %v5322 = vld [vmem:[%s515 + $0x8] sm:$0xff]
      %v5323 = vld [vmem:[%s515 + $0x10] sm:$0xff]
      %v5324 = vld [vmem:[%s515 + $0x18] sm:$0xff]
      %v5325 = vld [vmem:[%s515 + $0x20] sm:$0xff]
      %v5326 = vld [vmem:[%s515 + $0x28] sm:$0xff]
      %v5327 = vld [vmem:[%s515 + $0x30] sm:$0xff]
      %v5328 = vld [vmem:[%s515 + $0x38] sm:$0xff]
      %v5329 = vld [vmem:[%s515 + $0x40] sm:$0xff]
      %v5330 = vld [vmem:[%s515 + $0x48] sm:$0xff]
      %v5331 = vld [vmem:[%s515 + $0x50] sm:$0xff]
      %v5332 = vld [vmem:[%s515 + $0x58] sm:$0xff]
      %v5333 = vld [vmem:[%s515 + $0x60] sm:$0xff]
      %v5334 = vld [vmem:[%s515 + $0x68] sm:$0xff]
      %v5335 = vld [vmem:[%s515 + $0x70] sm:$0xff]
      %v5336 = vld [vmem:[%s515 + $0x78] sm:$0xff]
      %v5337 = vld [vmem:[%s515 + $0x80] sm:$0xff]
      %v5338 = vld [vmem:[%s515 + $0x88] sm:$0xff]
      %v5339 = vld [vmem:[%s515 + $0x90] sm:$0xff]
      %v5340 = vld [vmem:[%s515 + $0x98] sm:$0xff]
      %v5341 = vld [vmem:[%s515 + $0xa0] sm:$0xff]
      %v5342 = vld [vmem:[%s515 + $0xa8] sm:$0xff]
      %v5343 = vld [vmem:[%s515 + $0xb0] sm:$0xff]
      %v5344 = vld [vmem:[%s515 + $0xb8] sm:$0xff]
      %v5345 = vld [vmem:[%s515 + $0xc0] sm:$0xff]
      %v5346 = vld [vmem:[%s515 + $0xc8] sm:$0xff]
      %v5347 = vld [vmem:[%s515 + $0xd0] sm:$0xff]
      %v5348 = vld [vmem:[%s515 + $0xd8] sm:$0xff]
      %v5349 = vld [vmem:[%s515 + $0xe0] sm:$0xff]
      %v5350 = vld [vmem:[%s515 + $0xe8] sm:$0xff]
      %v5351 = vld [vmem:[%s515 + $0xf0] sm:$0xff]
      %v5352 = vld [vmem:[%s515 + $0xf8] sm:$0xff]
      %v5353 = vld [vmem:[%s515 + $0x100] sm:$0xff]
      %v5354 = vld [vmem:[%s515 + $0x108] sm:$0xff]
      %v5355 = vld [vmem:[%s515 + $0x110] sm:$0xff]
      %v5356 = vld [vmem:[%s515 + $0x118] sm:$0xff]
      %v5357 = vld [vmem:[%s515 + $0x120] sm:$0xff]
      %v5358 = vld [vmem:[%s515 + $0x128] sm:$0xff]
      %v5359 = vld [vmem:[%s515 + $0x130] sm:$0xff]
      %v5360 = vld [vmem:[%s515 + $0x138] sm:$0xff]
      %v5361 = vld [vmem:[%s515 + $0x140] sm:$0xff]
      %v5362 = vld [vmem:[%s515 + $0x148] sm:$0xff]
      %v5363 = vld [vmem:[%s515 + $0x150] sm:$0xff]
      %v5364 = vld [vmem:[%s515 + $0x158] sm:$0xff]
      %v5365 = vld [vmem:[%s515 + $0x160] sm:$0xff]
      %v5366 = vld [vmem:[%s515 + $0x168] sm:$0xff]
      %v5367 = vld [vmem:[%s515 + $0x170] sm:$0xff]
      %v5368 = vld [vmem:[%s515 + $0x178] sm:$0xff]
      %v5369 = vld [vmem:[%s515 + $0x180] sm:$0xff]
      %v5370 = vld [vmem:[%s515 + $0x188] sm:$0xff]
      %v5371 = vld [vmem:[%s515 + $0x190] sm:$0xff]
      %v5372 = vld [vmem:[%s515 + $0x198] sm:$0xff]
      %v5373 = vld [vmem:[%s515 + $0x1a0] sm:$0xff]
      %v5374 = vld [vmem:[%s515 + $0x1a8] sm:$0xff]
      %v5375 = vld [vmem:[%s515 + $0x1b0] sm:$0xff]
      %v5376 = vld [vmem:[%s515 + $0x1b8] sm:$0xff]
      %v5377 = vld [vmem:[%s515 + $0x1c0] sm:$0xff]
      %v5378 = vld [vmem:[%s515 + $0x1c8] sm:$0xff]
      %v5379 = vld [vmem:[%s515 + $0x1d0] sm:$0xff]
      %v5380 = vld [vmem:[%s515 + $0x1d8] sm:$0xff]
      %v5381 = vld [vmem:[%s515 + $0x1e0] sm:$0xff]
      %v5382 = vld [vmem:[%s515 + $0x1e8] sm:$0xff]
      %v5383 = vld [vmem:[%s515 + $0x1f0] sm:$0xff]
      %v5384 = vld [vmem:[%s515 + $0x1f8] sm:$0xff]
      %v5385 = vld [vmem:[%s515 + $0x200] sm:$0xff]
      %v5386 = vld [vmem:[%s515 + $0x208] sm:$0xff]
      %v5387 = vld [vmem:[%s515 + $0x210] sm:$0xff]
      %v5388 = vld [vmem:[%s515 + $0x218] sm:$0xff]
      %v5389 = vld [vmem:[%s515 + $0x220] sm:$0xff]
      %v5390 = vld [vmem:[%s515 + $0x228] sm:$0xff]
      %v5391 = vld [vmem:[%s515 + $0x230] sm:$0xff]
      %v5392 = vld [vmem:[%s515 + $0x238] sm:$0xff]
      %v5393 = vld [vmem:[%s515 + $0x240] sm:$0xff]
      %v5394 = vld [vmem:[%s515 + $0x248] sm:$0xff]
      %v5395 = vld [vmem:[%s515 + $0x250] sm:$0xff]
      %v5396 = vld [vmem:[%s515 + $0x258] sm:$0xff]
      %v5397 = vld [vmem:[%s515 + $0x260] sm:$0xff]
      %v5398 = vld [vmem:[%s515 + $0x268] sm:$0xff]
      %v5399 = vld [vmem:[%s515 + $0x270] sm:$0xff]
      %v5400 = vld [vmem:[%s515 + $0x278] sm:$0xff]
      %v5401 = vld [vmem:[%s515 + $0x280] sm:$0xff]
      %v5402 = vld [vmem:[%s515 + $0x288] sm:$0xff]
      %v5403 = vld [vmem:[%s515 + $0x290] sm:$0xff]
      %v5404 = vld [vmem:[%s515 + $0x298] sm:$0xff]
      %v5405 = vld [vmem:[%s515 + $0x2a0] sm:$0xff]
      %v5406 = vld [vmem:[%s515 + $0x2a8] sm:$0xff]
      %v5407 = vld [vmem:[%s515 + $0x2b0] sm:$0xff]
      %v5408 = vld [vmem:[%s515 + $0x2b8] sm:$0xff]
      %v5409 = vld [vmem:[%s515 + $0x2c0] sm:$0xff]
      %v5410 = vld [vmem:[%s515 + $0x2c8] sm:$0xff]
      %v5411 = vld [vmem:[%s515 + $0x2d0] sm:$0xff]
      %v5412 = vld [vmem:[%s515 + $0x2d8] sm:$0xff]
      %v5413 = vld [vmem:[%s515 + $0x2e0] sm:$0xff]
      %v5414 = vld [vmem:[%s515 + $0x2e8] sm:$0xff]
      %v5415 = vld [vmem:[%s515 + $0x2f0] sm:$0xff]
      %v5416 = vld [vmem:[%s515 + $0x2f8] sm:$0xff]
      %v5417 = vld [vmem:[%s515 + $0x300] sm:$0xff]
      %v5418 = vld [vmem:[%s515 + $0x308] sm:$0xff]
      %v5419 = vld [vmem:[%s515 + $0x310] sm:$0xff]
      %v5420 = vld [vmem:[%s515 + $0x318] sm:$0xff]
      %v5421 = vld [vmem:[%s515 + $0x320] sm:$0xff]
      %v5422 = vld [vmem:[%s515 + $0x328] sm:$0xff]
      %v5423 = vld [vmem:[%s515 + $0x330] sm:$0xff]
      %v5424 = vld [vmem:[%s515 + $0x338] sm:$0xff]
      %v5425 = vld [vmem:[%s515 + $0x340] sm:$0xff]
      %v5426 = vld [vmem:[%s515 + $0x348] sm:$0xff]
      %v5427 = vld [vmem:[%s515 + $0x350] sm:$0xff]
      %v5428 = vld [vmem:[%s515 + $0x358] sm:$0xff]
      %v5429 = vld [vmem:[%s515 + $0x360] sm:$0xff]
      %v5430 = vld [vmem:[%s515 + $0x368] sm:$0xff]
      %v5431 = vld [vmem:[%s515 + $0x370] sm:$0xff]
      %v5432 = vld [vmem:[%s515 + $0x378] sm:$0xff]
      %v5433 = vld [vmem:[%s515 + $0x380] sm:$0xff]
      %v5434 = vld [vmem:[%s515 + $0x388] sm:$0xff]
      %v5435 = vld [vmem:[%s515 + $0x390] sm:$0xff]
      %v5436 = vld [vmem:[%s515 + $0x398] sm:$0xff]
      %v5437 = vld [vmem:[%s515 + $0x3a0] sm:$0xff]
      %v5438 = vld [vmem:[%s515 + $0x3a8] sm:$0xff]
      %v5439 = vld [vmem:[%s515 + $0x3b0] sm:$0xff]
      %v5440 = vld [vmem:[%s515 + $0x3b8] sm:$0xff]
      %v5441 = vld [vmem:[%s515 + $0x3c0] sm:$0xff]
      %v5442 = vld [vmem:[%s515 + $0x3c8] sm:$0xff]
      %v5443 = vld [vmem:[%s515 + $0x3d0] sm:$0xff]
      %v5444 = vld [vmem:[%s515 + $0x3d8] sm:$0xff]
      %v5445 = vld [vmem:[%s515 + $0x3e0] sm:$0xff]
      %v5446 = vld [vmem:[%s515 + $0x3e8] sm:$0xff]
      %v5447 = vld [vmem:[%s515 + $0x3f0] sm:$0xff]
      %v5448 = vld [vmem:[%s515 + $0x3f8] sm:$0xff]
      %5449 = vst [vmem:[#allocation1] ss:$4 sm:$0xff] %v5065
      %s5450 = scalar_lea.vmem [#allocation1], 1
      %5451 = vst [vmem:[%s5450] ss:$4 sm:$0xff] %v5066
      %s5452 = scalar_lea.vmem [#allocation1], 2
      %5453 = vst [vmem:[%s5452] ss:$4 sm:$0xff] %v5067
      %s5454 = scalar_lea.vmem [#allocation1], 3
      %5455 = vst [vmem:[%s5454] ss:$4 sm:$0xff] %v5068
      %s5456 = scalar_lea.vmem [#allocation1], 32
      %5457 = vst [vmem:[%s5456] ss:$4 sm:$0xff] %v5069
      %s5458 = scalar_lea.vmem [#allocation1], 33
      %5459 = vst [vmem:[%s5458] ss:$4 sm:$0xff] %v5070
      %s5460 = scalar_lea.vmem [#allocation1], 34
      %5461 = vst [vmem:[%s5460] ss:$4 sm:$0xff] %v5071
      %s5462 = scalar_lea.vmem [#allocation1], 35
      %5463 = vst [vmem:[%s5462] ss:$4 sm:$0xff] %v5072
      %v5464 = vld.sshfl [vmem:[#allocation1] sm:$0xff pattern:$0x73625140]
      %v5465 = vld.sshfl [vmem:[#allocation1 + $0x20] sm:$0xff pattern:$0x73625140]
      %5466 = vst [vmem:[#allocation1] ss:$4 sm:$0xff] %v5073
      %5467 = vst [vmem:[%s5450] ss:$4 sm:$0xff] %v5074
      %5468 = vst [vmem:[%s5452] ss:$4 sm:$0xff] %v5075
      %5469 = vst [vmem:[%s5454] ss:$4 sm:$0xff] %v5076
      %5470 = vst [vmem:[%s5456] ss:$4 sm:$0xff] %v5077
      %5471 = vst [vmem:[%s5458] ss:$4 sm:$0xff] %v5078
      %5472 = vst [vmem:[%s5460] ss:$4 sm:$0xff] %v5079
      %5473 = vst [vmem:[%s5462] ss:$4 sm:$0xff] %v5080
      %v5474 = vld.sshfl [vmem:[#allocation1] sm:$0xff pattern:$0x73625140]
      %v5475 = vld.sshfl [vmem:[#allocation1 + $0x20] sm:$0xff pattern:$0x73625140]
      %5476 = vst [vmem:[#allocation1] ss:$4 sm:$0xff] %v5065
      %5477 = vst [vmem:[%s5450] ss:$4 sm:$0xff] %v5066
      %5478 = vst [vmem:[%s5452] ss:$4 sm:$0xff] %v5067
      %5479 = vst [vmem:[%s5454] ss:$4 sm:$0xff] %v5068
      %5480 = vst [vmem:[%s5456] ss:$4 sm:$0xff] %v5069
      %5481 = vst [vmem:[%s5458] ss:$4 sm:$0xff] %v5070
      %5482 = vst [vmem:[%s5460] ss:$4 sm:$0xff] %v5071
      %5483 = vst [vmem:[%s5462] ss:$4 sm:$0xff] %v5072
      %v5484 = vld.sshfl [vmem:[#allocation1] sm:$0xff pattern:$0x73625140]
      %v5485 = vld.sshfl [vmem:[#allocation1 + $0x20] sm:$0xff pattern:$0x73625140]
      %5486 = vst [vmem:[#allocation1] ss:$4 sm:$0xff] %v5073
      %5487 = vst [vmem:[%s5450] ss:$4 sm:$0xff] %v5074
      %5488 = vst [vmem:[%s5452] ss:$4 sm:$0xff] %v5075
      %5489 = vst [vmem:[%s5454] ss:$4 sm:$0xff] %v5076
      %5490 = vst [vmem:[%s5456] ss:$4 sm:$0xff] %v5077
      %5491 = vst [vmem:[%s5458] ss:$4 sm:$0xff] %v5078
      %5492 = vst [vmem:[%s5460] ss:$4 sm:$0xff] %v5079
      %5493 = vst [vmem:[%s5462] ss:$4 sm:$0xff] %v5080
      %v5494 = vld.sshfl [vmem:[#allocation1] sm:$0xff pattern:$0x73625140]
      %v5495 = vld.sshfl [vmem:[#allocation1 + $0x20] sm:$0xff pattern:$0x73625140]
      %5496 = vst [vmem:[#allocation1] ss:$4 sm:$0xff] %v5081
      %5497 = vst [vmem:[%s5450] ss:$4 sm:$0xff] %v5082
      %5498 = vst [vmem:[%s5452] ss:$4 sm:$0xff] %v5083
      %5499 = vst [vmem:[%s5454] ss:$4 sm:$0xff] %v5084
      %5500 = vst [vmem:[%s5456] ss:$4 sm:$0xff] %v5085
      %5501 = vst [vmem:[%s5458] ss:$4 sm:$0xff] %v5086
      %5502 = vst [vmem:[%s5460] ss:$4 sm:$0xff] %v5087
      %5503 = vst [vmem:[%s5462] ss:$4 sm:$0xff] %v5088
      %v5504 = vld.sshfl [vmem:[#allocation1] sm:$0xff pattern:$0x73625140]
      %v5505 = vld.sshfl [vmem:[#allocation1 + $0x20] sm:$0xff pattern:$0x73625140]
      %5506 = vst [vmem:[#allocation1] ss:$4 sm:$0xff] %v5089
      %5507 = vst [vmem:[%s5450] ss:$4 sm:$0xff] %v5090
      %5508 = vst [vmem:[%s5452] ss:$4 sm:$0xff] %v5091
      %5509 = vst [vmem:[%s5454] ss:$4 sm:$0xff] %v5092
      %5510 = vst [vmem:[%s5456] ss:$4 sm:$0xff] %v5093
      %5511 = vst [vmem:[%s5458] ss:$4 sm:$0xff] %v5094
      %5512 = vst [vmem:[%s5460] ss:$4 sm:$0xff] %v5095
      %5513 = vst [vmem:[%s5462] ss:$4 sm:$0xff] %v5096
      %v5514 = vld.sshfl [vmem:[#allocation1] sm:$0xff pattern:$0x73625140]
      %v5515 = vld.sshfl [vmem:[#allocation1 + $0x20] sm:$0xff pattern:$0x73625140]
      %5516 = vst [vmem:[#allocation1] ss:$4 sm:$0xff] %v5081
      %5517 = vst [vmem:[%s5450] ss:$4 sm:$0xff] %v5082
      %5518 = vst [vmem:[%s5452] ss:$4 sm:$0xff] %v5083
      %5519 = vst [vmem:[%s5454] ss:$4 sm:$0xff] %v5084
      %5520 = vst [vmem:[%s5456] ss:$4 sm:$0xff] %v5085
      %5521 = vst [vmem:[%s5458] ss:$4 sm:$0xff] %v5086
      %5522 = vst [vmem:[%s5460] ss:$4 sm:$0xff] %v5087
      %5523 = vst [vmem:[%s5462] ss:$4 sm:$0xff] %v5088
      %v5524 = vld.sshfl [vmem:[#allocation1] sm:$0xff pattern:$0x73625140]
      %v5525 = vld.sshfl [vmem:[#allocation1 + $0x20] sm:$0xff pattern:$0x73625140]
      %5526 = vst [vmem:[#allocation1] ss:$4 sm:$0xff] %v5089
      %5527 = vst [vmem:[%s5450] ss:$4 sm:$0xff] %v5090
      %5528 = vst [vmem:[%s5452] ss:$4 sm:$0xff] %v5091
      %5529 = vst [vmem:[%s5454] ss:$4 sm:$0xff] %v5092
      %5530 = vst [vmem:[%s5456] ss:$4 sm:$0xff] %v5093
      %5531 = vst [vmem:[%s5458] ss:$4 sm:$0xff] %v5094
      %5532 = vst [vmem:[%s5460] ss:$4 sm:$0xff] %v5095
      %5533 = vst [vmem:[%s5462] ss:$4 sm:$0xff] %v5096
      %v5534 = vld.sshfl [vmem:[#allocation1] sm:$0xff pattern:$0x73625140]
      %v5535 = vld.sshfl [vmem:[#allocation1 + $0x20] sm:$0xff pattern:$0x73625140]
      %5536 = vst [vmem:[#allocation1] ss:$4 sm:$0xff] %v5097
      %5537 = vst [vmem:[%s5450] ss:$4 sm:$0xff] %v5098
      %5538 = vst [vmem:[%s5452] ss:$4 sm:$0xff] %v5099
      %5539 = vst [vmem:[%s5454] ss:$4 sm:$0xff] %v5100
      %5540 = vst [vmem:[%s5456] ss:$4 sm:$0xff] %v5101
      %5541 = vst [vmem:[%s5458] ss:$4 sm:$0xff] %v5102
      %5542 = vst [vmem:[%s5460] ss:$4 sm:$0xff] %v5103
      %5543 = vst [vmem:[%s5462] ss:$4 sm:$0xff] %v5104
      %v5544 = vld.sshfl [vmem:[#allocation1] sm:$0xff pattern:$0x73625140]
      %v5545 = vld.sshfl [vmem:[#allocation1 + $0x20] sm:$0xff pattern:$0x73625140]
      %5546 = vst [vmem:[#allocation1] ss:$4 sm:$0xff] %v5105
      %5547 = vst [vmem:[%s5450] ss:$4 sm:$0xff] %v5106
      %5548 = vst [vmem:[%s5452] ss:$4 sm:$0xff] %v5107
      %5549 = vst [vmem:[%s5454] ss:$4 sm:$0xff] %v5108
      %5550 = vst [vmem:[%s5456] ss:$4 sm:$0xff] %v5109
      %5551 = vst [vmem:[%s5458] ss:$4 sm:$0xff] %v5110
      %5552 = vst [vmem:[%s5460] ss:$4 sm:$0xff] %v5111
      %5553 = vst [vmem:[%s5462] ss:$4 sm:$0xff] %v5112
      %v5554 = vld.sshfl [vmem:[#allocation1] sm:$0xff pattern:$0x73625140]
      %v5555 = vld.sshfl [vmem:[#allocation1 + $0x20] sm:$0xff pattern:$0x73625140]
      %5556 = vst [vmem:[#allocation1] ss:$4 sm:$0xff] %v5097
      %5557 = vst [vmem:[%s5450] ss:$4 sm:$0xff] %v5098
      %5558 = vst [vmem:[%s5452] ss:$4 sm:$0xff] %v5099
      %5559 = vst [vmem:[%s5454] ss:$4 sm:$0xff] %v5100
      %5560 = vst [vmem:[%s5456] ss:$4 sm:$0xff] %v5101
      %5561 = vst [vmem:[%s5458] ss:$4 sm:$0xff] %v5102
      %5562 = vst [vmem:[%s5460] ss:$4 sm:$0xff] %v5103
      %5563 = vst [vmem:[%s5462] ss:$4 sm:$0xff] %v5104
      %v5564 = vld.sshfl [vmem:[#allocation1] sm:$0xff pattern:$0x73625140]
      %v5565 = vld.sshfl [vmem:[#allocation1 + $0x20] sm:$0xff pattern:$0x73625140]
      %5566 = vst [vmem:[#allocation1] ss:$4 sm:$0xff] %v5105
      %5567 = vst [vmem:[%s5450] ss:$4 sm:$0xff] %v5106
      %5568 = vst [vmem:[%s5452] ss:$4 sm:$0xff] %v5107
      %5569 = vst [vmem:[%s5454] ss:$4 sm:$0xff] %v5108
      %5570 = vst [vmem:[%s5456] ss:$4 sm:$0xff] %v5109
      %5571 = vst [vmem:[%s5458] ss:$4 sm:$0xff] %v5110
      %5572 = vst [vmem:[%s5460] ss:$4 sm:$0xff] %v5111
      %5573 = vst [vmem:[%s5462] ss:$4 sm:$0xff] %v5112
      %v5574 = vld.sshfl [vmem:[#allocation1] sm:$0xff pattern:$0x73625140]
      %v5575 = vld.sshfl [vmem:[#allocation1 + $0x20] sm:$0xff pattern:$0x73625140]
      %5576 = vst [vmem:[#allocation1] ss:$4 sm:$0xff] %v5113
      %5577 = vst [vmem:[%s5450] ss:$4 sm:$0xff] %v5114
      %5578 = vst [vmem:[%s5452] ss:$4 sm:$0xff] %v5115
      %5579 = vst [vmem:[%s5454] ss:$4 sm:$0xff] %v5116
      %5580 = vst [vmem:[%s5456] ss:$4 sm:$0xff] %v5117
      %5581 = vst [vmem:[%s5458] ss:$4 sm:$0xff] %v5118
      %5582 = vst [vmem:[%s5460] ss:$4 sm:$0xff] %v5119
      %5583 = vst [vmem:[%s5462] ss:$4 sm:$0xff] %v5120
      %v5584 = vld.sshfl [vmem:[#allocation1] sm:$0xff pattern:$0x73625140]
      %v5585 = vld.sshfl [vmem:[#allocation1 + $0x20] sm:$0xff pattern:$0x73625140]
      %5586 = vst [vmem:[#allocation1] ss:$4 sm:$0xff] %v5121
      %5587 = vst [vmem:[%s5450] ss:$4 sm:$0xff] %v5122
      %5588 = vst [vmem:[%s5452] ss:$4 sm:$0xff] %v5123
      %5589 = vst [vmem:[%s5454] ss:$4 sm:$0xff] %v5124
      %5590 = vst [vmem:[%s5456] ss:$4 sm:$0xff] %v5125
      %5591 = vst [vmem:[%s5458] ss:$4 sm:$0xff] %v5126
      %5592 = vst [vmem:[%s5460] ss:$4 sm:$0xff] %v5127
      %5593 = vst [vmem:[%s5462] ss:$4 sm:$0xff] %v5128
      %v5594 = vld.sshfl [vmem:[#allocation1] sm:$0xff pattern:$0x73625140]
      %v5595 = vld.sshfl [vmem:[#allocation1 + $0x20] sm:$0xff pattern:$0x73625140]
      %5596 = vst [vmem:[#allocation1] ss:$4 sm:$0xff] %v5113
      %5597 = vst [vmem:[%s5450] ss:$4 sm:$0xff] %v5114
      %5598 = vst [vmem:[%s5452] ss:$4 sm:$0xff] %v5115
      %5599 = vst [vmem:[%s5454] ss:$4 sm:$0xff] %v5116
      %5600 = vst [vmem:[%s5456] ss:$4 sm:$0xff] %v5117
      %5601 = vst [vmem:[%s5458] ss:$4 sm:$0xff] %v5118
      %5602 = vst [vmem:[%s5460] ss:$4 sm:$0xff] %v5119
      %5603 = vst [vmem:[%s5462] ss:$4 sm:$0xff] %v5120
      %v5604 = vld.sshfl [vmem:[#allocation1] sm:$0xff pattern:$0x73625140]
      %v5605 = vld.sshfl [vmem:[#allocation1 + $0x20] sm:$0xff pattern:$0x73625140]
      %5606 = vst [vmem:[#allocation1] ss:$4 sm:$0xff] %v5121
      %5607 = vst [vmem:[%s5450] ss:$4 sm:$0xff] %v5122
      %5608 = vst [vmem:[%s5452] ss:$4 sm:$0xff] %v5123
      %5609 = vst [vmem:[%s5454] ss:$4 sm:$0xff] %v5124
      %5610 = vst [vmem:[%s5456] ss:$4 sm:$0xff] %v5125
      %5611 = vst [vmem:[%s5458] ss:$4 sm:$0xff] %v5126
      %5612 = vst [vmem:[%s5460] ss:$4 sm:$0xff] %v5127
      %5613 = vst [vmem:[%s5462] ss:$4 sm:$0xff] %v5128
      %v5614 = vld.sshfl [vmem:[#allocation1] sm:$0xff pattern:$0x73625140]
      %v5615 = vld.sshfl [vmem:[#allocation1 + $0x20] sm:$0xff pattern:$0x73625140]
      %5616 = vst [vmem:[#allocation1] ss:$4 sm:$0xff] %v5129
      %5617 = vst [vmem:[%s5450] ss:$4 sm:$0xff] %v5130
      %5618 = vst [vmem:[%s5452] ss:$4 sm:$0xff] %v5131
      %5619 = vst [vmem:[%s5454] ss:$4 sm:$0xff] %v5132
      %5620 = vst [vmem:[%s5456] ss:$4 sm:$0xff] %v5133
      %5621 = vst [vmem:[%s5458] ss:$4 sm:$0xff] %v5134
      %5622 = vst [vmem:[%s5460] ss:$4 sm:$0xff] %v5135
      %5623 = vst [vmem:[%s5462] ss:$4 sm:$0xff] %v5136
      %v5624 = vld.sshfl [vmem:[#allocation1] sm:$0xff pattern:$0x73625140]
      %v5625 = vld.sshfl [vmem:[#allocation1 + $0x20] sm:$0xff pattern:$0x73625140]
      %5626 = vst [vmem:[#allocation1] ss:$4 sm:$0xff] %v5137
      %5627 = vst [vmem:[%s5450] ss:$4 sm:$0xff] %v5138
      %5628 = vst [vmem:[%s5452] ss:$4 sm:$0xff] %v5139
      %5629 = vst [vmem:[%s5454] ss:$4 sm:$0xff] %v5140
      %5630 = vst [vmem:[%s5456] ss:$4 sm:$0xff] %v5141
      %5631 = vst [vmem:[%s5458] ss:$4 sm:$0xff] %v5142
      %5632 = vst [vmem:[%s5460] ss:$4 sm:$0xff] %v5143
      %5633 = vst [vmem:[%s5462] ss:$4 sm:$0xff] %v5144
      %v5634 = vld.sshfl [vmem:[#allocation1] sm:$0xff pattern:$0x73625140]
      %v5635 = vld.sshfl [vmem:[#allocation1 + $0x20] sm:$0xff pattern:$0x73625140]
      %5636 = vst [vmem:[#allocation1] ss:$4 sm:$0xff] %v5129
      %5637 = vst [vmem:[%s5450] ss:$4 sm:$0xff] %v5130
      %5638 = vst [vmem:[%s5452] ss:$4 sm:$0xff] %v5131
      %5639 = vst [vmem:[%s5454] ss:$4 sm:$0xff] %v5132
      %5640 = vst [vmem:[%s5456] ss:$4 sm:$0xff] %v5133
      %5641 = vst [vmem:[%s5458] ss:$4 sm:$0xff] %v5134
      %5642 = vst [vmem:[%s5460] ss:$4 sm:$0xff] %v5135
      %5643 = vst [vmem:[%s5462] ss:$4 sm:$0xff] %v5136
      %v5644 = vld.sshfl [vmem:[#allocation1] sm:$0xff pattern:$0x73625140]
      %v5645 = vld.sshfl [vmem:[#allocation1 + $0x20] sm:$0xff pattern:$0x73625140]
      %5646 = vst [vmem:[#allocation1] ss:$4 sm:$0xff] %v5137
      %5647 = vst [vmem:[%s5450] ss:$4 sm:$0xff] %v5138
      %5648 = vst [vmem:[%s5452] ss:$4 sm:$0xff] %v5139
      %5649 = vst [vmem:[%s5454] ss:$4 sm:$0xff] %v5140
      %5650 = vst [vmem:[%s5456] ss:$4 sm:$0xff] %v5141
      %5651 = vst [vmem:[%s5458] ss:$4 sm:$0xff] %v5142
      %5652 = vst [vmem:[%s5460] ss:$4 sm:$0xff] %v5143
      %5653 = vst [vmem:[%s5462] ss:$4 sm:$0xff] %v5144
      %v5654 = vld.sshfl [vmem:[#allocation1] sm:$0xff pattern:$0x73625140]
      %v5655 = vld.sshfl [vmem:[#allocation1 + $0x20] sm:$0xff pattern:$0x73625140]
      %5656 = vst [vmem:[#allocation1] ss:$4 sm:$0xff] %v5145
      %5657 = vst [vmem:[%s5450] ss:$4 sm:$0xff] %v5146
      %5658 = vst [vmem:[%s5452] ss:$4 sm:$0xff] %v5147
      %5659 = vst [vmem:[%s5454] ss:$4 sm:$0xff] %v5148
      %5660 = vst [vmem:[%s5456] ss:$4 sm:$0xff] %v5149
      %5661 = vst [vmem:[%s5458] ss:$4 sm:$0xff] %v5150
      %5662 = vst [vmem:[%s5460] ss:$4 sm:$0xff] %v5151
      %5663 = vst [vmem:[%s5462] ss:$4 sm:$0xff] %v5152
      %v5664 = vld.sshfl [vmem:[#allocation1] sm:$0xff pattern:$0x73625140]
      %v5665 = vld.sshfl [vmem:[#allocation1 + $0x20] sm:$0xff pattern:$0x73625140]
      %5666 = vst [vmem:[#allocation1] ss:$4 sm:$0xff] %v5153
      %5667 = vst [vmem:[%s5450] ss:$4 sm:$0xff] %v5154
      %5668 = vst [vmem:[%s5452] ss:$4 sm:$0xff] %v5155
      %5669 = vst [vmem:[%s5454] ss:$4 sm:$0xff] %v5156
      %5670 = vst [vmem:[%s5456] ss:$4 sm:$0xff] %v5157
      %5671 = vst [vmem:[%s5458] ss:$4 sm:$0xff] %v5158
      %5672 = vst [vmem:[%s5460] ss:$4 sm:$0xff] %v5159
      %5673 = vst [vmem:[%s5462] ss:$4 sm:$0xff] %v5160
      %v5674 = vld.sshfl [vmem:[#allocation1] sm:$0xff pattern:$0x73625140]
      %v5675 = vld.sshfl [vmem:[#allocation1 + $0x20] sm:$0xff pattern:$0x73625140]
      %5676 = vst [vmem:[#allocation1] ss:$4 sm:$0xff] %v5145
      %5677 = vst [vmem:[%s5450] ss:$4 sm:$0xff] %v5146
      %5678 = vst [vmem:[%s5452] ss:$4 sm:$0xff] %v5147
      %5679 = vst [vmem:[%s5454] ss:$4 sm:$0xff] %v5148
      %5680 = vst [vmem:[%s5456] ss:$4 sm:$0xff] %v5149
      %5681 = vst [vmem:[%s5458] ss:$4 sm:$0xff] %v5150
      %5682 = vst [vmem:[%s5460] ss:$4 sm:$0xff] %v5151
      %5683 = vst [vmem:[%s5462] ss:$4 sm:$0xff] %v5152
      %v5684 = vld.sshfl [vmem:[#allocation1] sm:$0xff pattern:$0x73625140]
      %v5685 = vld.sshfl [vmem:[#allocation1 + $0x20] sm:$0xff pattern:$0x73625140]
      %5686 = vst [vmem:[#allocation1] ss:$4 sm:$0xff] %v5153
      %5687 = vst [vmem:[%s5450] ss:$4 sm:$0xff] %v5154
      %5688 = vst [vmem:[%s5452] ss:$4 sm:$0xff] %v5155
      %5689 = vst [vmem:[%s5454] ss:$4 sm:$0xff] %v5156
      %5690 = vst [vmem:[%s5456] ss:$4 sm:$0xff] %v5157
      %5691 = vst [vmem:[%s5458] ss:$4 sm:$0xff] %v5158
      %5692 = vst [vmem:[%s5460] ss:$4 sm:$0xff] %v5159
      %5693 = vst [vmem:[%s5462] ss:$4 sm:$0xff] %v5160
      %v5694 = vld.sshfl [vmem:[#allocation1] sm:$0xff pattern:$0x73625140]
      %v5695 = vld.sshfl [vmem:[#allocation1 + $0x20] sm:$0xff pattern:$0x73625140]
      %5696 = vst [vmem:[#allocation1] ss:$4 sm:$0xff] %v5161
      %5697 = vst [vmem:[%s5450] ss:$4 sm:$0xff] %v5162
      %5698 = vst [vmem:[%s5452] ss:$4 sm:$0xff] %v5163
      %5699 = vst [vmem:[%s5454] ss:$4 sm:$0xff] %v5164
      %5700 = vst [vmem:[%s5456] ss:$4 sm:$0xff] %v5165
      %5701 = vst [vmem:[%s5458] ss:$4 sm:$0xff] %v5166
      %5702 = vst [vmem:[%s5460] ss:$4 sm:$0xff] %v5167
      %5703 = vst [vmem:[%s5462] ss:$4 sm:$0xff] %v5168
      %v5704 = vld.sshfl [vmem:[#allocation1] sm:$0xff pattern:$0x73625140]
      %v5705 = vld.sshfl [vmem:[#allocation1 + $0x20] sm:$0xff pattern:$0x73625140]
      %5706 = vst [vmem:[#allocation1] ss:$4 sm:$0xff] %v5169
      %5707 = vst [vmem:[%s5450] ss:$4 sm:$0xff] %v5170
      %5708 = vst [vmem:[%s5452] ss:$4 sm:$0xff] %v5171
      %5709 = vst [vmem:[%s5454] ss:$4 sm:$0xff] %v5172
      %5710 = vst [vmem:[%s5456] ss:$4 sm:$0xff] %v5173
      %5711 = vst [vmem:[%s5458] ss:$4 sm:$0xff] %v5174
      %5712 = vst [vmem:[%s5460] ss:$4 sm:$0xff] %v5175
      %5713 = vst [vmem:[%s5462] ss:$4 sm:$0xff] %v5176
      %v5714 = vld.sshfl [vmem:[#allocation1] sm:$0xff pattern:$0x73625140]
      %v5715 = vld.sshfl [vmem:[#allocation1 + $0x20] sm:$0xff pattern:$0x73625140]
      %5716 = vst [vmem:[#allocation1] ss:$4 sm:$0xff] %v5161
      %5717 = vst [vmem:[%s5450] ss:$4 sm:$0xff] %v5162
      %5718 = vst [vmem:[%s5452] ss:$4 sm:$0xff] %v5163
      %5719 = vst [vmem:[%s5454] ss:$4 sm:$0xff] %v5164
      %5720 = vst [vmem:[%s5456] ss:$4 sm:$0xff] %v5165
      %5721 = vst [vmem:[%s5458] ss:$4 sm:$0xff] %v5166
      %5722 = vst [vmem:[%s5460] ss:$4 sm:$0xff] %v5167
      %5723 = vst [vmem:[%s5462] ss:$4 sm:$0xff] %v5168
      %v5724 = vld.sshfl [vmem:[#allocation1] sm:$0xff pattern:$0x73625140]
      %v5725 = vld.sshfl [vmem:[#allocation1 + $0x20] sm:$0xff pattern:$0x73625140]
      %5726 = vst [vmem:[#allocation1] ss:$4 sm:$0xff] %v5169
      %5727 = vst [vmem:[%s5450] ss:$4 sm:$0xff] %v5170
      %5728 = vst [vmem:[%s5452] ss:$4 sm:$0xff] %v5171
      %5729 = vst [vmem:[%s5454] ss:$4 sm:$0xff] %v5172
      %5730 = vst [vmem:[%s5456] ss:$4 sm:$0xff] %v5173
      %5731 = vst [vmem:[%s5458] ss:$4 sm:$0xff] %v5174
      %5732 = vst [vmem:[%s5460] ss:$4 sm:$0xff] %v5175
      %5733 = vst [vmem:[%s5462] ss:$4 sm:$0xff] %v5176
      %v5734 = vld.sshfl [vmem:[#allocation1] sm:$0xff pattern:$0x73625140]
      %v5735 = vld.sshfl [vmem:[#allocation1 + $0x20] sm:$0xff pattern:$0x73625140]
      %5736 = vst [vmem:[#allocation1] ss:$4 sm:$0xff] %v5177
      %5737 = vst [vmem:[%s5450] ss:$4 sm:$0xff] %v5178
      %5738 = vst [vmem:[%s5452] ss:$4 sm:$0xff] %v5179
      %5739 = vst [vmem:[%s5454] ss:$4 sm:$0xff] %v5180
      %5740 = vst [vmem:[%s5456] ss:$4 sm:$0xff] %v5181
      %5741 = vst [vmem:[%s5458] ss:$4 sm:$0xff] %v5182
      %5742 = vst [vmem:[%s5460] ss:$4 sm:$0xff] %v5183
      %5743 = vst [vmem:[%s5462] ss:$4 sm:$0xff] %v5184
      %v5744 = vld.sshfl [vmem:[#allocation1] sm:$0xff pattern:$0x73625140]
      %v5745 = vld.sshfl [vmem:[#allocation1 + $0x20] sm:$0xff pattern:$0x73625140]
      %5746 = vst [vmem:[#allocation1] ss:$4 sm:$0xff] %v5185
      %5747 = vst [vmem:[%s5450] ss:$4 sm:$0xff] %v5186
      %5748 = vst [vmem:[%s5452] ss:$4 sm:$0xff] %v5187
      %5749 = vst [vmem:[%s5454] ss:$4 sm:$0xff] %v5188
      %5750 = vst [vmem:[%s5456] ss:$4 sm:$0xff] %v5189
      %5751 = vst [vmem:[%s5458] ss:$4 sm:$0xff] %v5190
      %5752 = vst [vmem:[%s5460] ss:$4 sm:$0xff] %v5191
      %5753 = vst [vmem:[%s5462] ss:$4 sm:$0xff] %v5192
      %v5754 = vld.sshfl [vmem:[#allocation1] sm:$0xff pattern:$0x73625140]
      %v5755 = vld.sshfl [vmem:[#allocation1 + $0x20] sm:$0xff pattern:$0x73625140]
      %5756 = vst [vmem:[#allocation1] ss:$4 sm:$0xff] %v5177
      %5757 = vst [vmem:[%s5450] ss:$4 sm:$0xff] %v5178
      %5758 = vst [vmem:[%s5452] ss:$4 sm:$0xff] %v5179
      %5759 = vst [vmem:[%s5454] ss:$4 sm:$0xff] %v5180
      %5760 = vst [vmem:[%s5456] ss:$4 sm:$0xff] %v5181
      %5761 = vst [vmem:[%s5458] ss:$4 sm:$0xff] %v5182
      %5762 = vst [vmem:[%s5460] ss:$4 sm:$0xff] %v5183
      %5763 = vst [vmem:[%s5462] ss:$4 sm:$0xff] %v5184
      %v5764 = vld.sshfl [vmem:[#allocation1] sm:$0xff pattern:$0x73625140]
      %v5765 = vld.sshfl [vmem:[#allocation1 + $0x20] sm:$0xff pattern:$0x73625140]
      %5766 = vst [vmem:[#allocation1] ss:$4 sm:$0xff] %v5185
      %5767 = vst [vmem:[%s5450] ss:$4 sm:$0xff] %v5186
      %5768 = vst [vmem:[%s5452] ss:$4 sm:$0xff] %v5187
      %5769 = vst [vmem:[%s5454] ss:$4 sm:$0xff] %v5188
      %5770 = vst [vmem:[%s5456] ss:$4 sm:$0xff] %v5189
      %5771 = vst [vmem:[%s5458] ss:$4 sm:$0xff] %v5190
      %5772 = vst [vmem:[%s5460] ss:$4 sm:$0xff] %v5191
      %5773 = vst [vmem:[%s5462] ss:$4 sm:$0xff] %v5192
      %v5774 = vld.sshfl [vmem:[#allocation1] sm:$0xff pattern:$0x73625140]
      %v5775 = vld.sshfl [vmem:[#allocation1 + $0x20] sm:$0xff pattern:$0x73625140]
      %5776 = vst [vmem:[#allocation1] ss:$4 sm:$0xff] %v5193
      %5777 = vst [vmem:[%s5450] ss:$4 sm:$0xff] %v5194
      %5778 = vst [vmem:[%s5452] ss:$4 sm:$0xff] %v5195
      %5779 = vst [vmem:[%s5454] ss:$4 sm:$0xff] %v5196
      %5780 = vst [vmem:[%s5456] ss:$4 sm:$0xff] %v5197
      %5781 = vst [vmem:[%s5458] ss:$4 sm:$0xff] %v5198
      %5782 = vst [vmem:[%s5460] ss:$4 sm:$0xff] %v5199
      %5783 = vst [vmem:[%s5462] ss:$4 sm:$0xff] %v5200
      %v5784 = vld.sshfl [vmem:[#allocation1] sm:$0xff pattern:$0x73625140]
      %v5785 = vld.sshfl [vmem:[#allocation1 + $0x20] sm:$0xff pattern:$0x73625140]
      %5786 = vst [vmem:[#allocation1] ss:$4 sm:$0xff] %v5201
      %5787 = vst [vmem:[%s5450] ss:$4 sm:$0xff] %v5202
      %5788 = vst [vmem:[%s5452] ss:$4 sm:$0xff] %v5203
      %5789 = vst [vmem:[%s5454] ss:$4 sm:$0xff] %v5204
      %5790 = vst [vmem:[%s5456] ss:$4 sm:$0xff] %v5205
      %5791 = vst [vmem:[%s5458] ss:$4 sm:$0xff] %v5206
      %5792 = vst [vmem:[%s5460] ss:$4 sm:$0xff] %v5207
      %5793 = vst [vmem:[%s5462] ss:$4 sm:$0xff] %v5208
      %v5794 = vld.sshfl [vmem:[#allocation1] sm:$0xff pattern:$0x73625140]
      %v5795 = vld.sshfl [vmem:[#allocation1 + $0x20] sm:$0xff pattern:$0x73625140]
      %5796 = vst [vmem:[#allocation1] ss:$4 sm:$0xff] %v5193
      %5797 = vst [vmem:[%s5450] ss:$4 sm:$0xff] %v5194
      %5798 = vst [vmem:[%s5452] ss:$4 sm:$0xff] %v5195
      %5799 = vst [vmem:[%s5454] ss:$4 sm:$0xff] %v5196
      %5800 = vst [vmem:[%s5456] ss:$4 sm:$0xff] %v5197
      %5801 = vst [vmem:[%s5458] ss:$4 sm:$0xff] %v5198
      %5802 = vst [vmem:[%s5460] ss:$4 sm:$0xff] %v5199
      %5803 = vst [vmem:[%s5462] ss:$4 sm:$0xff] %v5200
      %v5804 = vld.sshfl [vmem:[#allocation1] sm:$0xff pattern:$0x73625140]
      %v5805 = vld.sshfl [vmem:[#allocation1 + $0x20] sm:$0xff pattern:$0x73625140]
      %5806 = vst [vmem:[#allocation1] ss:$4 sm:$0xff] %v5201
      %5807 = vst [vmem:[%s5450] ss:$4 sm:$0xff] %v5202
      %5808 = vst [vmem:[%s5452] ss:$4 sm:$0xff] %v5203
      %5809 = vst [vmem:[%s5454] ss:$4 sm:$0xff] %v5204
      %5810 = vst [vmem:[%s5456] ss:$4 sm:$0xff] %v5205
      %5811 = vst [vmem:[%s5458] ss:$4 sm:$0xff] %v5206
      %5812 = vst [vmem:[%s5460] ss:$4 sm:$0xff] %v5207
      %5813 = vst [vmem:[%s5462] ss:$4 sm:$0xff] %v5208
      %v5814 = vld.sshfl [vmem:[#allocation1] sm:$0xff pattern:$0x73625140]
      %v5815 = vld.sshfl [vmem:[#allocation1 + $0x20] sm:$0xff pattern:$0x73625140]
      %5816 = vst [vmem:[#allocation1] ss:$4 sm:$0xff] %v5209
      %5817 = vst [vmem:[%s5450] ss:$4 sm:$0xff] %v5210
      %5818 = vst [vmem:[%s5452] ss:$4 sm:$0xff] %v5211
      %5819 = vst [vmem:[%s5454] ss:$4 sm:$0xff] %v5212
      %5820 = vst [vmem:[%s5456] ss:$4 sm:$0xff] %v5213
      %5821 = vst [vmem:[%s5458] ss:$4 sm:$0xff] %v5214
      %5822 = vst [vmem:[%s5460] ss:$4 sm:$0xff] %v5215
      %5823 = vst [vmem:[%s5462] ss:$4 sm:$0xff] %v5216
      %v5824 = vld.sshfl [vmem:[#allocation1] sm:$0xff pattern:$0x73625140]
      %v5825 = vld.sshfl [vmem:[#allocation1 + $0x20] sm:$0xff pattern:$0x73625140]
      %5826 = vst [vmem:[#allocation1] ss:$4 sm:$0xff] %v5217
      %5827 = vst [vmem:[%s5450] ss:$4 sm:$0xff] %v5218
      %5828 = vst [vmem:[%s5452] ss:$4 sm:$0xff] %v5219
      %5829 = vst [vmem:[%s5454] ss:$4 sm:$0xff] %v5220
      %5830 = vst [vmem:[%s5456] ss:$4 sm:$0xff] %v5221
      %5831 = vst [vmem:[%s5458] ss:$4 sm:$0xff] %v5222
      %5832 = vst [vmem:[%s5460] ss:$4 sm:$0xff] %v5223
      %5833 = vst [vmem:[%s5462] ss:$4 sm:$0xff] %v5224
      %v5834 = vld.sshfl [vmem:[#allocation1] sm:$0xff pattern:$0x73625140]
      %v5835 = vld.sshfl [vmem:[#allocation1 + $0x20] sm:$0xff pattern:$0x73625140]
      %5836 = vst [vmem:[#allocation1] ss:$4 sm:$0xff] %v5209
      %5837 = vst [vmem:[%s5450] ss:$4 sm:$0xff] %v5210
      %5838 = vst [vmem:[%s5452] ss:$4 sm:$0xff] %v5211
      %5839 = vst [vmem:[%s5454] ss:$4 sm:$0xff] %v5212
      %5840 = vst [vmem:[%s5456] ss:$4 sm:$0xff] %v5213
      %5841 = vst [vmem:[%s5458] ss:$4 sm:$0xff] %v5214
      %5842 = vst [vmem:[%s5460] ss:$4 sm:$0xff] %v5215
      %5843 = vst [vmem:[%s5462] ss:$4 sm:$0xff] %v5216
      %v5844 = vld.sshfl [vmem:[#allocation1] sm:$0xff pattern:$0x73625140]
      %v5845 = vld.sshfl [vmem:[#allocation1 + $0x20] sm:$0xff pattern:$0x73625140]
      %5846 = vst [vmem:[#allocation1] ss:$4 sm:$0xff] %v5217
      %5847 = vst [vmem:[%s5450] ss:$4 sm:$0xff] %v5218
      %5848 = vst [vmem:[%s5452] ss:$4 sm:$0xff] %v5219
      %5849 = vst [vmem:[%s5454] ss:$4 sm:$0xff] %v5220
      %5850 = vst [vmem:[%s5456] ss:$4 sm:$0xff] %v5221
      %5851 = vst [vmem:[%s5458] ss:$4 sm:$0xff] %v5222
      %5852 = vst [vmem:[%s5460] ss:$4 sm:$0xff] %v5223
      %5853 = vst [vmem:[%s5462] ss:$4 sm:$0xff] %v5224
      %v5854 = vld.sshfl [vmem:[#allocation1] sm:$0xff pattern:$0x73625140]
      %v5855 = vld.sshfl [vmem:[#allocation1 + $0x20] sm:$0xff pattern:$0x73625140]
      %5856 = vst [vmem:[#allocation1] ss:$4 sm:$0xff] %v5225
      %5857 = vst [vmem:[%s5450] ss:$4 sm:$0xff] %v5226
      %5858 = vst [vmem:[%s5452] ss:$4 sm:$0xff] %v5227
      %5859 = vst [vmem:[%s5454] ss:$4 sm:$0xff] %v5228
      %5860 = vst [vmem:[%s5456] ss:$4 sm:$0xff] %v5229
      %5861 = vst [vmem:[%s5458] ss:$4 sm:$0xff] %v5230
      %5862 = vst [vmem:[%s5460] ss:$4 sm:$0xff] %v5231
      %5863 = vst [vmem:[%s5462] ss:$4 sm:$0xff] %v5232
      %v5864 = vld.sshfl [vmem:[#allocation1] sm:$0xff pattern:$0x73625140]
      %v5865 = vld.sshfl [vmem:[#allocation1 + $0x20] sm:$0xff pattern:$0x73625140]
      %5866 = vst [vmem:[#allocation1] ss:$4 sm:$0xff] %v5233
      %5867 = vst [vmem:[%s5450] ss:$4 sm:$0xff] %v5234
      %5868 = vst [vmem:[%s5452] ss:$4 sm:$0xff] %v5235
      %5869 = vst [vmem:[%s5454] ss:$4 sm:$0xff] %v5236
      %5870 = vst [vmem:[%s5456] ss:$4 sm:$0xff] %v5237
      %5871 = vst [vmem:[%s5458] ss:$4 sm:$0xff] %v5238
      %5872 = vst [vmem:[%s5460] ss:$4 sm:$0xff] %v5239
      %5873 = vst [vmem:[%s5462] ss:$4 sm:$0xff] %v5240
      %v5874 = vld.sshfl [vmem:[#allocation1] sm:$0xff pattern:$0x73625140]
      %v5875 = vld.sshfl [vmem:[#allocation1 + $0x20] sm:$0xff pattern:$0x73625140]
      %5876 = vst [vmem:[#allocation1] ss:$4 sm:$0xff] %v5225
      %5877 = vst [vmem:[%s5450] ss:$4 sm:$0xff] %v5226
      %5878 = vst [vmem:[%s5452] ss:$4 sm:$0xff] %v5227
      %5879 = vst [vmem:[%s5454] ss:$4 sm:$0xff] %v5228
      %5880 = vst [vmem:[%s5456] ss:$4 sm:$0xff] %v5229
      %5881 = vst [vmem:[%s5458] ss:$4 sm:$0xff] %v5230
      %5882 = vst [vmem:[%s5460] ss:$4 sm:$0xff] %v5231
      %5883 = vst [vmem:[%s5462] ss:$4 sm:$0xff] %v5232
      %v5884 = vld.sshfl [vmem:[#allocation1] sm:$0xff pattern:$0x73625140]
      %v5885 = vld.sshfl [vmem:[#allocation1 + $0x20] sm:$0xff pattern:$0x73625140]
      %5886 = vst [vmem:[#allocation1] ss:$4 sm:$0xff] %v5233
      %5887 = vst [vmem:[%s5450] ss:$4 sm:$0xff] %v5234
      %5888 = vst [vmem:[%s5452] ss:$4 sm:$0xff] %v5235
      %5889 = vst [vmem:[%s5454] ss:$4 sm:$0xff] %v5236
      %5890 = vst [vmem:[%s5456] ss:$4 sm:$0xff] %v5237
      %5891 = vst [vmem:[%s5458] ss:$4 sm:$0xff] %v5238
      %5892 = vst [vmem:[%s5460] ss:$4 sm:$0xff] %v5239
      %5893 = vst [vmem:[%s5462] ss:$4 sm:$0xff] %v5240
      %v5894 = vld.sshfl [vmem:[#allocation1] sm:$0xff pattern:$0x73625140]
      %v5895 = vld.sshfl [vmem:[#allocation1 + $0x20] sm:$0xff pattern:$0x73625140]
      %5896 = vst [vmem:[#allocation1] ss:$4 sm:$0xff] %v5241
      %5897 = vst [vmem:[%s5450] ss:$4 sm:$0xff] %v5242
      %5898 = vst [vmem:[%s5452] ss:$4 sm:$0xff] %v5243
      %5899 = vst [vmem:[%s5454] ss:$4 sm:$0xff] %v5244
      %5900 = vst [vmem:[%s5456] ss:$4 sm:$0xff] %v5245
      %5901 = vst [vmem:[%s5458] ss:$4 sm:$0xff] %v5246
      %5902 = vst [vmem:[%s5460] ss:$4 sm:$0xff] %v5247
      %5903 = vst [vmem:[%s5462] ss:$4 sm:$0xff] %v5248
      %v5904 = vld.sshfl [vmem:[#allocation1] sm:$0xff pattern:$0x73625140]
      %v5905 = vld.sshfl [vmem:[#allocation1 + $0x20] sm:$0xff pattern:$0x73625140]
      %5906 = vst [vmem:[#allocation1] ss:$4 sm:$0xff] %v5249
      %5907 = vst [vmem:[%s5450] ss:$4 sm:$0xff] %v5250
      %5908 = vst [vmem:[%s5452] ss:$4 sm:$0xff] %v5251
      %5909 = vst [vmem:[%s5454] ss:$4 sm:$0xff] %v5252
      %5910 = vst [vmem:[%s5456] ss:$4 sm:$0xff] %v5253
      %5911 = vst [vmem:[%s5458] ss:$4 sm:$0xff] %v5254
      %5912 = vst [vmem:[%s5460] ss:$4 sm:$0xff] %v5255
      %5913 = vst [vmem:[%s5462] ss:$4 sm:$0xff] %v5256
      %v5914 = vld.sshfl [vmem:[#allocation1] sm:$0xff pattern:$0x73625140]
      %v5915 = vld.sshfl [vmem:[#allocation1 + $0x20] sm:$0xff pattern:$0x73625140]
      %5916 = vst [vmem:[#allocation1] ss:$4 sm:$0xff] %v5241
      %5917 = vst [vmem:[%s5450] ss:$4 sm:$0xff] %v5242
      %5918 = vst [vmem:[%s5452] ss:$4 sm:$0xff] %v5243
      %5919 = vst [vmem:[%s5454] ss:$4 sm:$0xff] %v5244
      %5920 = vst [vmem:[%s5456] ss:$4 sm:$0xff] %v5245
      %5921 = vst [vmem:[%s5458] ss:$4 sm:$0xff] %v5246
      %5922 = vst [vmem:[%s5460] ss:$4 sm:$0xff] %v5247
      %5923 = vst [vmem:[%s5462] ss:$4 sm:$0xff] %v5248
      %v5924 = vld.sshfl [vmem:[#allocation1] sm:$0xff pattern:$0x73625140]
      %v5925 = vld.sshfl [vmem:[#allocation1 + $0x20] sm:$0xff pattern:$0x73625140]
      %5926 = vst [vmem:[#allocation1] ss:$4 sm:$0xff] %v5249
      %5927 = vst [vmem:[%s5450] ss:$4 sm:$0xff] %v5250
      %5928 = vst [vmem:[%s5452] ss:$4 sm:$0xff] %v5251
      %5929 = vst [vmem:[%s5454] ss:$4 sm:$0xff] %v5252
      %5930 = vst [vmem:[%s5456] ss:$4 sm:$0xff] %v5253
      %5931 = vst [vmem:[%s5458] ss:$4 sm:$0xff] %v5254
      %5932 = vst [vmem:[%s5460] ss:$4 sm:$0xff] %v5255
      %5933 = vst [vmem:[%s5462] ss:$4 sm:$0xff] %v5256
      %v5934 = vld.sshfl [vmem:[#allocation1] sm:$0xff pattern:$0x73625140]
      %v5935 = vld.sshfl [vmem:[#allocation1 + $0x20] sm:$0xff pattern:$0x73625140]
      %5936 = vst [vmem:[#allocation1] ss:$4 sm:$0xff] %v5257
      %5937 = vst [vmem:[%s5450] ss:$4 sm:$0xff] %v5258
      %5938 = vst [vmem:[%s5452] ss:$4 sm:$0xff] %v5259
      %5939 = vst [vmem:[%s5454] ss:$4 sm:$0xff] %v5260
      %5940 = vst [vmem:[%s5456] ss:$4 sm:$0xff] %v5261
      %5941 = vst [vmem:[%s5458] ss:$4 sm:$0xff] %v5262
      %5942 = vst [vmem:[%s5460] ss:$4 sm:$0xff] %v5263
      %5943 = vst [vmem:[%s5462] ss:$4 sm:$0xff] %v5264
      %v5944 = vld.sshfl [vmem:[#allocation1] sm:$0xff pattern:$0x73625140]
      %v5945 = vld.sshfl [vmem:[#allocation1 + $0x20] sm:$0xff pattern:$0x73625140]
      %5946 = vst [vmem:[#allocation1] ss:$4 sm:$0xff] %v5265
      %5947 = vst [vmem:[%s5450] ss:$4 sm:$0xff] %v5266
      %5948 = vst [vmem:[%s5452] ss:$4 sm:$0xff] %v5267
      %5949 = vst [vmem:[%s5454] ss:$4 sm:$0xff] %v5268
      %5950 = vst [vmem:[%s5456] ss:$4 sm:$0xff] %v5269
      %5951 = vst [vmem:[%s5458] ss:$4 sm:$0xff] %v5270
      %5952 = vst [vmem:[%s5460] ss:$4 sm:$0xff] %v5271
      %5953 = vst [vmem:[%s5462] ss:$4 sm:$0xff] %v5272
      %v5954 = vld.sshfl [vmem:[#allocation1] sm:$0xff pattern:$0x73625140]
      %v5955 = vld.sshfl [vmem:[#allocation1 + $0x20] sm:$0xff pattern:$0x73625140]
      %5956 = vst [vmem:[#allocation1] ss:$4 sm:$0xff] %v5257
      %5957 = vst [vmem:[%s5450] ss:$4 sm:$0xff] %v5258
      %5958 = vst [vmem:[%s5452] ss:$4 sm:$0xff] %v5259
      %5959 = vst [vmem:[%s5454] ss:$4 sm:$0xff] %v5260
      %5960 = vst [vmem:[%s5456] ss:$4 sm:$0xff] %v5261
      %5961 = vst [vmem:[%s5458] ss:$4 sm:$0xff] %v5262
      %5962 = vst [vmem:[%s5460] ss:$4 sm:$0xff] %v5263
      %5963 = vst [vmem:[%s5462] ss:$4 sm:$0xff] %v5264
      %v5964 = vld.sshfl [vmem:[#allocation1] sm:$0xff pattern:$0x73625140]
      %v5965 = vld.sshfl [vmem:[#allocation1 + $0x20] sm:$0xff pattern:$0x73625140]
      %5966 = vst [vmem:[#allocation1] ss:$4 sm:$0xff] %v5265
      %5967 = vst [vmem:[%s5450] ss:$4 sm:$0xff] %v5266
      %5968 = vst [vmem:[%s5452] ss:$4 sm:$0xff] %v5267
      %5969 = vst [vmem:[%s5454] ss:$4 sm:$0xff] %v5268
      %5970 = vst [vmem:[%s5456] ss:$4 sm:$0xff] %v5269
      %5971 = vst [vmem:[%s5458] ss:$4 sm:$0xff] %v5270
      %5972 = vst [vmem:[%s5460] ss:$4 sm:$0xff] %v5271
      %5973 = vst [vmem:[%s5462] ss:$4 sm:$0xff] %v5272
      %v5974 = vld.sshfl [vmem:[#allocation1] sm:$0xff pattern:$0x73625140]
      %v5975 = vld.sshfl [vmem:[#allocation1 + $0x20] sm:$0xff pattern:$0x73625140]
      %5976 = vst [vmem:[#allocation1] ss:$4 sm:$0xff] %v5273
      %5977 = vst [vmem:[%s5450] ss:$4 sm:$0xff] %v5274
      %5978 = vst [vmem:[%s5452] ss:$4 sm:$0xff] %v5275
      %5979 = vst [vmem:[%s5454] ss:$4 sm:$0xff] %v5276
      %5980 = vst [vmem:[%s5456] ss:$4 sm:$0xff] %v5277
      %5981 = vst [vmem:[%s5458] ss:$4 sm:$0xff] %v5278
      %5982 = vst [vmem:[%s5460] ss:$4 sm:$0xff] %v5279
      %5983 = vst [vmem:[%s5462] ss:$4 sm:$0xff] %v5280
      %v5984 = vld.sshfl [vmem:[#allocation1] sm:$0xff pattern:$0x73625140]
      %v5985 = vld.sshfl [vmem:[#allocation1 + $0x20] sm:$0xff pattern:$0x73625140]
      %5986 = vst [vmem:[#allocation1] ss:$4 sm:$0xff] %v5281
      %5987 = vst [vmem:[%s5450] ss:$4 sm:$0xff] %v5282
      %5988 = vst [vmem:[%s5452] ss:$4 sm:$0xff] %v5283
      %5989 = vst [vmem:[%s5454] ss:$4 sm:$0xff] %v5284
      %5990 = vst [vmem:[%s5456] ss:$4 sm:$0xff] %v5285
      %5991 = vst [vmem:[%s5458] ss:$4 sm:$0xff] %v5286
      %5992 = vst [vmem:[%s5460] ss:$4 sm:$0xff] %v5287
      %5993 = vst [vmem:[%s5462] ss:$4 sm:$0xff] %v5288
      %v5994 = vld.sshfl [vmem:[#allocation1] sm:$0xff pattern:$0x73625140]
      %v5995 = vld.sshfl [vmem:[#allocation1 + $0x20] sm:$0xff pattern:$0x73625140]
      %5996 = vst [vmem:[#allocation1] ss:$4 sm:$0xff] %v5273
      %5997 = vst [vmem:[%s5450] ss:$4 sm:$0xff] %v5274
      %5998 = vst [vmem:[%s5452] ss:$4 sm:$0xff] %v5275
      %5999 = vst [vmem:[%s5454] ss:$4 sm:$0xff] %v5276
      %6000 = vst [vmem:[%s5456] ss:$4 sm:$0xff] %v5277
      %6001 = vst [vmem:[%s5458] ss:$4 sm:$0xff] %v5278
      %6002 = vst [vmem:[%s5460] ss:$4 sm:$0xff] %v5279
      %6003 = vst [vmem:[%s5462] ss:$4 sm:$0xff] %v5280
      %v6004 = vld.sshfl [vmem:[#allocation1] sm:$0xff pattern:$0x73625140]
      %v6005 = vld.sshfl [vmem:[#allocation1 + $0x20] sm:$0xff pattern:$0x73625140]
      %6006 = vst [vmem:[#allocation1] ss:$4 sm:$0xff] %v5281
      %6007 = vst [vmem:[%s5450] ss:$4 sm:$0xff] %v5282
      %6008 = vst [vmem:[%s5452] ss:$4 sm:$0xff] %v5283
      %6009 = vst [vmem:[%s5454] ss:$4 sm:$0xff] %v5284
      %6010 = vst [vmem:[%s5456] ss:$4 sm:$0xff] %v5285
      %6011 = vst [vmem:[%s5458] ss:$4 sm:$0xff] %v5286
      %6012 = vst [vmem:[%s5460] ss:$4 sm:$0xff] %v5287
      %6013 = vst [vmem:[%s5462] ss:$4 sm:$0xff] %v5288
      %v6014 = vld.sshfl [vmem:[#allocation1] sm:$0xff pattern:$0x73625140]
      %v6015 = vld.sshfl [vmem:[#allocation1 + $0x20] sm:$0xff pattern:$0x73625140]
      %6016 = vst [vmem:[#allocation1] ss:$4 sm:$0xff] %v5289
      %6017 = vst [vmem:[%s5450] ss:$4 sm:$0xff] %v5290
      %6018 = vst [vmem:[%s5452] ss:$4 sm:$0xff] %v5291
      %6019 = vst [vmem:[%s5454] ss:$4 sm:$0xff] %v5292
      %6020 = vst [vmem:[%s5456] ss:$4 sm:$0xff] %v5293
      %6021 = vst [vmem:[%s5458] ss:$4 sm:$0xff] %v5294
      %6022 = vst [vmem:[%s5460] ss:$4 sm:$0xff] %v5295
      %6023 = vst [vmem:[%s5462] ss:$4 sm:$0xff] %v5296
      %v6024 = vld.sshfl [vmem:[#allocation1] sm:$0xff pattern:$0x73625140]
      %v6025 = vld.sshfl [vmem:[#allocation1 + $0x20] sm:$0xff pattern:$0x73625140]
      %6026 = vst [vmem:[#allocation1] ss:$4 sm:$0xff] %v5297
      %6027 = vst [vmem:[%s5450] ss:$4 sm:$0xff] %v5298
      %6028 = vst [vmem:[%s5452] ss:$4 sm:$0xff] %v5299
      %6029 = vst [vmem:[%s5454] ss:$4 sm:$0xff] %v5300
      %6030 = vst [vmem:[%s5456] ss:$4 sm:$0xff] %v5301
      %6031 = vst [vmem:[%s5458] ss:$4 sm:$0xff] %v5302
      %6032 = vst [vmem:[%s5460] ss:$4 sm:$0xff] %v5303
      %6033 = vst [vmem:[%s5462] ss:$4 sm:$0xff] %v5304
      %v6034 = vld.sshfl [vmem:[#allocation1] sm:$0xff pattern:$0x73625140]
      %v6035 = vld.sshfl [vmem:[#allocation1 + $0x20] sm:$0xff pattern:$0x73625140]
      %6036 = vst [vmem:[#allocation1] ss:$4 sm:$0xff] %v5289
      %6037 = vst [vmem:[%s5450] ss:$4 sm:$0xff] %v5290
      %6038 = vst [vmem:[%s5452] ss:$4 sm:$0xff] %v5291
      %6039 = vst [vmem:[%s5454] ss:$4 sm:$0xff] %v5292
      %6040 = vst [vmem:[%s5456] ss:$4 sm:$0xff] %v5293
      %6041 = vst [vmem:[%s5458] ss:$4 sm:$0xff] %v5294
      %6042 = vst [vmem:[%s5460] ss:$4 sm:$0xff] %v5295
      %6043 = vst [vmem:[%s5462] ss:$4 sm:$0xff] %v5296
      %v6044 = vld.sshfl [vmem:[#allocation1] sm:$0xff pattern:$0x73625140]
      %v6045 = vld.sshfl [vmem:[#allocation1 + $0x20] sm:$0xff pattern:$0x73625140]
      %6046 = vst [vmem:[#allocation1] ss:$4 sm:$0xff] %v5297
      %6047 = vst [vmem:[%s5450] ss:$4 sm:$0xff] %v5298
      %6048 = vst [vmem:[%s5452] ss:$4 sm:$0xff] %v5299
      %6049 = vst [vmem:[%s5454] ss:$4 sm:$0xff] %v5300
      %6050 = vst [vmem:[%s5456] ss:$4 sm:$0xff] %v5301
      %6051 = vst [vmem:[%s5458] ss:$4 sm:$0xff] %v5302
      %6052 = vst [vmem:[%s5460] ss:$4 sm:$0xff] %v5303
      %6053 = vst [vmem:[%s5462] ss:$4 sm:$0xff] %v5304
      %v6054 = vld.sshfl [vmem:[#allocation1] sm:$0xff pattern:$0x73625140]
      %v6055 = vld.sshfl [vmem:[#allocation1 + $0x20] sm:$0xff pattern:$0x73625140]
      %6056 = vst [vmem:[#allocation1] ss:$4 sm:$0xff] %v5305
      %6057 = vst [vmem:[%s5450] ss:$4 sm:$0xff] %v5306
      %6058 = vst [vmem:[%s5452] ss:$4 sm:$0xff] %v5307
      %6059 = vst [vmem:[%s5454] ss:$4 sm:$0xff] %v5308
      %6060 = vst [vmem:[%s5456] ss:$4 sm:$0xff] %v5309
      %6061 = vst [vmem:[%s5458] ss:$4 sm:$0xff] %v5310
      %6062 = vst [vmem:[%s5460] ss:$4 sm:$0xff] %v5311
      %6063 = vst [vmem:[%s5462] ss:$4 sm:$0xff] %v5312
      %v6064 = vld.sshfl [vmem:[#allocation1] sm:$0xff pattern:$0x73625140]
      %v6065 = vld.sshfl [vmem:[#allocation1 + $0x20] sm:$0xff pattern:$0x73625140]
      %6066 = vst [vmem:[#allocation1] ss:$4 sm:$0xff] %v5313
      %6067 = vst [vmem:[%s5450] ss:$4 sm:$0xff] %v5314
      %6068 = vst [vmem:[%s5452] ss:$4 sm:$0xff] %v5315
      %6069 = vst [vmem:[%s5454] ss:$4 sm:$0xff] %v5316
      %6070 = vst [vmem:[%s5456] ss:$4 sm:$0xff] %v5317
      %6071 = vst [vmem:[%s5458] ss:$4 sm:$0xff] %v5318
      %6072 = vst [vmem:[%s5460] ss:$4 sm:$0xff] %v5319
      %6073 = vst [vmem:[%s5462] ss:$4 sm:$0xff] %v5320
      %v6074 = vld.sshfl [vmem:[#allocation1] sm:$0xff pattern:$0x73625140]
      %v6075 = vld.sshfl [vmem:[#allocation1 + $0x20] sm:$0xff pattern:$0x73625140]
      %6076 = vst [vmem:[#allocation1] ss:$4 sm:$0xff] %v5305
      %6077 = vst [vmem:[%s5450] ss:$4 sm:$0xff] %v5306
      %6078 = vst [vmem:[%s5452] ss:$4 sm:$0xff] %v5307
      %6079 = vst [vmem:[%s5454] ss:$4 sm:$0xff] %v5308
      %6080 = vst [vmem:[%s5456] ss:$4 sm:$0xff] %v5309
      %6081 = vst [vmem:[%s5458] ss:$4 sm:$0xff] %v5310
      %6082 = vst [vmem:[%s5460] ss:$4 sm:$0xff] %v5311
      %6083 = vst [vmem:[%s5462] ss:$4 sm:$0xff] %v5312
      %v6084 = vld.sshfl [vmem:[#allocation1] sm:$0xff pattern:$0x73625140]
      %v6085 = vld.sshfl [vmem:[#allocation1 + $0x20] sm:$0xff pattern:$0x73625140]
      %6086 = vst [vmem:[#allocation1] ss:$4 sm:$0xff] %v5313
      %6087 = vst [vmem:[%s5450] ss:$4 sm:$0xff] %v5314
      %6088 = vst [vmem:[%s5452] ss:$4 sm:$0xff] %v5315
      %6089 = vst [vmem:[%s5454] ss:$4 sm:$0xff] %v5316
      %6090 = vst [vmem:[%s5456] ss:$4 sm:$0xff] %v5317
      %6091 = vst [vmem:[%s5458] ss:$4 sm:$0xff] %v5318
      %6092 = vst [vmem:[%s5460] ss:$4 sm:$0xff] %v5319
      %6093 = vst [vmem:[%s5462] ss:$4 sm:$0xff] %v5320
      %v6094 = vld.sshfl [vmem:[#allocation1] sm:$0xff pattern:$0x73625140]
      %v6095 = vld.sshfl [vmem:[#allocation1 + $0x20] sm:$0xff pattern:$0x73625140]
      %6096 = vrot.lane.b32.xlu0 %v5464, 4
      %v6097 = vpop.permute.xlu0 %6096
      %6098 = vrot.lane.b32.xlu0 %v5465, 4
      %v6099 = vpop.permute.xlu0 %6098
      %6100 = vrot.lane.b32.xlu0 %v5474, 4
      %v6101 = vpop.permute.xlu0 %6100
      %6102 = vrot.lane.b32.xlu0 %v5475, 4
      %v6103 = vpop.permute.xlu0 %6102
      %6104 = vrot.lane.b32.xlu0 %v5484, 4
      %v6105 = vpop.permute.xlu0 %6104
      %6106 = vrot.lane.b32.xlu0 %v5485, 4
      %v6107 = vpop.permute.xlu0 %6106
      %6108 = vrot.lane.b32.xlu0 %v5494, 4
      %v6109 = vpop.permute.xlu0 %6108
      %6110 = vrot.lane.b32.xlu0 %v5495, 4
      %v6111 = vpop.permute.xlu0 %6110
      %6112 = vrot.lane.b32.xlu0 %v5504, 4
      %v6113 = vpop.permute.xlu0 %6112
      %6114 = vrot.lane.b32.xlu0 %v5505, 4
      %v6115 = vpop.permute.xlu0 %6114
      %6116 = vrot.lane.b32.xlu0 %v5514, 4
      %v6117 = vpop.permute.xlu0 %6116
      %6118 = vrot.lane.b32.xlu0 %v5515, 4
      %v6119 = vpop.permute.xlu0 %6118
      %6120 = vrot.lane.b32.xlu0 %v5524, 4
      %v6121 = vpop.permute.xlu0 %6120
      %6122 = vrot.lane.b32.xlu0 %v5525, 4
      %v6123 = vpop.permute.xlu0 %6122
      %6124 = vrot.lane.b32.xlu0 %v5534, 4
      %v6125 = vpop.permute.xlu0 %6124
      %6126 = vrot.lane.b32.xlu0 %v5535, 4
      %v6127 = vpop.permute.xlu0 %6126
      %6128 = vrot.lane.b32.xlu0 %v5544, 4
      %v6129 = vpop.permute.xlu0 %6128
      %6130 = vrot.lane.b32.xlu0 %v5545, 4
      %v6131 = vpop.permute.xlu0 %6130
      %6132 = vrot.lane.b32.xlu0 %v5554, 4
      %v6133 = vpop.permute.xlu0 %6132
      %6134 = vrot.lane.b32.xlu0 %v5555, 4
      %v6135 = vpop.permute.xlu0 %6134
      %6136 = vrot.lane.b32.xlu0 %v5564, 4
      %v6137 = vpop.permute.xlu0 %6136
      %6138 = vrot.lane.b32.xlu0 %v5565, 4
      %v6139 = vpop.permute.xlu0 %6138
      %6140 = vrot.lane.b32.xlu0 %v5574, 4
      %v6141 = vpop.permute.xlu0 %6140
      %6142 = vrot.lane.b32.xlu0 %v5575, 4
      %v6143 = vpop.permute.xlu0 %6142
      %6144 = vrot.lane.b32.xlu0 %v5584, 4
      %v6145 = vpop.permute.xlu0 %6144
      %6146 = vrot.lane.b32.xlu0 %v5585, 4
      %v6147 = vpop.permute.xlu0 %6146
      %6148 = vrot.lane.b32.xlu0 %v5594, 4
      %v6149 = vpop.permute.xlu0 %6148
      %6150 = vrot.lane.b32.xlu0 %v5595, 4
      %v6151 = vpop.permute.xlu0 %6150
      %6152 = vrot.lane.b32.xlu0 %v5604, 4
      %v6153 = vpop.permute.xlu0 %6152
      %6154 = vrot.lane.b32.xlu0 %v5605, 4
      %v6155 = vpop.permute.xlu0 %6154
      %6156 = vrot.lane.b32.xlu0 %v5614, 4
      %v6157 = vpop.permute.xlu0 %6156
      %6158 = vrot.lane.b32.xlu0 %v5615, 4
      %v6159 = vpop.permute.xlu0 %6158
      %6160 = vrot.lane.b32.xlu0 %v5624, 4
      %v6161 = vpop.permute.xlu0 %6160
      %6162 = vrot.lane.b32.xlu0 %v5625, 4
      %v6163 = vpop.permute.xlu0 %6162
      %6164 = vrot.lane.b32.xlu0 %v5634, 4
      %v6165 = vpop.permute.xlu0 %6164
      %6166 = vrot.lane.b32.xlu0 %v5635, 4
      %v6167 = vpop.permute.xlu0 %6166
      %6168 = vrot.lane.b32.xlu0 %v5644, 4
      %v6169 = vpop.permute.xlu0 %6168
      %6170 = vrot.lane.b32.xlu0 %v5645, 4
      %v6171 = vpop.permute.xlu0 %6170
      %6172 = vrot.lane.b32.xlu0 %v5654, 4
      %v6173 = vpop.permute.xlu0 %6172
      %6174 = vrot.lane.b32.xlu0 %v5655, 4
      %v6175 = vpop.permute.xlu0 %6174
      %6176 = vrot.lane.b32.xlu0 %v5664, 4
      %v6177 = vpop.permute.xlu0 %6176
      %6178 = vrot.lane.b32.xlu0 %v5665, 4
      %v6179 = vpop.permute.xlu0 %6178
      %6180 = vrot.lane.b32.xlu0 %v5674, 4
      %v6181 = vpop.permute.xlu0 %6180
      %6182 = vrot.lane.b32.xlu0 %v5675, 4
      %v6183 = vpop.permute.xlu0 %6182
      %6184 = vrot.lane.b32.xlu0 %v5684, 4
      %v6185 = vpop.permute.xlu0 %6184
      %6186 = vrot.lane.b32.xlu0 %v5685, 4
      %v6187 = vpop.permute.xlu0 %6186
      %6188 = vrot.lane.b32.xlu0 %v5694, 4
      %v6189 = vpop.permute.xlu0 %6188
      %6190 = vrot.lane.b32.xlu0 %v5695, 4
      %v6191 = vpop.permute.xlu0 %6190
      %6192 = vrot.lane.b32.xlu0 %v5704, 4
      %v6193 = vpop.permute.xlu0 %6192
      %6194 = vrot.lane.b32.xlu0 %v5705, 4
      %v6195 = vpop.permute.xlu0 %6194
      %6196 = vrot.lane.b32.xlu0 %v5714, 4
      %v6197 = vpop.permute.xlu0 %6196
      %6198 = vrot.lane.b32.xlu0 %v5715, 4
      %v6199 = vpop.permute.xlu0 %6198
      %6200 = vrot.lane.b32.xlu0 %v5724, 4
      %v6201 = vpop.permute.xlu0 %6200
      %6202 = vrot.lane.b32.xlu0 %v5725, 4
      %v6203 = vpop.permute.xlu0 %6202
      %6204 = vrot.lane.b32.xlu0 %v5734, 4
      %v6205 = vpop.permute.xlu0 %6204
      %6206 = vrot.lane.b32.xlu0 %v5735, 4
      %v6207 = vpop.permute.xlu0 %6206
      %6208 = vrot.lane.b32.xlu0 %v5744, 4
      %v6209 = vpop.permute.xlu0 %6208
      %6210 = vrot.lane.b32.xlu0 %v5745, 4
      %v6211 = vpop.permute.xlu0 %6210
      %6212 = vrot.lane.b32.xlu0 %v5754, 4
      %v6213 = vpop.permute.xlu0 %6212
      %6214 = vrot.lane.b32.xlu0 %v5755, 4
      %v6215 = vpop.permute.xlu0 %6214
      %6216 = vrot.lane.b32.xlu0 %v5764, 4
      %v6217 = vpop.permute.xlu0 %6216
      %6218 = vrot.lane.b32.xlu0 %v5765, 4
      %v6219 = vpop.permute.xlu0 %6218
      %6220 = vrot.lane.b32.xlu0 %v5774, 4
      %v6221 = vpop.permute.xlu0 %6220
      %6222 = vrot.lane.b32.xlu0 %v5775, 4
      %v6223 = vpop.permute.xlu0 %6222
      %6224 = vrot.lane.b32.xlu0 %v5784, 4
      %v6225 = vpop.permute.xlu0 %6224
      %6226 = vrot.lane.b32.xlu0 %v5785, 4
      %v6227 = vpop.permute.xlu0 %6226
      %6228 = vrot.lane.b32.xlu0 %v5794, 4
      %v6229 = vpop.permute.xlu0 %6228
      %6230 = vrot.lane.b32.xlu0 %v5795, 4
      %v6231 = vpop.permute.xlu0 %6230
      %6232 = vrot.lane.b32.xlu0 %v5804, 4
      %v6233 = vpop.permute.xlu0 %6232
      %6234 = vrot.lane.b32.xlu0 %v5805, 4
      %v6235 = vpop.permute.xlu0 %6234
      %6236 = vrot.lane.b32.xlu0 %v5814, 4
      %v6237 = vpop.permute.xlu0 %6236
      %6238 = vrot.lane.b32.xlu0 %v5815, 4
      %v6239 = vpop.permute.xlu0 %6238
      %6240 = vrot.lane.b32.xlu0 %v5824, 4
      %v6241 = vpop.permute.xlu0 %6240
      %6242 = vrot.lane.b32.xlu0 %v5825, 4
      %v6243 = vpop.permute.xlu0 %6242
      %6244 = vrot.lane.b32.xlu0 %v5834, 4
      %v6245 = vpop.permute.xlu0 %6244
      %6246 = vrot.lane.b32.xlu0 %v5835, 4
      %v6247 = vpop.permute.xlu0 %6246
      %6248 = vrot.lane.b32.xlu0 %v5844, 4
      %v6249 = vpop.permute.xlu0 %6248
      %6250 = vrot.lane.b32.xlu0 %v5845, 4
      %v6251 = vpop.permute.xlu0 %6250
      %6252 = vrot.lane.b32.xlu0 %v5854, 4
      %v6253 = vpop.permute.xlu0 %6252
      %6254 = vrot.lane.b32.xlu0 %v5855, 4
      %v6255 = vpop.permute.xlu0 %6254
      %6256 = vrot.lane.b32.xlu0 %v5864, 4
      %v6257 = vpop.permute.xlu0 %6256
      %6258 = vrot.lane.b32.xlu0 %v5865, 4
      %v6259 = vpop.permute.xlu0 %6258
      %6260 = vrot.lane.b32.xlu0 %v5874, 4
      %v6261 = vpop.permute.xlu0 %6260
      %6262 = vrot.lane.b32.xlu0 %v5875, 4
      %v6263 = vpop.permute.xlu0 %6262
      %6264 = vrot.lane.b32.xlu0 %v5884, 4
      %v6265 = vpop.permute.xlu0 %6264
      %6266 = vrot.lane.b32.xlu0 %v5885, 4
      %v6267 = vpop.permute.xlu0 %6266
      %6268 = vrot.lane.b32.xlu0 %v5894, 4
      %v6269 = vpop.permute.xlu0 %6268
      %6270 = vrot.lane.b32.xlu0 %v5895, 4
      %v6271 = vpop.permute.xlu0 %6270
      %6272 = vrot.lane.b32.xlu0 %v5904, 4
      %v6273 = vpop.permute.xlu0 %6272
      %6274 = vrot.lane.b32.xlu0 %v5905, 4
      %v6275 = vpop.permute.xlu0 %6274
      %6276 = vrot.lane.b32.xlu0 %v5914, 4
      %v6277 = vpop.permute.xlu0 %6276
      %6278 = vrot.lane.b32.xlu0 %v5915, 4
      %v6279 = vpop.permute.xlu0 %6278
      %6280 = vrot.lane.b32.xlu0 %v5924, 4
      %v6281 = vpop.permute.xlu0 %6280
      %6282 = vrot.lane.b32.xlu0 %v5925, 4
      %v6283 = vpop.permute.xlu0 %6282
      %6284 = vrot.lane.b32.xlu0 %v5934, 4
      %v6285 = vpop.permute.xlu0 %6284
      %6286 = vrot.lane.b32.xlu0 %v5935, 4
      %v6287 = vpop.permute.xlu0 %6286
      %6288 = vrot.lane.b32.xlu0 %v5944, 4
      %v6289 = vpop.permute.xlu0 %6288
      %6290 = vrot.lane.b32.xlu0 %v5945, 4
      %v6291 = vpop.permute.xlu0 %6290
      %6292 = vrot.lane.b32.xlu0 %v5954, 4
      %v6293 = vpop.permute.xlu0 %6292
      %6294 = vrot.lane.b32.xlu0 %v5955, 4
      %v6295 = vpop.permute.xlu0 %6294
      %6296 = vrot.lane.b32.xlu0 %v5964, 4
      %v6297 = vpop.permute.xlu0 %6296
      %6298 = vrot.lane.b32.xlu0 %v5965, 4
      %v6299 = vpop.permute.xlu0 %6298
      %6300 = vrot.lane.b32.xlu0 %v5974, 4
      %v6301 = vpop.permute.xlu0 %6300
      %6302 = vrot.lane.b32.xlu0 %v5975, 4
      %v6303 = vpop.permute.xlu0 %6302
      %6304 = vrot.lane.b32.xlu0 %v5984, 4
      %v6305 = vpop.permute.xlu0 %6304
      %6306 = vrot.lane.b32.xlu0 %v5985, 4
      %v6307 = vpop.permute.xlu0 %6306
      %6308 = vrot.lane.b32.xlu0 %v5994, 4
      %v6309 = vpop.permute.xlu0 %6308
      %6310 = vrot.lane.b32.xlu0 %v5995, 4
      %v6311 = vpop.permute.xlu0 %6310
      %6312 = vrot.lane.b32.xlu0 %v6004, 4
      %v6313 = vpop.permute.xlu0 %6312
      %6314 = vrot.lane.b32.xlu0 %v6005, 4
      %v6315 = vpop.permute.xlu0 %6314
      %6316 = vrot.lane.b32.xlu0 %v6014, 4
      %v6317 = vpop.permute.xlu0 %6316
      %6318 = vrot.lane.b32.xlu0 %v6015, 4
      %v6319 = vpop.permute.xlu0 %6318
      %6320 = vrot.lane.b32.xlu0 %v6024, 4
      %v6321 = vpop.permute.xlu0 %6320
      %6322 = vrot.lane.b32.xlu0 %v6025, 4
      %v6323 = vpop.permute.xlu0 %6322
      %6324 = vrot.lane.b32.xlu0 %v6034, 4
      %v6325 = vpop.permute.xlu0 %6324
      %6326 = vrot.lane.b32.xlu0 %v6035, 4
      %v6327 = vpop.permute.xlu0 %6326
      %6328 = vrot.lane.b32.xlu0 %v6044, 4
      %v6329 = vpop.permute.xlu0 %6328
      %6330 = vrot.lane.b32.xlu0 %v6045, 4
      %v6331 = vpop.permute.xlu0 %6330
      %6332 = vrot.lane.b32.xlu0 %v6054, 4
      %v6333 = vpop.permute.xlu0 %6332
      %6334 = vrot.lane.b32.xlu0 %v6055, 4
      %v6335 = vpop.permute.xlu0 %6334
      %6336 = vrot.lane.b32.xlu0 %v6064, 4
      %v6337 = vpop.permute.xlu0 %6336
      %6338 = vrot.lane.b32.xlu0 %v6065, 4
      %v6339 = vpop.permute.xlu0 %6338
      %6340 = vrot.lane.b32.xlu0 %v6074, 4
      %v6341 = vpop.permute.xlu0 %6340
      %6342 = vrot.lane.b32.xlu0 %v6075, 4
      %v6343 = vpop.permute.xlu0 %6342
      %6344 = vrot.lane.b32.xlu0 %v6084, 4
      %v6345 = vpop.permute.xlu0 %6344
      %6346 = vrot.lane.b32.xlu0 %v6085, 4
      %v6347 = vpop.permute.xlu0 %6346
      %6348 = vrot.lane.b32.xlu0 %v6094, 4
      %v6349 = vpop.permute.xlu0 %6348
      %6350 = vrot.lane.b32.xlu0 %v6095, 4
      %v6351 = vpop.permute.xlu0 %6350
      %vm6480 = vcmask 31744
      %v6481 = vsel %vm6480, %v5321, %v6097
      %v6482 = vsel %vm6480, %v5322, %v6099
      %v6483 = vsel %vm6480, %v5323, %v6101
      %v6484 = vsel %vm6480, %v5324, %v6103
      %v6485 = vsel %vm6480, %v5325, %v6105
      %v6486 = vsel %vm6480, %v5326, %v6107
      %v6487 = vsel %vm6480, %v5327, %v6109
      %v6488 = vsel %vm6480, %v5328, %v6111
      %v6489 = vsel %vm6480, %v5329, %v6113
      %v6490 = vsel %vm6480, %v5330, %v6115
      %v6491 = vsel %vm6480, %v5331, %v6117
      %v6492 = vsel %vm6480, %v5332, %v6119
      %v6493 = vsel %vm6480, %v5333, %v6121
      %v6494 = vsel %vm6480, %v5334, %v6123
      %v6495 = vsel %vm6480, %v5335, %v6125
      %v6496 = vsel %vm6480, %v5336, %v6127
      %v6497 = vsel %vm6480, %v5337, %v6129
      %v6498 = vsel %vm6480, %v5338, %v6131
      %v6499 = vsel %vm6480, %v5339, %v6133
      %v6500 = vsel %vm6480, %v5340, %v6135
      %v6501 = vsel %vm6480, %v5341, %v6137
      %v6502 = vsel %vm6480, %v5342, %v6139
      %v6503 = vsel %vm6480, %v5343, %v6141
      %v6504 = vsel %vm6480, %v5344, %v6143
      %v6505 = vsel %vm6480, %v5345, %v6145
      %v6506 = vsel %vm6480, %v5346, %v6147
      %v6507 = vsel %vm6480, %v5347, %v6149
      %v6508 = vsel %vm6480, %v5348, %v6151
      %v6509 = vsel %vm6480, %v5349, %v6153
      %v6510 = vsel %vm6480, %v5350, %v6155
      %v6511 = vsel %vm6480, %v5351, %v6157
      %v6512 = vsel %vm6480, %v5352, %v6159
      %v6513 = vsel %vm6480, %v5353, %v6161
      %v6514 = vsel %vm6480, %v5354, %v6163
      %v6515 = vsel %vm6480, %v5355, %v6165
      %v6516 = vsel %vm6480, %v5356, %v6167
      %v6517 = vsel %vm6480, %v5357, %v6169
      %v6518 = vsel %vm6480, %v5358, %v6171
      %v6519 = vsel %vm6480, %v5359, %v6173
      %v6520 = vsel %vm6480, %v5360, %v6175
      %v6521 = vsel %vm6480, %v5361, %v6177
      %v6522 = vsel %vm6480, %v5362, %v6179
      %v6523 = vsel %vm6480, %v5363, %v6181
      %v6524 = vsel %vm6480, %v5364, %v6183
      %v6525 = vsel %vm6480, %v5365, %v6185
      %v6526 = vsel %vm6480, %v5366, %v6187
      %v6527 = vsel %vm6480, %v5367, %v6189
      %v6528 = vsel %vm6480, %v5368, %v6191
      %v6529 = vsel %vm6480, %v5369, %v6193
      %v6530 = vsel %vm6480, %v5370, %v6195
      %v6531 = vsel %vm6480, %v5371, %v6197
      %v6532 = vsel %vm6480, %v5372, %v6199
      %v6533 = vsel %vm6480, %v5373, %v6201
      %v6534 = vsel %vm6480, %v5374, %v6203
      %v6535 = vsel %vm6480, %v5375, %v6205
      %v6536 = vsel %vm6480, %v5376, %v6207
      %v6537 = vsel %vm6480, %v5377, %v6209
      %v6538 = vsel %vm6480, %v5378, %v6211
      %v6539 = vsel %vm6480, %v5379, %v6213
      %v6540 = vsel %vm6480, %v5380, %v6215
      %v6541 = vsel %vm6480, %v5381, %v6217
      %v6542 = vsel %vm6480, %v5382, %v6219
      %v6543 = vsel %vm6480, %v5383, %v6221
      %v6544 = vsel %vm6480, %v5384, %v6223
      %v6545 = vsel %vm6480, %v5385, %v6225
      %v6546 = vsel %vm6480, %v5386, %v6227
      %v6547 = vsel %vm6480, %v5387, %v6229
      %v6548 = vsel %vm6480, %v5388, %v6231
      %v6549 = vsel %vm6480, %v5389, %v6233
      %v6550 = vsel %vm6480, %v5390, %v6235
      %v6551 = vsel %vm6480, %v5391, %v6237
      %v6552 = vsel %vm6480, %v5392, %v6239
      %v6553 = vsel %vm6480, %v5393, %v6241
      %v6554 = vsel %vm6480, %v5394, %v6243
      %v6555 = vsel %vm6480, %v5395, %v6245
      %v6556 = vsel %vm6480, %v5396, %v6247
      %v6557 = vsel %vm6480, %v5397, %v6249
      %v6558 = vsel %vm6480, %v5398, %v6251
      %v6559 = vsel %vm6480, %v5399, %v6253
      %v6560 = vsel %vm6480, %v5400, %v6255
      %v6561 = vsel %vm6480, %v5401, %v6257
      %v6562 = vsel %vm6480, %v5402, %v6259
      %v6563 = vsel %vm6480, %v5403, %v6261
      %v6564 = vsel %vm6480, %v5404, %v6263
      %v6565 = vsel %vm6480, %v5405, %v6265
      %v6566 = vsel %vm6480, %v5406, %v6267
      %v6567 = vsel %vm6480, %v5407, %v6269
      %v6568 = vsel %vm6480, %v5408, %v6271
      %v6569 = vsel %vm6480, %v5409, %v6273
      %v6570 = vsel %vm6480, %v5410, %v6275
      %v6571 = vsel %vm6480, %v5411, %v6277
      %v6572 = vsel %vm6480, %v5412, %v6279
      %v6573 = vsel %vm6480, %v5413, %v6281
      %v6574 = vsel %vm6480, %v5414, %v6283
      %v6575 = vsel %vm6480, %v5415, %v6285
      %v6576 = vsel %vm6480, %v5416, %v6287
      %v6577 = vsel %vm6480, %v5417, %v6289
      %v6578 = vsel %vm6480, %v5418, %v6291
      %v6579 = vsel %vm6480, %v5419, %v6293
      %v6580 = vsel %vm6480, %v5420, %v6295
      %v6581 = vsel %vm6480, %v5421, %v6297
      %v6582 = vsel %vm6480, %v5422, %v6299
      %v6583 = vsel %vm6480, %v5423, %v6301
      %v6584 = vsel %vm6480, %v5424, %v6303
      %v6585 = vsel %vm6480, %v5425, %v6305
      %v6586 = vsel %vm6480, %v5426, %v6307
      %v6587 = vsel %vm6480, %v5427, %v6309
      %v6588 = vsel %vm6480, %v5428, %v6311
      %v6589 = vsel %vm6480, %v5429, %v6313
      %v6590 = vsel %vm6480, %v5430, %v6315
      %v6591 = vsel %vm6480, %v5431, %v6317
      %v6592 = vsel %vm6480, %v5432, %v6319
      %v6593 = vsel %vm6480, %v5433, %v6321
      %v6594 = vsel %vm6480, %v5434, %v6323
      %v6595 = vsel %vm6480, %v5435, %v6325
      %v6596 = vsel %vm6480, %v5436, %v6327
      %v6597 = vsel %vm6480, %v5437, %v6329
      %v6598 = vsel %vm6480, %v5438, %v6331
      %v6599 = vsel %vm6480, %v5439, %v6333
      %v6600 = vsel %vm6480, %v5440, %v6335
      %v6601 = vsel %vm6480, %v5441, %v6337
      %v6602 = vsel %vm6480, %v5442, %v6339
      %v6603 = vsel %vm6480, %v5443, %v6341
      %v6604 = vsel %vm6480, %v5444, %v6343
      %v6605 = vsel %vm6480, %v5445, %v6345
      %v6606 = vsel %vm6480, %v5446, %v6347
      %v6607 = vsel %vm6480, %v5447, %v6349
      %v6608 = vsel %vm6480, %v5448, %v6351
      %6609 = vst.msk [vmem:[%s520] sm:$0xff] %vm2632, %v6481
      %6610 = vst.msk [vmem:[%s520 + $0x8] sm:$0xff] %vm2632, %v6482
      %6611 = vst.msk [vmem:[%s520 + $0x10] sm:$0xff] %vm2632, %v6483
      %6612 = vst.msk [vmem:[%s520 + $0x18] sm:$0xff] %vm2632, %v6484
      %6613 = vst.msk [vmem:[%s520 + $0x20] sm:$0xff] %vm2632, %v6485
      %6614 = vst.msk [vmem:[%s520 + $0x28] sm:$0xff] %vm2632, %v6486
      %6615 = vst.msk [vmem:[%s520 + $0x30] sm:$0xff] %vm2632, %v6487
      %6616 = vst.msk [vmem:[%s520 + $0x38] sm:$0xff] %vm2632, %v6488
      %6617 = vst.msk [vmem:[%s520 + $0x40] sm:$0xff] %vm2632, %v6489
      %6618 = vst.msk [vmem:[%s520 + $0x48] sm:$0xff] %vm2632, %v6490
      %6619 = vst.msk [vmem:[%s520 + $0x50] sm:$0xff] %vm2632, %v6491
      %6620 = vst.msk [vmem:[%s520 + $0x58] sm:$0xff] %vm2632, %v6492
      %6621 = vst.msk [vmem:[%s520 + $0x60] sm:$0xff] %vm2632, %v6493
      %6622 = vst.msk [vmem:[%s520 + $0x68] sm:$0xff] %vm2632, %v6494
      %6623 = vst.msk [vmem:[%s520 + $0x70] sm:$0xff] %vm2632, %v6495
      %6624 = vst.msk [vmem:[%s520 + $0x78] sm:$0xff] %vm2632, %v6496
      %6625 = vst.msk [vmem:[%s520 + $0x80] sm:$0xff] %vm2632, %v6497
      %6626 = vst.msk [vmem:[%s520 + $0x88] sm:$0xff] %vm2632, %v6498
      %6627 = vst.msk [vmem:[%s520 + $0x90] sm:$0xff] %vm2632, %v6499
      %6628 = vst.msk [vmem:[%s520 + $0x98] sm:$0xff] %vm2632, %v6500
      %6629 = vst.msk [vmem:[%s520 + $0xa0] sm:$0xff] %vm2632, %v6501
      %6630 = vst.msk [vmem:[%s520 + $0xa8] sm:$0xff] %vm2632, %v6502
      %6631 = vst.msk [vmem:[%s520 + $0xb0] sm:$0xff] %vm2632, %v6503
      %6632 = vst.msk [vmem:[%s520 + $0xb8] sm:$0xff] %vm2632, %v6504
      %6633 = vst.msk [vmem:[%s520 + $0xc0] sm:$0xff] %vm2632, %v6505
      %6634 = vst.msk [vmem:[%s520 + $0xc8] sm:$0xff] %vm2632, %v6506
      %6635 = vst.msk [vmem:[%s520 + $0xd0] sm:$0xff] %vm2632, %v6507
      %6636 = vst.msk [vmem:[%s520 + $0xd8] sm:$0xff] %vm2632, %v6508
      %6637 = vst.msk [vmem:[%s520 + $0xe0] sm:$0xff] %vm2632, %v6509
      %6638 = vst.msk [vmem:[%s520 + $0xe8] sm:$0xff] %vm2632, %v6510
      %6639 = vst.msk [vmem:[%s520 + $0xf0] sm:$0xff] %vm2632, %v6511
      %6640 = vst.msk [vmem:[%s520 + $0xf8] sm:$0xff] %vm2632, %v6512
      %6641 = vst.msk [vmem:[%s520 + $0x100] sm:$0xff] %vm2632, %v6513
      %6642 = vst.msk [vmem:[%s520 + $0x108] sm:$0xff] %vm2632, %v6514
      %6643 = vst.msk [vmem:[%s520 + $0x110] sm:$0xff] %vm2632, %v6515
      %6644 = vst.msk [vmem:[%s520 + $0x118] sm:$0xff] %vm2632, %v6516
      %6645 = vst.msk [vmem:[%s520 + $0x120] sm:$0xff] %vm2632, %v6517
      %6646 = vst.msk [vmem:[%s520 + $0x128] sm:$0xff] %vm2632, %v6518
      %6647 = vst.msk [vmem:[%s520 + $0x130] sm:$0xff] %vm2632, %v6519
      %6648 = vst.msk [vmem:[%s520 + $0x138] sm:$0xff] %vm2632, %v6520
      %6649 = vst.msk [vmem:[%s520 + $0x140] sm:$0xff] %vm2632, %v6521
      %6650 = vst.msk [vmem:[%s520 + $0x148] sm:$0xff] %vm2632, %v6522
      %6651 = vst.msk [vmem:[%s520 + $0x150] sm:$0xff] %vm2632, %v6523
      %6652 = vst.msk [vmem:[%s520 + $0x158] sm:$0xff] %vm2632, %v6524
      %6653 = vst.msk [vmem:[%s520 + $0x160] sm:$0xff] %vm2632, %v6525
      %6654 = vst.msk [vmem:[%s520 + $0x168] sm:$0xff] %vm2632, %v6526
      %6655 = vst.msk [vmem:[%s520 + $0x170] sm:$0xff] %vm2632, %v6527
      %6656 = vst.msk [vmem:[%s520 + $0x178] sm:$0xff] %vm2632, %v6528
      %6657 = vst.msk [vmem:[%s520 + $0x180] sm:$0xff] %vm2632, %v6529
      %6658 = vst.msk [vmem:[%s520 + $0x188] sm:$0xff] %vm2632, %v6530
      %6659 = vst.msk [vmem:[%s520 + $0x190] sm:$0xff] %vm2632, %v6531
      %6660 = vst.msk [vmem:[%s520 + $0x198] sm:$0xff] %vm2632, %v6532
      %6661 = vst.msk [vmem:[%s520 + $0x1a0] sm:$0xff] %vm2632, %v6533
      %6662 = vst.msk [vmem:[%s520 + $0x1a8] sm:$0xff] %vm2632, %v6534
      %6663 = vst.msk [vmem:[%s520 + $0x1b0] sm:$0xff] %vm2632, %v6535
      %6664 = vst.msk [vmem:[%s520 + $0x1b8] sm:$0xff] %vm2632, %v6536
      %6665 = vst.msk [vmem:[%s520 + $0x1c0] sm:$0xff] %vm2632, %v6537
      %6666 = vst.msk [vmem:[%s520 + $0x1c8] sm:$0xff] %vm2632, %v6538
      %6667 = vst.msk [vmem:[%s520 + $0x1d0] sm:$0xff] %vm2632, %v6539
      %6668 = vst.msk [vmem:[%s520 + $0x1d8] sm:$0xff] %vm2632, %v6540
      %6669 = vst.msk [vmem:[%s520 + $0x1e0] sm:$0xff] %vm2632, %v6541
      %6670 = vst.msk [vmem:[%s520 + $0x1e8] sm:$0xff] %vm2632, %v6542
      %6671 = vst.msk [vmem:[%s520 + $0x1f0] sm:$0xff] %vm2632, %v6543
      %6672 = vst.msk [vmem:[%s520 + $0x1f8] sm:$0xff] %vm2632, %v6544
      %6673 = vst.msk [vmem:[%s520 + $0x200] sm:$0xff] %vm2632, %v6545
      %6674 = vst.msk [vmem:[%s520 + $0x208] sm:$0xff] %vm2632, %v6546
      %6675 = vst.msk [vmem:[%s520 + $0x210] sm:$0xff] %vm2632, %v6547
      %6676 = vst.msk [vmem:[%s520 + $0x218] sm:$0xff] %vm2632, %v6548
      %6677 = vst.msk [vmem:[%s520 + $0x220] sm:$0xff] %vm2632, %v6549
      %6678 = vst.msk [vmem:[%s520 + $0x228] sm:$0xff] %vm2632, %v6550
      %6679 = vst.msk [vmem:[%s520 + $0x230] sm:$0xff] %vm2632, %v6551
      %6680 = vst.msk [vmem:[%s520 + $0x238] sm:$0xff] %vm2632, %v6552
      %6681 = vst.msk [vmem:[%s520 + $0x240] sm:$0xff] %vm2632, %v6553
      %6682 = vst.msk [vmem:[%s520 + $0x248] sm:$0xff] %vm2632, %v6554
      %6683 = vst.msk [vmem:[%s520 + $0x250] sm:$0xff] %vm2632, %v6555
      %6684 = vst.msk [vmem:[%s520 + $0x258] sm:$0xff] %vm2632, %v6556
      %6685 = vst.msk [vmem:[%s520 + $0x260] sm:$0xff] %vm2632, %v6557
      %6686 = vst.msk [vmem:[%s520 + $0x268] sm:$0xff] %vm2632, %v6558
      %6687 = vst.msk [vmem:[%s520 + $0x270] sm:$0xff] %vm2632, %v6559
      %6688 = vst.msk [vmem:[%s520 + $0x278] sm:$0xff] %vm2632, %v6560
      %6689 = vst.msk [vmem:[%s520 + $0x280] sm:$0xff] %vm2632, %v6561
      %6690 = vst.msk [vmem:[%s520 + $0x288] sm:$0xff] %vm2632, %v6562
      %6691 = vst.msk [vmem:[%s520 + $0x290] sm:$0xff] %vm2632, %v6563
      %6692 = vst.msk [vmem:[%s520 + $0x298] sm:$0xff] %vm2632, %v6564
      %6693 = vst.msk [vmem:[%s520 + $0x2a0] sm:$0xff] %vm2632, %v6565
      %6694 = vst.msk [vmem:[%s520 + $0x2a8] sm:$0xff] %vm2632, %v6566
      %6695 = vst.msk [vmem:[%s520 + $0x2b0] sm:$0xff] %vm2632, %v6567
      %6696 = vst.msk [vmem:[%s520 + $0x2b8] sm:$0xff] %vm2632, %v6568
      %6697 = vst.msk [vmem:[%s520 + $0x2c0] sm:$0xff] %vm2632, %v6569
      %6698 = vst.msk [vmem:[%s520 + $0x2c8] sm:$0xff] %vm2632, %v6570
      %6699 = vst.msk [vmem:[%s520 + $0x2d0] sm:$0xff] %vm2632, %v6571
      %6700 = vst.msk [vmem:[%s520 + $0x2d8] sm:$0xff] %vm2632, %v6572
      %6701 = vst.msk [vmem:[%s520 + $0x2e0] sm:$0xff] %vm2632, %v6573
      %6702 = vst.msk [vmem:[%s520 + $0x2e8] sm:$0xff] %vm2632, %v6574
      %6703 = vst.msk [vmem:[%s520 + $0x2f0] sm:$0xff] %vm2632, %v6575
      %6704 = vst.msk [vmem:[%s520 + $0x2f8] sm:$0xff] %vm2632, %v6576
      %6705 = vst.msk [vmem:[%s520 + $0x300] sm:$0xff] %vm2632, %v6577
      %6706 = vst.msk [vmem:[%s520 + $0x308] sm:$0xff] %vm2632, %v6578
      %6707 = vst.msk [vmem:[%s520 + $0x310] sm:$0xff] %vm2632, %v6579
      %6708 = vst.msk [vmem:[%s520 + $0x318] sm:$0xff] %vm2632, %v6580
      %6709 = vst.msk [vmem:[%s520 + $0x320] sm:$0xff] %vm2632, %v6581
      %6710 = vst.msk [vmem:[%s520 + $0x328] sm:$0xff] %vm2632, %v6582
      %6711 = vst.msk [vmem:[%s520 + $0x330] sm:$0xff] %vm2632, %v6583
      %6712 = vst.msk [vmem:[%s520 + $0x338] sm:$0xff] %vm2632, %v6584
      %6713 = vst.msk [vmem:[%s520 + $0x340] sm:$0xff] %vm2632, %v6585
      %6714 = vst.msk [vmem:[%s520 + $0x348] sm:$0xff] %vm2632, %v6586
      %6715 = vst.msk [vmem:[%s520 + $0x350] sm:$0xff] %vm2632, %v6587
      %6716 = vst.msk [vmem:[%s520 + $0x358] sm:$0xff] %vm2632, %v6588
      %6717 = vst.msk [vmem:[%s520 + $0x360] sm:$0xff] %vm2632, %v6589
      %6718 = vst.msk [vmem:[%s520 + $0x368] sm:$0xff] %vm2632, %v6590
      %6719 = vst.msk [vmem:[%s520 + $0x370] sm:$0xff] %vm2632, %v6591
      %6720 = vst.msk [vmem:[%s520 + $0x378] sm:$0xff] %vm2632, %v6592
      %6721 = vst.msk [vmem:[%s520 + $0x380] sm:$0xff] %vm2632, %v6593
      %6722 = vst.msk [vmem:[%s520 + $0x388] sm:$0xff] %vm2632, %v6594
      %6723 = vst.msk [vmem:[%s520 + $0x390] sm:$0xff] %vm2632, %v6595
      %6724 = vst.msk [vmem:[%s520 + $0x398] sm:$0xff] %vm2632, %v6596
      %6725 = vst.msk [vmem:[%s520 + $0x3a0] sm:$0xff] %vm2632, %v6597
      %6726 = vst.msk [vmem:[%s520 + $0x3a8] sm:$0xff] %vm2632, %v6598
      %6727 = vst.msk [vmem:[%s520 + $0x3b0] sm:$0xff] %vm2632, %v6599
      %6728 = vst.msk [vmem:[%s520 + $0x3b8] sm:$0xff] %vm2632, %v6600
      %6729 = vst.msk [vmem:[%s520 + $0x3c0] sm:$0xff] %vm2632, %v6601
      %6730 = vst.msk [vmem:[%s520 + $0x3c8] sm:$0xff] %vm2632, %v6602
      %6731 = vst.msk [vmem:[%s520 + $0x3d0] sm:$0xff] %vm2632, %v6603
      %6732 = vst.msk [vmem:[%s520 + $0x3d8] sm:$0xff] %vm2632, %v6604
      %6733 = vst.msk [vmem:[%s520 + $0x3e0] sm:$0xff] %vm2632, %v6605
      %6734 = vst.msk [vmem:[%s520 + $0x3e8] sm:$0xff] %vm2632, %v6606
      %6735 = vst.msk [vmem:[%s520 + $0x3f0] sm:$0xff] %vm2632, %v6607
      %6736 = vst.msk [vmem:[%s520 + $0x3f8] sm:$0xff] %vm2632, %v6608
      %p6737 = scmp.lt.s32.totalorder %s24, 1
      %s6738 = scalar_select %p6737, %s24, 1
      %s6739 = smul.addr %s6738, 128
      %s6740 = smul.addr %s6739, 8
      %s6741 = scalar_lea.vmem %s13, %s6740
      // Predicated region
      $region73: #{unet_decoder_forward.1} parent=71 // pred_check
        %p6742 = pneg %p340
      $region74: #{unet_decoder_forward.1} parent=71 // pred_check_branch
        %6744 = sbr.rel (%p6742) target = $region76
      $region75: #{unet_decoder_forward.1} parent=71 // pred_region
        _
      $region76: #{unet_decoder_forward.1} parent=71 // pred_fallthru
        _
    $region72: #{unet_decoder_forward.1} parent=5 // pred_fallthru
      _
    %p6745 = scmp.le.s32.totalorder 2, %s19
    // Predicated region
    $region77: #{unet_decoder_forward.1} parent=5 // pred_check
      %p6746 = pneg %p6745
    $region78: #{unet_decoder_forward.1} parent=5 // pred_check_branch
      %6748 = sbr.rel (%p6746) target = $region80
    $region79: #{unet_decoder_forward.1} parent=5 // pred_region
      %s6749 = ssub.s32 %s19, 2
      // Predicated region
      $region81: #{unet_decoder_forward.1} parent=79 // pred_check
        %p6750 = pneg %p346
      $region82: #{unet_decoder_forward.1} parent=79 // pred_check_branch
        %6752 = sbr.rel (%p6750) target = $region84
      $region83: #{unet_decoder_forward.1} parent=79 // pred_region
        %p6753 = scmp.lt.s32.totalorder %s25, 1
        %s6754 = scalar_select %p6753, %s25, 1
        %s6755 = smul.addr %s6754, 128
        %s6756 = smul.addr %s6755, 8
        %s6757 = scalar_lea.vmem %s13, %s6756
      $region84: #{unet_decoder_forward.1} parent=79 // pred_fallthru
        _
    $region80: #{unet_decoder_forward.1} parent=5 // pred_fallthru
      _
  $region6: #{unet_decoder_forward.1} parent=0 // loop_footer
    %s23 = sadd.s32 1, %s19
  $region7: #{unet_decoder_forward.1} parent=0 // loop_footer_branch
    %18 = sbr.rel target = $region3
  $region8: #{unet_decoder_forward.1} parent=0 // loop_exit
    _

</llo_original>
